<compile_context>
chip_gen: v7x
topology: tpu7x:2x2x1
jax: 0.10.0
libtpu: 0.0.40
codegen_flags: <defaults>
</compile_context>

<pallas_src>
import functools

import jax
import jax.numpy as jnp
import numpy as np
from jax.experimental import pallas as pl
from jax.experimental.pallas import tpu as pltpu

_CP = 8   # channel dim padded to one sublane tile (real channels: 6, last layer: 1)
_H0 = 4   # spatial size after view(B, 6, 4, 4)

_LAYER_DEFS = (
    # name,  K, stride, pad, Cin, Cout, activation
    ("c1a", 3, 3, 0, 6, 6, "relu"),
    ("c1b", 5, 2, 1, 6, 6, "relu"),
    ("c2a", 5, 1, 1, 6, 6, "relu"),
    ("c2b", 4, 1, 1, 6, 6, "relu"),
    ("c3a", 3, 1, 1, 6, 6, "relu"),
    ("c3b", 3, 1, 1, 6, 1, "tanh"),
)


def _make_plan(h0=_H0, w0=_H0):
    plan = []
    H, W = h0, w0
    for name, K, s, p, cin, cout, act in _LAYER_DEFS:
        e = K - 1 - p                       # edge padding of the dilated input
        Hp = (H - 1) * s + 1 + 2 * e        # dilated + padded height
        Wp = (W - 1) * s + 1 + 2 * e        # dilated + padded width
        Ho = (H - 1) * s - 2 * p + K        # ConvTranspose2d output size
        Wo = (W - 1) * s - 2 * p + K
        plan.append(dict(name=name, K=K, s=s, p=p, e=e, cin=cin, cout=cout,
                         act=act, H=H, W=W, Hp=Hp, Wp=Wp, Ho=Ho, Wo=Wo))
        H, W = Ho, Wo
    return tuple(plan)


# ------------------------------ fused kernel --------------------------------

def _decoder_kernel(plan, bt, x_ref, w1_ref, b1_ref, w2_ref, b2_ref, *refs):
    o_ref = refs[-1]
    conv_refs = refs[:-1]

    # ---- layerIn: Linear -> ReLU -> Linear, batched over the whole tile.
    # x is pre-transposed on the host: (latent, bt), batch on lanes.
    xT = x_ref[0]
    h1 = jnp.dot(w1_ref[...], xT, preferred_element_type=jnp.float32) + b1_ref[...]
    h1 = jnp.maximum(h1, 0.0)                                              # (96, bt)
    h2 = jnp.dot(w2_ref[...], h1, preferred_element_type=jnp.float32) + b2_ref[...]  # (128, bt)

    # ---- unpack to the conv layout.  w2/b2 were permuted / zero-padded on the
    # host so row (w*32 + h*8 + c) of h2 already holds activation [c, h, w];
    # 4 static row slices + 1 lane concat give (H*8, W*bt) with lane = w*bt + b.
    a = jnp.concatenate([h2[w * 32:(w + 1) * 32, :] for w in range(_H0)], axis=1)

    # ---- six ConvTranspose2d layers, fully in VMEM / registers.
    for li, cfg in enumerate(plan):
        pw_ref, wh_ref, b_ref = conv_refs[3 * li: 3 * li + 3]
        K = cfg["K"]
        nvalid = cfg["Wo"] * bt

        # (a) W-axis dilation + zero padding: ONE un-broadcast 0/1 placement matmul.
        xw = jnp.dot(a, pw_ref[...], preferred_element_type=jnp.float32)   # (Hin*8, Wp*bt)

        # (b) the transposed conv: K matmuls against block-banded weight matrices
        #     (H dilation/padding and the kh-sum folded in on the host); kw offsets
        #     are static lane-offset slices of xw, accumulated in f32.
        y = jnp.dot(wh_ref[0], xw[:, :nvalid], preferred_element_type=jnp.float32)
        for kw in range(1, K):
            y = y + jnp.dot(wh_ref[kw], xw[:, kw * bt: kw * bt + nvalid],
                            preferred_element_type=jnp.float32)
        y = y + b_ref[...]                                                 # (Ho*8, 1) bias
        a = jnp.maximum(y, 0.0) if cfg["act"] == "relu" else jnp.tanh(y)

    o_ref[0] = a                                   # packed (28*8, 28*bt) output slab


# ------------------------------ host-side prep ------------------------------

def _prep_inputs(params, plan, bt):
    cp = _CP
    w1T = params["w1"].T.astype(jnp.float32)                     # (96, latent)
    b1c = params["b1"].reshape(-1, 1).astype(jnp.float32)        # (96, 1)

    # Fold the view(B,6,4,4) reordering + 6->8 channel zero-pad into w2 / b2:
    # output row r = w*32 + h*8 + c  <-  original column c*16 + h*4 + w (c < 6).
    src = np.zeros(_H0 * cp * _H0, np.int32)
    msk = np.zeros(_H0 * cp * _H0, np.float32)
    for w in range(_H0):
        for h in range(_H0):
            for c in range(6):
                r = w * 32 + h * 8 + c
                src[r] = c * 16 + h * 4 + w
                msk[r] = 1.0
    w2T = params["w2"].T.astype(jnp.float32)                     # (96, 96)
    w2Tp = jnp.take(w2T, jnp.asarray(src), axis=0) * jnp.asarray(msk)[:, None]   # (128, 96)
    b2f = params["b2"].reshape(-1).astype(jnp.float32)
    b2c = (jnp.take(b2f, jnp.asarray(src)) * jnp.asarray(msk))[:, None]          # (128, 1)

    inputs = [w1T, b1c, w2Tp, b2c]

    for cfg in plan:
        w = params[cfg["name"] + "_w"].astype(jnp.float32)       # (Cin, Cout, K, K)
        b = params[cfg["name"] + "_b"].astype(jnp.float32)       # (Cout,)
        cin, cout, K, _ = w.shape
        H, W, Wp, Ho, Wo = cfg["H"], cfg["W"], cfg["Wp"], cfg["Ho"], cfg["Wo"]
        s, e = cfg["s"], cfg["e"]

        # ConvTranspose2d == correlation with spatially flipped, channel-swapped w.
        wf = jnp.transpose(jnp.flip(w, axis=(2, 3)), (1, 0, 2, 3))          # (Cout,Cin,K,K)
        wf8 = jnp.zeros((cp, cp, K, K), jnp.float32).at[:cout, :cin].set(wf)

        # WH[kw]: (Ho*8, H*8) block-banded matrices folding the H-axis dilation,
        # padding and the kh contraction:  kh = e + h*s - ho.
        S = np.zeros((Ho, H, K), np.float32)
        for ho in range(Ho):
            for h in range(H):
                kh = e + h * s - ho
                if 0 <= kh < K:
                    S[ho, h, kh] = 1.0
        WH = jnp.einsum("ahk,cdkw->wachd", jnp.asarray(S), wf8)             # (K,Ho,8,H,8)
        WH = WH.reshape(K, Ho * cp, H * cp)

        # PW: 0/1 lane placement (W-axis dilation + zero padding), batch-aware.
        PW = np.zeros((W * bt, Wp * bt), np.float32)
        for w_ in range(W):
            for b_ in range(bt):
                PW[w_ * bt + b_, (e + w_ * s) * bt + b_] = 1.0

        bcol = jnp.tile(jnp.zeros((cp,), jnp.float32).at[:cout].set(b), Ho)[:, None]

        inputs += [jnp.asarray(PW), WH, bcol]
    return inputs


def decoder_forward(params, x):
    B, latent = x.shape
    bt = min(4, B)                                   # lane budget: Wp_max * bt <= 128
    G = -(-B // bt)                                  # ceil
    Bp = G * bt

    xp = jnp.zeros((Bp, latent), jnp.float32).at[:B, :].set(x.astype(jnp.float32))
    xTg = jnp.transpose(xp.reshape(G, bt, latent), (0, 2, 1))     # (G, latent, bt)

    plan = _make_plan()
    weights = _prep_inputs(params, plan, bt)
    inputs = [xTg] + weights

    in_specs = [pl.BlockSpec((1, latent, bt), lambda g: (g, 0, 0))]
    in_specs += [pl.BlockSpec(w.shape, lambda g, n=w.ndim: (0,) * n) for w in weights]

    ho_last, wo_last = plan[-1]["Ho"], plan[-1]["Wo"]
    out = pl.pallas_call(
        functools.partial(_decoder_kernel, plan, bt),
        out_shape=jax.ShapeDtypeStruct((G, ho_last * _CP, wo_last * bt), jnp.float32),
        grid=(G,),
        in_specs=in_specs,
        out_specs=pl.BlockSpec((1, ho_last * _CP, wo_last * bt), lambda g: (g, 0, 0)),
        compiler_params=pltpu.CompilerParams(dimension_semantics=("parallel",)),
    )(*inputs)

    # De-interleave the packed output: rows = ho*8 + co (channel 0 valid),
    # lanes = wo*bt + b.  Cheap XLA ops on tiny data, outside the kernel.
    y = out.reshape(G, ho_last, _CP, wo_last, bt)[:, :, 0, :, :]   # (G, 28, 28, bt)
    y = jnp.transpose(y, (0, 3, 1, 2)).reshape(Bp, 1, ho_last, wo_last)
    return y[:B]


# --------------------------- pure-JAX reference -----------------------------

def _convT_ref(x, w, b, stride, padding):
    wt = jnp.transpose(jnp.flip(w, axis=(2, 3)), (1, 0, 2, 3))
    pd = w.shape[2] - 1 - padding
    y = jax.lax.conv_general_dilated(
        x, wt, window_strides=(1, 1), padding=[(pd, pd), (pd, pd)],
        lhs_dilation=(stride, stride),
        dimension_numbers=("NCHW", "OIHW", "NCHW"))
    return y + b[None, :, None, None]


def decoder_ref(params, x):
    h = jnp.maximum(x @ params["w1"] + params["b1"], 0.0)
    h = h @ params["w2"] + params["b2"]
    h = h.reshape(h.shape[0], 6, 4, 4)
    h = jnp.maximum(_convT_ref(h, params["c1a_w"], params["c1a_b"], 3, 0), 0.0)
    h = jnp.maximum(_convT_ref(h, params["c1b_w"], params["c1b_b"], 2, 1), 0.0)
    h = jnp.maximum(_convT_ref(h, params["c2a_w"], params["c2a_b"], 1, 1), 0.0)
    h = jnp.maximum(_convT_ref(h, params["c2b_w"], params["c2b_b"], 1, 1), 0.0)
    h = jnp.maximum(_convT_ref(h, params["c3a_w"], params["c3a_b"], 1, 1), 0.0)
    h = jnp.tanh(_convT_ref(h, params["c3b_w"], params["c3b_b"], 1, 1))
    return h


# ------------------------------- parameters ---------------------------------

def init_params(key, latent=10):
    ks = jax.random.split(key, 16)

    def w(i, shape, scale):
        return (jax.random.normal(ks[i], shape) * scale).astype(jnp.float32)

    return {
        "w1": w(0, (latent, 96), 0.2), "b1": w(1, (1, 96), 0.1),
        "w2": w(2, (96, 96), 0.1),     "b2": w(3, (1, 96), 0.1),
        # ConvTranspose2d weights in PyTorch layout (Cin, Cout, KH, KW)
        "c1a_w": w(4, (6, 6, 3, 3), 0.15), "c1a_b": w(5, (6,), 0.05),
        "c1b_w": w(6, (6, 6, 5, 5), 0.10), "c1b_b": w(7, (6,), 0.05),
        "c2a_w": w(8, (6, 6, 5, 5), 0.10), "c2a_b": w(9, (6,), 0.05),
        "c2b_w": w(10, (6, 6, 4, 4), 0.12), "c2b_b": w(11, (6,), 0.05),
        "c3a_w": w(12, (6, 6, 3, 3), 0.15), "c3a_b": w(13, (6,), 0.05),
        "c3b_w": w(14, (6, 1, 3, 3), 0.15), "c3b_b": w(15, (1,), 0.05),
    }


if __name__ == "__main__":
    key = jax.random.PRNGKey(0)
    pkey, xkey = jax.random.split(key)
    params = init_params(pkey, latent=10)

    # primary test: batch = 2 (single grid step, batch packed on lanes)
    x = jax.random.normal(xkey, (2, 10), dtype=jnp.float32)   # (batch, latentSize)
    out = jax.block_until_ready(jax.jit(decoder_forward)(params, x))
    assert out.shape == (2, 1, 28, 28), out.shape
    ref = decoder_ref(params, x)
    np.testing.assert_allclose(np.asarray(out), np.asarray(ref), rtol=1e-3, atol=1e-3)

    # second test: batch = 6 -> tile of 4, padded batch, grid of 2 steps
    x2 = jax.random.normal(jax.random.PRNGKey(1), (6, 10), dtype=jnp.float32)
    out2 = jax.block_until_ready(jax.jit(decoder_forward)(params, x2))
    assert out2.shape == (6, 1, 28, 28), out2.shape
    ref2 = decoder_ref(params, x2)
    np.testing.assert_allclose(np.asarray(out2), np.asarray(ref2), rtol=1e-3, atol=1e-3)

    print("KERNEL_OK")
</pallas_src>

<mosaic_0001>
module attributes {stable_mosaic.version = 11 : i64} {
  func.func @_decoder_kernel(%arg0: i32, %arg1: memref<1x10x2xf32, #tpu.memory_space<vmem>>, %arg2: memref<96x10xf32, #tpu.memory_space<vmem>>, %arg3: memref<96x1xf32, #tpu.memory_space<vmem>>, %arg4: memref<128x96xf32, #tpu.memory_space<vmem>>, %arg5: memref<128x1xf32, #tpu.memory_space<vmem>>, %arg6: memref<8x28xf32, #tpu.memory_space<vmem>>, %arg7: memref<3x96x32xf32, #tpu.memory_space<vmem>>, %arg8: memref<96x1xf32, #tpu.memory_space<vmem>>, %arg9: memref<24x58xf32, #tpu.memory_space<vmem>>, %arg10: memref<5x200x96xf32, #tpu.memory_space<vmem>>, %arg11: memref<200x1xf32, #tpu.memory_space<vmem>>, %arg12: memref<50x62xf32, #tpu.memory_space<vmem>>, %arg13: memref<5x216x200xf32, #tpu.memory_space<vmem>>, %arg14: memref<216x1xf32, #tpu.memory_space<vmem>>, %arg15: memref<54x62xf32, #tpu.memory_space<vmem>>, %arg16: memref<4x224x216xf32, #tpu.memory_space<vmem>>, %arg17: memref<224x1xf32, #tpu.memory_space<vmem>>, %arg18: memref<56x60xf32, #tpu.memory_space<vmem>>, %arg19: memref<3x224x224xf32, #tpu.memory_space<vmem>>, %arg20: memref<224x1xf32, #tpu.memory_space<vmem>>, %arg21: memref<56x60xf32, #tpu.memory_space<vmem>>, %arg22: memref<3x224x224xf32, #tpu.memory_space<vmem>>, %arg23: memref<224x1xf32, #tpu.memory_space<vmem>>, %arg24: memref<1x224x56xf32, #tpu.memory_space<vmem>>) attributes {dimension_semantics = [#tpu.dimension_semantics<parallel>], iteration_bounds = array<i64: 1>, scalar_prefetch = 0 : i64, scratch_operands = 0 : i64, tpu.core_type = #tpu.core_type<tc>, window_params = [{transform_indices = @transform_0, window_bounds = array<i64: 1, 10, 2>}, {pipeline_mode = #tpu.pipeline_mode<synchronous>, transform_indices = @transform_1, window_bounds = array<i64: 96, 10>}, {pipeline_mode = #tpu.pipeline_mode<synchronous>, transform_indices = @transform_2, window_bounds = array<i64: 96, 1>}, {pipeline_mode = #tpu.pipeline_mode<synchronous>, transform_indices = @transform_3, window_bounds = array<i64: 128, 96>}, {pipeline_mode = #tpu.pipeline_mode<synchronous>, transform_indices = @transform_4, window_bounds = array<i64: 128, 1>}, {pipeline_mode = #tpu.pipeline_mode<synchronous>, transform_indices = @transform_5, window_bounds = array<i64: 8, 28>}, {pipeline_mode = #tpu.pipeline_mode<synchronous>, transform_indices = @transform_6, window_bounds = array<i64: 3, 96, 32>}, {pipeline_mode = #tpu.pipeline_mode<synchronous>, transform_indices = @transform_7, window_bounds = array<i64: 96, 1>}, {pipeline_mode = #tpu.pipeline_mode<synchronous>, transform_indices = @transform_8, window_bounds = array<i64: 24, 58>}, {pipeline_mode = #tpu.pipeline_mode<synchronous>, transform_indices = @transform_9, window_bounds = array<i64: 5, 200, 96>}, {pipeline_mode = #tpu.pipeline_mode<synchronous>, transform_indices = @transform_10, window_bounds = array<i64: 200, 1>}, {pipeline_mode = #tpu.pipeline_mode<synchronous>, transform_indices = @transform_11, window_bounds = array<i64: 50, 62>}, {pipeline_mode = #tpu.pipeline_mode<synchronous>, transform_indices = @transform_12, window_bounds = array<i64: 5, 216, 200>}, {pipeline_mode = #tpu.pipeline_mode<synchronous>, transform_indices = @transform_13, window_bounds = array<i64: 216, 1>}, {pipeline_mode = #tpu.pipeline_mode<synchronous>, transform_indices = @transform_14, window_bounds = array<i64: 54, 62>}, {pipeline_mode = #tpu.pipeline_mode<synchronous>, transform_indices = @transform_15, window_bounds = array<i64: 4, 224, 216>}, {pipeline_mode = #tpu.pipeline_mode<synchronous>, transform_indices = @transform_16, window_bounds = array<i64: 224, 1>}, {pipeline_mode = #tpu.pipeline_mode<synchronous>, transform_indices = @transform_17, window_bounds = array<i64: 56, 60>}, {pipeline_mode = #tpu.pipeline_mode<synchronous>, transform_indices = @transform_18, window_bounds = array<i64: 3, 224, 224>}, {pipeline_mode = #tpu.pipeline_mode<synchronous>, transform_indices = @transform_19, window_bounds = array<i64: 224, 1>}, {pipeline_mode = #tpu.pipeline_mode<synchronous>, transform_indices = @transform_20, window_bounds = array<i64: 56, 60>}, {pipeline_mode = #tpu.pipeline_mode<synchronous>, transform_indices = @transform_21, window_bounds = array<i64: 3, 224, 224>}, {pipeline_mode = #tpu.pipeline_mode<synchronous>, transform_indices = @transform_22, window_bounds = array<i64: 224, 1>}, {transform_indices = @transform_23, window_bounds = array<i64: 1, 224, 56>}]} {
    %c0 = arith.constant 0 : index
    %c0_0 = arith.constant 0 : index
    %c0_1 = arith.constant 0 : index
    %0 = vector.load %arg1[%c0, %c0_0, %c0_1] : memref<1x10x2xf32, #tpu.memory_space<vmem>>, vector<1x10x2xf32>
    %1 = vector.shape_cast %0 : vector<1x10x2xf32> to vector<10x2xf32>
    %c0_2 = arith.constant 0 : index
    %c0_3 = arith.constant 0 : index
    %2 = vector.load %arg2[%c0_2, %c0_3] : memref<96x10xf32, #tpu.memory_space<vmem>>, vector<96x10xf32>
    %cst = arith.constant dense<0.000000e+00> : vector<96x2xf32>
    %3 = tpu.matmul %2, %1, %cst {dimension_numbers = #tpu.dot_dimension_numbers<[1], [0], [0], [1], [0, 0, 1, 1], [], []>} : vector<96x10xf32>, vector<10x2xf32>, vector<96x2xf32> -> vector<96x2xf32>
    %c0_4 = arith.constant 0 : index
    %c0_5 = arith.constant 0 : index
    %4 = vector.load %arg3[%c0_4, %c0_5] : memref<96x1xf32, #tpu.memory_space<vmem>>, vector<96x1xf32>
    %5 = vector.broadcast %4 : vector<96x1xf32> to vector<96x2xf32>
    %6 = arith.addf %3, %5 : vector<96x2xf32>
    %cst_6 = arith.constant 0.000000e+00 : f32
    %7 = vector.broadcast %cst_6 : f32 to vector<96x2xf32>
    %8 = arith.maximumf %6, %7 : vector<96x2xf32>
    %c0_7 = arith.constant 0 : index
    %c0_8 = arith.constant 0 : index
    %9 = vector.load %arg4[%c0_7, %c0_8] : memref<128x96xf32, #tpu.memory_space<vmem>>, vector<128x96xf32>
    %cst_9 = arith.constant dense<0.000000e+00> : vector<128x2xf32>
    %10 = tpu.matmul %9, %8, %cst_9 {dimension_numbers = #tpu.dot_dimension_numbers<[1], [0], [0], [1], [0, 0, 1, 1], [], []>} : vector<128x96xf32>, vector<96x2xf32>, vector<128x2xf32> -> vector<128x2xf32>
    %c0_10 = arith.constant 0 : index
    %c0_11 = arith.constant 0 : index
    %11 = vector.load %arg5[%c0_10, %c0_11] : memref<128x1xf32, #tpu.memory_space<vmem>>, vector<128x1xf32>
    %12 = vector.broadcast %11 : vector<128x1xf32> to vector<128x2xf32>
    %13 = arith.addf %10, %12 : vector<128x2xf32>
    %14 = vector.extract_strided_slice %13 {offsets = [0, 0], sizes = [32, 2], strides = [1, 1]} : vector<128x2xf32> to vector<32x2xf32>
    %15 = vector.extract_strided_slice %13 {offsets = [32, 0], sizes = [32, 2], strides = [1, 1]} : vector<128x2xf32> to vector<32x2xf32>
    %16 = vector.extract_strided_slice %13 {offsets = [64, 0], sizes = [32, 2], strides = [1, 1]} : vector<128x2xf32> to vector<32x2xf32>
    %17 = vector.extract_strided_slice %13 {offsets = [96, 0], sizes = [32, 2], strides = [1, 1]} : vector<128x2xf32> to vector<32x2xf32>
    %18 = tpu.concatenate %14, %15, %16, %17 in 1 : vector<32x2xf32>, vector<32x2xf32>, vector<32x2xf32>, vector<32x2xf32> -> vector<32x8xf32>
    %c0_12 = arith.constant 0 : index
    %c0_13 = arith.constant 0 : index
    %19 = vector.load %arg6[%c0_12, %c0_13] : memref<8x28xf32, #tpu.memory_space<vmem>>, vector<8x28xf32>
    %cst_14 = arith.constant dense<0.000000e+00> : vector<32x28xf32>
    %20 = tpu.matmul %18, %19, %cst_14 {dimension_numbers = #tpu.dot_dimension_numbers<[1], [0], [0], [1], [0, 0, 1, 1], [], []>} : vector<32x8xf32>, vector<8x28xf32>, vector<32x28xf32> -> vector<32x28xf32>
    %c0_15 = arith.constant 0 : index
    %c0_16 = arith.constant 0 : index
    %c0_17 = arith.constant 0 : index
    %21 = vector.load %arg7[%c0_15, %c0_16, %c0_17] : memref<3x96x32xf32, #tpu.memory_space<vmem>>, vector<1x96x32xf32>
    %22 = vector.shape_cast %21 : vector<1x96x32xf32> to vector<96x32xf32>
    %23 = vector.extract_strided_slice %20 {offsets = [0, 0], sizes = [32, 24], strides = [1, 1]} : vector<32x28xf32> to vector<32x24xf32>
    %cst_18 = arith.constant dense<0.000000e+00> : vector<96x24xf32>
    %24 = tpu.matmul %22, %23, %cst_18 {dimension_numbers = #tpu.dot_dimension_numbers<[1], [0], [0], [1], [0, 0, 1, 1], [], []>} : vector<96x32xf32>, vector<32x24xf32>, vector<96x24xf32> -> vector<96x24xf32>
    %c1 = arith.constant 1 : index
    %c0_19 = arith.constant 0 : index
    %c0_20 = arith.constant 0 : index
    %25 = vector.load %arg7[%c1, %c0_19, %c0_20] : memref<3x96x32xf32, #tpu.memory_space<vmem>>, vector<1x96x32xf32>
    %26 = vector.shape_cast %25 : vector<1x96x32xf32> to vector<96x32xf32>
    %27 = vector.extract_strided_slice %20 {offsets = [0, 2], sizes = [32, 24], strides = [1, 1]} : vector<32x28xf32> to vector<32x24xf32>
    %cst_21 = arith.constant dense<0.000000e+00> : vector<96x24xf32>
    %28 = tpu.matmul %26, %27, %cst_21 {dimension_numbers = #tpu.dot_dimension_numbers<[1], [0], [0], [1], [0, 0, 1, 1], [], []>} : vector<96x32xf32>, vector<32x24xf32>, vector<96x24xf32> -> vector<96x24xf32>
    %29 = arith.addf %24, %28 : vector<96x24xf32>
    %c2 = arith.constant 2 : index
    %c0_22 = arith.constant 0 : index
    %c0_23 = arith.constant 0 : index
    %30 = vector.load %arg7[%c2, %c0_22, %c0_23] : memref<3x96x32xf32, #tpu.memory_space<vmem>>, vector<1x96x32xf32>
    %31 = vector.shape_cast %30 : vector<1x96x32xf32> to vector<96x32xf32>
    %32 = vector.extract_strided_slice %20 {offsets = [0, 4], sizes = [32, 24], strides = [1, 1]} : vector<32x28xf32> to vector<32x24xf32>
    %cst_24 = arith.constant dense<0.000000e+00> : vector<96x24xf32>
    %33 = tpu.matmul %31, %32, %cst_24 {dimension_numbers = #tpu.dot_dimension_numbers<[1], [0], [0], [1], [0, 0, 1, 1], [], []>} : vector<96x32xf32>, vector<32x24xf32>, vector<96x24xf32> -> vector<96x24xf32>
    %34 = arith.addf %29, %33 : vector<96x24xf32>
    %c0_25 = arith.constant 0 : index
    %c0_26 = arith.constant 0 : index
    %35 = vector.load %arg8[%c0_25, %c0_26] : memref<96x1xf32, #tpu.memory_space<vmem>>, vector<96x1xf32>
    %36 = vector.broadcast %35 : vector<96x1xf32> to vector<96x24xf32>
    %37 = arith.addf %34, %36 : vector<96x24xf32>
    %cst_27 = arith.constant 0.000000e+00 : f32
    %38 = vector.broadcast %cst_27 : f32 to vector<96x24xf32>
    %39 = arith.maximumf %37, %38 : vector<96x24xf32>
    %c0_28 = arith.constant 0 : index
    %c0_29 = arith.constant 0 : index
    %40 = vector.load %arg9[%c0_28, %c0_29] : memref<24x58xf32, #tpu.memory_space<vmem>>, vector<24x58xf32>
    %cst_30 = arith.constant dense<0.000000e+00> : vector<96x58xf32>
    %41 = tpu.matmul %39, %40, %cst_30 {dimension_numbers = #tpu.dot_dimension_numbers<[1], [0], [0], [1], [0, 0, 1, 1], [], []>} : vector<96x24xf32>, vector<24x58xf32>, vector<96x58xf32> -> vector<96x58xf32>
    %c0_31 = arith.constant 0 : index
    %c0_32 = arith.constant 0 : index
    %c0_33 = arith.constant 0 : index
    %42 = vector.load %arg10[%c0_31, %c0_32, %c0_33] : memref<5x200x96xf32, #tpu.memory_space<vmem>>, vector<1x200x96xf32>
    %43 = vector.shape_cast %42 : vector<1x200x96xf32> to vector<200x96xf32>
    %44 = vector.extract_strided_slice %41 {offsets = [0, 0], sizes = [96, 50], strides = [1, 1]} : vector<96x58xf32> to vector<96x50xf32>
    %cst_34 = arith.constant dense<0.000000e+00> : vector<200x50xf32>
    %45 = tpu.matmul %43, %44, %cst_34 {dimension_numbers = #tpu.dot_dimension_numbers<[1], [0], [0], [1], [0, 0, 1, 1], [], []>} : vector<200x96xf32>, vector<96x50xf32>, vector<200x50xf32> -> vector<200x50xf32>
    %c1_35 = arith.constant 1 : index
    %c0_36 = arith.constant 0 : index
    %c0_37 = arith.constant 0 : index
    %46 = vector.load %arg10[%c1_35, %c0_36, %c0_37] : memref<5x200x96xf32, #tpu.memory_space<vmem>>, vector<1x200x96xf32>
    %47 = vector.shape_cast %46 : vector<1x200x96xf32> to vector<200x96xf32>
    %48 = vector.extract_strided_slice %41 {offsets = [0, 2], sizes = [96, 50], strides = [1, 1]} : vector<96x58xf32> to vector<96x50xf32>
    %cst_38 = arith.constant dense<0.000000e+00> : vector<200x50xf32>
    %49 = tpu.matmul %47, %48, %cst_38 {dimension_numbers = #tpu.dot_dimension_numbers<[1], [0], [0], [1], [0, 0, 1, 1], [], []>} : vector<200x96xf32>, vector<96x50xf32>, vector<200x50xf32> -> vector<200x50xf32>
    %50 = arith.addf %45, %49 : vector<200x50xf32>
    %c2_39 = arith.constant 2 : index
    %c0_40 = arith.constant 0 : index
    %c0_41 = arith.constant 0 : index
    %51 = vector.load %arg10[%c2_39, %c0_40, %c0_41] : memref<5x200x96xf32, #tpu.memory_space<vmem>>, vector<1x200x96xf32>
    %52 = vector.shape_cast %51 : vector<1x200x96xf32> to vector<200x96xf32>
    %53 = vector.extract_strided_slice %41 {offsets = [0, 4], sizes = [96, 50], strides = [1, 1]} : vector<96x58xf32> to vector<96x50xf32>
    %cst_42 = arith.constant dense<0.000000e+00> : vector<200x50xf32>
    %54 = tpu.matmul %52, %53, %cst_42 {dimension_numbers = #tpu.dot_dimension_numbers<[1], [0], [0], [1], [0, 0, 1, 1], [], []>} : vector<200x96xf32>, vector<96x50xf32>, vector<200x50xf32> -> vector<200x50xf32>
    %55 = arith.addf %50, %54 : vector<200x50xf32>
    %c3 = arith.constant 3 : index
    %c0_43 = arith.constant 0 : index
    %c0_44 = arith.constant 0 : index
    %56 = vector.load %arg10[%c3, %c0_43, %c0_44] : memref<5x200x96xf32, #tpu.memory_space<vmem>>, vector<1x200x96xf32>
    %57 = vector.shape_cast %56 : vector<1x200x96xf32> to vector<200x96xf32>
    %58 = vector.extract_strided_slice %41 {offsets = [0, 6], sizes = [96, 50], strides = [1, 1]} : vector<96x58xf32> to vector<96x50xf32>
    %cst_45 = arith.constant dense<0.000000e+00> : vector<200x50xf32>
    %59 = tpu.matmul %57, %58, %cst_45 {dimension_numbers = #tpu.dot_dimension_numbers<[1], [0], [0], [1], [0, 0, 1, 1], [], []>} : vector<200x96xf32>, vector<96x50xf32>, vector<200x50xf32> -> vector<200x50xf32>
    %60 = arith.addf %55, %59 : vector<200x50xf32>
    %c4 = arith.constant 4 : index
    %c0_46 = arith.constant 0 : index
    %c0_47 = arith.constant 0 : index
    %61 = vector.load %arg10[%c4, %c0_46, %c0_47] : memref<5x200x96xf32, #tpu.memory_space<vmem>>, vector<1x200x96xf32>
    %62 = vector.shape_cast %61 : vector<1x200x96xf32> to vector<200x96xf32>
    %63 = vector.extract_strided_slice %41 {offsets = [0, 8], sizes = [96, 50], strides = [1, 1]} : vector<96x58xf32> to vector<96x50xf32>
    %cst_48 = arith.constant dense<0.000000e+00> : vector<200x50xf32>
    %64 = tpu.matmul %62, %63, %cst_48 {dimension_numbers = #tpu.dot_dimension_numbers<[1], [0], [0], [1], [0, 0, 1, 1], [], []>} : vector<200x96xf32>, vector<96x50xf32>, vector<200x50xf32> -> vector<200x50xf32>
    %65 = arith.addf %60, %64 : vector<200x50xf32>
    %c0_49 = arith.constant 0 : index
    %c0_50 = arith.constant 0 : index
    %66 = vector.load %arg11[%c0_49, %c0_50] : memref<200x1xf32, #tpu.memory_space<vmem>>, vector<200x1xf32>
    %67 = vector.broadcast %66 : vector<200x1xf32> to vector<200x50xf32>
    %68 = arith.addf %65, %67 : vector<200x50xf32>
    %cst_51 = arith.constant 0.000000e+00 : f32
    %69 = vector.broadcast %cst_51 : f32 to vector<200x50xf32>
    %70 = arith.maximumf %68, %69 : vector<200x50xf32>
    %c0_52 = arith.constant 0 : index
    %c0_53 = arith.constant 0 : index
    %71 = vector.load %arg12[%c0_52, %c0_53] : memref<50x62xf32, #tpu.memory_space<vmem>>, vector<50x62xf32>
    %cst_54 = arith.constant dense<0.000000e+00> : vector<200x62xf32>
    %72 = tpu.matmul %70, %71, %cst_54 {dimension_numbers = #tpu.dot_dimension_numbers<[1], [0], [0], [1], [0, 0, 1, 1], [], []>} : vector<200x50xf32>, vector<50x62xf32>, vector<200x62xf32> -> vector<200x62xf32>
    %c0_55 = arith.constant 0 : index
    %c0_56 = arith.constant 0 : index
    %c0_57 = arith.constant 0 : index
    %73 = vector.load %arg13[%c0_55, %c0_56, %c0_57] : memref<5x216x200xf32, #tpu.memory_space<vmem>>, vector<1x216x200xf32>
    %74 = vector.shape_cast %73 : vector<1x216x200xf32> to vector<216x200xf32>
    %75 = vector.extract_strided_slice %72 {offsets = [0, 0], sizes = [200, 54], strides = [1, 1]} : vector<200x62xf32> to vector<200x54xf32>
    %cst_58 = arith.constant dense<0.000000e+00> : vector<216x54xf32>
    %76 = tpu.matmul %74, %75, %cst_58 {dimension_numbers = #tpu.dot_dimension_numbers<[1], [0], [0], [1], [0, 0, 1, 1], [], []>} : vector<216x200xf32>, vector<200x54xf32>, vector<216x54xf32> -> vector<216x54xf32>
    %c1_59 = arith.constant 1 : index
    %c0_60 = arith.constant 0 : index
    %c0_61 = arith.constant 0 : index
    %77 = vector.load %arg13[%c1_59, %c0_60, %c0_61] : memref<5x216x200xf32, #tpu.memory_space<vmem>>, vector<1x216x200xf32>
    %78 = vector.shape_cast %77 : vector<1x216x200xf32> to vector<216x200xf32>
    %79 = vector.extract_strided_slice %72 {offsets = [0, 2], sizes = [200, 54], strides = [1, 1]} : vector<200x62xf32> to vector<200x54xf32>
    %cst_62 = arith.constant dense<0.000000e+00> : vector<216x54xf32>
    %80 = tpu.matmul %78, %79, %cst_62 {dimension_numbers = #tpu.dot_dimension_numbers<[1], [0], [0], [1], [0, 0, 1, 1], [], []>} : vector<216x200xf32>, vector<200x54xf32>, vector<216x54xf32> -> vector<216x54xf32>
    %81 = arith.addf %76, %80 : vector<216x54xf32>
    %c2_63 = arith.constant 2 : index
    %c0_64 = arith.constant 0 : index
    %c0_65 = arith.constant 0 : index
    %82 = vector.load %arg13[%c2_63, %c0_64, %c0_65] : memref<5x216x200xf32, #tpu.memory_space<vmem>>, vector<1x216x200xf32>
    %83 = vector.shape_cast %82 : vector<1x216x200xf32> to vector<216x200xf32>
    %84 = vector.extract_strided_slice %72 {offsets = [0, 4], sizes = [200, 54], strides = [1, 1]} : vector<200x62xf32> to vector<200x54xf32>
    %cst_66 = arith.constant dense<0.000000e+00> : vector<216x54xf32>
    %85 = tpu.matmul %83, %84, %cst_66 {dimension_numbers = #tpu.dot_dimension_numbers<[1], [0], [0], [1], [0, 0, 1, 1], [], []>} : vector<216x200xf32>, vector<200x54xf32>, vector<216x54xf32> -> vector<216x54xf32>
    %86 = arith.addf %81, %85 : vector<216x54xf32>
    %c3_67 = arith.constant 3 : index
    %c0_68 = arith.constant 0 : index
    %c0_69 = arith.constant 0 : index
    %87 = vector.load %arg13[%c3_67, %c0_68, %c0_69] : memref<5x216x200xf32, #tpu.memory_space<vmem>>, vector<1x216x200xf32>
    %88 = vector.shape_cast %87 : vector<1x216x200xf32> to vector<216x200xf32>
    %89 = vector.extract_strided_slice %72 {offsets = [0, 6], sizes = [200, 54], strides = [1, 1]} : vector<200x62xf32> to vector<200x54xf32>
    %cst_70 = arith.constant dense<0.000000e+00> : vector<216x54xf32>
    %90 = tpu.matmul %88, %89, %cst_70 {dimension_numbers = #tpu.dot_dimension_numbers<[1], [0], [0], [1], [0, 0, 1, 1], [], []>} : vector<216x200xf32>, vector<200x54xf32>, vector<216x54xf32> -> vector<216x54xf32>
    %91 = arith.addf %86, %90 : vector<216x54xf32>
    %c4_71 = arith.constant 4 : index
    %c0_72 = arith.constant 0 : index
    %c0_73 = arith.constant 0 : index
    %92 = vector.load %arg13[%c4_71, %c0_72, %c0_73] : memref<5x216x200xf32, #tpu.memory_space<vmem>>, vector<1x216x200xf32>
    %93 = vector.shape_cast %92 : vector<1x216x200xf32> to vector<216x200xf32>
    %94 = vector.extract_strided_slice %72 {offsets = [0, 8], sizes = [200, 54], strides = [1, 1]} : vector<200x62xf32> to vector<200x54xf32>
    %cst_74 = arith.constant dense<0.000000e+00> : vector<216x54xf32>
    %95 = tpu.matmul %93, %94, %cst_74 {dimension_numbers = #tpu.dot_dimension_numbers<[1], [0], [0], [1], [0, 0, 1, 1], [], []>} : vector<216x200xf32>, vector<200x54xf32>, vector<216x54xf32> -> vector<216x54xf32>
    %96 = arith.addf %91, %95 : vector<216x54xf32>
    %c0_75 = arith.constant 0 : index
    %c0_76 = arith.constant 0 : index
    %97 = vector.load %arg14[%c0_75, %c0_76] : memref<216x1xf32, #tpu.memory_space<vmem>>, vector<216x1xf32>
    %98 = vector.broadcast %97 : vector<216x1xf32> to vector<216x54xf32>
    %99 = arith.addf %96, %98 : vector<216x54xf32>
    %cst_77 = arith.constant 0.000000e+00 : f32
    %100 = vector.broadcast %cst_77 : f32 to vector<216x54xf32>
    %101 = arith.maximumf %99, %100 : vector<216x54xf32>
    %c0_78 = arith.constant 0 : index
    %c0_79 = arith.constant 0 : index
    %102 = vector.load %arg15[%c0_78, %c0_79] : memref<54x62xf32, #tpu.memory_space<vmem>>, vector<54x62xf32>
    %cst_80 = arith.constant dense<0.000000e+00> : vector<216x62xf32>
    %103 = tpu.matmul %101, %102, %cst_80 {dimension_numbers = #tpu.dot_dimension_numbers<[1], [0], [0], [1], [0, 0, 1, 1], [], []>} : vector<216x54xf32>, vector<54x62xf32>, vector<216x62xf32> -> vector<216x62xf32>
    %c0_81 = arith.constant 0 : index
    %c0_82 = arith.constant 0 : index
    %c0_83 = arith.constant 0 : index
    %104 = vector.load %arg16[%c0_81, %c0_82, %c0_83] : memref<4x224x216xf32, #tpu.memory_space<vmem>>, vector<1x224x216xf32>
    %105 = vector.shape_cast %104 : vector<1x224x216xf32> to vector<224x216xf32>
    %106 = vector.extract_strided_slice %103 {offsets = [0, 0], sizes = [216, 56], strides = [1, 1]} : vector<216x62xf32> to vector<216x56xf32>
    %cst_84 = arith.constant dense<0.000000e+00> : vector<224x56xf32>
    %107 = tpu.matmul %105, %106, %cst_84 {dimension_numbers = #tpu.dot_dimension_numbers<[1], [0], [0], [1], [0, 0, 1, 1], [], []>} : vector<224x216xf32>, vector<216x56xf32>, vector<224x56xf32> -> vector<224x56xf32>
    %c1_85 = arith.constant 1 : index
    %c0_86 = arith.constant 0 : index
    %c0_87 = arith.constant 0 : index
    %108 = vector.load %arg16[%c1_85, %c0_86, %c0_87] : memref<4x224x216xf32, #tpu.memory_space<vmem>>, vector<1x224x216xf32>
    %109 = vector.shape_cast %108 : vector<1x224x216xf32> to vector<224x216xf32>
    %110 = vector.extract_strided_slice %103 {offsets = [0, 2], sizes = [216, 56], strides = [1, 1]} : vector<216x62xf32> to vector<216x56xf32>
    %cst_88 = arith.constant dense<0.000000e+00> : vector<224x56xf32>
    %111 = tpu.matmul %109, %110, %cst_88 {dimension_numbers = #tpu.dot_dimension_numbers<[1], [0], [0], [1], [0, 0, 1, 1], [], []>} : vector<224x216xf32>, vector<216x56xf32>, vector<224x56xf32> -> vector<224x56xf32>
    %112 = arith.addf %107, %111 : vector<224x56xf32>
    %c2_89 = arith.constant 2 : index
    %c0_90 = arith.constant 0 : index
    %c0_91 = arith.constant 0 : index
    %113 = vector.load %arg16[%c2_89, %c0_90, %c0_91] : memref<4x224x216xf32, #tpu.memory_space<vmem>>, vector<1x224x216xf32>
    %114 = vector.shape_cast %113 : vector<1x224x216xf32> to vector<224x216xf32>
    %115 = vector.extract_strided_slice %103 {offsets = [0, 4], sizes = [216, 56], strides = [1, 1]} : vector<216x62xf32> to vector<216x56xf32>
    %cst_92 = arith.constant dense<0.000000e+00> : vector<224x56xf32>
    %116 = tpu.matmul %114, %115, %cst_92 {dimension_numbers = #tpu.dot_dimension_numbers<[1], [0], [0], [1], [0, 0, 1, 1], [], []>} : vector<224x216xf32>, vector<216x56xf32>, vector<224x56xf32> -> vector<224x56xf32>
    %117 = arith.addf %112, %116 : vector<224x56xf32>
    %c3_93 = arith.constant 3 : index
    %c0_94 = arith.constant 0 : index
    %c0_95 = arith.constant 0 : index
    %118 = vector.load %arg16[%c3_93, %c0_94, %c0_95] : memref<4x224x216xf32, #tpu.memory_space<vmem>>, vector<1x224x216xf32>
    %119 = vector.shape_cast %118 : vector<1x224x216xf32> to vector<224x216xf32>
    %120 = vector.extract_strided_slice %103 {offsets = [0, 6], sizes = [216, 56], strides = [1, 1]} : vector<216x62xf32> to vector<216x56xf32>
    %cst_96 = arith.constant dense<0.000000e+00> : vector<224x56xf32>
    %121 = tpu.matmul %119, %120, %cst_96 {dimension_numbers = #tpu.dot_dimension_numbers<[1], [0], [0], [1], [0, 0, 1, 1], [], []>} : vector<224x216xf32>, vector<216x56xf32>, vector<224x56xf32> -> vector<224x56xf32>
    %122 = arith.addf %117, %121 : vector<224x56xf32>
    %c0_97 = arith.constant 0 : index
    %c0_98 = arith.constant 0 : index
    %123 = vector.load %arg17[%c0_97, %c0_98] : memref<224x1xf32, #tpu.memory_space<vmem>>, vector<224x1xf32>
    %124 = vector.broadcast %123 : vector<224x1xf32> to vector<224x56xf32>
    %125 = arith.addf %122, %124 : vector<224x56xf32>
    %cst_99 = arith.constant 0.000000e+00 : f32
    %126 = vector.broadcast %cst_99 : f32 to vector<224x56xf32>
    %127 = arith.maximumf %125, %126 : vector<224x56xf32>
    %c0_100 = arith.constant 0 : index
    %c0_101 = arith.constant 0 : index
    %128 = vector.load %arg18[%c0_100, %c0_101] : memref<56x60xf32, #tpu.memory_space<vmem>>, vector<56x60xf32>
    %cst_102 = arith.constant dense<0.000000e+00> : vector<224x60xf32>
    %129 = tpu.matmul %127, %128, %cst_102 {dimension_numbers = #tpu.dot_dimension_numbers<[1], [0], [0], [1], [0, 0, 1, 1], [], []>} : vector<224x56xf32>, vector<56x60xf32>, vector<224x60xf32> -> vector<224x60xf32>
    %c0_103 = arith.constant 0 : index
    %c0_104 = arith.constant 0 : index
    %c0_105 = arith.constant 0 : index
    %130 = vector.load %arg19[%c0_103, %c0_104, %c0_105] : memref<3x224x224xf32, #tpu.memory_space<vmem>>, vector<1x224x224xf32>
    %131 = vector.shape_cast %130 : vector<1x224x224xf32> to vector<224x224xf32>
    %132 = vector.extract_strided_slice %129 {offsets = [0, 0], sizes = [224, 56], strides = [1, 1]} : vector<224x60xf32> to vector<224x56xf32>
    %cst_106 = arith.constant dense<0.000000e+00> : vector<224x56xf32>
    %133 = tpu.matmul %131, %132, %cst_106 {dimension_numbers = #tpu.dot_dimension_numbers<[1], [0], [0], [1], [0, 0, 1, 1], [], []>} : vector<224x224xf32>, vector<224x56xf32>, vector<224x56xf32> -> vector<224x56xf32>
    %c1_107 = arith.constant 1 : index
    %c0_108 = arith.constant 0 : index
    %c0_109 = arith.constant 0 : index
    %134 = vector.load %arg19[%c1_107, %c0_108, %c0_109] : memref<3x224x224xf32, #tpu.memory_space<vmem>>, vector<1x224x224xf32>
    %135 = vector.shape_cast %134 : vector<1x224x224xf32> to vector<224x224xf32>
    %136 = vector.extract_strided_slice %129 {offsets = [0, 2], sizes = [224, 56], strides = [1, 1]} : vector<224x60xf32> to vector<224x56xf32>
    %cst_110 = arith.constant dense<0.000000e+00> : vector<224x56xf32>
    %137 = tpu.matmul %135, %136, %cst_110 {dimension_numbers = #tpu.dot_dimension_numbers<[1], [0], [0], [1], [0, 0, 1, 1], [], []>} : vector<224x224xf32>, vector<224x56xf32>, vector<224x56xf32> -> vector<224x56xf32>
    %138 = arith.addf %133, %137 : vector<224x56xf32>
    %c2_111 = arith.constant 2 : index
    %c0_112 = arith.constant 0 : index
    %c0_113 = arith.constant 0 : index
    %139 = vector.load %arg19[%c2_111, %c0_112, %c0_113] : memref<3x224x224xf32, #tpu.memory_space<vmem>>, vector<1x224x224xf32>
    %140 = vector.shape_cast %139 : vector<1x224x224xf32> to vector<224x224xf32>
    %141 = vector.extract_strided_slice %129 {offsets = [0, 4], sizes = [224, 56], strides = [1, 1]} : vector<224x60xf32> to vector<224x56xf32>
    %cst_114 = arith.constant dense<0.000000e+00> : vector<224x56xf32>
    %142 = tpu.matmul %140, %141, %cst_114 {dimension_numbers = #tpu.dot_dimension_numbers<[1], [0], [0], [1], [0, 0, 1, 1], [], []>} : vector<224x224xf32>, vector<224x56xf32>, vector<224x56xf32> -> vector<224x56xf32>
    %143 = arith.addf %138, %142 : vector<224x56xf32>
    %c0_115 = arith.constant 0 : index
    %c0_116 = arith.constant 0 : index
    %144 = vector.load %arg20[%c0_115, %c0_116] : memref<224x1xf32, #tpu.memory_space<vmem>>, vector<224x1xf32>
    %145 = vector.broadcast %144 : vector<224x1xf32> to vector<224x56xf32>
    %146 = arith.addf %143, %145 : vector<224x56xf32>
    %cst_117 = arith.constant 0.000000e+00 : f32
    %147 = vector.broadcast %cst_117 : f32 to vector<224x56xf32>
    %148 = arith.maximumf %146, %147 : vector<224x56xf32>
    %c0_118 = arith.constant 0 : index
    %c0_119 = arith.constant 0 : index
    %149 = vector.load %arg21[%c0_118, %c0_119] : memref<56x60xf32, #tpu.memory_space<vmem>>, vector<56x60xf32>
    %cst_120 = arith.constant dense<0.000000e+00> : vector<224x60xf32>
    %150 = tpu.matmul %148, %149, %cst_120 {dimension_numbers = #tpu.dot_dimension_numbers<[1], [0], [0], [1], [0, 0, 1, 1], [], []>} : vector<224x56xf32>, vector<56x60xf32>, vector<224x60xf32> -> vector<224x60xf32>
    %c0_121 = arith.constant 0 : index
    %c0_122 = arith.constant 0 : index
    %c0_123 = arith.constant 0 : index
    %151 = vector.load %arg22[%c0_121, %c0_122, %c0_123] : memref<3x224x224xf32, #tpu.memory_space<vmem>>, vector<1x224x224xf32>
    %152 = vector.shape_cast %151 : vector<1x224x224xf32> to vector<224x224xf32>
    %153 = vector.extract_strided_slice %150 {offsets = [0, 0], sizes = [224, 56], strides = [1, 1]} : vector<224x60xf32> to vector<224x56xf32>
    %cst_124 = arith.constant dense<0.000000e+00> : vector<224x56xf32>
    %154 = tpu.matmul %152, %153, %cst_124 {dimension_numbers = #tpu.dot_dimension_numbers<[1], [0], [0], [1], [0, 0, 1, 1], [], []>} : vector<224x224xf32>, vector<224x56xf32>, vector<224x56xf32> -> vector<224x56xf32>
    %c1_125 = arith.constant 1 : index
    %c0_126 = arith.constant 0 : index
    %c0_127 = arith.constant 0 : index
    %155 = vector.load %arg22[%c1_125, %c0_126, %c0_127] : memref<3x224x224xf32, #tpu.memory_space<vmem>>, vector<1x224x224xf32>
    %156 = vector.shape_cast %155 : vector<1x224x224xf32> to vector<224x224xf32>
    %157 = vector.extract_strided_slice %150 {offsets = [0, 2], sizes = [224, 56], strides = [1, 1]} : vector<224x60xf32> to vector<224x56xf32>
    %cst_128 = arith.constant dense<0.000000e+00> : vector<224x56xf32>
    %158 = tpu.matmul %156, %157, %cst_128 {dimension_numbers = #tpu.dot_dimension_numbers<[1], [0], [0], [1], [0, 0, 1, 1], [], []>} : vector<224x224xf32>, vector<224x56xf32>, vector<224x56xf32> -> vector<224x56xf32>
    %159 = arith.addf %154, %158 : vector<224x56xf32>
    %c2_129 = arith.constant 2 : index
    %c0_130 = arith.constant 0 : index
    %c0_131 = arith.constant 0 : index
    %160 = vector.load %arg22[%c2_129, %c0_130, %c0_131] : memref<3x224x224xf32, #tpu.memory_space<vmem>>, vector<1x224x224xf32>
    %161 = vector.shape_cast %160 : vector<1x224x224xf32> to vector<224x224xf32>
    %162 = vector.extract_strided_slice %150 {offsets = [0, 4], sizes = [224, 56], strides = [1, 1]} : vector<224x60xf32> to vector<224x56xf32>
    %cst_132 = arith.constant dense<0.000000e+00> : vector<224x56xf32>
    %163 = tpu.matmul %161, %162, %cst_132 {dimension_numbers = #tpu.dot_dimension_numbers<[1], [0], [0], [1], [0, 0, 1, 1], [], []>} : vector<224x224xf32>, vector<224x56xf32>, vector<224x56xf32> -> vector<224x56xf32>
    %164 = arith.addf %159, %163 : vector<224x56xf32>
    %c0_133 = arith.constant 0 : index
    %c0_134 = arith.constant 0 : index
    %165 = vector.load %arg23[%c0_133, %c0_134] : memref<224x1xf32, #tpu.memory_space<vmem>>, vector<224x1xf32>
    %166 = vector.broadcast %165 : vector<224x1xf32> to vector<224x56xf32>
    %167 = arith.addf %164, %166 : vector<224x56xf32>
    %168 = math.tanh %167 : vector<224x56xf32>
    %c0_135 = arith.constant 0 : index
    %c0_136 = arith.constant 0 : index
    %c0_137 = arith.constant 0 : index
    %169 = vector.load %arg24[%c0_135, %c0_136, %c0_137] : memref<1x224x56xf32, #tpu.memory_space<vmem>>, vector<1x224x56xf32>
    %170 = vector.shape_cast %169 : vector<1x224x56xf32> to vector<224x56xf32>
    %171 = vector.shape_cast %168 : vector<224x56xf32> to vector<1x224x56xf32>
    tpu.vector_store %arg24[%c0_135, %c0_136, %c0_137], %171 {strides = array<i32>} : memref<1x224x56xf32, #tpu.memory_space<vmem>>, vector<1x224x56xf32>,
    return
  }
  func.func @transform_0(%arg0: i32) -> (i32, i32, i32) {
    %c0_i32 = arith.constant 0 : i32
    %c0_i32_0 = arith.constant 0 : i32
    %c0_i32_1 = arith.constant 0 : i32
    return %arg0, %c0_i32, %c0_i32_0 : i32, i32, i32
  }
  func.func @transform_1(%arg0: i32) -> (i32, i32) {
    %c0_i32 = arith.constant 0 : i32
    %c0_i32_0 = arith.constant 0 : i32
    %c0_i32_1 = arith.constant 0 : i32
    return %c0_i32, %c0_i32_0 : i32, i32
  }
  func.func @transform_2(%arg0: i32) -> (i32, i32) {
    %c0_i32 = arith.constant 0 : i32
    %c0_i32_0 = arith.constant 0 : i32
    %c0_i32_1 = arith.constant 0 : i32
    return %c0_i32, %c0_i32_0 : i32, i32
  }
  func.func @transform_3(%arg0: i32) -> (i32, i32) {
    %c0_i32 = arith.constant 0 : i32
    %c0_i32_0 = arith.constant 0 : i32
    %c0_i32_1 = arith.constant 0 : i32
    return %c0_i32, %c0_i32_0 : i32, i32
  }
  func.func @transform_4(%arg0: i32) -> (i32, i32) {
    %c0_i32 = arith.constant 0 : i32
    %c0_i32_0 = arith.constant 0 : i32
    %c0_i32_1 = arith.constant 0 : i32
    return %c0_i32, %c0_i32_0 : i32, i32
  }
  func.func @transform_5(%arg0: i32) -> (i32, i32) {
    %c0_i32 = arith.constant 0 : i32
    %c0_i32_0 = arith.constant 0 : i32
    %c0_i32_1 = arith.constant 0 : i32
    return %c0_i32, %c0_i32_0 : i32, i32
  }
  func.func @transform_6(%arg0: i32) -> (i32, i32, i32) {
    %c0_i32 = arith.constant 0 : i32
    %c0_i32_0 = arith.constant 0 : i32
    %c0_i32_1 = arith.constant 0 : i32
    %c0_i32_2 = arith.constant 0 : i32
    return %c0_i32, %c0_i32_0, %c0_i32_1 : i32, i32, i32
  }
  func.func @transform_7(%arg0: i32) -> (i32, i32) {
    %c0_i32 = arith.constant 0 : i32
    %c0_i32_0 = arith.constant 0 : i32
    %c0_i32_1 = arith.constant 0 : i32
    return %c0_i32, %c0_i32_0 : i32, i32
  }
  func.func @transform_8(%arg0: i32) -> (i32, i32) {
    %c0_i32 = arith.constant 0 : i32
    %c0_i32_0 = arith.constant 0 : i32
    %c0_i32_1 = arith.constant 0 : i32
    return %c0_i32, %c0_i32_0 : i32, i32
  }
  func.func @transform_9(%arg0: i32) -> (i32, i32, i32) {
    %c0_i32 = arith.constant 0 : i32
    %c0_i32_0 = arith.constant 0 : i32
    %c0_i32_1 = arith.constant 0 : i32
    %c0_i32_2 = arith.constant 0 : i32
    return %c0_i32, %c0_i32_0, %c0_i32_1 : i32, i32, i32
  }
  func.func @transform_10(%arg0: i32) -> (i32, i32) {
    %c0_i32 = arith.constant 0 : i32
    %c0_i32_0 = arith.constant 0 : i32
    %c0_i32_1 = arith.constant 0 : i32
    return %c0_i32, %c0_i32_0 : i32, i32
  }
  func.func @transform_11(%arg0: i32) -> (i32, i32) {
    %c0_i32 = arith.constant 0 : i32
    %c0_i32_0 = arith.constant 0 : i32
    %c0_i32_1 = arith.constant 0 : i32
    return %c0_i32, %c0_i32_0 : i32, i32
  }
  func.func @transform_12(%arg0: i32) -> (i32, i32, i32) {
    %c0_i32 = arith.constant 0 : i32
    %c0_i32_0 = arith.constant 0 : i32
    %c0_i32_1 = arith.constant 0 : i32
    %c0_i32_2 = arith.constant 0 : i32
    return %c0_i32, %c0_i32_0, %c0_i32_1 : i32, i32, i32
  }
  func.func @transform_13(%arg0: i32) -> (i32, i32) {
    %c0_i32 = arith.constant 0 : i32
    %c0_i32_0 = arith.constant 0 : i32
    %c0_i32_1 = arith.constant 0 : i32
    return %c0_i32, %c0_i32_0 : i32, i32
  }
  func.func @transform_14(%arg0: i32) -> (i32, i32) {
    %c0_i32 = arith.constant 0 : i32
    %c0_i32_0 = arith.constant 0 : i32
    %c0_i32_1 = arith.constant 0 : i32
    return %c0_i32, %c0_i32_0 : i32, i32
  }
  func.func @transform_15(%arg0: i32) -> (i32, i32, i32) {
    %c0_i32 = arith.constant 0 : i32
    %c0_i32_0 = arith.constant 0 : i32
    %c0_i32_1 = arith.constant 0 : i32
    %c0_i32_2 = arith.constant 0 : i32
    return %c0_i32, %c0_i32_0, %c0_i32_1 : i32, i32, i32
  }
  func.func @transform_16(%arg0: i32) -> (i32, i32) {
    %c0_i32 = arith.constant 0 : i32
    %c0_i32_0 = arith.constant 0 : i32
    %c0_i32_1 = arith.constant 0 : i32
    return %c0_i32, %c0_i32_0 : i32, i32
  }
  func.func @transform_17(%arg0: i32) -> (i32, i32) {
    %c0_i32 = arith.constant 0 : i32
    %c0_i32_0 = arith.constant 0 : i32
    %c0_i32_1 = arith.constant 0 : i32
    return %c0_i32, %c0_i32_0 : i32, i32
  }
  func.func @transform_18(%arg0: i32) -> (i32, i32, i32) {
    %c0_i32 = arith.constant 0 : i32
    %c0_i32_0 = arith.constant 0 : i32
    %c0_i32_1 = arith.constant 0 : i32
    %c0_i32_2 = arith.constant 0 : i32
    return %c0_i32, %c0_i32_0, %c0_i32_1 : i32, i32, i32
  }
  func.func @transform_19(%arg0: i32) -> (i32, i32) {
    %c0_i32 = arith.constant 0 : i32
    %c0_i32_0 = arith.constant 0 : i32
    %c0_i32_1 = arith.constant 0 : i32
    return %c0_i32, %c0_i32_0 : i32, i32
  }
  func.func @transform_20(%arg0: i32) -> (i32, i32) {
    %c0_i32 = arith.constant 0 : i32
    %c0_i32_0 = arith.constant 0 : i32
    %c0_i32_1 = arith.constant 0 : i32
    return %c0_i32, %c0_i32_0 : i32, i32
  }
  func.func @transform_21(%arg0: i32) -> (i32, i32, i32) {
    %c0_i32 = arith.constant 0 : i32
    %c0_i32_0 = arith.constant 0 : i32
    %c0_i32_1 = arith.constant 0 : i32
    %c0_i32_2 = arith.constant 0 : i32
    return %c0_i32, %c0_i32_0, %c0_i32_1 : i32, i32, i32
  }
  func.func @transform_22(%arg0: i32) -> (i32, i32) {
    %c0_i32 = arith.constant 0 : i32
    %c0_i32_0 = arith.constant 0 : i32
    %c0_i32_1 = arith.constant 0 : i32
    return %c0_i32, %c0_i32_0 : i32, i32
  }
  func.func @transform_23(%arg0: i32) -> (i32, i32, i32) {
    %c0_i32 = arith.constant 0 : i32
    %c0_i32_0 = arith.constant 0 : i32
    %c0_i32_1 = arith.constant 0 : i32
    return %arg0, %c0_i32, %c0_i32_0 : i32, i32, i32
  }
}

</mosaic_0001>

<llo_original>
// kernel: tile.58
$region0: #{tile.58}
  #allocation0 [shape = 's32[1]{0}', space=sflag, size = 0x4, scoped, tag = 'scoped memory for tile.58']
  %s0 = inlined_call_operand.vmem [shape: f32[8], index: 0, kind: input, shape index: {}]
  %s1 = inlined_call_operand.vmem [shape: f32[28,8], index: 1, kind: output, shape index: {}]
  // Predicated region
  $region2: #{tile.58} parent=0 // pred_check
    _
  $region3: #{tile.58} parent=0 // pred_check_branch
    %3 = sbr.rel (0) target = $region5
  $region4: #{tile.58} parent=0 // pred_region
    _
  $region5: #{tile.58} parent=0 // pred_fallthru
    _
  %v4 = vld [vmem:[%s0] ss:$0 sm:$0xff]
  %5 = vst [vmem:[%s1] sm:$0xff] %v4
  %s6 = scalar_lea.vmem %s1, 8
  %7 = vst [vmem:[%s6] sm:$0xff] %v4
  %s8 = scalar_lea.vmem %s1, 16
  %9 = vst [vmem:[%s8] sm:$0xff] %v4
  %s10 = scalar_lea.vmem %s1, 24
  %11 = vst [vmem:[%s10] sm:$0xff] %v4

// kernel: tile.5
$region0: #{tile.5}
  %s0 = inlined_call_operand.vmem [shape: f32[28,8], index: 0, kind: input, shape index: {}]
  %s1 = inlined_call_operand.vmem [shape: f32[224,1], index: 1, kind: output, shape index: {}]
  %v2 = vld [vmem:[%s0] sm:$0xff]
  %vm3 = vcmask 7168
  %4 = vst.msk [vmem:[%s1] ss:$8 sm:$0xf] %vm3, %v2
  %5 = vst.msk [vmem:[%s1] ss:$8 sm:$0xf0] %vm3, %v2
  %s6 = scalar_lea.vmem %s0, 8
  %v7 = vld [vmem:[%s6] sm:$0xff]
  %vm8 = vcmask 7168
  %s9 = scalar_lea.vmem %s1, 64
  %10 = vst.msk [vmem:[%s9] ss:$8 sm:$0xf] %vm8, %v7
  %s11 = scalar_lea.vmem %s1, 64
  %12 = vst.msk [vmem:[%s11] ss:$8 sm:$0xf0] %vm8, %v7
  %s13 = scalar_lea.vmem %s0, 16
  %v14 = vld [vmem:[%s13] sm:$0xff]
  %vm15 = vcmask 7168
  %s16 = scalar_lea.vmem %s1, 128
  %17 = vst.msk [vmem:[%s16] ss:$8 sm:$0xf] %vm15, %v14
  %s18 = scalar_lea.vmem %s1, 128
  %19 = vst.msk [vmem:[%s18] ss:$8 sm:$0xf0] %vm15, %v14
  %s20 = scalar_lea.vmem %s0, 24
  %v21 = vld [vmem:[%s20] sm:$0xf]
  %vm22 = vcmask 7168
  %s23 = scalar_lea.vmem %s1, 192
  %24 = vst.msk [vmem:[%s23] ss:$8 sm:$0xf] %vm22, %v21
  %v25 = vld [vmem:[%s0] sm:$0xff]
  %26 = vrot.lane.b32.xlu0 %v25, 127
  %v27 = vpop.permute.xlu0 %26
  %vm28 = vcmask 7168
  %s29 = scalar_lea.vmem %s1, 1
  %30 = vst.msk [vmem:[%s29] ss:$8 sm:$0xf] %vm28, %v27
  %s31 = scalar_lea.vmem %s1, 1
  %32 = vst.msk [vmem:[%s31] ss:$8 sm:$0xf0] %vm28, %v27
  %s33 = scalar_lea.vmem %s0, 8
  %v34 = vld [vmem:[%s33] sm:$0xff]
  %35 = vrot.lane.b32.xlu0 %v34, 127
  %v36 = vpop.permute.xlu0 %35
  %vm37 = vcmask 7168
  %s38 = scalar_lea.vmem %s1, 65
  %39 = vst.msk [vmem:[%s38] ss:$8 sm:$0xf] %vm37, %v36
  %s40 = scalar_lea.vmem %s1, 65
  %41 = vst.msk [vmem:[%s40] ss:$8 sm:$0xf0] %vm37, %v36
  %s42 = scalar_lea.vmem %s0, 16
  %v43 = vld [vmem:[%s42] sm:$0xff]
  %44 = vrot.lane.b32.xlu0 %v43, 127
  %v45 = vpop.permute.xlu0 %44
  %vm46 = vcmask 7168
  %s47 = scalar_lea.vmem %s1, 129
  %48 = vst.msk [vmem:[%s47] ss:$8 sm:$0xf] %vm46, %v45
  %s49 = scalar_lea.vmem %s1, 129
  %50 = vst.msk [vmem:[%s49] ss:$8 sm:$0xf0] %vm46, %v45
  %s51 = scalar_lea.vmem %s0, 24
  %v52 = vld [vmem:[%s51] sm:$0xf]
  %53 = vrot.lane.b32.xlu0 %v52, 127
  %v54 = vpop.permute.xlu0 %53
  %vm55 = vcmask 7168
  %s56 = scalar_lea.vmem %s1, 193
  %57 = vst.msk [vmem:[%s56] ss:$8 sm:$0xf] %vm55, %v54
  %v58 = vld [vmem:[%s0] sm:$0xff]
  %59 = vrot.lane.b32.xlu0 %v58, 126
  %v60 = vpop.permute.xlu0 %59
  %vm61 = vcmask 7168
  %s62 = scalar_lea.vmem %s1, 2
  %63 = vst.msk [vmem:[%s62] ss:$8 sm:$0xf] %vm61, %v60
  %s64 = scalar_lea.vmem %s1, 2
  %65 = vst.msk [vmem:[%s64] ss:$8 sm:$0xf0] %vm61, %v60
  %s66 = scalar_lea.vmem %s0, 8
  %v67 = vld [vmem:[%s66] sm:$0xff]
  %68 = vrot.lane.b32.xlu0 %v67, 126
  %v69 = vpop.permute.xlu0 %68
  %vm70 = vcmask 7168
  %s71 = scalar_lea.vmem %s1, 66
  %72 = vst.msk [vmem:[%s71] ss:$8 sm:$0xf] %vm70, %v69
  %s73 = scalar_lea.vmem %s1, 66
  %74 = vst.msk [vmem:[%s73] ss:$8 sm:$0xf0] %vm70, %v69
  %s75 = scalar_lea.vmem %s0, 16
  %v76 = vld [vmem:[%s75] sm:$0xff]
  %77 = vrot.lane.b32.xlu0 %v76, 126
  %v78 = vpop.permute.xlu0 %77
  %vm79 = vcmask 7168
  %s80 = scalar_lea.vmem %s1, 130
  %81 = vst.msk [vmem:[%s80] ss:$8 sm:$0xf] %vm79, %v78
  %s82 = scalar_lea.vmem %s1, 130
  %83 = vst.msk [vmem:[%s82] ss:$8 sm:$0xf0] %vm79, %v78
  %s84 = scalar_lea.vmem %s0, 24
  %v85 = vld [vmem:[%s84] sm:$0xf]
  %86 = vrot.lane.b32.xlu0 %v85, 126
  %v87 = vpop.permute.xlu0 %86
  %vm88 = vcmask 7168
  %s89 = scalar_lea.vmem %s1, 194
  %90 = vst.msk [vmem:[%s89] ss:$8 sm:$0xf] %vm88, %v87
  %v91 = vld [vmem:[%s0] sm:$0xff]
  %92 = vrot.lane.b32.xlu0 %v91, 125
  %v93 = vpop.permute.xlu0 %92
  %vm94 = vcmask 7168
  %s95 = scalar_lea.vmem %s1, 3
  %96 = vst.msk [vmem:[%s95] ss:$8 sm:$0xf] %vm94, %v93
  %s97 = scalar_lea.vmem %s1, 3
  %98 = vst.msk [vmem:[%s97] ss:$8 sm:$0xf0] %vm94, %v93
  %s99 = scalar_lea.vmem %s0, 8
  %v100 = vld [vmem:[%s99] sm:$0xff]
  %101 = vrot.lane.b32.xlu0 %v100, 125
  %v102 = vpop.permute.xlu0 %101
  %vm103 = vcmask 7168
  %s104 = scalar_lea.vmem %s1, 67
  %105 = vst.msk [vmem:[%s104] ss:$8 sm:$0xf] %vm103, %v102
  %s106 = scalar_lea.vmem %s1, 67
  %107 = vst.msk [vmem:[%s106] ss:$8 sm:$0xf0] %vm103, %v102
  %s108 = scalar_lea.vmem %s0, 16
  %v109 = vld [vmem:[%s108] sm:$0xff]
  %110 = vrot.lane.b32.xlu0 %v109, 125
  %v111 = vpop.permute.xlu0 %110
  %vm112 = vcmask 7168
  %s113 = scalar_lea.vmem %s1, 131
  %114 = vst.msk [vmem:[%s113] ss:$8 sm:$0xf] %vm112, %v111
  %s115 = scalar_lea.vmem %s1, 131
  %116 = vst.msk [vmem:[%s115] ss:$8 sm:$0xf0] %vm112, %v111
  %s117 = scalar_lea.vmem %s0, 24
  %v118 = vld [vmem:[%s117] sm:$0xf]
  %119 = vrot.lane.b32.xlu0 %v118, 125
  %v120 = vpop.permute.xlu0 %119
  %vm121 = vcmask 7168
  %s122 = scalar_lea.vmem %s1, 195
  %123 = vst.msk [vmem:[%s122] ss:$8 sm:$0xf] %vm121, %v120
  %v124 = vld [vmem:[%s0] sm:$0xff]
  %125 = vrot.lane.b32.xlu0 %v124, 124
  %v126 = vpop.permute.xlu0 %125
  %vm127 = vcmask 7168
  %s128 = scalar_lea.vmem %s1, 4
  %129 = vst.msk [vmem:[%s128] ss:$8 sm:$0xf] %vm127, %v126
  %s130 = scalar_lea.vmem %s1, 4
  %131 = vst.msk [vmem:[%s130] ss:$8 sm:$0xf0] %vm127, %v126
  %s132 = scalar_lea.vmem %s0, 8
  %v133 = vld [vmem:[%s132] sm:$0xff]
  %134 = vrot.lane.b32.xlu0 %v133, 124
  %v135 = vpop.permute.xlu0 %134
  %vm136 = vcmask 7168
  %s137 = scalar_lea.vmem %s1, 68
  %138 = vst.msk [vmem:[%s137] ss:$8 sm:$0xf] %vm136, %v135
  %s139 = scalar_lea.vmem %s1, 68
  %140 = vst.msk [vmem:[%s139] ss:$8 sm:$0xf0] %vm136, %v135
  %s141 = scalar_lea.vmem %s0, 16
  %v142 = vld [vmem:[%s141] sm:$0xff]
  %143 = vrot.lane.b32.xlu0 %v142, 124
  %v144 = vpop.permute.xlu0 %143
  %vm145 = vcmask 7168
  %s146 = scalar_lea.vmem %s1, 132
  %147 = vst.msk [vmem:[%s146] ss:$8 sm:$0xf] %vm145, %v144
  %s148 = scalar_lea.vmem %s1, 132
  %149 = vst.msk [vmem:[%s148] ss:$8 sm:$0xf0] %vm145, %v144
  %s150 = scalar_lea.vmem %s0, 24
  %v151 = vld [vmem:[%s150] sm:$0xf]
  %152 = vrot.lane.b32.xlu0 %v151, 124
  %v153 = vpop.permute.xlu0 %152
  %vm154 = vcmask 7168
  %s155 = scalar_lea.vmem %s1, 196
  %156 = vst.msk [vmem:[%s155] ss:$8 sm:$0xf] %vm154, %v153
  %v157 = vld [vmem:[%s0] sm:$0xff]
  %158 = vrot.lane.b32.xlu0 %v157, 123
  %v159 = vpop.permute.xlu0 %158
  %vm160 = vcmask 7168
  %s161 = scalar_lea.vmem %s1, 5
  %162 = vst.msk [vmem:[%s161] ss:$8 sm:$0xf] %vm160, %v159
  %s163 = scalar_lea.vmem %s1, 5
  %164 = vst.msk [vmem:[%s163] ss:$8 sm:$0xf0] %vm160, %v159
  %s165 = scalar_lea.vmem %s0, 8
  %v166 = vld [vmem:[%s165] sm:$0xff]
  %167 = vrot.lane.b32.xlu0 %v166, 123
  %v168 = vpop.permute.xlu0 %167
  %vm169 = vcmask 7168
  %s170 = scalar_lea.vmem %s1, 69
  %171 = vst.msk [vmem:[%s170] ss:$8 sm:$0xf] %vm169, %v168
  %s172 = scalar_lea.vmem %s1, 69
  %173 = vst.msk [vmem:[%s172] ss:$8 sm:$0xf0] %vm169, %v168
  %s174 = scalar_lea.vmem %s0, 16
  %v175 = vld [vmem:[%s174] sm:$0xff]
  %176 = vrot.lane.b32.xlu0 %v175, 123
  %v177 = vpop.permute.xlu0 %176
  %vm178 = vcmask 7168
  %s179 = scalar_lea.vmem %s1, 133
  %180 = vst.msk [vmem:[%s179] ss:$8 sm:$0xf] %vm178, %v177
  %s181 = scalar_lea.vmem %s1, 133
  %182 = vst.msk [vmem:[%s181] ss:$8 sm:$0xf0] %vm178, %v177
  %s183 = scalar_lea.vmem %s0, 24
  %v184 = vld [vmem:[%s183] sm:$0xf]
  %185 = vrot.lane.b32.xlu0 %v184, 123
  %v186 = vpop.permute.xlu0 %185
  %vm187 = vcmask 7168
  %s188 = scalar_lea.vmem %s1, 197
  %189 = vst.msk [vmem:[%s188] ss:$8 sm:$0xf] %vm187, %v186
  %v190 = vld [vmem:[%s0] sm:$0xff]
  %191 = vrot.lane.b32.xlu0 %v190, 122
  %v192 = vpop.permute.xlu0 %191
  %vm193 = vcmask 7168
  %s194 = scalar_lea.vmem %s1, 6
  %195 = vst.msk [vmem:[%s194] ss:$8 sm:$0xf] %vm193, %v192
  %s196 = scalar_lea.vmem %s1, 6
  %197 = vst.msk [vmem:[%s196] ss:$8 sm:$0xf0] %vm193, %v192
  %s198 = scalar_lea.vmem %s0, 8
  %v199 = vld [vmem:[%s198] sm:$0xff]
  %200 = vrot.lane.b32.xlu0 %v199, 122
  %v201 = vpop.permute.xlu0 %200
  %vm202 = vcmask 7168
  %s203 = scalar_lea.vmem %s1, 70
  %204 = vst.msk [vmem:[%s203] ss:$8 sm:$0xf] %vm202, %v201
  %s205 = scalar_lea.vmem %s1, 70
  %206 = vst.msk [vmem:[%s205] ss:$8 sm:$0xf0] %vm202, %v201
  %s207 = scalar_lea.vmem %s0, 16
  %v208 = vld [vmem:[%s207] sm:$0xff]
  %209 = vrot.lane.b32.xlu0 %v208, 122
  %v210 = vpop.permute.xlu0 %209
  %vm211 = vcmask 7168
  %s212 = scalar_lea.vmem %s1, 134
  %213 = vst.msk [vmem:[%s212] ss:$8 sm:$0xf] %vm211, %v210
  %s214 = scalar_lea.vmem %s1, 134
  %215 = vst.msk [vmem:[%s214] ss:$8 sm:$0xf0] %vm211, %v210
  %s216 = scalar_lea.vmem %s0, 24
  %v217 = vld [vmem:[%s216] sm:$0xf]
  %218 = vrot.lane.b32.xlu0 %v217, 122
  %v219 = vpop.permute.xlu0 %218
  %vm220 = vcmask 7168
  %s221 = scalar_lea.vmem %s1, 198
  %222 = vst.msk [vmem:[%s221] ss:$8 sm:$0xf] %vm220, %v219
  %v223 = vld [vmem:[%s0] sm:$0xff]
  %224 = vrot.lane.b32.xlu0 %v223, 121
  %v225 = vpop.permute.xlu0 %224
  %vm226 = vcmask 7168
  %s227 = scalar_lea.vmem %s1, 7
  %228 = vst.msk [vmem:[%s227] ss:$8 sm:$0xf] %vm226, %v225
  %s229 = scalar_lea.vmem %s1, 7
  %230 = vst.msk [vmem:[%s229] ss:$8 sm:$0xf0] %vm226, %v225
  %s231 = scalar_lea.vmem %s0, 8
  %v232 = vld [vmem:[%s231] sm:$0xff]
  %233 = vrot.lane.b32.xlu0 %v232, 121
  %v234 = vpop.permute.xlu0 %233
  %vm235 = vcmask 7168
  %s236 = scalar_lea.vmem %s1, 71
  %237 = vst.msk [vmem:[%s236] ss:$8 sm:$0xf] %vm235, %v234
  %s238 = scalar_lea.vmem %s1, 71
  %239 = vst.msk [vmem:[%s238] ss:$8 sm:$0xf0] %vm235, %v234
  %s240 = scalar_lea.vmem %s0, 16
  %v241 = vld [vmem:[%s240] sm:$0xff]
  %242 = vrot.lane.b32.xlu0 %v241, 121
  %v243 = vpop.permute.xlu0 %242
  %vm244 = vcmask 7168
  %s245 = scalar_lea.vmem %s1, 135
  %246 = vst.msk [vmem:[%s245] ss:$8 sm:$0xf] %vm244, %v243
  %s247 = scalar_lea.vmem %s1, 135
  %248 = vst.msk [vmem:[%s247] ss:$8 sm:$0xf0] %vm244, %v243
  %s249 = scalar_lea.vmem %s0, 24
  %v250 = vld [vmem:[%s249] sm:$0xf]
  %251 = vrot.lane.b32.xlu0 %v250, 121
  %v252 = vpop.permute.xlu0 %251
  %vm253 = vcmask 7168
  %s254 = scalar_lea.vmem %s1, 199
  %255 = vst.msk [vmem:[%s254] ss:$8 sm:$0xf] %vm253, %v252

// kernel: tile.43
$region0: #{tile.43}
  #allocation0 [shape = 's32[1]{0}', space=sflag, size = 0x4, scoped, tag = 'scoped memory for tile.43']
  %s0 = inlined_call_operand.vmem [shape: f32[8], index: 0, kind: input, shape index: {}]
  %s1 = inlined_call_operand.vmem [shape: f32[27,8], index: 1, kind: output, shape index: {}]
  // Predicated region
  $region2: #{tile.43} parent=0 // pred_check
    _
  $region3: #{tile.43} parent=0 // pred_check_branch
    %3 = sbr.rel (0) target = $region5
  $region4: #{tile.43} parent=0 // pred_region
    _
  $region5: #{tile.43} parent=0 // pred_fallthru
    _
  %v4 = vld [vmem:[%s0] ss:$0 sm:$0xff]
  %5 = vst [vmem:[%s1] sm:$0xff] %v4
  %s6 = scalar_lea.vmem %s1, 8
  %7 = vst [vmem:[%s6] sm:$0xff] %v4
  %s8 = scalar_lea.vmem %s1, 16
  %9 = vst [vmem:[%s8] sm:$0xff] %v4
  %s10 = scalar_lea.vmem %s1, 24
  %11 = vst [vmem:[%s10] sm:$0xff] %v4

// kernel: tile.2
$region0: #{tile.2}
  %s0 = inlined_call_operand.vmem [shape: f32[27,8], index: 0, kind: input, shape index: {}]
  %s1 = inlined_call_operand.vmem [shape: f32[216,1], index: 1, kind: output, shape index: {}]
  %v2 = vld [vmem:[%s0] sm:$0xff]
  %vm3 = vcmask 7168
  %4 = vst.msk [vmem:[%s1] ss:$8 sm:$0xf] %vm3, %v2
  %5 = vst.msk [vmem:[%s1] ss:$8 sm:$0xf0] %vm3, %v2
  %s6 = scalar_lea.vmem %s0, 8
  %v7 = vld [vmem:[%s6] sm:$0xff]
  %vm8 = vcmask 7168
  %s9 = scalar_lea.vmem %s1, 64
  %10 = vst.msk [vmem:[%s9] ss:$8 sm:$0xf] %vm8, %v7
  %s11 = scalar_lea.vmem %s1, 64
  %12 = vst.msk [vmem:[%s11] ss:$8 sm:$0xf0] %vm8, %v7
  %s13 = scalar_lea.vmem %s0, 16
  %v14 = vld [vmem:[%s13] sm:$0xff]
  %vm15 = vcmask 7168
  %s16 = scalar_lea.vmem %s1, 128
  %17 = vst.msk [vmem:[%s16] ss:$8 sm:$0xf] %vm15, %v14
  %s18 = scalar_lea.vmem %s1, 128
  %19 = vst.msk [vmem:[%s18] ss:$8 sm:$0xf0] %vm15, %v14
  %s20 = scalar_lea.vmem %s0, 24
  %v21 = vld [vmem:[%s20] sm:$0x7]
  %vm22 = vcmask 7168
  %s23 = scalar_lea.vmem %s1, 192
  %24 = vst.msk [vmem:[%s23] ss:$8 sm:$0x7] %vm22, %v21
  %v25 = vld [vmem:[%s0] sm:$0xff]
  %26 = vrot.lane.b32.xlu0 %v25, 127
  %v27 = vpop.permute.xlu0 %26
  %vm28 = vcmask 7168
  %s29 = scalar_lea.vmem %s1, 1
  %30 = vst.msk [vmem:[%s29] ss:$8 sm:$0xf] %vm28, %v27
  %s31 = scalar_lea.vmem %s1, 1
  %32 = vst.msk [vmem:[%s31] ss:$8 sm:$0xf0] %vm28, %v27
  %s33 = scalar_lea.vmem %s0, 8
  %v34 = vld [vmem:[%s33] sm:$0xff]
  %35 = vrot.lane.b32.xlu0 %v34, 127
  %v36 = vpop.permute.xlu0 %35
  %vm37 = vcmask 7168
  %s38 = scalar_lea.vmem %s1, 65
  %39 = vst.msk [vmem:[%s38] ss:$8 sm:$0xf] %vm37, %v36
  %s40 = scalar_lea.vmem %s1, 65
  %41 = vst.msk [vmem:[%s40] ss:$8 sm:$0xf0] %vm37, %v36
  %s42 = scalar_lea.vmem %s0, 16
  %v43 = vld [vmem:[%s42] sm:$0xff]
  %44 = vrot.lane.b32.xlu0 %v43, 127
  %v45 = vpop.permute.xlu0 %44
  %vm46 = vcmask 7168
  %s47 = scalar_lea.vmem %s1, 129
  %48 = vst.msk [vmem:[%s47] ss:$8 sm:$0xf] %vm46, %v45
  %s49 = scalar_lea.vmem %s1, 129
  %50 = vst.msk [vmem:[%s49] ss:$8 sm:$0xf0] %vm46, %v45
  %s51 = scalar_lea.vmem %s0, 24
  %v52 = vld [vmem:[%s51] sm:$0x7]
  %53 = vrot.lane.b32.xlu0 %v52, 127
  %v54 = vpop.permute.xlu0 %53
  %vm55 = vcmask 7168
  %s56 = scalar_lea.vmem %s1, 193
  %57 = vst.msk [vmem:[%s56] ss:$8 sm:$0x7] %vm55, %v54
  %v58 = vld [vmem:[%s0] sm:$0xff]
  %59 = vrot.lane.b32.xlu0 %v58, 126
  %v60 = vpop.permute.xlu0 %59
  %vm61 = vcmask 7168
  %s62 = scalar_lea.vmem %s1, 2
  %63 = vst.msk [vmem:[%s62] ss:$8 sm:$0xf] %vm61, %v60
  %s64 = scalar_lea.vmem %s1, 2
  %65 = vst.msk [vmem:[%s64] ss:$8 sm:$0xf0] %vm61, %v60
  %s66 = scalar_lea.vmem %s0, 8
  %v67 = vld [vmem:[%s66] sm:$0xff]
  %68 = vrot.lane.b32.xlu0 %v67, 126
  %v69 = vpop.permute.xlu0 %68
  %vm70 = vcmask 7168
  %s71 = scalar_lea.vmem %s1, 66
  %72 = vst.msk [vmem:[%s71] ss:$8 sm:$0xf] %vm70, %v69
  %s73 = scalar_lea.vmem %s1, 66
  %74 = vst.msk [vmem:[%s73] ss:$8 sm:$0xf0] %vm70, %v69
  %s75 = scalar_lea.vmem %s0, 16
  %v76 = vld [vmem:[%s75] sm:$0xff]
  %77 = vrot.lane.b32.xlu0 %v76, 126
  %v78 = vpop.permute.xlu0 %77
  %vm79 = vcmask 7168
  %s80 = scalar_lea.vmem %s1, 130
  %81 = vst.msk [vmem:[%s80] ss:$8 sm:$0xf] %vm79, %v78
  %s82 = scalar_lea.vmem %s1, 130
  %83 = vst.msk [vmem:[%s82] ss:$8 sm:$0xf0] %vm79, %v78
  %s84 = scalar_lea.vmem %s0, 24
  %v85 = vld [vmem:[%s84] sm:$0x7]
  %86 = vrot.lane.b32.xlu0 %v85, 126
  %v87 = vpop.permute.xlu0 %86
  %vm88 = vcmask 7168
  %s89 = scalar_lea.vmem %s1, 194
  %90 = vst.msk [vmem:[%s89] ss:$8 sm:$0x7] %vm88, %v87
  %v91 = vld [vmem:[%s0] sm:$0xff]
  %92 = vrot.lane.b32.xlu0 %v91, 125
  %v93 = vpop.permute.xlu0 %92
  %vm94 = vcmask 7168
  %s95 = scalar_lea.vmem %s1, 3
  %96 = vst.msk [vmem:[%s95] ss:$8 sm:$0xf] %vm94, %v93
  %s97 = scalar_lea.vmem %s1, 3
  %98 = vst.msk [vmem:[%s97] ss:$8 sm:$0xf0] %vm94, %v93
  %s99 = scalar_lea.vmem %s0, 8
  %v100 = vld [vmem:[%s99] sm:$0xff]
  %101 = vrot.lane.b32.xlu0 %v100, 125
  %v102 = vpop.permute.xlu0 %101
  %vm103 = vcmask 7168
  %s104 = scalar_lea.vmem %s1, 67
  %105 = vst.msk [vmem:[%s104] ss:$8 sm:$0xf] %vm103, %v102
  %s106 = scalar_lea.vmem %s1, 67
  %107 = vst.msk [vmem:[%s106] ss:$8 sm:$0xf0] %vm103, %v102
  %s108 = scalar_lea.vmem %s0, 16
  %v109 = vld [vmem:[%s108] sm:$0xff]
  %110 = vrot.lane.b32.xlu0 %v109, 125
  %v111 = vpop.permute.xlu0 %110
  %vm112 = vcmask 7168
  %s113 = scalar_lea.vmem %s1, 131
  %114 = vst.msk [vmem:[%s113] ss:$8 sm:$0xf] %vm112, %v111
  %s115 = scalar_lea.vmem %s1, 131
  %116 = vst.msk [vmem:[%s115] ss:$8 sm:$0xf0] %vm112, %v111
  %s117 = scalar_lea.vmem %s0, 24
  %v118 = vld [vmem:[%s117] sm:$0x7]
  %119 = vrot.lane.b32.xlu0 %v118, 125
  %v120 = vpop.permute.xlu0 %119
  %vm121 = vcmask 7168
  %s122 = scalar_lea.vmem %s1, 195
  %123 = vst.msk [vmem:[%s122] ss:$8 sm:$0x7] %vm121, %v120
  %v124 = vld [vmem:[%s0] sm:$0xff]
  %125 = vrot.lane.b32.xlu0 %v124, 124
  %v126 = vpop.permute.xlu0 %125
  %vm127 = vcmask 7168
  %s128 = scalar_lea.vmem %s1, 4
  %129 = vst.msk [vmem:[%s128] ss:$8 sm:$0xf] %vm127, %v126
  %s130 = scalar_lea.vmem %s1, 4
  %131 = vst.msk [vmem:[%s130] ss:$8 sm:$0xf0] %vm127, %v126
  %s132 = scalar_lea.vmem %s0, 8
  %v133 = vld [vmem:[%s132] sm:$0xff]
  %134 = vrot.lane.b32.xlu0 %v133, 124
  %v135 = vpop.permute.xlu0 %134
  %vm136 = vcmask 7168
  %s137 = scalar_lea.vmem %s1, 68
  %138 = vst.msk [vmem:[%s137] ss:$8 sm:$0xf] %vm136, %v135
  %s139 = scalar_lea.vmem %s1, 68
  %140 = vst.msk [vmem:[%s139] ss:$8 sm:$0xf0] %vm136, %v135
  %s141 = scalar_lea.vmem %s0, 16
  %v142 = vld [vmem:[%s141] sm:$0xff]
  %143 = vrot.lane.b32.xlu0 %v142, 124
  %v144 = vpop.permute.xlu0 %143
  %vm145 = vcmask 7168
  %s146 = scalar_lea.vmem %s1, 132
  %147 = vst.msk [vmem:[%s146] ss:$8 sm:$0xf] %vm145, %v144
  %s148 = scalar_lea.vmem %s1, 132
  %149 = vst.msk [vmem:[%s148] ss:$8 sm:$0xf0] %vm145, %v144
  %s150 = scalar_lea.vmem %s0, 24
  %v151 = vld [vmem:[%s150] sm:$0x7]
  %152 = vrot.lane.b32.xlu0 %v151, 124
  %v153 = vpop.permute.xlu0 %152
  %vm154 = vcmask 7168
  %s155 = scalar_lea.vmem %s1, 196
  %156 = vst.msk [vmem:[%s155] ss:$8 sm:$0x7] %vm154, %v153
  %v157 = vld [vmem:[%s0] sm:$0xff]
  %158 = vrot.lane.b32.xlu0 %v157, 123
  %v159 = vpop.permute.xlu0 %158
  %vm160 = vcmask 7168
  %s161 = scalar_lea.vmem %s1, 5
  %162 = vst.msk [vmem:[%s161] ss:$8 sm:$0xf] %vm160, %v159
  %s163 = scalar_lea.vmem %s1, 5
  %164 = vst.msk [vmem:[%s163] ss:$8 sm:$0xf0] %vm160, %v159
  %s165 = scalar_lea.vmem %s0, 8
  %v166 = vld [vmem:[%s165] sm:$0xff]
  %167 = vrot.lane.b32.xlu0 %v166, 123
  %v168 = vpop.permute.xlu0 %167
  %vm169 = vcmask 7168
  %s170 = scalar_lea.vmem %s1, 69
  %171 = vst.msk [vmem:[%s170] ss:$8 sm:$0xf] %vm169, %v168
  %s172 = scalar_lea.vmem %s1, 69
  %173 = vst.msk [vmem:[%s172] ss:$8 sm:$0xf0] %vm169, %v168
  %s174 = scalar_lea.vmem %s0, 16
  %v175 = vld [vmem:[%s174] sm:$0xff]
  %176 = vrot.lane.b32.xlu0 %v175, 123
  %v177 = vpop.permute.xlu0 %176
  %vm178 = vcmask 7168
  %s179 = scalar_lea.vmem %s1, 133
  %180 = vst.msk [vmem:[%s179] ss:$8 sm:$0xf] %vm178, %v177
  %s181 = scalar_lea.vmem %s1, 133
  %182 = vst.msk [vmem:[%s181] ss:$8 sm:$0xf0] %vm178, %v177
  %s183 = scalar_lea.vmem %s0, 24
  %v184 = vld [vmem:[%s183] sm:$0x7]
  %185 = vrot.lane.b32.xlu0 %v184, 123
  %v186 = vpop.permute.xlu0 %185
  %vm187 = vcmask 7168
  %s188 = scalar_lea.vmem %s1, 197
  %189 = vst.msk [vmem:[%s188] ss:$8 sm:$0x7] %vm187, %v186
  %v190 = vld [vmem:[%s0] sm:$0xff]
  %191 = vrot.lane.b32.xlu0 %v190, 122
  %v192 = vpop.permute.xlu0 %191
  %vm193 = vcmask 7168
  %s194 = scalar_lea.vmem %s1, 6
  %195 = vst.msk [vmem:[%s194] ss:$8 sm:$0xf] %vm193, %v192
  %s196 = scalar_lea.vmem %s1, 6
  %197 = vst.msk [vmem:[%s196] ss:$8 sm:$0xf0] %vm193, %v192
  %s198 = scalar_lea.vmem %s0, 8
  %v199 = vld [vmem:[%s198] sm:$0xff]
  %200 = vrot.lane.b32.xlu0 %v199, 122
  %v201 = vpop.permute.xlu0 %200
  %vm202 = vcmask 7168
  %s203 = scalar_lea.vmem %s1, 70
  %204 = vst.msk [vmem:[%s203] ss:$8 sm:$0xf] %vm202, %v201
  %s205 = scalar_lea.vmem %s1, 70
  %206 = vst.msk [vmem:[%s205] ss:$8 sm:$0xf0] %vm202, %v201
  %s207 = scalar_lea.vmem %s0, 16
  %v208 = vld [vmem:[%s207] sm:$0xff]
  %209 = vrot.lane.b32.xlu0 %v208, 122
  %v210 = vpop.permute.xlu0 %209
  %vm211 = vcmask 7168
  %s212 = scalar_lea.vmem %s1, 134
  %213 = vst.msk [vmem:[%s212] ss:$8 sm:$0xf] %vm211, %v210
  %s214 = scalar_lea.vmem %s1, 134
  %215 = vst.msk [vmem:[%s214] ss:$8 sm:$0xf0] %vm211, %v210
  %s216 = scalar_lea.vmem %s0, 24
  %v217 = vld [vmem:[%s216] sm:$0x7]
  %218 = vrot.lane.b32.xlu0 %v217, 122
  %v219 = vpop.permute.xlu0 %218
  %vm220 = vcmask 7168
  %s221 = scalar_lea.vmem %s1, 198
  %222 = vst.msk [vmem:[%s221] ss:$8 sm:$0x7] %vm220, %v219
  %v223 = vld [vmem:[%s0] sm:$0xff]
  %224 = vrot.lane.b32.xlu0 %v223, 121
  %v225 = vpop.permute.xlu0 %224
  %vm226 = vcmask 7168
  %s227 = scalar_lea.vmem %s1, 7
  %228 = vst.msk [vmem:[%s227] ss:$8 sm:$0xf] %vm226, %v225
  %s229 = scalar_lea.vmem %s1, 7
  %230 = vst.msk [vmem:[%s229] ss:$8 sm:$0xf0] %vm226, %v225
  %s231 = scalar_lea.vmem %s0, 8
  %v232 = vld [vmem:[%s231] sm:$0xff]
  %233 = vrot.lane.b32.xlu0 %v232, 121
  %v234 = vpop.permute.xlu0 %233
  %vm235 = vcmask 7168
  %s236 = scalar_lea.vmem %s1, 71
  %237 = vst.msk [vmem:[%s236] ss:$8 sm:$0xf] %vm235, %v234
  %s238 = scalar_lea.vmem %s1, 71
  %239 = vst.msk [vmem:[%s238] ss:$8 sm:$0xf0] %vm235, %v234
  %s240 = scalar_lea.vmem %s0, 16
  %v241 = vld [vmem:[%s240] sm:$0xff]
  %242 = vrot.lane.b32.xlu0 %v241, 121
  %v243 = vpop.permute.xlu0 %242
  %vm244 = vcmask 7168
  %s245 = scalar_lea.vmem %s1, 135
  %246 = vst.msk [vmem:[%s245] ss:$8 sm:$0xf] %vm244, %v243
  %s247 = scalar_lea.vmem %s1, 135
  %248 = vst.msk [vmem:[%s247] ss:$8 sm:$0xf0] %vm244, %v243
  %s249 = scalar_lea.vmem %s0, 24
  %v250 = vld [vmem:[%s249] sm:$0x7]
  %251 = vrot.lane.b32.xlu0 %v250, 121
  %v252 = vpop.permute.xlu0 %251
  %vm253 = vcmask 7168
  %s254 = scalar_lea.vmem %s1, 199
  %255 = vst.msk [vmem:[%s254] ss:$8 sm:$0x7] %vm253, %v252

// kernel: tile.38
$region0: #{tile.38}
  #allocation0 [shape = 's32[1]{0}', space=sflag, size = 0x4, scoped, tag = 'scoped memory for tile.38']
  %s0 = inlined_call_operand.vmem [shape: f32[8], index: 0, kind: input, shape index: {}]
  %s1 = inlined_call_operand.vmem [shape: f32[25,8], index: 1, kind: output, shape index: {}]
  // Predicated region
  $region2: #{tile.38} parent=0 // pred_check
    _
  $region3: #{tile.38} parent=0 // pred_check_branch
    %3 = sbr.rel (0) target = $region5
  $region4: #{tile.38} parent=0 // pred_region
    _
  $region5: #{tile.38} parent=0 // pred_fallthru
    _
  %v4 = vld [vmem:[%s0] ss:$0 sm:$0xff]
  %5 = vst [vmem:[%s1] sm:$0xff] %v4
  %s6 = scalar_lea.vmem %s1, 8
  %7 = vst [vmem:[%s6] sm:$0xff] %v4
  %s8 = scalar_lea.vmem %s1, 16
  %9 = vst [vmem:[%s8] sm:$0xff] %v4
  %s10 = scalar_lea.vmem %s1, 24
  %11 = vst [vmem:[%s10] sm:$0xff] %v4

// kernel: tile.1
$region0: #{tile.1}
  %s0 = inlined_call_operand.vmem [shape: f32[25,8], index: 0, kind: input, shape index: {}]
  %s1 = inlined_call_operand.vmem [shape: f32[200,1], index: 1, kind: output, shape index: {}]
  %v2 = vld [vmem:[%s0] sm:$0xff]
  %vm3 = vcmask 7168
  %4 = vst.msk [vmem:[%s1] ss:$8 sm:$0xf] %vm3, %v2
  %5 = vst.msk [vmem:[%s1] ss:$8 sm:$0xf0] %vm3, %v2
  %s6 = scalar_lea.vmem %s0, 8
  %v7 = vld [vmem:[%s6] sm:$0xff]
  %vm8 = vcmask 7168
  %s9 = scalar_lea.vmem %s1, 64
  %10 = vst.msk [vmem:[%s9] ss:$8 sm:$0xf] %vm8, %v7
  %s11 = scalar_lea.vmem %s1, 64
  %12 = vst.msk [vmem:[%s11] ss:$8 sm:$0xf0] %vm8, %v7
  %s13 = scalar_lea.vmem %s0, 16
  %v14 = vld [vmem:[%s13] sm:$0xff]
  %vm15 = vcmask 7168
  %s16 = scalar_lea.vmem %s1, 128
  %17 = vst.msk [vmem:[%s16] ss:$8 sm:$0xf] %vm15, %v14
  %s18 = scalar_lea.vmem %s1, 128
  %19 = vst.msk [vmem:[%s18] ss:$8 sm:$0xf0] %vm15, %v14
  %s20 = scalar_lea.vmem %s0, 24
  %v21 = vld [vmem:[%s20] sm:$0x1]
  %vm22 = vcmask 7168
  %s23 = scalar_lea.vmem %s1, 192
  %24 = vst.msk [vmem:[%s23] sm:$0x1] %vm22, %v21
  %v25 = vld [vmem:[%s0] sm:$0xff]
  %26 = vrot.lane.b32.xlu0 %v25, 127
  %v27 = vpop.permute.xlu0 %26
  %vm28 = vcmask 7168
  %s29 = scalar_lea.vmem %s1, 1
  %30 = vst.msk [vmem:[%s29] ss:$8 sm:$0xf] %vm28, %v27
  %s31 = scalar_lea.vmem %s1, 1
  %32 = vst.msk [vmem:[%s31] ss:$8 sm:$0xf0] %vm28, %v27
  %s33 = scalar_lea.vmem %s0, 8
  %v34 = vld [vmem:[%s33] sm:$0xff]
  %35 = vrot.lane.b32.xlu0 %v34, 127
  %v36 = vpop.permute.xlu0 %35
  %vm37 = vcmask 7168
  %s38 = scalar_lea.vmem %s1, 65
  %39 = vst.msk [vmem:[%s38] ss:$8 sm:$0xf] %vm37, %v36
  %s40 = scalar_lea.vmem %s1, 65
  %41 = vst.msk [vmem:[%s40] ss:$8 sm:$0xf0] %vm37, %v36
  %s42 = scalar_lea.vmem %s0, 16
  %v43 = vld [vmem:[%s42] sm:$0xff]
  %44 = vrot.lane.b32.xlu0 %v43, 127
  %v45 = vpop.permute.xlu0 %44
  %vm46 = vcmask 7168
  %s47 = scalar_lea.vmem %s1, 129
  %48 = vst.msk [vmem:[%s47] ss:$8 sm:$0xf] %vm46, %v45
  %s49 = scalar_lea.vmem %s1, 129
  %50 = vst.msk [vmem:[%s49] ss:$8 sm:$0xf0] %vm46, %v45
  %s51 = scalar_lea.vmem %s0, 24
  %v52 = vld [vmem:[%s51] sm:$0x1]
  %53 = vrot.lane.b32.xlu0 %v52, 127
  %v54 = vpop.permute.xlu0 %53
  %vm55 = vcmask 7168
  %s56 = scalar_lea.vmem %s1, 193
  %57 = vst.msk [vmem:[%s56] sm:$0x1] %vm55, %v54
  %v58 = vld [vmem:[%s0] sm:$0xff]
  %59 = vrot.lane.b32.xlu0 %v58, 126
  %v60 = vpop.permute.xlu0 %59
  %vm61 = vcmask 7168
  %s62 = scalar_lea.vmem %s1, 2
  %63 = vst.msk [vmem:[%s62] ss:$8 sm:$0xf] %vm61, %v60
  %s64 = scalar_lea.vmem %s1, 2
  %65 = vst.msk [vmem:[%s64] ss:$8 sm:$0xf0] %vm61, %v60
  %s66 = scalar_lea.vmem %s0, 8
  %v67 = vld [vmem:[%s66] sm:$0xff]
  %68 = vrot.lane.b32.xlu0 %v67, 126
  %v69 = vpop.permute.xlu0 %68
  %vm70 = vcmask 7168
  %s71 = scalar_lea.vmem %s1, 66
  %72 = vst.msk [vmem:[%s71] ss:$8 sm:$0xf] %vm70, %v69
  %s73 = scalar_lea.vmem %s1, 66
  %74 = vst.msk [vmem:[%s73] ss:$8 sm:$0xf0] %vm70, %v69
  %s75 = scalar_lea.vmem %s0, 16
  %v76 = vld [vmem:[%s75] sm:$0xff]
  %77 = vrot.lane.b32.xlu0 %v76, 126
  %v78 = vpop.permute.xlu0 %77
  %vm79 = vcmask 7168
  %s80 = scalar_lea.vmem %s1, 130
  %81 = vst.msk [vmem:[%s80] ss:$8 sm:$0xf] %vm79, %v78
  %s82 = scalar_lea.vmem %s1, 130
  %83 = vst.msk [vmem:[%s82] ss:$8 sm:$0xf0] %vm79, %v78
  %s84 = scalar_lea.vmem %s0, 24
  %v85 = vld [vmem:[%s84] sm:$0x1]
  %86 = vrot.lane.b32.xlu0 %v85, 126
  %v87 = vpop.permute.xlu0 %86
  %vm88 = vcmask 7168
  %s89 = scalar_lea.vmem %s1, 194
  %90 = vst.msk [vmem:[%s89] sm:$0x1] %vm88, %v87
  %v91 = vld [vmem:[%s0] sm:$0xff]
  %92 = vrot.lane.b32.xlu0 %v91, 125
  %v93 = vpop.permute.xlu0 %92
  %vm94 = vcmask 7168
  %s95 = scalar_lea.vmem %s1, 3
  %96 = vst.msk [vmem:[%s95] ss:$8 sm:$0xf] %vm94, %v93
  %s97 = scalar_lea.vmem %s1, 3
  %98 = vst.msk [vmem:[%s97] ss:$8 sm:$0xf0] %vm94, %v93
  %s99 = scalar_lea.vmem %s0, 8
  %v100 = vld [vmem:[%s99] sm:$0xff]
  %101 = vrot.lane.b32.xlu0 %v100, 125
  %v102 = vpop.permute.xlu0 %101
  %vm103 = vcmask 7168
  %s104 = scalar_lea.vmem %s1, 67
  %105 = vst.msk [vmem:[%s104] ss:$8 sm:$0xf] %vm103, %v102
  %s106 = scalar_lea.vmem %s1, 67
  %107 = vst.msk [vmem:[%s106] ss:$8 sm:$0xf0] %vm103, %v102
  %s108 = scalar_lea.vmem %s0, 16
  %v109 = vld [vmem:[%s108] sm:$0xff]
  %110 = vrot.lane.b32.xlu0 %v109, 125
  %v111 = vpop.permute.xlu0 %110
  %vm112 = vcmask 7168
  %s113 = scalar_lea.vmem %s1, 131
  %114 = vst.msk [vmem:[%s113] ss:$8 sm:$0xf] %vm112, %v111
  %s115 = scalar_lea.vmem %s1, 131
  %116 = vst.msk [vmem:[%s115] ss:$8 sm:$0xf0] %vm112, %v111
  %s117 = scalar_lea.vmem %s0, 24
  %v118 = vld [vmem:[%s117] sm:$0x1]
  %119 = vrot.lane.b32.xlu0 %v118, 125
  %v120 = vpop.permute.xlu0 %119
  %vm121 = vcmask 7168
  %s122 = scalar_lea.vmem %s1, 195
  %123 = vst.msk [vmem:[%s122] sm:$0x1] %vm121, %v120
  %v124 = vld [vmem:[%s0] sm:$0xff]
  %125 = vrot.lane.b32.xlu0 %v124, 124
  %v126 = vpop.permute.xlu0 %125
  %vm127 = vcmask 7168
  %s128 = scalar_lea.vmem %s1, 4
  %129 = vst.msk [vmem:[%s128] ss:$8 sm:$0xf] %vm127, %v126
  %s130 = scalar_lea.vmem %s1, 4
  %131 = vst.msk [vmem:[%s130] ss:$8 sm:$0xf0] %vm127, %v126
  %s132 = scalar_lea.vmem %s0, 8
  %v133 = vld [vmem:[%s132] sm:$0xff]
  %134 = vrot.lane.b32.xlu0 %v133, 124
  %v135 = vpop.permute.xlu0 %134
  %vm136 = vcmask 7168
  %s137 = scalar_lea.vmem %s1, 68
  %138 = vst.msk [vmem:[%s137] ss:$8 sm:$0xf] %vm136, %v135
  %s139 = scalar_lea.vmem %s1, 68
  %140 = vst.msk [vmem:[%s139] ss:$8 sm:$0xf0] %vm136, %v135
  %s141 = scalar_lea.vmem %s0, 16
  %v142 = vld [vmem:[%s141] sm:$0xff]
  %143 = vrot.lane.b32.xlu0 %v142, 124
  %v144 = vpop.permute.xlu0 %143
  %vm145 = vcmask 7168
  %s146 = scalar_lea.vmem %s1, 132
  %147 = vst.msk [vmem:[%s146] ss:$8 sm:$0xf] %vm145, %v144
  %s148 = scalar_lea.vmem %s1, 132
  %149 = vst.msk [vmem:[%s148] ss:$8 sm:$0xf0] %vm145, %v144
  %s150 = scalar_lea.vmem %s0, 24
  %v151 = vld [vmem:[%s150] sm:$0x1]
  %152 = vrot.lane.b32.xlu0 %v151, 124
  %v153 = vpop.permute.xlu0 %152
  %vm154 = vcmask 7168
  %s155 = scalar_lea.vmem %s1, 196
  %156 = vst.msk [vmem:[%s155] sm:$0x1] %vm154, %v153
  %v157 = vld [vmem:[%s0] sm:$0xff]
  %158 = vrot.lane.b32.xlu0 %v157, 123
  %v159 = vpop.permute.xlu0 %158
  %vm160 = vcmask 7168
  %s161 = scalar_lea.vmem %s1, 5
  %162 = vst.msk [vmem:[%s161] ss:$8 sm:$0xf] %vm160, %v159
  %s163 = scalar_lea.vmem %s1, 5
  %164 = vst.msk [vmem:[%s163] ss:$8 sm:$0xf0] %vm160, %v159
  %s165 = scalar_lea.vmem %s0, 8
  %v166 = vld [vmem:[%s165] sm:$0xff]
  %167 = vrot.lane.b32.xlu0 %v166, 123
  %v168 = vpop.permute.xlu0 %167
  %vm169 = vcmask 7168
  %s170 = scalar_lea.vmem %s1, 69
  %171 = vst.msk [vmem:[%s170] ss:$8 sm:$0xf] %vm169, %v168
  %s172 = scalar_lea.vmem %s1, 69
  %173 = vst.msk [vmem:[%s172] ss:$8 sm:$0xf0] %vm169, %v168
  %s174 = scalar_lea.vmem %s0, 16
  %v175 = vld [vmem:[%s174] sm:$0xff]
  %176 = vrot.lane.b32.xlu0 %v175, 123
  %v177 = vpop.permute.xlu0 %176
  %vm178 = vcmask 7168
  %s179 = scalar_lea.vmem %s1, 133
  %180 = vst.msk [vmem:[%s179] ss:$8 sm:$0xf] %vm178, %v177
  %s181 = scalar_lea.vmem %s1, 133
  %182 = vst.msk [vmem:[%s181] ss:$8 sm:$0xf0] %vm178, %v177
  %s183 = scalar_lea.vmem %s0, 24
  %v184 = vld [vmem:[%s183] sm:$0x1]
  %185 = vrot.lane.b32.xlu0 %v184, 123
  %v186 = vpop.permute.xlu0 %185
  %vm187 = vcmask 7168
  %s188 = scalar_lea.vmem %s1, 197
  %189 = vst.msk [vmem:[%s188] sm:$0x1] %vm187, %v186
  %v190 = vld [vmem:[%s0] sm:$0xff]
  %191 = vrot.lane.b32.xlu0 %v190, 122
  %v192 = vpop.permute.xlu0 %191
  %vm193 = vcmask 7168
  %s194 = scalar_lea.vmem %s1, 6
  %195 = vst.msk [vmem:[%s194] ss:$8 sm:$0xf] %vm193, %v192
  %s196 = scalar_lea.vmem %s1, 6
  %197 = vst.msk [vmem:[%s196] ss:$8 sm:$0xf0] %vm193, %v192
  %s198 = scalar_lea.vmem %s0, 8
  %v199 = vld [vmem:[%s198] sm:$0xff]
  %200 = vrot.lane.b32.xlu0 %v199, 122
  %v201 = vpop.permute.xlu0 %200
  %vm202 = vcmask 7168
  %s203 = scalar_lea.vmem %s1, 70
  %204 = vst.msk [vmem:[%s203] ss:$8 sm:$0xf] %vm202, %v201
  %s205 = scalar_lea.vmem %s1, 70
  %206 = vst.msk [vmem:[%s205] ss:$8 sm:$0xf0] %vm202, %v201
  %s207 = scalar_lea.vmem %s0, 16
  %v208 = vld [vmem:[%s207] sm:$0xff]
  %209 = vrot.lane.b32.xlu0 %v208, 122
  %v210 = vpop.permute.xlu0 %209
  %vm211 = vcmask 7168
  %s212 = scalar_lea.vmem %s1, 134
  %213 = vst.msk [vmem:[%s212] ss:$8 sm:$0xf] %vm211, %v210
  %s214 = scalar_lea.vmem %s1, 134
  %215 = vst.msk [vmem:[%s214] ss:$8 sm:$0xf0] %vm211, %v210
  %s216 = scalar_lea.vmem %s0, 24
  %v217 = vld [vmem:[%s216] sm:$0x1]
  %218 = vrot.lane.b32.xlu0 %v217, 122
  %v219 = vpop.permute.xlu0 %218
  %vm220 = vcmask 7168
  %s221 = scalar_lea.vmem %s1, 198
  %222 = vst.msk [vmem:[%s221] sm:$0x1] %vm220, %v219
  %v223 = vld [vmem:[%s0] sm:$0xff]
  %224 = vrot.lane.b32.xlu0 %v223, 121
  %v225 = vpop.permute.xlu0 %224
  %vm226 = vcmask 7168
  %s227 = scalar_lea.vmem %s1, 7
  %228 = vst.msk [vmem:[%s227] ss:$8 sm:$0xf] %vm226, %v225
  %s229 = scalar_lea.vmem %s1, 7
  %230 = vst.msk [vmem:[%s229] ss:$8 sm:$0xf0] %vm226, %v225
  %s231 = scalar_lea.vmem %s0, 8
  %v232 = vld [vmem:[%s231] sm:$0xff]
  %233 = vrot.lane.b32.xlu0 %v232, 121
  %v234 = vpop.permute.xlu0 %233
  %vm235 = vcmask 7168
  %s236 = scalar_lea.vmem %s1, 71
  %237 = vst.msk [vmem:[%s236] ss:$8 sm:$0xf] %vm235, %v234
  %s238 = scalar_lea.vmem %s1, 71
  %239 = vst.msk [vmem:[%s238] ss:$8 sm:$0xf0] %vm235, %v234
  %s240 = scalar_lea.vmem %s0, 16
  %v241 = vld [vmem:[%s240] sm:$0xff]
  %242 = vrot.lane.b32.xlu0 %v241, 121
  %v243 = vpop.permute.xlu0 %242
  %vm244 = vcmask 7168
  %s245 = scalar_lea.vmem %s1, 135
  %246 = vst.msk [vmem:[%s245] ss:$8 sm:$0xf] %vm244, %v243
  %s247 = scalar_lea.vmem %s1, 135
  %248 = vst.msk [vmem:[%s247] ss:$8 sm:$0xf0] %vm244, %v243
  %s249 = scalar_lea.vmem %s0, 24
  %v250 = vld [vmem:[%s249] sm:$0x1]
  %251 = vrot.lane.b32.xlu0 %v250, 121
  %v252 = vpop.permute.xlu0 %251
  %vm253 = vcmask 7168
  %s254 = scalar_lea.vmem %s1, 199
  %255 = vst.msk [vmem:[%s254] sm:$0x1] %vm253, %v252

// kernel: tile.33
$region0: #{tile.33}
  #allocation0 [shape = 's32[1]{0}', space=sflag, size = 0x4, scoped, tag = 'scoped memory for tile.33']
  %s0 = inlined_call_operand.vmem [shape: f32[8], index: 0, kind: input, shape index: {}]
  %s1 = inlined_call_operand.vmem [shape: f32[12,8], index: 1, kind: output, shape index: {}]
  // Predicated region
  $region2: #{tile.33} parent=0 // pred_check
    _
  $region3: #{tile.33} parent=0 // pred_check_branch
    %3 = sbr.rel (0) target = $region5
  $region4: #{tile.33} parent=0 // pred_region
    _
  $region5: #{tile.33} parent=0 // pred_fallthru
    _
  %v4 = vld [vmem:[%s0] ss:$0 sm:$0xff]
  %5 = vst [vmem:[%s1] sm:$0xff] %v4
  %s6 = scalar_lea.vmem %s1, 8
  %7 = vst [vmem:[%s6] sm:$0xff] %v4

// kernel: tile.0
$region0: #{tile.0}
  %s0 = inlined_call_operand.vmem [shape: f32[12,8], index: 0, kind: input, shape index: {}]
  %s1 = inlined_call_operand.vmem [shape: f32[96,1], index: 1, kind: output, shape index: {}]
  %v2 = vld [vmem:[%s0] sm:$0xff]
  %vm3 = vcmask 7168
  %4 = vst.msk [vmem:[%s1] ss:$8 sm:$0xf] %vm3, %v2
  %5 = vst.msk [vmem:[%s1] ss:$8 sm:$0xf0] %vm3, %v2
  %s6 = scalar_lea.vmem %s0, 8
  %v7 = vld [vmem:[%s6] sm:$0xf]
  %vm8 = vcmask 7168
  %s9 = scalar_lea.vmem %s1, 64
  %10 = vst.msk [vmem:[%s9] ss:$8 sm:$0xf] %vm8, %v7
  %v11 = vld [vmem:[%s0] sm:$0xff]
  %12 = vrot.lane.b32.xlu0 %v11, 127
  %v13 = vpop.permute.xlu0 %12
  %vm14 = vcmask 7168
  %s15 = scalar_lea.vmem %s1, 1
  %16 = vst.msk [vmem:[%s15] ss:$8 sm:$0xf] %vm14, %v13
  %s17 = scalar_lea.vmem %s1, 1
  %18 = vst.msk [vmem:[%s17] ss:$8 sm:$0xf0] %vm14, %v13
  %s19 = scalar_lea.vmem %s0, 8
  %v20 = vld [vmem:[%s19] sm:$0xf]
  %21 = vrot.lane.b32.xlu0 %v20, 127
  %v22 = vpop.permute.xlu0 %21
  %vm23 = vcmask 7168
  %s24 = scalar_lea.vmem %s1, 65
  %25 = vst.msk [vmem:[%s24] ss:$8 sm:$0xf] %vm23, %v22
  %v26 = vld [vmem:[%s0] sm:$0xff]
  %27 = vrot.lane.b32.xlu0 %v26, 126
  %v28 = vpop.permute.xlu0 %27
  %vm29 = vcmask 7168
  %s30 = scalar_lea.vmem %s1, 2
  %31 = vst.msk [vmem:[%s30] ss:$8 sm:$0xf] %vm29, %v28
  %s32 = scalar_lea.vmem %s1, 2
  %33 = vst.msk [vmem:[%s32] ss:$8 sm:$0xf0] %vm29, %v28
  %s34 = scalar_lea.vmem %s0, 8
  %v35 = vld [vmem:[%s34] sm:$0xf]
  %36 = vrot.lane.b32.xlu0 %v35, 126
  %v37 = vpop.permute.xlu0 %36
  %vm38 = vcmask 7168
  %s39 = scalar_lea.vmem %s1, 66
  %40 = vst.msk [vmem:[%s39] ss:$8 sm:$0xf] %vm38, %v37
  %v41 = vld [vmem:[%s0] sm:$0xff]
  %42 = vrot.lane.b32.xlu0 %v41, 125
  %v43 = vpop.permute.xlu0 %42
  %vm44 = vcmask 7168
  %s45 = scalar_lea.vmem %s1, 3
  %46 = vst.msk [vmem:[%s45] ss:$8 sm:$0xf] %vm44, %v43
  %s47 = scalar_lea.vmem %s1, 3
  %48 = vst.msk [vmem:[%s47] ss:$8 sm:$0xf0] %vm44, %v43
  %s49 = scalar_lea.vmem %s0, 8
  %v50 = vld [vmem:[%s49] sm:$0xf]
  %51 = vrot.lane.b32.xlu0 %v50, 125
  %v52 = vpop.permute.xlu0 %51
  %vm53 = vcmask 7168
  %s54 = scalar_lea.vmem %s1, 67
  %55 = vst.msk [vmem:[%s54] ss:$8 sm:$0xf] %vm53, %v52
  %v56 = vld [vmem:[%s0] sm:$0xff]
  %57 = vrot.lane.b32.xlu0 %v56, 124
  %v58 = vpop.permute.xlu0 %57
  %vm59 = vcmask 7168
  %s60 = scalar_lea.vmem %s1, 4
  %61 = vst.msk [vmem:[%s60] ss:$8 sm:$0xf] %vm59, %v58
  %s62 = scalar_lea.vmem %s1, 4
  %63 = vst.msk [vmem:[%s62] ss:$8 sm:$0xf0] %vm59, %v58
  %s64 = scalar_lea.vmem %s0, 8
  %v65 = vld [vmem:[%s64] sm:$0xf]
  %66 = vrot.lane.b32.xlu0 %v65, 124
  %v67 = vpop.permute.xlu0 %66
  %vm68 = vcmask 7168
  %s69 = scalar_lea.vmem %s1, 68
  %70 = vst.msk [vmem:[%s69] ss:$8 sm:$0xf] %vm68, %v67
  %v71 = vld [vmem:[%s0] sm:$0xff]
  %72 = vrot.lane.b32.xlu0 %v71, 123
  %v73 = vpop.permute.xlu0 %72
  %vm74 = vcmask 7168
  %s75 = scalar_lea.vmem %s1, 5
  %76 = vst.msk [vmem:[%s75] ss:$8 sm:$0xf] %vm74, %v73
  %s77 = scalar_lea.vmem %s1, 5
  %78 = vst.msk [vmem:[%s77] ss:$8 sm:$0xf0] %vm74, %v73
  %s79 = scalar_lea.vmem %s0, 8
  %v80 = vld [vmem:[%s79] sm:$0xf]
  %81 = vrot.lane.b32.xlu0 %v80, 123
  %v82 = vpop.permute.xlu0 %81
  %vm83 = vcmask 7168
  %s84 = scalar_lea.vmem %s1, 69
  %85 = vst.msk [vmem:[%s84] ss:$8 sm:$0xf] %vm83, %v82
  %v86 = vld [vmem:[%s0] sm:$0xff]
  %87 = vrot.lane.b32.xlu0 %v86, 122
  %v88 = vpop.permute.xlu0 %87
  %vm89 = vcmask 7168
  %s90 = scalar_lea.vmem %s1, 6
  %91 = vst.msk [vmem:[%s90] ss:$8 sm:$0xf] %vm89, %v88
  %s92 = scalar_lea.vmem %s1, 6
  %93 = vst.msk [vmem:[%s92] ss:$8 sm:$0xf0] %vm89, %v88
  %s94 = scalar_lea.vmem %s0, 8
  %v95 = vld [vmem:[%s94] sm:$0xf]
  %96 = vrot.lane.b32.xlu0 %v95, 122
  %v97 = vpop.permute.xlu0 %96
  %vm98 = vcmask 7168
  %s99 = scalar_lea.vmem %s1, 70
  %100 = vst.msk [vmem:[%s99] ss:$8 sm:$0xf] %vm98, %v97
  %v101 = vld [vmem:[%s0] sm:$0xff]
  %102 = vrot.lane.b32.xlu0 %v101, 121
  %v103 = vpop.permute.xlu0 %102
  %vm104 = vcmask 7168
  %s105 = scalar_lea.vmem %s1, 7
  %106 = vst.msk [vmem:[%s105] ss:$8 sm:$0xf] %vm104, %v103
  %s107 = scalar_lea.vmem %s1, 7
  %108 = vst.msk [vmem:[%s107] ss:$8 sm:$0xf0] %vm104, %v103
  %s109 = scalar_lea.vmem %s0, 8
  %v110 = vld [vmem:[%s109] sm:$0xf]
  %111 = vrot.lane.b32.xlu0 %v110, 121
  %v112 = vpop.permute.xlu0 %111
  %vm113 = vcmask 7168
  %s114 = scalar_lea.vmem %s1, 71
  %115 = vst.msk [vmem:[%s114] ss:$8 sm:$0xf] %vm113, %v112

// kernel: decoder_forward.1
$region0: #{decoder_forward.1}
  #allocation0 [shape = 'u32[]', space=smem, size = 0x4, offset = 0x4, fixed_abs, tag = 'smem constant byte address 0x4 - core index']
  #allocation1 [shape = 'u32[144,128]{1,0:T(1,128)}', space=vmem, size = 0x12000, scoped, tag = 'internal scratch']
  %s0 = inlined_call_operand.vmem [shape: f32[1,10,2], index: 0, kind: input, shape index: {}]
  %s1 = inlined_call_operand.vmem [shape: f32[96,10], index: 1, kind: input, shape index: {}]
  %s2 = inlined_call_operand.vmem [shape: f32[96,1], index: 2, kind: input, shape index: {}]
  %s3 = inlined_call_operand.vmem [shape: f32[128,96], index: 3, kind: input, shape index: {}]
  %s4 = inlined_call_operand.vmem [shape: f32[128,1], index: 4, kind: input, shape index: {}]
  %s5 = inlined_call_operand.vmem [shape: f32[8,28], index: 5, kind: input, shape index: {}]
  %s6 = inlined_call_operand.vmem [shape: f32[3,96,32], index: 6, kind: input, shape index: {}]
  %s7 = inlined_call_operand.vmem [shape: f32[96,1], index: 7, kind: input, shape index: {}]
  %s8 = inlined_call_operand.vmem [shape: f32[24,58], index: 8, kind: input, shape index: {}]
  %s9 = inlined_call_operand.vmem [shape: f32[5,200,96], index: 9, kind: input, shape index: {}]
  %s10 = inlined_call_operand.vmem [shape: f32[200,1], index: 10, kind: input, shape index: {}]
  %s11 = inlined_call_operand.vmem [shape: f32[50,62], index: 11, kind: input, shape index: {}]
  %s12 = inlined_call_operand.vmem [shape: f32[5,216,200], index: 12, kind: input, shape index: {}]
  %s13 = inlined_call_operand.vmem [shape: f32[216,1], index: 13, kind: input, shape index: {}]
  %s14 = inlined_call_operand.vmem [shape: f32[54,62], index: 14, kind: input, shape index: {}]
  %s15 = inlined_call_operand.vmem [shape: f32[4,224,216], index: 15, kind: input, shape index: {}]
  %s16 = inlined_call_operand.vmem [shape: f32[224,1], index: 16, kind: input, shape index: {}]
  %s17 = inlined_call_operand.vmem [shape: f32[56,60], index: 17, kind: input, shape index: {}, may-alias: {17,20}]
  %s18 = inlined_call_operand.vmem [shape: f32[3,224,224], index: 18, kind: input, shape index: {}]
  %s19 = inlined_call_operand.vmem [shape: f32[224,1], index: 19, kind: input, shape index: {}]
  %s20 = inlined_call_operand.vmem [shape: f32[56,60], index: 20, kind: input, shape index: {}, may-alias: {17,20}]
  %s21 = inlined_call_operand.vmem [shape: f32[3,224,224], index: 21, kind: input, shape index: {}]
  %s22 = inlined_call_operand.vmem [shape: f32[224,1], index: 22, kind: input, shape index: {}]
  %s23 = inlined_call_operand.vmem [shape: f32[1,224,56], index: 23, kind: output, shape index: {}]
  %s24 = sld [smem:[#allocation0]]
  $region102: #{decoder_forward.1} parent=0
    _
  %s26 = ssub.s32 1, %s24
  %s27 = scalar_select 0, %s26, %s24
  // Predicated region
  $region2: #{decoder_forward.1} parent=0 // pred_check
    _
  $region3: #{decoder_forward.1} parent=0 // pred_check_branch
    %29 = sbr.rel (0) target = $region5
  $region4: #{decoder_forward.1} parent=0 // pred_region
    _
  $region5: #{decoder_forward.1} parent=0 // pred_fallthru
    _
  // Predicated region
  $region6: #{decoder_forward.1} parent=0 // pred_check
    _
  $region7: #{decoder_forward.1} parent=0 // pred_check_branch
    %31 = sbr.rel (0) target = $region9
  $region8: #{decoder_forward.1} parent=0 // pred_region
    _
  $region9: #{decoder_forward.1} parent=0 // pred_fallthru
    _
  // Predicated region
  $region10: #{decoder_forward.1} parent=0 // pred_check
    _
  $region11: #{decoder_forward.1} parent=0 // pred_check_branch
    %33 = sbr.rel (0) target = $region13
  $region12: #{decoder_forward.1} parent=0 // pred_region
    _
  $region13: #{decoder_forward.1} parent=0 // pred_fallthru
    _
  // Predicated region
  $region14: #{decoder_forward.1} parent=0 // pred_check
    _
  $region15: #{decoder_forward.1} parent=0 // pred_check_branch
    %35 = sbr.rel (0) target = $region17
  $region16: #{decoder_forward.1} parent=0 // pred_region
    _
  $region17: #{decoder_forward.1} parent=0 // pred_fallthru
    _
  // Predicated region
  $region18: #{decoder_forward.1} parent=0 // pred_check
    _
  $region19: #{decoder_forward.1} parent=0 // pred_check_branch
    %37 = sbr.rel (0) target = $region21
  $region20: #{decoder_forward.1} parent=0 // pred_region
    _
  $region21: #{decoder_forward.1} parent=0 // pred_fallthru
    _
  // Predicated region
  $region22: #{decoder_forward.1} parent=0 // pred_check
    _
  $region23: #{decoder_forward.1} parent=0 // pred_check_branch
    %39 = sbr.rel (0) target = $region25
  $region24: #{decoder_forward.1} parent=0 // pred_region
    _
  $region25: #{decoder_forward.1} parent=0 // pred_fallthru
    _
  // Predicated region
  $region26: #{decoder_forward.1} parent=0 // pred_check
    _
  $region27: #{decoder_forward.1} parent=0 // pred_check_branch
    %41 = sbr.rel (0) target = $region29
  $region28: #{decoder_forward.1} parent=0 // pred_region
    _
  $region29: #{decoder_forward.1} parent=0 // pred_fallthru
    _
  // Predicated region
  $region30: #{decoder_forward.1} parent=0 // pred_check
    _
  $region31: #{decoder_forward.1} parent=0 // pred_check_branch
    %43 = sbr.rel (0) target = $region33
  $region32: #{decoder_forward.1} parent=0 // pred_region
    _
  $region33: #{decoder_forward.1} parent=0 // pred_fallthru
    _
  // Predicated region
  $region34: #{decoder_forward.1} parent=0 // pred_check
    _
  $region35: #{decoder_forward.1} parent=0 // pred_check_branch
    %45 = sbr.rel (0) target = $region37
  $region36: #{decoder_forward.1} parent=0 // pred_region
    _
  $region37: #{decoder_forward.1} parent=0 // pred_fallthru
    _
  // Predicated region
  $region38: #{decoder_forward.1} parent=0 // pred_check
    _
  $region39: #{decoder_forward.1} parent=0 // pred_check_branch
    %47 = sbr.rel (0) target = $region41
  $region40: #{decoder_forward.1} parent=0 // pred_region
    _
  $region41: #{decoder_forward.1} parent=0 // pred_fallthru
    _
  // Predicated region
  $region42: #{decoder_forward.1} parent=0 // pred_check
    _
  $region43: #{decoder_forward.1} parent=0 // pred_check_branch
    %49 = sbr.rel (0) target = $region45
  $region44: #{decoder_forward.1} parent=0 // pred_region
    _
  $region45: #{decoder_forward.1} parent=0 // pred_fallthru
    _
  // Predicated region
  $region46: #{decoder_forward.1} parent=0 // pred_check
    _
  $region47: #{decoder_forward.1} parent=0 // pred_check_branch
    %51 = sbr.rel (0) target = $region49
  $region48: #{decoder_forward.1} parent=0 // pred_region
    _
  $region49: #{decoder_forward.1} parent=0 // pred_fallthru
    _
  // Predicated region
  $region50: #{decoder_forward.1} parent=0 // pred_check
    _
  $region51: #{decoder_forward.1} parent=0 // pred_check_branch
    %53 = sbr.rel (0) target = $region53
  $region52: #{decoder_forward.1} parent=0 // pred_region
    _
  $region53: #{decoder_forward.1} parent=0 // pred_fallthru
    _
  // Predicated region
  $region54: #{decoder_forward.1} parent=0 // pred_check
    _
  $region55: #{decoder_forward.1} parent=0 // pred_check_branch
    %55 = sbr.rel (0) target = $region57
  $region56: #{decoder_forward.1} parent=0 // pred_region
    _
  $region57: #{decoder_forward.1} parent=0 // pred_fallthru
    _
  // Predicated region
  $region58: #{decoder_forward.1} parent=0 // pred_check
    _
  $region59: #{decoder_forward.1} parent=0 // pred_check_branch
    %57 = sbr.rel (0) target = $region61
  $region60: #{decoder_forward.1} parent=0 // pred_region
    _
  $region61: #{decoder_forward.1} parent=0 // pred_fallthru
    _
  // Predicated region
  $region62: #{decoder_forward.1} parent=0 // pred_check
    _
  $region63: #{decoder_forward.1} parent=0 // pred_check_branch
    %59 = sbr.rel (0) target = $region65
  $region64: #{decoder_forward.1} parent=0 // pred_region
    _
  $region65: #{decoder_forward.1} parent=0 // pred_fallthru
    _
  // Predicated region
  $region66: #{decoder_forward.1} parent=0 // pred_check
    _
  $region67: #{decoder_forward.1} parent=0 // pred_check_branch
    %61 = sbr.rel (0) target = $region69
  $region68: #{decoder_forward.1} parent=0 // pred_region
    _
  $region69: #{decoder_forward.1} parent=0 // pred_fallthru
    _
  // Predicated region
  $region70: #{decoder_forward.1} parent=0 // pred_check
    _
  $region71: #{decoder_forward.1} parent=0 // pred_check_branch
    %63 = sbr.rel (0) target = $region73
  $region72: #{decoder_forward.1} parent=0 // pred_region
    _
  $region73: #{decoder_forward.1} parent=0 // pred_fallthru
    _
  // Predicated region
  $region74: #{decoder_forward.1} parent=0 // pred_check
    _
  $region75: #{decoder_forward.1} parent=0 // pred_check_branch
    %65 = sbr.rel (0) target = $region77
  $region76: #{decoder_forward.1} parent=0 // pred_region
    _
  $region77: #{decoder_forward.1} parent=0 // pred_fallthru
    _
  // Predicated region
  $region78: #{decoder_forward.1} parent=0 // pred_check
    _
  $region79: #{decoder_forward.1} parent=0 // pred_check_branch
    %67 = sbr.rel (0) target = $region81
  $region80: #{decoder_forward.1} parent=0 // pred_region
    _
  $region81: #{decoder_forward.1} parent=0 // pred_fallthru
    _
  // Predicated region
  $region82: #{decoder_forward.1} parent=0 // pred_check
    _
  $region83: #{decoder_forward.1} parent=0 // pred_check_branch
    %69 = sbr.rel (0) target = $region85
  $region84: #{decoder_forward.1} parent=0 // pred_region
    _
  $region85: #{decoder_forward.1} parent=0 // pred_fallthru
    _
  // Predicated region
  $region86: #{decoder_forward.1} parent=0 // pred_check
    _
  $region87: #{decoder_forward.1} parent=0 // pred_check_branch
    %71 = sbr.rel (0) target = $region89
  $region88: #{decoder_forward.1} parent=0 // pred_region
    _
  $region89: #{decoder_forward.1} parent=0 // pred_fallthru
    _
  // Predicated region
  $region90: #{decoder_forward.1} parent=0 // pred_check
    _
  $region91: #{decoder_forward.1} parent=0 // pred_check_branch
    %73 = sbr.rel (0) target = $region93
  $region92: #{decoder_forward.1} parent=0 // pred_region
    _
  $region93: #{decoder_forward.1} parent=0 // pred_fallthru
    _
  %v74 = vld [vmem:[%s0] sm:$0xff]
  %v75 = vld [vmem:[%s0 + $0x8] sm:$0x3]
  %v76 = vld [vmem:[%s1] sm:$0xff]
  %v77 = vld [vmem:[%s1 + $0x8] sm:$0xff]
  %v78 = vld [vmem:[%s1 + $0x10] sm:$0xff]
  %v79 = vld [vmem:[%s1 + $0x18] sm:$0xff]
  %v80 = vld [vmem:[%s1 + $0x20] sm:$0xff]
  %v81 = vld [vmem:[%s1 + $0x28] sm:$0xff]
  %v82 = vld [vmem:[%s1 + $0x30] sm:$0xff]
  %v83 = vld [vmem:[%s1 + $0x38] sm:$0xff]
  %v84 = vld [vmem:[%s1 + $0x40] sm:$0xff]
  %v85 = vld [vmem:[%s1 + $0x48] sm:$0xff]
  %v86 = vld [vmem:[%s1 + $0x50] sm:$0xff]
  %v87 = vld [vmem:[%s1 + $0x58] sm:$0xff]
  %v88 = vld [vmem:[%s2] sm:$0xff]
  %v89 = vld [vmem:[%s2 + $0x8] sm:$0xff]
  %v90 = vld [vmem:[%s2 + $0x10] sm:$0xff]
  %v91 = vld [vmem:[%s2 + $0x18] sm:$0xff]
  %v92 = vld [vmem:[%s2 + $0x20] sm:$0xff]
  %v93 = vld [vmem:[%s2 + $0x28] sm:$0xff]
  %v94 = vld [vmem:[%s2 + $0x30] sm:$0xff]
  %v95 = vld [vmem:[%s2 + $0x38] sm:$0xff]
  %v96 = vld [vmem:[%s2 + $0x40] sm:$0xff]
  %v97 = vld [vmem:[%s2 + $0x48] sm:$0xff]
  %v98 = vld [vmem:[%s2 + $0x50] sm:$0xff]
  %v99 = vld [vmem:[%s2 + $0x58] sm:$0xff]
  %101 = vset.pattern.permute.xlu0 0
  %102 = vperm.xlu0 %101, %v88
  %v103 = vpop.permute.xlu0 %102
  %106 = vset.pattern.permute.xlu0 0
  %107 = vperm.xlu0 %106, %v89
  %v108 = vpop.permute.xlu0 %107
  %111 = vset.pattern.permute.xlu0 0
  %112 = vperm.xlu0 %111, %v90
  %v113 = vpop.permute.xlu0 %112
  %116 = vset.pattern.permute.xlu0 0
  %117 = vperm.xlu0 %116, %v91
  %v118 = vpop.permute.xlu0 %117
  %121 = vset.pattern.permute.xlu0 0
  %122 = vperm.xlu0 %121, %v92
  %v123 = vpop.permute.xlu0 %122
  %126 = vset.pattern.permute.xlu0 0
  %127 = vperm.xlu0 %126, %v93
  %v128 = vpop.permute.xlu0 %127
  %131 = vset.pattern.permute.xlu0 0
  %132 = vperm.xlu0 %131, %v94
  %v133 = vpop.permute.xlu0 %132
  %136 = vset.pattern.permute.xlu0 0
  %137 = vperm.xlu0 %136, %v95
  %v138 = vpop.permute.xlu0 %137
  %141 = vset.pattern.permute.xlu0 0
  %142 = vperm.xlu0 %141, %v96
  %v143 = vpop.permute.xlu0 %142
  %146 = vset.pattern.permute.xlu0 0
  %147 = vperm.xlu0 %146, %v97
  %v148 = vpop.permute.xlu0 %147
  %151 = vset.pattern.permute.xlu0 0
  %152 = vperm.xlu0 %151, %v98
  %v153 = vpop.permute.xlu0 %152
  %156 = vset.pattern.permute.xlu0 0
  %157 = vperm.xlu0 %156, %v99
  %v158 = vpop.permute.xlu0 %157
  %vm160 = vcmask 80896
  %v162 = vsel %vm160, %v76, 0
  %v165 = vsel %vm160, %v77, 0
  %v168 = vsel %vm160, %v78, 0
  %v171 = vsel %vm160, %v79, 0
  %v174 = vsel %vm160, %v80, 0
  %v177 = vsel %vm160, %v81, 0
  %v180 = vsel %vm160, %v82, 0
  %v183 = vsel %vm160, %v83, 0
  %v186 = vsel %vm160, %v84, 0
  %v189 = vsel %vm160, %v85, 0
  %v192 = vsel %vm160, %v86, 0
  %v195 = vsel %vm160, %v87, 0
  %vm197 = vcmask 1041408
  %v199 = vsel %vm197, %v75, 0
  %201 = vmatprep.subr.mxu0 0.0
  %202 = vmatpush1.msra.mxu0 %v74
  %203 = vmatprep.subr.mxu0 0.0
  %204 = vmatpush1.msra.mxu0 %v199
  %205 = vmatprep.subr.mxu0 0.0
  %206 = vmatpush1.msra.mxu0 0.0
  %207 = vmatprep.subr.mxu0 0.0
  %208 = vmatpush1.msra.mxu0 0.0
  %209 = vmatprep.subr.mxu0 0.0
  %210 = vmatpush1.msra.mxu0 0.0
  %211 = vmatprep.subr.mxu0 0.0
  %212 = vmatpush1.msra.mxu0 0.0
  %213 = vmatprep.subr.mxu0 0.0
  %214 = vmatpush1.msra.mxu0 0.0
  %215 = vmatprep.subr.mxu0 0.0
  %216 = vmatpush1.msra.mxu0 0.0
  %217 = vmatprep.subr.mxu0 0.0
  %218 = vmatpush1.msra.mxu0 0.0
  %219 = vmatprep.subr.mxu0 0.0
  %220 = vmatpush1.msra.mxu0 0.0
  %221 = vmatprep.subr.mxu0 0.0
  %222 = vmatpush1.msra.mxu0 0.0
  %223 = vmatprep.subr.mxu0 0.0
  %224 = vmatpush1.msra.mxu0 0.0
  %225 = vmatprep.subr.mxu0 0.0
  %226 = vmatpush1.msra.mxu0 0.0
  %227 = vmatprep.subr.mxu0 0.0
  %228 = vmatpush1.msra.mxu0 0.0
  %229 = vmatprep.subr.mxu0 0.0
  %230 = vmatpush1.msra.mxu0 0.0
  %231 = vmatprep.subr.mxu0 0.0
  %232 = vmatpush1.msra.mxu0 0.0
  %233 = vmatprep.subr.mxu0 0.0
  %234 = vmatpush1.msra.mxu0 0.0
  %235 = vmatprep.subr.mxu0 0.0
  %236 = vmatpush1.msra.mxu0 0.0
  %237 = vmatprep.subr.mxu0 0.0
  %238 = vmatpush1.msra.mxu0 0.0
  %239 = vmatprep.subr.mxu0 0.0
  %240 = vmatpush1.msra.mxu0 0.0
  %241 = vmatprep.subr.mxu0 0.0
  %242 = vmatpush1.msra.mxu0 0.0
  %243 = vmatprep.subr.mxu0 0.0
  %244 = vmatpush1.msra.mxu0 0.0
  %245 = vmatprep.subr.mxu0 0.0
  %246 = vmatpush1.msra.mxu0 0.0
  %247 = vmatprep.subr.mxu0 0.0
  %248 = vmatpush1.msra.mxu0 0.0
  %249 = vmatprep.subr.mxu0 0.0
  %250 = vmatpush1.msra.mxu0 0.0
  %251 = vmatprep.subr.mxu0 0.0
  %252 = vmatpush1.msra.mxu0 0.0
  %253 = vmatprep.subr.mxu0 0.0
  %254 = vmatpush1.msra.mxu0 0.0
  %255 = vmatprep.subr.mxu0 0.0
  %256 = vmatpush1.msra.mxu0 0.0
  %257 = vmatprep.subr.mxu0 0.0
  %258 = vmatpush1.msra.mxu0 0.0
  %259 = vmatprep.subr.mxu0 0.0
  %260 = vmatpush1.msra.mxu0 0.0
  %261 = vmatprep.subr.mxu0 0.0
  %262 = vmatpush1.msra.mxu0 0.0
  %263 = vmatprep.subr.mxu0 0.0
  %264 = vmatpush1.msra.mxu0 0.0
  %265 = vmatprep.mubr.f32.mxu0 0.0
  %266 = vmatmul.mubr.f32.gmra.mrb[0].mxu0 %v162
  %v267 = vpop.f32.mrb[0].mxu0
  %v268 = vadd.f32 %v103, %v267
  %v269 = vpop.f32.mrb[0].mxu0
  %270 = vmatprep.mubr.f32.mxu0 0.0
  %271 = vmatmul.mubr.f32.gmra.mrb[0].mxu0 %v165
  %v272 = vpop.f32.mrb[0].mxu0
  %v273 = vadd.f32 %v108, %v272
  %v274 = vpop.f32.mrb[0].mxu0
  %275 = vmatprep.mubr.f32.mxu0 0.0
  %276 = vmatmul.mubr.f32.gmra.mrb[0].mxu0 %v168
  %v277 = vpop.f32.mrb[0].mxu0
  %v278 = vadd.f32 %v113, %v277
  %v279 = vpop.f32.mrb[0].mxu0
  %280 = vmatprep.mubr.f32.mxu0 0.0
  %281 = vmatmul.mubr.f32.gmra.mrb[0].mxu0 %v171
  %v282 = vpop.f32.mrb[0].mxu0
  %v283 = vadd.f32 %v118, %v282
  %v284 = vpop.f32.mrb[0].mxu0
  %285 = vmatprep.mubr.f32.mxu0 0.0
  %286 = vmatmul.mubr.f32.gmra.mrb[0].mxu0 %v174
  %v287 = vpop.f32.mrb[0].mxu0
  %v288 = vadd.f32 %v123, %v287
  %v289 = vpop.f32.mrb[0].mxu0
  %290 = vmatprep.mubr.f32.mxu0 0.0
  %291 = vmatmul.mubr.f32.gmra.mrb[0].mxu0 %v177
  %v292 = vpop.f32.mrb[0].mxu0
  %v293 = vadd.f32 %v128, %v292
  %v294 = vpop.f32.mrb[0].mxu0
  %295 = vmatprep.mubr.f32.mxu0 0.0
  %296 = vmatmul.mubr.f32.gmra.mrb[0].mxu0 %v180
  %v297 = vpop.f32.mrb[0].mxu0
  %v298 = vadd.f32 %v133, %v297
  %v299 = vpop.f32.mrb[0].mxu0
  %300 = vmatprep.mubr.f32.mxu0 0.0
  %301 = vmatmul.mubr.f32.gmra.mrb[0].mxu0 %v183
  %v302 = vpop.f32.mrb[0].mxu0
  %v303 = vadd.f32 %v138, %v302
  %v304 = vpop.f32.mrb[0].mxu0
  %305 = vmatprep.mubr.f32.mxu0 0.0
  %306 = vmatmul.mubr.f32.gmra.mrb[0].mxu0 %v186
  %v307 = vpop.f32.mrb[0].mxu0
  %v308 = vadd.f32 %v143, %v307
  %v309 = vpop.f32.mrb[0].mxu0
  %310 = vmatprep.mubr.f32.mxu0 0.0
  %311 = vmatmul.mubr.f32.gmra.mrb[0].mxu0 %v189
  %v312 = vpop.f32.mrb[0].mxu0
  %v313 = vadd.f32 %v148, %v312
  %v314 = vpop.f32.mrb[0].mxu0
  %315 = vmatprep.mubr.f32.mxu0 0.0
  %316 = vmatmul.mubr.f32.gmra.mrb[0].mxu0 %v192
  %v317 = vpop.f32.mrb[0].mxu0
  %v318 = vadd.f32 %v153, %v317
  %v319 = vpop.f32.mrb[0].mxu0
  %320 = vmatprep.mubr.f32.mxu0 0.0
  %321 = vmatmul.mubr.f32.gmra.mrb[0].mxu0 %v195
  %v322 = vpop.f32.mrb[0].mxu0
  %v323 = vadd.f32 %v158, %v322
  %v324 = vpop.f32.mrb[0].mxu0
  %325 = vdwg.mxu0
  %v326 = vmax.f32 %v268, 0.0
  %v327 = vmax.f32 %v273, 0.0
  %v328 = vmax.f32 %v278, 0.0
  %v329 = vmax.f32 %v283, 0.0
  %v330 = vmax.f32 %v288, 0.0
  %v331 = vmax.f32 %v293, 0.0
  %v332 = vmax.f32 %v298, 0.0
  %v333 = vmax.f32 %v303, 0.0
  %v334 = vmax.f32 %v308, 0.0
  %v335 = vmax.f32 %v313, 0.0
  %v336 = vmax.f32 %v318, 0.0
  %v337 = vmax.f32 %v323, 0.0
  %v338 = vld [vmem:[%s3] sm:$0xff]
  %v339 = vld [vmem:[%s3 + $0x8] sm:$0xff]
  %v340 = vld [vmem:[%s3 + $0x10] sm:$0xff]
  %v341 = vld [vmem:[%s3 + $0x18] sm:$0xff]
  %v342 = vld [vmem:[%s3 + $0x20] sm:$0xff]
  %v343 = vld [vmem:[%s3 + $0x28] sm:$0xff]
  %v344 = vld [vmem:[%s3 + $0x30] sm:$0xff]
  %v345 = vld [vmem:[%s3 + $0x38] sm:$0xff]
  %v346 = vld [vmem:[%s3 + $0x40] sm:$0xff]
  %v347 = vld [vmem:[%s3 + $0x48] sm:$0xff]
  %v348 = vld [vmem:[%s3 + $0x50] sm:$0xff]
  %v349 = vld [vmem:[%s3 + $0x58] sm:$0xff]
  %v350 = vld [vmem:[%s3 + $0x60] sm:$0xff]
  %v351 = vld [vmem:[%s3 + $0x68] sm:$0xff]
  %v352 = vld [vmem:[%s3 + $0x70] sm:$0xff]
  %v353 = vld [vmem:[%s3 + $0x78] sm:$0xff]
  %v354 = vld [vmem:[%s4] sm:$0xff]
  %v355 = vld [vmem:[%s4 + $0x8] sm:$0xff]
  %v356 = vld [vmem:[%s4 + $0x10] sm:$0xff]
  %v357 = vld [vmem:[%s4 + $0x18] sm:$0xff]
  %v358 = vld [vmem:[%s4 + $0x20] sm:$0xff]
  %v359 = vld [vmem:[%s4 + $0x28] sm:$0xff]
  %v360 = vld [vmem:[%s4 + $0x30] sm:$0xff]
  %v361 = vld [vmem:[%s4 + $0x38] sm:$0xff]
  %v362 = vld [vmem:[%s4 + $0x40] sm:$0xff]
  %v363 = vld [vmem:[%s4 + $0x48] sm:$0xff]
  %v364 = vld [vmem:[%s4 + $0x50] sm:$0xff]
  %v365 = vld [vmem:[%s4 + $0x58] sm:$0xff]
  %v366 = vld [vmem:[%s4 + $0x60] sm:$0xff]
  %v367 = vld [vmem:[%s4 + $0x68] sm:$0xff]
  %v368 = vld [vmem:[%s4 + $0x70] sm:$0xff]
  %v369 = vld [vmem:[%s4 + $0x78] sm:$0xff]
  %371 = vset.pattern.permute.xlu0 0
  %372 = vperm.xlu0 %371, %v354
  %v373 = vpop.permute.xlu0 %372
  %376 = vset.pattern.permute.xlu0 0
  %377 = vperm.xlu0 %376, %v355
  %v378 = vpop.permute.xlu0 %377
  %381 = vset.pattern.permute.xlu0 0
  %382 = vperm.xlu0 %381, %v356
  %v383 = vpop.permute.xlu0 %382
  %386 = vset.pattern.permute.xlu0 0
  %387 = vperm.xlu0 %386, %v357
  %v388 = vpop.permute.xlu0 %387
  %391 = vset.pattern.permute.xlu0 0
  %392 = vperm.xlu0 %391, %v358
  %v393 = vpop.permute.xlu0 %392
  %396 = vset.pattern.permute.xlu0 0
  %397 = vperm.xlu0 %396, %v359
  %v398 = vpop.permute.xlu0 %397
  %401 = vset.pattern.permute.xlu0 0
  %402 = vperm.xlu0 %401, %v360
  %v403 = vpop.permute.xlu0 %402
  %406 = vset.pattern.permute.xlu0 0
  %407 = vperm.xlu0 %406, %v361
  %v408 = vpop.permute.xlu0 %407
  %411 = vset.pattern.permute.xlu0 0
  %412 = vperm.xlu0 %411, %v362
  %v413 = vpop.permute.xlu0 %412
  %416 = vset.pattern.permute.xlu0 0
  %417 = vperm.xlu0 %416, %v363
  %v418 = vpop.permute.xlu0 %417
  %421 = vset.pattern.permute.xlu0 0
  %422 = vperm.xlu0 %421, %v364
  %v423 = vpop.permute.xlu0 %422
  %426 = vset.pattern.permute.xlu0 0
  %427 = vperm.xlu0 %426, %v365
  %v428 = vpop.permute.xlu0 %427
  %431 = vset.pattern.permute.xlu0 0
  %432 = vperm.xlu0 %431, %v366
  %v433 = vpop.permute.xlu0 %432
  %436 = vset.pattern.permute.xlu0 0
  %437 = vperm.xlu0 %436, %v367
  %v438 = vpop.permute.xlu0 %437
  %441 = vset.pattern.permute.xlu0 0
  %442 = vperm.xlu0 %441, %v368
  %v443 = vpop.permute.xlu0 %442
  %446 = vset.pattern.permute.xlu0 0
  %447 = vperm.xlu0 %446, %v369
  %v448 = vpop.permute.xlu0 %447
  %vm450 = vcmask 785408
  %v452 = vsel %vm450, %v338, 0
  %v455 = vsel %vm450, %v339, 0
  %v458 = vsel %vm450, %v340, 0
  %v461 = vsel %vm450, %v341, 0
  %v464 = vsel %vm450, %v342, 0
  %v467 = vsel %vm450, %v343, 0
  %v470 = vsel %vm450, %v344, 0
  %v473 = vsel %vm450, %v345, 0
  %v476 = vsel %vm450, %v346, 0
  %v479 = vsel %vm450, %v347, 0
  %v482 = vsel %vm450, %v348, 0
  %v485 = vsel %vm450, %v349, 0
  %v488 = vsel %vm450, %v350, 0
  %v491 = vsel %vm450, %v351, 0
  %v494 = vsel %vm450, %v352, 0
  %v497 = vsel %vm450, %v353, 0
  %499 = vmatprep.subr.mxu0 0.0
  %500 = vmatpush1.msra.mxu0 %v326
  %501 = vmatprep.subr.mxu0 0.0
  %502 = vmatpush1.msra.mxu0 %v327
  %503 = vmatprep.subr.mxu0 0.0
  %504 = vmatpush1.msra.mxu0 %v328
  %505 = vmatprep.subr.mxu0 0.0
  %506 = vmatpush1.msra.mxu0 %v329
  %507 = vmatprep.subr.mxu0 0.0
  %508 = vmatpush1.msra.mxu0 %v330
  %509 = vmatprep.subr.mxu0 0.0
  %510 = vmatpush1.msra.mxu0 %v331
  %511 = vmatprep.subr.mxu0 0.0
  %512 = vmatpush1.msra.mxu0 %v332
  %513 = vmatprep.subr.mxu0 0.0
  %514 = vmatpush1.msra.mxu0 %v333
  %515 = vmatprep.subr.mxu0 0.0
  %516 = vmatpush1.msra.mxu0 %v334
  %517 = vmatprep.subr.mxu0 0.0
  %518 = vmatpush1.msra.mxu0 %v335
  %519 = vmatprep.subr.mxu0 0.0
  %520 = vmatpush1.msra.mxu0 %v336
  %521 = vmatprep.subr.mxu0 0.0
  %522 = vmatpush1.msra.mxu0 %v337
  %523 = vmatprep.subr.mxu0 0.0
  %524 = vmatpush1.msra.mxu0 0.0
  %525 = vmatprep.subr.mxu0 0.0
  %526 = vmatpush1.msra.mxu0 0.0
  %527 = vmatprep.subr.mxu0 0.0
  %528 = vmatpush1.msra.mxu0 0.0
  %529 = vmatprep.subr.mxu0 0.0
  %530 = vmatpush1.msra.mxu0 0.0
  %531 = vmatprep.subr.mxu0 0.0
  %532 = vmatpush1.msra.mxu0 0.0
  %533 = vmatprep.subr.mxu0 0.0
  %534 = vmatpush1.msra.mxu0 0.0
  %535 = vmatprep.subr.mxu0 0.0
  %536 = vmatpush1.msra.mxu0 0.0
  %537 = vmatprep.subr.mxu0 0.0
  %538 = vmatpush1.msra.mxu0 0.0
  %539 = vmatprep.subr.mxu0 0.0
  %540 = vmatpush1.msra.mxu0 0.0
  %541 = vmatprep.subr.mxu0 0.0
  %542 = vmatpush1.msra.mxu0 0.0
  %543 = vmatprep.subr.mxu0 0.0
  %544 = vmatpush1.msra.mxu0 0.0
  %545 = vmatprep.subr.mxu0 0.0
  %546 = vmatpush1.msra.mxu0 0.0
  %547 = vmatprep.subr.mxu0 0.0
  %548 = vmatpush1.msra.mxu0 0.0
  %549 = vmatprep.subr.mxu0 0.0
  %550 = vmatpush1.msra.mxu0 0.0
  %551 = vmatprep.subr.mxu0 0.0
  %552 = vmatpush1.msra.mxu0 0.0
  %553 = vmatprep.subr.mxu0 0.0
  %554 = vmatpush1.msra.mxu0 0.0
  %555 = vmatprep.subr.mxu0 0.0
  %556 = vmatpush1.msra.mxu0 0.0
  %557 = vmatprep.subr.mxu0 0.0
  %558 = vmatpush1.msra.mxu0 0.0
  %559 = vmatprep.subr.mxu0 0.0
  %560 = vmatpush1.msra.mxu0 0.0
  %561 = vmatprep.subr.mxu0 0.0
  %562 = vmatpush1.msra.mxu0 0.0
  %563 = vmatprep.mubr.f32.mxu0 0.0
  %564 = vmatmul.mubr.f32.gmra.mrb[0].mxu0 %v452
  %v565 = vpop.f32.mrb[0].mxu0
  %v566 = vadd.f32 %v373, %v565
  %v567 = vpop.f32.mrb[0].mxu0
  %568 = vmatprep.mubr.f32.mxu0 0.0
  %569 = vmatmul.mubr.f32.gmra.mrb[0].mxu0 %v455
  %v570 = vpop.f32.mrb[0].mxu0
  %v571 = vadd.f32 %v378, %v570
  %v572 = vpop.f32.mrb[0].mxu0
  %573 = vmatprep.mubr.f32.mxu0 0.0
  %574 = vmatmul.mubr.f32.gmra.mrb[0].mxu0 %v458
  %v575 = vpop.f32.mrb[0].mxu0
  %v576 = vadd.f32 %v383, %v575
  %v577 = vpop.f32.mrb[0].mxu0
  %578 = vmatprep.mubr.f32.mxu0 0.0
  %579 = vmatmul.mubr.f32.gmra.mrb[0].mxu0 %v461
  %v580 = vpop.f32.mrb[0].mxu0
  %v581 = vadd.f32 %v388, %v580
  %v582 = vpop.f32.mrb[0].mxu0
  %583 = vmatprep.mubr.f32.mxu0 0.0
  %584 = vmatmul.mubr.f32.gmra.mrb[0].mxu0 %v464
  %v585 = vpop.f32.mrb[0].mxu0
  %v586 = vadd.f32 %v393, %v585
  %v587 = vpop.f32.mrb[0].mxu0
  %588 = vmatprep.mubr.f32.mxu0 0.0
  %589 = vmatmul.mubr.f32.gmra.mrb[0].mxu0 %v467
  %v590 = vpop.f32.mrb[0].mxu0
  %v591 = vadd.f32 %v398, %v590
  %v592 = vpop.f32.mrb[0].mxu0
  %593 = vmatprep.mubr.f32.mxu0 0.0
  %594 = vmatmul.mubr.f32.gmra.mrb[0].mxu0 %v470
  %v595 = vpop.f32.mrb[0].mxu0
  %v596 = vadd.f32 %v403, %v595
  %v597 = vpop.f32.mrb[0].mxu0
  %598 = vmatprep.mubr.f32.mxu0 0.0
  %599 = vmatmul.mubr.f32.gmra.mrb[0].mxu0 %v473
  %v600 = vpop.f32.mrb[0].mxu0
  %v601 = vadd.f32 %v408, %v600
  %v602 = vpop.f32.mrb[0].mxu0
  %603 = vmatprep.mubr.f32.mxu0 0.0
  %604 = vmatmul.mubr.f32.gmra.mrb[0].mxu0 %v476
  %v605 = vpop.f32.mrb[0].mxu0
  %v606 = vadd.f32 %v413, %v605
  %v607 = vpop.f32.mrb[0].mxu0
  %608 = vmatprep.mubr.f32.mxu0 0.0
  %609 = vmatmul.mubr.f32.gmra.mrb[0].mxu0 %v479
  %v610 = vpop.f32.mrb[0].mxu0
  %v611 = vadd.f32 %v418, %v610
  %v612 = vpop.f32.mrb[0].mxu0
  %613 = vmatprep.mubr.f32.mxu0 0.0
  %614 = vmatmul.mubr.f32.gmra.mrb[0].mxu0 %v482
  %v615 = vpop.f32.mrb[0].mxu0
  %v616 = vadd.f32 %v423, %v615
  %v617 = vpop.f32.mrb[0].mxu0
  %618 = vmatprep.mubr.f32.mxu0 0.0
  %619 = vmatmul.mubr.f32.gmra.mrb[0].mxu0 %v485
  %v620 = vpop.f32.mrb[0].mxu0
  %v621 = vadd.f32 %v428, %v620
  %v622 = vpop.f32.mrb[0].mxu0
  %623 = vmatprep.mubr.f32.mxu0 0.0
  %624 = vmatmul.mubr.f32.gmra.mrb[0].mxu0 %v488
  %v625 = vpop.f32.mrb[0].mxu0
  %v626 = vadd.f32 %v433, %v625
  %v627 = vpop.f32.mrb[0].mxu0
  %628 = vmatprep.mubr.f32.mxu0 0.0
  %629 = vmatmul.mubr.f32.gmra.mrb[0].mxu0 %v491
  %v630 = vpop.f32.mrb[0].mxu0
  %v631 = vadd.f32 %v438, %v630
  %v632 = vpop.f32.mrb[0].mxu0
  %633 = vmatprep.mubr.f32.mxu0 0.0
  %634 = vmatmul.mubr.f32.gmra.mrb[0].mxu0 %v494
  %v635 = vpop.f32.mrb[0].mxu0
  %v636 = vadd.f32 %v443, %v635
  %v637 = vpop.f32.mrb[0].mxu0
  %638 = vmatprep.mubr.f32.mxu0 0.0
  %639 = vmatmul.mubr.f32.gmra.mrb[0].mxu0 %v497
  %v640 = vpop.f32.mrb[0].mxu0
  %v641 = vadd.f32 %v448, %v640
  %v642 = vpop.f32.mrb[0].mxu0
  %643 = vdwg.mxu0
  %648 = vrot.lane.b32.xlu0 %v586, 2
  %v649 = vpop.permute.xlu0 %648
  %650 = vrot.lane.b32.xlu0 %v591, 2
  %v651 = vpop.permute.xlu0 %650
  %652 = vrot.lane.b32.xlu0 %v596, 2
  %v653 = vpop.permute.xlu0 %652
  %654 = vrot.lane.b32.xlu0 %v601, 2
  %v655 = vpop.permute.xlu0 %654
  %664 = vrot.lane.b32.xlu0 %v606, 4
  %v665 = vpop.permute.xlu0 %664
  %666 = vrot.lane.b32.xlu0 %v611, 4
  %v667 = vpop.permute.xlu0 %666
  %668 = vrot.lane.b32.xlu0 %v616, 4
  %v669 = vpop.permute.xlu0 %668
  %670 = vrot.lane.b32.xlu0 %v621, 4
  %v671 = vpop.permute.xlu0 %670
  %680 = vrot.lane.b32.xlu0 %v626, 6
  %v681 = vpop.permute.xlu0 %680
  %682 = vrot.lane.b32.xlu0 %v631, 6
  %v683 = vpop.permute.xlu0 %682
  %684 = vrot.lane.b32.xlu0 %v636, 6
  %v685 = vpop.permute.xlu0 %684
  %686 = vrot.lane.b32.xlu0 %v641, 6
  %v687 = vpop.permute.xlu0 %686
  %vm692 = vcmask 15360
  %v693 = vsel %vm692, %v566, %v649
  %v694 = vsel %vm692, %v571, %v651
  %v695 = vsel %vm692, %v576, %v653
  %v696 = vsel %vm692, %v581, %v655
  %vm697 = vcmask 31744
  %v698 = vsel %vm697, %v693, %v665
  %v699 = vsel %vm697, %v694, %v667
  %v700 = vsel %vm697, %v695, %v669
  %v701 = vsel %vm697, %v696, %v671
  %vm702 = vcmask 48128
  %v703 = vsel %vm702, %v698, %v681
  %v704 = vsel %vm702, %v699, %v683
  %v705 = vsel %vm702, %v700, %v685
  %v706 = vsel %vm702, %v701, %v687
  %v707 = vld [vmem:[%s5] sm:$0xff]
  %vm708 = vcmask 64512
  %v710 = vsel %vm708, %v703, 0
  %v713 = vsel %vm708, %v704, 0
  %v716 = vsel %vm708, %v705, 0
  %v719 = vsel %vm708, %v706, 0
  %721 = vmatprep.subr.mxu0 0.0
  %722 = vmatpush1.msra.mxu0 %v707
  %723 = vmatprep.subr.mxu0 0.0
  %724 = vmatpush1.msra.mxu0 0.0
  %725 = vmatprep.subr.mxu0 0.0
  %726 = vmatpush1.msra.mxu0 0.0
  %727 = vmatprep.subr.mxu0 0.0
  %728 = vmatpush1.msra.mxu0 0.0
  %729 = vmatprep.subr.mxu0 0.0
  %730 = vmatpush1.msra.mxu0 0.0
  %731 = vmatprep.subr.mxu0 0.0
  %732 = vmatpush1.msra.mxu0 0.0
  %733 = vmatprep.subr.mxu0 0.0
  %734 = vmatpush1.msra.mxu0 0.0
  %735 = vmatprep.subr.mxu0 0.0
  %736 = vmatpush1.msra.mxu0 0.0
  %737 = vmatprep.subr.mxu0 0.0
  %738 = vmatpush1.msra.mxu0 0.0
  %739 = vmatprep.subr.mxu0 0.0
  %740 = vmatpush1.msra.mxu0 0.0
  %741 = vmatprep.subr.mxu0 0.0
  %742 = vmatpush1.msra.mxu0 0.0
  %743 = vmatprep.subr.mxu0 0.0
  %744 = vmatpush1.msra.mxu0 0.0
  %745 = vmatprep.subr.mxu0 0.0
  %746 = vmatpush1.msra.mxu0 0.0
  %747 = vmatprep.subr.mxu0 0.0
  %748 = vmatpush1.msra.mxu0 0.0
  %749 = vmatprep.subr.mxu0 0.0
  %750 = vmatpush1.msra.mxu0 0.0
  %751 = vmatprep.subr.mxu0 0.0
  %752 = vmatpush1.msra.mxu0 0.0
  %753 = vmatprep.subr.mxu0 0.0
  %754 = vmatpush1.msra.mxu0 0.0
  %755 = vmatprep.subr.mxu0 0.0
  %756 = vmatpush1.msra.mxu0 0.0
  %757 = vmatprep.subr.mxu0 0.0
  %758 = vmatpush1.msra.mxu0 0.0
  %759 = vmatprep.subr.mxu0 0.0
  %760 = vmatpush1.msra.mxu0 0.0
  %761 = vmatprep.subr.mxu0 0.0
  %762 = vmatpush1.msra.mxu0 0.0
  %763 = vmatprep.subr.mxu0 0.0
  %764 = vmatpush1.msra.mxu0 0.0
  %765 = vmatprep.subr.mxu0 0.0
  %766 = vmatpush1.msra.mxu0 0.0
  %767 = vmatprep.subr.mxu0 0.0
  %768 = vmatpush1.msra.mxu0 0.0
  %769 = vmatprep.subr.mxu0 0.0
  %770 = vmatpush1.msra.mxu0 0.0
  %771 = vmatprep.subr.mxu0 0.0
  %772 = vmatpush1.msra.mxu0 0.0
  %773 = vmatprep.subr.mxu0 0.0
  %774 = vmatpush1.msra.mxu0 0.0
  %775 = vmatprep.subr.mxu0 0.0
  %776 = vmatpush1.msra.mxu0 0.0
  %777 = vmatprep.subr.mxu0 0.0
  %778 = vmatpush1.msra.mxu0 0.0
  %779 = vmatprep.subr.mxu0 0.0
  %780 = vmatpush1.msra.mxu0 0.0
  %781 = vmatprep.subr.mxu0 0.0
  %782 = vmatpush1.msra.mxu0 0.0
  %783 = vmatprep.subr.mxu0 0.0
  %784 = vmatpush1.msra.mxu0 0.0
  %785 = vmatprep.mubr.f32.mxu0 0.0
  %786 = vmatmul.mubr.f32.gmra.mrb[0].mxu0 %v710
  %v787 = vpop.f32.mrb[0].mxu0
  %v788 = vadd.f32 0.0, %v787
  %v789 = vpop.f32.mrb[0].mxu0
  %790 = vmatprep.mubr.f32.mxu0 0.0
  %791 = vmatmul.mubr.f32.gmra.mrb[0].mxu0 %v713
  %v792 = vpop.f32.mrb[0].mxu0
  %v793 = vadd.f32 0.0, %v792
  %v794 = vpop.f32.mrb[0].mxu0
  %795 = vmatprep.mubr.f32.mxu0 0.0
  %796 = vmatmul.mubr.f32.gmra.mrb[0].mxu0 %v716
  %v797 = vpop.f32.mrb[0].mxu0
  %v798 = vadd.f32 0.0, %v797
  %v799 = vpop.f32.mrb[0].mxu0
  %800 = vmatprep.mubr.f32.mxu0 0.0
  %801 = vmatmul.mubr.f32.gmra.mrb[0].mxu0 %v719
  %v802 = vpop.f32.mrb[0].mxu0
  %v803 = vadd.f32 0.0, %v802
  %v804 = vpop.f32.mrb[0].mxu0
  %805 = vdwg.mxu0
  %v806 = vld [vmem:[%s6] sm:$0xff]
  %v807 = vld [vmem:[%s6 + $0x8] sm:$0xff]
  %v808 = vld [vmem:[%s6 + $0x10] sm:$0xff]
  %v809 = vld [vmem:[%s6 + $0x18] sm:$0xff]
  %v810 = vld [vmem:[%s6 + $0x20] sm:$0xff]
  %v811 = vld [vmem:[%s6 + $0x28] sm:$0xff]
  %v812 = vld [vmem:[%s6 + $0x30] sm:$0xff]
  %v813 = vld [vmem:[%s6 + $0x38] sm:$0xff]
  %v814 = vld [vmem:[%s6 + $0x40] sm:$0xff]
  %v815 = vld [vmem:[%s6 + $0x48] sm:$0xff]
  %v816 = vld [vmem:[%s6 + $0x50] sm:$0xff]
  %v817 = vld [vmem:[%s6 + $0x58] sm:$0xff]
  %s818 = scalar_lea.vmem %s6, 96
  %v819 = vld [vmem:[%s818] sm:$0xff]
  %v820 = vld [vmem:[%s818 + $0x8] sm:$0xff]
  %v821 = vld [vmem:[%s818 + $0x10] sm:$0xff]
  %v822 = vld [vmem:[%s818 + $0x18] sm:$0xff]
  %v823 = vld [vmem:[%s818 + $0x20] sm:$0xff]
  %v824 = vld [vmem:[%s818 + $0x28] sm:$0xff]
  %v825 = vld [vmem:[%s818 + $0x30] sm:$0xff]
  %v826 = vld [vmem:[%s818 + $0x38] sm:$0xff]
  %v827 = vld [vmem:[%s818 + $0x40] sm:$0xff]
  %v828 = vld [vmem:[%s818 + $0x48] sm:$0xff]
  %v829 = vld [vmem:[%s818 + $0x50] sm:$0xff]
  %v830 = vld [vmem:[%s818 + $0x58] sm:$0xff]
  %835 = vrot.lane.b32.xlu0 %v788, 126
  %v836 = vpop.permute.xlu0 %835
  %837 = vrot.lane.b32.xlu0 %v793, 126
  %v838 = vpop.permute.xlu0 %837
  %839 = vrot.lane.b32.xlu0 %v798, 126
  %v840 = vpop.permute.xlu0 %839
  %841 = vrot.lane.b32.xlu0 %v803, 126
  %v842 = vpop.permute.xlu0 %841
  %vm847 = vcmask 261120
  %v849 = vsel %vm847, %v819, 0
  %v852 = vsel %vm847, %v820, 0
  %v855 = vsel %vm847, %v821, 0
  %v858 = vsel %vm847, %v822, 0
  %v861 = vsel %vm847, %v823, 0
  %v864 = vsel %vm847, %v824, 0
  %v867 = vsel %vm847, %v825, 0
  %v870 = vsel %vm847, %v826, 0
  %v873 = vsel %vm847, %v827, 0
  %v876 = vsel %vm847, %v828, 0
  %v879 = vsel %vm847, %v829, 0
  %v882 = vsel %vm847, %v830, 0
  %884 = vmatprep.subr.mxu0 0.0
  %885 = vmatpush1.msra.mxu0 %v836
  %886 = vmatprep.subr.mxu0 0.0
  %887 = vmatpush1.msra.mxu0 %v838
  %888 = vmatprep.subr.mxu0 0.0
  %889 = vmatpush1.msra.mxu0 %v840
  %890 = vmatprep.subr.mxu0 0.0
  %891 = vmatpush1.msra.mxu0 %v842
  %892 = vmatprep.subr.mxu0 0.0
  %893 = vmatpush1.msra.mxu0 0.0
  %894 = vmatprep.subr.mxu0 0.0
  %895 = vmatpush1.msra.mxu0 0.0
  %896 = vmatprep.subr.mxu0 0.0
  %897 = vmatpush1.msra.mxu0 0.0
  %898 = vmatprep.subr.mxu0 0.0
  %899 = vmatpush1.msra.mxu0 0.0
  %900 = vmatprep.subr.mxu0 0.0
  %901 = vmatpush1.msra.mxu0 0.0
  %902 = vmatprep.subr.mxu0 0.0
  %903 = vmatpush1.msra.mxu0 0.0
  %904 = vmatprep.subr.mxu0 0.0
  %905 = vmatpush1.msra.mxu0 0.0
  %906 = vmatprep.subr.mxu0 0.0
  %907 = vmatpush1.msra.mxu0 0.0
  %908 = vmatprep.subr.mxu0 0.0
  %909 = vmatpush1.msra.mxu0 0.0
  %910 = vmatprep.subr.mxu0 0.0
  %911 = vmatpush1.msra.mxu0 0.0
  %912 = vmatprep.subr.mxu0 0.0
  %913 = vmatpush1.msra.mxu0 0.0
  %914 = vmatprep.subr.mxu0 0.0
  %915 = vmatpush1.msra.mxu0 0.0
  %916 = vmatprep.subr.mxu0 0.0
  %917 = vmatpush1.msra.mxu0 0.0
  %918 = vmatprep.subr.mxu0 0.0
  %919 = vmatpush1.msra.mxu0 0.0
  %920 = vmatprep.subr.mxu0 0.0
  %921 = vmatpush1.msra.mxu0 0.0
  %922 = vmatprep.subr.mxu0 0.0
  %923 = vmatpush1.msra.mxu0 0.0
  %924 = vmatprep.subr.mxu0 0.0
  %925 = vmatpush1.msra.mxu0 0.0
  %926 = vmatprep.subr.mxu0 0.0
  %927 = vmatpush1.msra.mxu0 0.0
  %928 = vmatprep.subr.mxu0 0.0
  %929 = vmatpush1.msra.mxu0 0.0
  %930 = vmatprep.subr.mxu0 0.0
  %931 = vmatpush1.msra.mxu0 0.0
  %932 = vmatprep.subr.mxu0 0.0
  %933 = vmatpush1.msra.mxu0 0.0
  %934 = vmatprep.subr.mxu0 0.0
  %935 = vmatpush1.msra.mxu0 0.0
  %936 = vmatprep.subr.mxu0 0.0
  %937 = vmatpush1.msra.mxu0 0.0
  %938 = vmatprep.subr.mxu0 0.0
  %939 = vmatpush1.msra.mxu0 0.0
  %940 = vmatprep.subr.mxu0 0.0
  %941 = vmatpush1.msra.mxu0 0.0
  %942 = vmatprep.subr.mxu0 0.0
  %943 = vmatpush1.msra.mxu0 0.0
  %944 = vmatprep.subr.mxu0 0.0
  %945 = vmatpush1.msra.mxu0 0.0
  %946 = vmatprep.subr.mxu0 0.0
  %947 = vmatpush1.msra.mxu0 0.0
  %948 = vmatprep.mubr.f32.mxu0 0.0
  %949 = vmatmul.mubr.f32.gmra.mrb[0].mxu0 %v849
  %v950 = vpop.f32.mrb[0].mxu0
  %v951 = vadd.f32 0.0, %v950
  %v952 = vpop.f32.mrb[0].mxu0
  %953 = vmatprep.mubr.f32.mxu0 0.0
  %954 = vmatmul.mubr.f32.gmra.mrb[0].mxu0 %v852
  %v955 = vpop.f32.mrb[0].mxu0
  %v956 = vadd.f32 0.0, %v955
  %v957 = vpop.f32.mrb[0].mxu0
  %958 = vmatprep.mubr.f32.mxu0 0.0
  %959 = vmatmul.mubr.f32.gmra.mrb[0].mxu0 %v855
  %v960 = vpop.f32.mrb[0].mxu0
  %v961 = vadd.f32 0.0, %v960
  %v962 = vpop.f32.mrb[0].mxu0
  %963 = vmatprep.mubr.f32.mxu0 0.0
  %964 = vmatmul.mubr.f32.gmra.mrb[0].mxu0 %v858
  %v965 = vpop.f32.mrb[0].mxu0
  %v966 = vadd.f32 0.0, %v965
  %v967 = vpop.f32.mrb[0].mxu0
  %968 = vmatprep.mubr.f32.mxu0 0.0
  %969 = vmatmul.mubr.f32.gmra.mrb[0].mxu0 %v861
  %v970 = vpop.f32.mrb[0].mxu0
  %v971 = vadd.f32 0.0, %v970
  %v972 = vpop.f32.mrb[0].mxu0
  %973 = vmatprep.mubr.f32.mxu0 0.0
  %974 = vmatmul.mubr.f32.gmra.mrb[0].mxu0 %v864
  %v975 = vpop.f32.mrb[0].mxu0
  %v976 = vadd.f32 0.0, %v975
  %v977 = vpop.f32.mrb[0].mxu0
  %978 = vmatprep.mubr.f32.mxu0 0.0
  %979 = vmatmul.mubr.f32.gmra.mrb[0].mxu0 %v867
  %v980 = vpop.f32.mrb[0].mxu0
  %v981 = vadd.f32 0.0, %v980
  %v982 = vpop.f32.mrb[0].mxu0
  %983 = vmatprep.mubr.f32.mxu0 0.0
  %984 = vmatmul.mubr.f32.gmra.mrb[0].mxu0 %v870
  %v985 = vpop.f32.mrb[0].mxu0
  %v986 = vadd.f32 0.0, %v985
  %v987 = vpop.f32.mrb[0].mxu0
  %988 = vmatprep.mubr.f32.mxu0 0.0
  %989 = vmatmul.mubr.f32.gmra.mrb[0].mxu0 %v873
  %v990 = vpop.f32.mrb[0].mxu0
  %v991 = vadd.f32 0.0, %v990
  %v992 = vpop.f32.mrb[0].mxu0
  %993 = vmatprep.mubr.f32.mxu0 0.0
  %994 = vmatmul.mubr.f32.gmra.mrb[0].mxu0 %v876
  %v995 = vpop.f32.mrb[0].mxu0
  %v996 = vadd.f32 0.0, %v995
  %v997 = vpop.f32.mrb[0].mxu0
  %998 = vmatprep.mubr.f32.mxu0 0.0
  %999 = vmatmul.mubr.f32.gmra.mrb[0].mxu0 %v879
  %v1000 = vpop.f32.mrb[0].mxu0
  %v1001 = vadd.f32 0.0, %v1000
  %v1002 = vpop.f32.mrb[0].mxu0
  %1003 = vmatprep.mubr.f32.mxu0 0.0
  %1004 = vmatmul.mubr.f32.gmra.mrb[0].mxu0 %v882
  %v1005 = vpop.f32.mrb[0].mxu0
  %v1006 = vadd.f32 0.0, %v1005
  %v1007 = vpop.f32.mrb[0].mxu0
  %1008 = vdwg.mxu0
  %v1010 = vsel %vm847, %v806, 0
  %v1013 = vsel %vm847, %v807, 0
  %v1016 = vsel %vm847, %v808, 0
  %v1019 = vsel %vm847, %v809, 0
  %v1022 = vsel %vm847, %v810, 0
  %v1025 = vsel %vm847, %v811, 0
  %v1028 = vsel %vm847, %v812, 0
  %v1031 = vsel %vm847, %v813, 0
  %v1034 = vsel %vm847, %v814, 0
  %v1037 = vsel %vm847, %v815, 0
  %v1040 = vsel %vm847, %v816, 0
  %v1043 = vsel %vm847, %v817, 0
  %1045 = vmatprep.subr.mxu0 0.0
  %1046 = vmatpush1.msra.mxu0 %v788
  %1047 = vmatprep.subr.mxu0 0.0
  %1048 = vmatpush1.msra.mxu0 %v793
  %1049 = vmatprep.subr.mxu0 0.0
  %1050 = vmatpush1.msra.mxu0 %v798
  %1051 = vmatprep.subr.mxu0 0.0
  %1052 = vmatpush1.msra.mxu0 %v803
  %1053 = vmatprep.subr.mxu0 0.0
  %1054 = vmatpush1.msra.mxu0 0.0
  %1055 = vmatprep.subr.mxu0 0.0
  %1056 = vmatpush1.msra.mxu0 0.0
  %1057 = vmatprep.subr.mxu0 0.0
  %1058 = vmatpush1.msra.mxu0 0.0
  %1059 = vmatprep.subr.mxu0 0.0
  %1060 = vmatpush1.msra.mxu0 0.0
  %1061 = vmatprep.subr.mxu0 0.0
  %1062 = vmatpush1.msra.mxu0 0.0
  %1063 = vmatprep.subr.mxu0 0.0
  %1064 = vmatpush1.msra.mxu0 0.0
  %1065 = vmatprep.subr.mxu0 0.0
  %1066 = vmatpush1.msra.mxu0 0.0
  %1067 = vmatprep.subr.mxu0 0.0
  %1068 = vmatpush1.msra.mxu0 0.0
  %1069 = vmatprep.subr.mxu0 0.0
  %1070 = vmatpush1.msra.mxu0 0.0
  %1071 = vmatprep.subr.mxu0 0.0
  %1072 = vmatpush1.msra.mxu0 0.0
  %1073 = vmatprep.subr.mxu0 0.0
  %1074 = vmatpush1.msra.mxu0 0.0
  %1075 = vmatprep.subr.mxu0 0.0
  %1076 = vmatpush1.msra.mxu0 0.0
  %1077 = vmatprep.subr.mxu0 0.0
  %1078 = vmatpush1.msra.mxu0 0.0
  %1079 = vmatprep.subr.mxu0 0.0
  %1080 = vmatpush1.msra.mxu0 0.0
  %1081 = vmatprep.subr.mxu0 0.0
  %1082 = vmatpush1.msra.mxu0 0.0
  %1083 = vmatprep.subr.mxu0 0.0
  %1084 = vmatpush1.msra.mxu0 0.0
  %1085 = vmatprep.subr.mxu0 0.0
  %1086 = vmatpush1.msra.mxu0 0.0
  %1087 = vmatprep.subr.mxu0 0.0
  %1088 = vmatpush1.msra.mxu0 0.0
  %1089 = vmatprep.subr.mxu0 0.0
  %1090 = vmatpush1.msra.mxu0 0.0
  %1091 = vmatprep.subr.mxu0 0.0
  %1092 = vmatpush1.msra.mxu0 0.0
  %1093 = vmatprep.subr.mxu0 0.0
  %1094 = vmatpush1.msra.mxu0 0.0
  %1095 = vmatprep.subr.mxu0 0.0
  %1096 = vmatpush1.msra.mxu0 0.0
  %1097 = vmatprep.subr.mxu0 0.0
  %1098 = vmatpush1.msra.mxu0 0.0
  %1099 = vmatprep.subr.mxu0 0.0
  %1100 = vmatpush1.msra.mxu0 0.0
  %1101 = vmatprep.subr.mxu0 0.0
  %1102 = vmatpush1.msra.mxu0 0.0
  %1103 = vmatprep.subr.mxu0 0.0
  %1104 = vmatpush1.msra.mxu0 0.0
  %1105 = vmatprep.subr.mxu0 0.0
  %1106 = vmatpush1.msra.mxu0 0.0
  %1107 = vmatprep.subr.mxu0 0.0
  %1108 = vmatpush1.msra.mxu0 0.0
  %1109 = vmatprep.mubr.f32.mxu0 0.0
  %1110 = vmatmul.mubr.f32.gmra.mrb[0].mxu0 %v1010
  %v1111 = vpop.f32.mrb[0].mxu0
  %v1112 = vadd.f32 %v951, %v1111
  %v1113 = vpop.f32.mrb[0].mxu0
  %1114 = vmatprep.mubr.f32.mxu0 0.0
  %1115 = vmatmul.mubr.f32.gmra.mrb[0].mxu0 %v1013
  %v1116 = vpop.f32.mrb[0].mxu0
  %v1117 = vadd.f32 %v956, %v1116
  %v1118 = vpop.f32.mrb[0].mxu0
  %1119 = vmatprep.mubr.f32.mxu0 0.0
  %1120 = vmatmul.mubr.f32.gmra.mrb[0].mxu0 %v1016
  %v1121 = vpop.f32.mrb[0].mxu0
  %v1122 = vadd.f32 %v961, %v1121
  %v1123 = vpop.f32.mrb[0].mxu0
  %1124 = vmatprep.mubr.f32.mxu0 0.0
  %1125 = vmatmul.mubr.f32.gmra.mrb[0].mxu0 %v1019
  %v1126 = vpop.f32.mrb[0].mxu0
  %v1127 = vadd.f32 %v966, %v1126
  %v1128 = vpop.f32.mrb[0].mxu0
  %1129 = vmatprep.mubr.f32.mxu0 0.0
  %1130 = vmatmul.mubr.f32.gmra.mrb[0].mxu0 %v1022
  %v1131 = vpop.f32.mrb[0].mxu0
  %v1132 = vadd.f32 %v971, %v1131
  %v1133 = vpop.f32.mrb[0].mxu0
  %1134 = vmatprep.mubr.f32.mxu0 0.0
  %1135 = vmatmul.mubr.f32.gmra.mrb[0].mxu0 %v1025
  %v1136 = vpop.f32.mrb[0].mxu0
  %v1137 = vadd.f32 %v976, %v1136
  %v1138 = vpop.f32.mrb[0].mxu0
  %1139 = vmatprep.mubr.f32.mxu0 0.0
  %1140 = vmatmul.mubr.f32.gmra.mrb[0].mxu0 %v1028
  %v1141 = vpop.f32.mrb[0].mxu0
  %v1142 = vadd.f32 %v981, %v1141
  %v1143 = vpop.f32.mrb[0].mxu0
  %1144 = vmatprep.mubr.f32.mxu0 0.0
  %1145 = vmatmul.mubr.f32.gmra.mrb[0].mxu0 %v1031
  %v1146 = vpop.f32.mrb[0].mxu0
  %v1147 = vadd.f32 %v986, %v1146
  %v1148 = vpop.f32.mrb[0].mxu0
  %1149 = vmatprep.mubr.f32.mxu0 0.0
  %1150 = vmatmul.mubr.f32.gmra.mrb[0].mxu0 %v1034
  %v1151 = vpop.f32.mrb[0].mxu0
  %v1152 = vadd.f32 %v991, %v1151
  %v1153 = vpop.f32.mrb[0].mxu0
  %1154 = vmatprep.mubr.f32.mxu0 0.0
  %1155 = vmatmul.mubr.f32.gmra.mrb[0].mxu0 %v1037
  %v1156 = vpop.f32.mrb[0].mxu0
  %v1157 = vadd.f32 %v996, %v1156
  %v1158 = vpop.f32.mrb[0].mxu0
  %1159 = vmatprep.mubr.f32.mxu0 0.0
  %1160 = vmatmul.mubr.f32.gmra.mrb[0].mxu0 %v1040
  %v1161 = vpop.f32.mrb[0].mxu0
  %v1162 = vadd.f32 %v1001, %v1161
  %v1163 = vpop.f32.mrb[0].mxu0
  %1164 = vmatprep.mubr.f32.mxu0 0.0
  %1165 = vmatmul.mubr.f32.gmra.mrb[0].mxu0 %v1043
  %v1166 = vpop.f32.mrb[0].mxu0
  %v1167 = vadd.f32 %v1006, %v1166
  %v1168 = vpop.f32.mrb[0].mxu0
  %1169 = vdwg.mxu0
  %s1170 = scalar_lea.vmem %s6, 192
  %v1171 = vld [vmem:[%s1170] sm:$0xff]
  %v1172 = vld [vmem:[%s1170 + $0x8] sm:$0xff]
  %v1173 = vld [vmem:[%s1170 + $0x10] sm:$0xff]
  %v1174 = vld [vmem:[%s1170 + $0x18] sm:$0xff]
  %v1175 = vld [vmem:[%s1170 + $0x20] sm:$0xff]
  %v1176 = vld [vmem:[%s1170 + $0x28] sm:$0xff]
  %v1177 = vld [vmem:[%s1170 + $0x30] sm:$0xff]
  %v1178 = vld [vmem:[%s1170 + $0x38] sm:$0xff]
  %v1179 = vld [vmem:[%s1170 + $0x40] sm:$0xff]
  %v1180 = vld [vmem:[%s1170 + $0x48] sm:$0xff]
  %v1181 = vld [vmem:[%s1170 + $0x50] sm:$0xff]
  %v1182 = vld [vmem:[%s1170 + $0x58] sm:$0xff]
  %1183 = vrot.lane.b32.xlu0 %v788, 124
  %v1184 = vpop.permute.xlu0 %1183
  %1185 = vrot.lane.b32.xlu0 %v793, 124
  %v1186 = vpop.permute.xlu0 %1185
  %1187 = vrot.lane.b32.xlu0 %v798, 124
  %v1188 = vpop.permute.xlu0 %1187
  %1189 = vrot.lane.b32.xlu0 %v803, 124
  %v1190 = vpop.permute.xlu0 %1189
  %v1196 = vsel %vm847, %v1171, 0
  %v1199 = vsel %vm847, %v1172, 0
  %v1202 = vsel %vm847, %v1173, 0
  %v1205 = vsel %vm847, %v1174, 0
  %v1208 = vsel %vm847, %v1175, 0
  %v1211 = vsel %vm847, %v1176, 0
  %v1214 = vsel %vm847, %v1177, 0
  %v1217 = vsel %vm847, %v1178, 0
  %v1220 = vsel %vm847, %v1179, 0
  %v1223 = vsel %vm847, %v1180, 0
  %v1226 = vsel %vm847, %v1181, 0
  %v1229 = vsel %vm847, %v1182, 0
  %1231 = vmatprep.subr.mxu0 0.0
  %1232 = vmatpush1.msra.mxu0 %v1184
  %1233 = vmatprep.subr.mxu0 0.0
  %1234 = vmatpush1.msra.mxu0 %v1186
  %1235 = vmatprep.subr.mxu0 0.0
  %1236 = vmatpush1.msra.mxu0 %v1188
  %1237 = vmatprep.subr.mxu0 0.0
  %1238 = vmatpush1.msra.mxu0 %v1190
  %1239 = vmatprep.subr.mxu0 0.0
  %1240 = vmatpush1.msra.mxu0 0.0
  %1241 = vmatprep.subr.mxu0 0.0
  %1242 = vmatpush1.msra.mxu0 0.0
  %1243 = vmatprep.subr.mxu0 0.0
  %1244 = vmatpush1.msra.mxu0 0.0
  %1245 = vmatprep.subr.mxu0 0.0
  %1246 = vmatpush1.msra.mxu0 0.0
  %1247 = vmatprep.subr.mxu0 0.0
  %1248 = vmatpush1.msra.mxu0 0.0
  %1249 = vmatprep.subr.mxu0 0.0
  %1250 = vmatpush1.msra.mxu0 0.0
  %1251 = vmatprep.subr.mxu0 0.0
  %1252 = vmatpush1.msra.mxu0 0.0
  %1253 = vmatprep.subr.mxu0 0.0
  %1254 = vmatpush1.msra.mxu0 0.0
  %1255 = vmatprep.subr.mxu0 0.0
  %1256 = vmatpush1.msra.mxu0 0.0
  %1257 = vmatprep.subr.mxu0 0.0
  %1258 = vmatpush1.msra.mxu0 0.0
  %1259 = vmatprep.subr.mxu0 0.0
  %1260 = vmatpush1.msra.mxu0 0.0
  %1261 = vmatprep.subr.mxu0 0.0
  %1262 = vmatpush1.msra.mxu0 0.0
  %1263 = vmatprep.subr.mxu0 0.0
  %1264 = vmatpush1.msra.mxu0 0.0
  %1265 = vmatprep.subr.mxu0 0.0
  %1266 = vmatpush1.msra.mxu0 0.0
  %1267 = vmatprep.subr.mxu0 0.0
  %1268 = vmatpush1.msra.mxu0 0.0
  %1269 = vmatprep.subr.mxu0 0.0
  %1270 = vmatpush1.msra.mxu0 0.0
  %1271 = vmatprep.subr.mxu0 0.0
  %1272 = vmatpush1.msra.mxu0 0.0
  %1273 = vmatprep.subr.mxu0 0.0
  %1274 = vmatpush1.msra.mxu0 0.0
  %1275 = vmatprep.subr.mxu0 0.0
  %1276 = vmatpush1.msra.mxu0 0.0
  %1277 = vmatprep.subr.mxu0 0.0
  %1278 = vmatpush1.msra.mxu0 0.0
  %1279 = vmatprep.subr.mxu0 0.0
  %1280 = vmatpush1.msra.mxu0 0.0
  %1281 = vmatprep.subr.mxu0 0.0
  %1282 = vmatpush1.msra.mxu0 0.0
  %1283 = vmatprep.subr.mxu0 0.0
  %1284 = vmatpush1.msra.mxu0 0.0
  %1285 = vmatprep.subr.mxu0 0.0
  %1286 = vmatpush1.msra.mxu0 0.0
  %1287 = vmatprep.subr.mxu0 0.0
  %1288 = vmatpush1.msra.mxu0 0.0
  %1289 = vmatprep.subr.mxu0 0.0
  %1290 = vmatpush1.msra.mxu0 0.0
  %1291 = vmatprep.subr.mxu0 0.0
  %1292 = vmatpush1.msra.mxu0 0.0
  %1293 = vmatprep.subr.mxu0 0.0
  %1294 = vmatpush1.msra.mxu0 0.0
  %1295 = vmatprep.mubr.f32.mxu0 0.0
  %1296 = vmatmul.mubr.f32.gmra.mrb[0].mxu0 %v1196
  %v1297 = vpop.f32.mrb[0].mxu0
  %v1298 = vadd.f32 0.0, %v1297
  %v1299 = vpop.f32.mrb[0].mxu0
  %1300 = vmatprep.mubr.f32.mxu0 0.0
  %1301 = vmatmul.mubr.f32.gmra.mrb[0].mxu0 %v1199
  %v1302 = vpop.f32.mrb[0].mxu0
  %v1303 = vadd.f32 0.0, %v1302
  %v1304 = vpop.f32.mrb[0].mxu0
  %1305 = vmatprep.mubr.f32.mxu0 0.0
  %1306 = vmatmul.mubr.f32.gmra.mrb[0].mxu0 %v1202
  %v1307 = vpop.f32.mrb[0].mxu0
  %v1308 = vadd.f32 0.0, %v1307
  %v1309 = vpop.f32.mrb[0].mxu0
  %1310 = vmatprep.mubr.f32.mxu0 0.0
  %1311 = vmatmul.mubr.f32.gmra.mrb[0].mxu0 %v1205
  %v1312 = vpop.f32.mrb[0].mxu0
  %v1313 = vadd.f32 0.0, %v1312
  %v1314 = vpop.f32.mrb[0].mxu0
  %1315 = vmatprep.mubr.f32.mxu0 0.0
  %1316 = vmatmul.mubr.f32.gmra.mrb[0].mxu0 %v1208
  %v1317 = vpop.f32.mrb[0].mxu0
  %v1318 = vadd.f32 0.0, %v1317
  %v1319 = vpop.f32.mrb[0].mxu0
  %1320 = vmatprep.mubr.f32.mxu0 0.0
  %1321 = vmatmul.mubr.f32.gmra.mrb[0].mxu0 %v1211
  %v1322 = vpop.f32.mrb[0].mxu0
  %v1323 = vadd.f32 0.0, %v1322
  %v1324 = vpop.f32.mrb[0].mxu0
  %1325 = vmatprep.mubr.f32.mxu0 0.0
  %1326 = vmatmul.mubr.f32.gmra.mrb[0].mxu0 %v1214
  %v1327 = vpop.f32.mrb[0].mxu0
  %v1328 = vadd.f32 0.0, %v1327
  %v1329 = vpop.f32.mrb[0].mxu0
  %1330 = vmatprep.mubr.f32.mxu0 0.0
  %1331 = vmatmul.mubr.f32.gmra.mrb[0].mxu0 %v1217
  %v1332 = vpop.f32.mrb[0].mxu0
  %v1333 = vadd.f32 0.0, %v1332
  %v1334 = vpop.f32.mrb[0].mxu0
  %1335 = vmatprep.mubr.f32.mxu0 0.0
  %1336 = vmatmul.mubr.f32.gmra.mrb[0].mxu0 %v1220
  %v1337 = vpop.f32.mrb[0].mxu0
  %v1338 = vadd.f32 0.0, %v1337
  %v1339 = vpop.f32.mrb[0].mxu0
  %1340 = vmatprep.mubr.f32.mxu0 0.0
  %1341 = vmatmul.mubr.f32.gmra.mrb[0].mxu0 %v1223
  %v1342 = vpop.f32.mrb[0].mxu0
  %v1343 = vadd.f32 0.0, %v1342
  %v1344 = vpop.f32.mrb[0].mxu0
  %1345 = vmatprep.mubr.f32.mxu0 0.0
  %1346 = vmatmul.mubr.f32.gmra.mrb[0].mxu0 %v1226
  %v1347 = vpop.f32.mrb[0].mxu0
  %v1348 = vadd.f32 0.0, %v1347
  %v1349 = vpop.f32.mrb[0].mxu0
  %1350 = vmatprep.mubr.f32.mxu0 0.0
  %1351 = vmatmul.mubr.f32.gmra.mrb[0].mxu0 %v1229
  %v1352 = vpop.f32.mrb[0].mxu0
  %v1353 = vadd.f32 0.0, %v1352
  %v1354 = vpop.f32.mrb[0].mxu0
  %1355 = vdwg.mxu0
  %v1356 = vadd.f32 %v1112, %v1298
  %v1357 = vadd.f32 %v1117, %v1303
  %v1358 = vadd.f32 %v1122, %v1308
  %v1359 = vadd.f32 %v1127, %v1313
  %v1360 = vadd.f32 %v1132, %v1318
  %v1361 = vadd.f32 %v1137, %v1323
  %v1362 = vadd.f32 %v1142, %v1328
  %v1363 = vadd.f32 %v1147, %v1333
  %v1364 = vadd.f32 %v1152, %v1338
  %v1365 = vadd.f32 %v1157, %v1343
  %v1366 = vadd.f32 %v1162, %v1348
  %v1367 = vadd.f32 %v1167, %v1353
  %v1368 = vld [vmem:[%s7] sm:$0xff]
  %v1369 = vld [vmem:[%s7 + $0x8] sm:$0xff]
  %v1370 = vld [vmem:[%s7 + $0x10] sm:$0xff]
  %v1371 = vld [vmem:[%s7 + $0x18] sm:$0xff]
  %v1372 = vld [vmem:[%s7 + $0x20] sm:$0xff]
  %v1373 = vld [vmem:[%s7 + $0x28] sm:$0xff]
  %v1374 = vld [vmem:[%s7 + $0x30] sm:$0xff]
  %v1375 = vld [vmem:[%s7 + $0x38] sm:$0xff]
  %v1376 = vld [vmem:[%s7 + $0x40] sm:$0xff]
  %v1377 = vld [vmem:[%s7 + $0x48] sm:$0xff]
  %v1378 = vld [vmem:[%s7 + $0x50] sm:$0xff]
  %v1379 = vld [vmem:[%s7 + $0x58] sm:$0xff]
  %1381 = vset.pattern.permute.xlu0 0
  %1382 = vperm.xlu0 %1381, %v1368
  %v1383 = vpop.permute.xlu0 %1382
  %1386 = vset.pattern.permute.xlu0 0
  %1387 = vperm.xlu0 %1386, %v1369
  %v1388 = vpop.permute.xlu0 %1387
  %1391 = vset.pattern.permute.xlu0 0
  %1392 = vperm.xlu0 %1391, %v1370
  %v1393 = vpop.permute.xlu0 %1392
  %1396 = vset.pattern.permute.xlu0 0
  %1397 = vperm.xlu0 %1396, %v1371
  %v1398 = vpop.permute.xlu0 %1397
  %1401 = vset.pattern.permute.xlu0 0
  %1402 = vperm.xlu0 %1401, %v1372
  %v1403 = vpop.permute.xlu0 %1402
  %1406 = vset.pattern.permute.xlu0 0
  %1407 = vperm.xlu0 %1406, %v1373
  %v1408 = vpop.permute.xlu0 %1407
  %1411 = vset.pattern.permute.xlu0 0
  %1412 = vperm.xlu0 %1411, %v1374
  %v1413 = vpop.permute.xlu0 %1412
  %1416 = vset.pattern.permute.xlu0 0
  %1417 = vperm.xlu0 %1416, %v1375
  %v1418 = vpop.permute.xlu0 %1417
  %1421 = vset.pattern.permute.xlu0 0
  %1422 = vperm.xlu0 %1421, %v1376
  %v1423 = vpop.permute.xlu0 %1422
  %1426 = vset.pattern.permute.xlu0 0
  %1427 = vperm.xlu0 %1426, %v1377
  %v1428 = vpop.permute.xlu0 %1427
  %1431 = vset.pattern.permute.xlu0 0
  %1432 = vperm.xlu0 %1431, %v1378
  %v1433 = vpop.permute.xlu0 %1432
  %1436 = vset.pattern.permute.xlu0 0
  %1437 = vperm.xlu0 %1436, %v1379
  %v1438 = vpop.permute.xlu0 %1437
  %v1440 = vadd.f32 %v1356, %v1383
  %v1441 = vadd.f32 %v1357, %v1388
  %v1442 = vadd.f32 %v1358, %v1393
  %v1443 = vadd.f32 %v1359, %v1398
  %v1444 = vadd.f32 %v1360, %v1403
  %v1445 = vadd.f32 %v1361, %v1408
  %v1446 = vadd.f32 %v1362, %v1413
  %v1447 = vadd.f32 %v1363, %v1418
  %v1448 = vadd.f32 %v1364, %v1423
  %v1449 = vadd.f32 %v1365, %v1428
  %v1450 = vadd.f32 %v1366, %v1433
  %v1451 = vadd.f32 %v1367, %v1438
  %v1452 = vmax.f32 %v1440, 0.0
  %v1453 = vmax.f32 %v1441, 0.0
  %v1454 = vmax.f32 %v1442, 0.0
  %v1455 = vmax.f32 %v1443, 0.0
  %v1456 = vmax.f32 %v1444, 0.0
  %v1457 = vmax.f32 %v1445, 0.0
  %v1458 = vmax.f32 %v1446, 0.0
  %v1459 = vmax.f32 %v1447, 0.0
  %v1460 = vmax.f32 %v1448, 0.0
  %v1461 = vmax.f32 %v1449, 0.0
  %v1462 = vmax.f32 %v1450, 0.0
  %v1463 = vmax.f32 %v1451, 0.0
  %v1464 = vld [vmem:[%s8] sm:$0xff]
  %v1465 = vld [vmem:[%s8 + $0x8] sm:$0xff]
  %v1466 = vld [vmem:[%s8 + $0x10] sm:$0xff]
  %vm1467 = vcmask 195584
  %v1469 = vsel %vm1467, %v1452, 0
  %v1472 = vsel %vm1467, %v1453, 0
  %v1475 = vsel %vm1467, %v1454, 0
  %v1478 = vsel %vm1467, %v1455, 0
  %v1481 = vsel %vm1467, %v1456, 0
  %v1484 = vsel %vm1467, %v1457, 0
  %v1487 = vsel %vm1467, %v1458, 0
  %v1490 = vsel %vm1467, %v1459, 0
  %v1493 = vsel %vm1467, %v1460, 0
  %v1496 = vsel %vm1467, %v1461, 0
  %v1499 = vsel %vm1467, %v1462, 0
  %v1502 = vsel %vm1467, %v1463, 0
  %1504 = vmatprep.subr.mxu0 0.0
  %1505 = vmatpush1.msra.mxu0 %v1464
  %1506 = vmatprep.subr.mxu0 0.0
  %1507 = vmatpush1.msra.mxu0 %v1465
  %1508 = vmatprep.subr.mxu0 0.0
  %1509 = vmatpush1.msra.mxu0 %v1466
  %1510 = vmatprep.subr.mxu0 0.0
  %1511 = vmatpush1.msra.mxu0 0.0
  %1512 = vmatprep.subr.mxu0 0.0
  %1513 = vmatpush1.msra.mxu0 0.0
  %1514 = vmatprep.subr.mxu0 0.0
  %1515 = vmatpush1.msra.mxu0 0.0
  %1516 = vmatprep.subr.mxu0 0.0
  %1517 = vmatpush1.msra.mxu0 0.0
  %1518 = vmatprep.subr.mxu0 0.0
  %1519 = vmatpush1.msra.mxu0 0.0
  %1520 = vmatprep.subr.mxu0 0.0
  %1521 = vmatpush1.msra.mxu0 0.0
  %1522 = vmatprep.subr.mxu0 0.0
  %1523 = vmatpush1.msra.mxu0 0.0
  %1524 = vmatprep.subr.mxu0 0.0
  %1525 = vmatpush1.msra.mxu0 0.0
  %1526 = vmatprep.subr.mxu0 0.0
  %1527 = vmatpush1.msra.mxu0 0.0
  %1528 = vmatprep.subr.mxu0 0.0
  %1529 = vmatpush1.msra.mxu0 0.0
  %1530 = vmatprep.subr.mxu0 0.0
  %1531 = vmatpush1.msra.mxu0 0.0
  %1532 = vmatprep.subr.mxu0 0.0
  %1533 = vmatpush1.msra.mxu0 0.0
  %1534 = vmatprep.subr.mxu0 0.0
  %1535 = vmatpush1.msra.mxu0 0.0
  %1536 = vmatprep.subr.mxu0 0.0
  %1537 = vmatpush1.msra.mxu0 0.0
  %1538 = vmatprep.subr.mxu0 0.0
  %1539 = vmatpush1.msra.mxu0 0.0
  %1540 = vmatprep.subr.mxu0 0.0
  %1541 = vmatpush1.msra.mxu0 0.0
  %1542 = vmatprep.subr.mxu0 0.0
  %1543 = vmatpush1.msra.mxu0 0.0
  %1544 = vmatprep.subr.mxu0 0.0
  %1545 = vmatpush1.msra.mxu0 0.0
  %1546 = vmatprep.subr.mxu0 0.0
  %1547 = vmatpush1.msra.mxu0 0.0
  %1548 = vmatprep.subr.mxu0 0.0
  %1549 = vmatpush1.msra.mxu0 0.0
  %1550 = vmatprep.subr.mxu0 0.0
  %1551 = vmatpush1.msra.mxu0 0.0
  %1552 = vmatprep.subr.mxu0 0.0
  %1553 = vmatpush1.msra.mxu0 0.0
  %1554 = vmatprep.subr.mxu0 0.0
  %1555 = vmatpush1.msra.mxu0 0.0
  %1556 = vmatprep.subr.mxu0 0.0
  %1557 = vmatpush1.msra.mxu0 0.0
  %1558 = vmatprep.subr.mxu0 0.0
  %1559 = vmatpush1.msra.mxu0 0.0
  %1560 = vmatprep.subr.mxu0 0.0
  %1561 = vmatpush1.msra.mxu0 0.0
  %1562 = vmatprep.subr.mxu0 0.0
  %1563 = vmatpush1.msra.mxu0 0.0
  %1564 = vmatprep.subr.mxu0 0.0
  %1565 = vmatpush1.msra.mxu0 0.0
  %1566 = vmatprep.subr.mxu0 0.0
  %1567 = vmatpush1.msra.mxu0 0.0
  %1568 = vmatprep.mubr.f32.mxu0 0.0
  %1569 = vmatmul.mubr.f32.gmra.mrb[0].mxu0 %v1469
  %v1570 = vpop.f32.mrb[0].mxu0
  %v1571 = vadd.f32 0.0, %v1570
  %v1572 = vpop.f32.mrb[0].mxu0
  %1573 = vmatprep.mubr.f32.mxu0 0.0
  %1574 = vmatmul.mubr.f32.gmra.mrb[0].mxu0 %v1472
  %v1575 = vpop.f32.mrb[0].mxu0
  %v1576 = vadd.f32 0.0, %v1575
  %v1577 = vpop.f32.mrb[0].mxu0
  %1578 = vmatprep.mubr.f32.mxu0 0.0
  %1579 = vmatmul.mubr.f32.gmra.mrb[0].mxu0 %v1475
  %v1580 = vpop.f32.mrb[0].mxu0
  %v1581 = vadd.f32 0.0, %v1580
  %v1582 = vpop.f32.mrb[0].mxu0
  %1583 = vmatprep.mubr.f32.mxu0 0.0
  %1584 = vmatmul.mubr.f32.gmra.mrb[0].mxu0 %v1478
  %v1585 = vpop.f32.mrb[0].mxu0
  %v1586 = vadd.f32 0.0, %v1585
  %v1587 = vpop.f32.mrb[0].mxu0
  %1588 = vmatprep.mubr.f32.mxu0 0.0
  %1589 = vmatmul.mubr.f32.gmra.mrb[0].mxu0 %v1481
  %v1590 = vpop.f32.mrb[0].mxu0
  %v1591 = vadd.f32 0.0, %v1590
  %v1592 = vpop.f32.mrb[0].mxu0
  %1593 = vmatprep.mubr.f32.mxu0 0.0
  %1594 = vmatmul.mubr.f32.gmra.mrb[0].mxu0 %v1484
  %v1595 = vpop.f32.mrb[0].mxu0
  %v1596 = vadd.f32 0.0, %v1595
  %v1597 = vpop.f32.mrb[0].mxu0
  %1598 = vmatprep.mubr.f32.mxu0 0.0
  %1599 = vmatmul.mubr.f32.gmra.mrb[0].mxu0 %v1487
  %v1600 = vpop.f32.mrb[0].mxu0
  %v1601 = vadd.f32 0.0, %v1600
  %v1602 = vpop.f32.mrb[0].mxu0
  %1603 = vmatprep.mubr.f32.mxu0 0.0
  %1604 = vmatmul.mubr.f32.gmra.mrb[0].mxu0 %v1490
  %v1605 = vpop.f32.mrb[0].mxu0
  %v1606 = vadd.f32 0.0, %v1605
  %v1607 = vpop.f32.mrb[0].mxu0
  %1608 = vmatprep.mubr.f32.mxu0 0.0
  %1609 = vmatmul.mubr.f32.gmra.mrb[0].mxu0 %v1493
  %v1610 = vpop.f32.mrb[0].mxu0
  %v1611 = vadd.f32 0.0, %v1610
  %v1612 = vpop.f32.mrb[0].mxu0
  %1613 = vmatprep.mubr.f32.mxu0 0.0
  %1614 = vmatmul.mubr.f32.gmra.mrb[0].mxu0 %v1496
  %v1615 = vpop.f32.mrb[0].mxu0
  %v1616 = vadd.f32 0.0, %v1615
  %v1617 = vpop.f32.mrb[0].mxu0
  %1618 = vmatprep.mubr.f32.mxu0 0.0
  %1619 = vmatmul.mubr.f32.gmra.mrb[0].mxu0 %v1499
  %v1620 = vpop.f32.mrb[0].mxu0
  %v1621 = vadd.f32 0.0, %v1620
  %v1622 = vpop.f32.mrb[0].mxu0
  %1623 = vmatprep.mubr.f32.mxu0 0.0
  %1624 = vmatmul.mubr.f32.gmra.mrb[0].mxu0 %v1502
  %v1625 = vpop.f32.mrb[0].mxu0
  %v1626 = vadd.f32 0.0, %v1625
  %v1627 = vpop.f32.mrb[0].mxu0
  %1628 = vdwg.mxu0
  %v1629 = vld [vmem:[%s9] sm:$0xff]
  %v1630 = vld [vmem:[%s9 + $0x8] sm:$0xff]
  %v1631 = vld [vmem:[%s9 + $0x10] sm:$0xff]
  %v1632 = vld [vmem:[%s9 + $0x18] sm:$0xff]
  %v1633 = vld [vmem:[%s9 + $0x20] sm:$0xff]
  %v1634 = vld [vmem:[%s9 + $0x28] sm:$0xff]
  %v1635 = vld [vmem:[%s9 + $0x30] sm:$0xff]
  %v1636 = vld [vmem:[%s9 + $0x38] sm:$0xff]
  %v1637 = vld [vmem:[%s9 + $0x40] sm:$0xff]
  %v1638 = vld [vmem:[%s9 + $0x48] sm:$0xff]
  %v1639 = vld [vmem:[%s9 + $0x50] sm:$0xff]
  %v1640 = vld [vmem:[%s9 + $0x58] sm:$0xff]
  %v1641 = vld [vmem:[%s9 + $0x60] sm:$0xff]
  %v1642 = vld [vmem:[%s9 + $0x68] sm:$0xff]
  %v1643 = vld [vmem:[%s9 + $0x70] sm:$0xff]
  %v1644 = vld [vmem:[%s9 + $0x78] sm:$0xff]
  %v1645 = vld [vmem:[%s9 + $0x80] sm:$0xff]
  %v1646 = vld [vmem:[%s9 + $0x88] sm:$0xff]
  %v1647 = vld [vmem:[%s9 + $0x90] sm:$0xff]
  %v1648 = vld [vmem:[%s9 + $0x98] sm:$0xff]
  %v1649 = vld [vmem:[%s9 + $0xa0] sm:$0xff]
  %v1650 = vld [vmem:[%s9 + $0xa8] sm:$0xff]
  %v1651 = vld [vmem:[%s9 + $0xb0] sm:$0xff]
  %v1652 = vld [vmem:[%s9 + $0xb8] sm:$0xff]
  %v1653 = vld [vmem:[%s9 + $0xc0] sm:$0xff]
  %s1654 = scalar_lea.vmem %s9, 200
  %v1655 = vld [vmem:[%s1654] sm:$0xff]
  %v1656 = vld [vmem:[%s1654 + $0x8] sm:$0xff]
  %v1657 = vld [vmem:[%s1654 + $0x10] sm:$0xff]
  %v1658 = vld [vmem:[%s1654 + $0x18] sm:$0xff]
  %v1659 = vld [vmem:[%s1654 + $0x20] sm:$0xff]
  %v1660 = vld [vmem:[%s1654 + $0x28] sm:$0xff]
  %v1661 = vld [vmem:[%s1654 + $0x30] sm:$0xff]
  %v1662 = vld [vmem:[%s1654 + $0x38] sm:$0xff]
  %v1663 = vld [vmem:[%s1654 + $0x40] sm:$0xff]
  %v1664 = vld [vmem:[%s1654 + $0x48] sm:$0xff]
  %v1665 = vld [vmem:[%s1654 + $0x50] sm:$0xff]
  %v1666 = vld [vmem:[%s1654 + $0x58] sm:$0xff]
  %v1667 = vld [vmem:[%s1654 + $0x60] sm:$0xff]
  %v1668 = vld [vmem:[%s1654 + $0x68] sm:$0xff]
  %v1669 = vld [vmem:[%s1654 + $0x70] sm:$0xff]
  %v1670 = vld [vmem:[%s1654 + $0x78] sm:$0xff]
  %v1671 = vld [vmem:[%s1654 + $0x80] sm:$0xff]
  %v1672 = vld [vmem:[%s1654 + $0x88] sm:$0xff]
  %v1673 = vld [vmem:[%s1654 + $0x90] sm:$0xff]
  %v1674 = vld [vmem:[%s1654 + $0x98] sm:$0xff]
  %v1675 = vld [vmem:[%s1654 + $0xa0] sm:$0xff]
  %v1676 = vld [vmem:[%s1654 + $0xa8] sm:$0xff]
  %v1677 = vld [vmem:[%s1654 + $0xb0] sm:$0xff]
  %v1678 = vld [vmem:[%s1654 + $0xb8] sm:$0xff]
  %v1679 = vld [vmem:[%s1654 + $0xc0] sm:$0xff]
  %1692 = vrot.lane.b32.xlu0 %v1571, 126
  %v1693 = vpop.permute.xlu0 %1692
  %1694 = vrot.lane.b32.xlu0 %v1576, 126
  %v1695 = vpop.permute.xlu0 %1694
  %1696 = vrot.lane.b32.xlu0 %v1581, 126
  %v1697 = vpop.permute.xlu0 %1696
  %1698 = vrot.lane.b32.xlu0 %v1586, 126
  %v1699 = vpop.permute.xlu0 %1698
  %1700 = vrot.lane.b32.xlu0 %v1591, 126
  %v1701 = vpop.permute.xlu0 %1700
  %1702 = vrot.lane.b32.xlu0 %v1596, 126
  %v1703 = vpop.permute.xlu0 %1702
  %1704 = vrot.lane.b32.xlu0 %v1601, 126
  %v1705 = vpop.permute.xlu0 %1704
  %1706 = vrot.lane.b32.xlu0 %v1606, 126
  %v1707 = vpop.permute.xlu0 %1706
  %1708 = vrot.lane.b32.xlu0 %v1611, 126
  %v1709 = vpop.permute.xlu0 %1708
  %1710 = vrot.lane.b32.xlu0 %v1616, 126
  %v1711 = vpop.permute.xlu0 %1710
  %1712 = vrot.lane.b32.xlu0 %v1621, 126
  %v1713 = vpop.permute.xlu0 %1712
  %1714 = vrot.lane.b32.xlu0 %v1626, 126
  %v1715 = vpop.permute.xlu0 %1714
  %v1729 = vsel %vm450, %v1655, 0
  %v1732 = vsel %vm450, %v1656, 0
  %v1735 = vsel %vm450, %v1657, 0
  %v1738 = vsel %vm450, %v1658, 0
  %v1741 = vsel %vm450, %v1659, 0
  %v1744 = vsel %vm450, %v1660, 0
  %v1747 = vsel %vm450, %v1661, 0
  %v1750 = vsel %vm450, %v1662, 0
  %v1753 = vsel %vm450, %v1663, 0
  %v1756 = vsel %vm450, %v1664, 0
  %v1759 = vsel %vm450, %v1665, 0
  %v1762 = vsel %vm450, %v1666, 0
  %v1765 = vsel %vm450, %v1667, 0
  %v1768 = vsel %vm450, %v1668, 0
  %v1771 = vsel %vm450, %v1669, 0
  %v1774 = vsel %vm450, %v1670, 0
  %v1777 = vsel %vm450, %v1671, 0
  %v1780 = vsel %vm450, %v1672, 0
  %v1783 = vsel %vm450, %v1673, 0
  %v1786 = vsel %vm450, %v1674, 0
  %v1789 = vsel %vm450, %v1675, 0
  %v1792 = vsel %vm450, %v1676, 0
  %v1795 = vsel %vm450, %v1677, 0
  %v1798 = vsel %vm450, %v1678, 0
  %v1801 = vsel %vm450, %v1679, 0
  %1803 = vmatprep.subr.mxu0 0.0
  %1804 = vmatpush1.msra.mxu0 %v1693
  %1805 = vmatprep.subr.mxu0 0.0
  %1806 = vmatpush1.msra.mxu0 %v1695
  %1807 = vmatprep.subr.mxu0 0.0
  %1808 = vmatpush1.msra.mxu0 %v1697
  %1809 = vmatprep.subr.mxu0 0.0
  %1810 = vmatpush1.msra.mxu0 %v1699
  %1811 = vmatprep.subr.mxu0 0.0
  %1812 = vmatpush1.msra.mxu0 %v1701
  %1813 = vmatprep.subr.mxu0 0.0
  %1814 = vmatpush1.msra.mxu0 %v1703
  %1815 = vmatprep.subr.mxu0 0.0
  %1816 = vmatpush1.msra.mxu0 %v1705
  %1817 = vmatprep.subr.mxu0 0.0
  %1818 = vmatpush1.msra.mxu0 %v1707
  %1819 = vmatprep.subr.mxu0 0.0
  %1820 = vmatpush1.msra.mxu0 %v1709
  %1821 = vmatprep.subr.mxu0 0.0
  %1822 = vmatpush1.msra.mxu0 %v1711
  %1823 = vmatprep.subr.mxu0 0.0
  %1824 = vmatpush1.msra.mxu0 %v1713
  %1825 = vmatprep.subr.mxu0 0.0
  %1826 = vmatpush1.msra.mxu0 %v1715
  %1827 = vmatprep.subr.mxu0 0.0
  %1828 = vmatpush1.msra.mxu0 0.0
  %1829 = vmatprep.subr.mxu0 0.0
  %1830 = vmatpush1.msra.mxu0 0.0
  %1831 = vmatprep.subr.mxu0 0.0
  %1832 = vmatpush1.msra.mxu0 0.0
  %1833 = vmatprep.subr.mxu0 0.0
  %1834 = vmatpush1.msra.mxu0 0.0
  %1835 = vmatprep.subr.mxu0 0.0
  %1836 = vmatpush1.msra.mxu0 0.0
  %1837 = vmatprep.subr.mxu0 0.0
  %1838 = vmatpush1.msra.mxu0 0.0
  %1839 = vmatprep.subr.mxu0 0.0
  %1840 = vmatpush1.msra.mxu0 0.0
  %1841 = vmatprep.subr.mxu0 0.0
  %1842 = vmatpush1.msra.mxu0 0.0
  %1843 = vmatprep.subr.mxu0 0.0
  %1844 = vmatpush1.msra.mxu0 0.0
  %1845 = vmatprep.subr.mxu0 0.0
  %1846 = vmatpush1.msra.mxu0 0.0
  %1847 = vmatprep.subr.mxu0 0.0
  %1848 = vmatpush1.msra.mxu0 0.0
  %1849 = vmatprep.subr.mxu0 0.0
  %1850 = vmatpush1.msra.mxu0 0.0
  %1851 = vmatprep.subr.mxu0 0.0
  %1852 = vmatpush1.msra.mxu0 0.0
  %1853 = vmatprep.subr.mxu0 0.0
  %1854 = vmatpush1.msra.mxu0 0.0
  %1855 = vmatprep.subr.mxu0 0.0
  %1856 = vmatpush1.msra.mxu0 0.0
  %1857 = vmatprep.subr.mxu0 0.0
  %1858 = vmatpush1.msra.mxu0 0.0
  %1859 = vmatprep.subr.mxu0 0.0
  %1860 = vmatpush1.msra.mxu0 0.0
  %1861 = vmatprep.subr.mxu0 0.0
  %1862 = vmatpush1.msra.mxu0 0.0
  %1863 = vmatprep.subr.mxu0 0.0
  %1864 = vmatpush1.msra.mxu0 0.0
  %1865 = vmatprep.subr.mxu0 0.0
  %1866 = vmatpush1.msra.mxu0 0.0
  %1867 = vmatprep.mubr.f32.mxu0 0.0
  %1868 = vmatmul.mubr.f32.gmra.mrb[0].mxu0 %v1729
  %v1869 = vpop.f32.mrb[0].mxu0
  %v1870 = vadd.f32 0.0, %v1869
  %v1871 = vpop.f32.mrb[0].mxu0
  %1872 = vmatprep.mubr.f32.mxu0 0.0
  %1873 = vmatmul.mubr.f32.gmra.mrb[0].mxu0 %v1732
  %v1874 = vpop.f32.mrb[0].mxu0
  %v1875 = vadd.f32 0.0, %v1874
  %v1876 = vpop.f32.mrb[0].mxu0
  %1877 = vmatprep.mubr.f32.mxu0 0.0
  %1878 = vmatmul.mubr.f32.gmra.mrb[0].mxu0 %v1735
  %v1879 = vpop.f32.mrb[0].mxu0
  %v1880 = vadd.f32 0.0, %v1879
  %v1881 = vpop.f32.mrb[0].mxu0
  %1882 = vmatprep.mubr.f32.mxu0 0.0
  %1883 = vmatmul.mubr.f32.gmra.mrb[0].mxu0 %v1738
  %v1884 = vpop.f32.mrb[0].mxu0
  %v1885 = vadd.f32 0.0, %v1884
  %v1886 = vpop.f32.mrb[0].mxu0
  %1887 = vmatprep.mubr.f32.mxu0 0.0
  %1888 = vmatmul.mubr.f32.gmra.mrb[0].mxu0 %v1741
  %v1889 = vpop.f32.mrb[0].mxu0
  %v1890 = vadd.f32 0.0, %v1889
  %v1891 = vpop.f32.mrb[0].mxu0
  %1892 = vmatprep.mubr.f32.mxu0 0.0
  %1893 = vmatmul.mubr.f32.gmra.mrb[0].mxu0 %v1744
  %v1894 = vpop.f32.mrb[0].mxu0
  %v1895 = vadd.f32 0.0, %v1894
  %v1896 = vpop.f32.mrb[0].mxu0
  %1897 = vmatprep.mubr.f32.mxu0 0.0
  %1898 = vmatmul.mubr.f32.gmra.mrb[0].mxu0 %v1747
  %v1899 = vpop.f32.mrb[0].mxu0
  %v1900 = vadd.f32 0.0, %v1899
  %v1901 = vpop.f32.mrb[0].mxu0
  %1902 = vmatprep.mubr.f32.mxu0 0.0
  %1903 = vmatmul.mubr.f32.gmra.mrb[0].mxu0 %v1750
  %v1904 = vpop.f32.mrb[0].mxu0
  %v1905 = vadd.f32 0.0, %v1904
  %v1906 = vpop.f32.mrb[0].mxu0
  %1907 = vmatprep.mubr.f32.mxu0 0.0
  %1908 = vmatmul.mubr.f32.gmra.mrb[0].mxu0 %v1753
  %v1909 = vpop.f32.mrb[0].mxu0
  %v1910 = vadd.f32 0.0, %v1909
  %v1911 = vpop.f32.mrb[0].mxu0
  %1912 = vmatprep.mubr.f32.mxu0 0.0
  %1913 = vmatmul.mubr.f32.gmra.mrb[0].mxu0 %v1756
  %v1914 = vpop.f32.mrb[0].mxu0
  %v1915 = vadd.f32 0.0, %v1914
  %v1916 = vpop.f32.mrb[0].mxu0
  %1917 = vmatprep.mubr.f32.mxu0 0.0
  %1918 = vmatmul.mubr.f32.gmra.mrb[0].mxu0 %v1759
  %v1919 = vpop.f32.mrb[0].mxu0
  %v1920 = vadd.f32 0.0, %v1919
  %v1921 = vpop.f32.mrb[0].mxu0
  %1922 = vmatprep.mubr.f32.mxu0 0.0
  %1923 = vmatmul.mubr.f32.gmra.mrb[0].mxu0 %v1762
  %v1924 = vpop.f32.mrb[0].mxu0
  %v1925 = vadd.f32 0.0, %v1924
  %v1926 = vpop.f32.mrb[0].mxu0
  %1927 = vmatprep.mubr.f32.mxu0 0.0
  %1928 = vmatmul.mubr.f32.gmra.mrb[0].mxu0 %v1765
  %v1929 = vpop.f32.mrb[0].mxu0
  %v1930 = vadd.f32 0.0, %v1929
  %v1931 = vpop.f32.mrb[0].mxu0
  %1932 = vmatprep.mubr.f32.mxu0 0.0
  %1933 = vmatmul.mubr.f32.gmra.mrb[0].mxu0 %v1768
  %v1934 = vpop.f32.mrb[0].mxu0
  %v1935 = vadd.f32 0.0, %v1934
  %v1936 = vpop.f32.mrb[0].mxu0
  %1937 = vmatprep.mubr.f32.mxu0 0.0
  %1938 = vmatmul.mubr.f32.gmra.mrb[0].mxu0 %v1771
  %v1939 = vpop.f32.mrb[0].mxu0
  %v1940 = vadd.f32 0.0, %v1939
  %v1941 = vpop.f32.mrb[0].mxu0
  %1942 = vmatprep.mubr.f32.mxu0 0.0
  %1943 = vmatmul.mubr.f32.gmra.mrb[0].mxu0 %v1774
  %v1944 = vpop.f32.mrb[0].mxu0
  %v1945 = vadd.f32 0.0, %v1944
  %v1946 = vpop.f32.mrb[0].mxu0
  %1947 = vmatprep.mubr.f32.mxu0 0.0
  %1948 = vmatmul.mubr.f32.gmra.mrb[0].mxu0 %v1777
  %v1949 = vpop.f32.mrb[0].mxu0
  %v1950 = vadd.f32 0.0, %v1949
  %v1951 = vpop.f32.mrb[0].mxu0
  %1952 = vmatprep.mubr.f32.mxu0 0.0
  %1953 = vmatmul.mubr.f32.gmra.mrb[0].mxu0 %v1780
  %v1954 = vpop.f32.mrb[0].mxu0
  %v1955 = vadd.f32 0.0, %v1954
  %v1956 = vpop.f32.mrb[0].mxu0
  %1957 = vmatprep.mubr.f32.mxu0 0.0
  %1958 = vmatmul.mubr.f32.gmra.mrb[0].mxu0 %v1783
  %v1959 = vpop.f32.mrb[0].mxu0
  %v1960 = vadd.f32 0.0, %v1959
  %v1961 = vpop.f32.mrb[0].mxu0
  %1962 = vmatprep.mubr.f32.mxu0 0.0
  %1963 = vmatmul.mubr.f32.gmra.mrb[0].mxu0 %v1786
  %v1964 = vpop.f32.mrb[0].mxu0
  %v1965 = vadd.f32 0.0, %v1964
  %v1966 = vpop.f32.mrb[0].mxu0
  %1967 = vmatprep.mubr.f32.mxu0 0.0
  %1968 = vmatmul.mubr.f32.gmra.mrb[0].mxu0 %v1789
  %v1969 = vpop.f32.mrb[0].mxu0
  %v1970 = vadd.f32 0.0, %v1969
  %v1971 = vpop.f32.mrb[0].mxu0
  %1972 = vmatprep.mubr.f32.mxu0 0.0
  %1973 = vmatmul.mubr.f32.gmra.mrb[0].mxu0 %v1792
  %v1974 = vpop.f32.mrb[0].mxu0
  %v1975 = vadd.f32 0.0, %v1974
  %v1976 = vpop.f32.mrb[0].mxu0
  %1977 = vmatprep.mubr.f32.mxu0 0.0
  %1978 = vmatmul.mubr.f32.gmra.mrb[0].mxu0 %v1795
  %v1979 = vpop.f32.mrb[0].mxu0
  %v1980 = vadd.f32 0.0, %v1979
  %v1981 = vpop.f32.mrb[0].mxu0
  %1982 = vmatprep.mubr.f32.mxu0 0.0
  %1983 = vmatmul.mubr.f32.gmra.mrb[0].mxu0 %v1798
  %v1984 = vpop.f32.mrb[0].mxu0
  %v1985 = vadd.f32 0.0, %v1984
  %v1986 = vpop.f32.mrb[0].mxu0
  %1987 = vmatprep.mubr.f32.mxu0 0.0
  %1988 = vmatmul.mubr.f32.gmra.mrb[0].mxu0 %v1801
  %v1989 = vpop.f32.mrb[0].mxu0
  %v1990 = vadd.f32 0.0, %v1989
  %v1991 = vpop.f32.mrb[0].mxu0
  %1992 = vdwg.mxu0
  %v1994 = vsel %vm450, %v1629, 0
  %v1997 = vsel %vm450, %v1630, 0
  %v2000 = vsel %vm450, %v1631, 0
  %v2003 = vsel %vm450, %v1632, 0
  %v2006 = vsel %vm450, %v1633, 0
  %v2009 = vsel %vm450, %v1634, 0
  %v2012 = vsel %vm450, %v1635, 0
  %v2015 = vsel %vm450, %v1636, 0
  %v2018 = vsel %vm450, %v1637, 0
  %v2021 = vsel %vm450, %v1638, 0
  %v2024 = vsel %vm450, %v1639, 0
  %v2027 = vsel %vm450, %v1640, 0
  %v2030 = vsel %vm450, %v1641, 0
  %v2033 = vsel %vm450, %v1642, 0
  %v2036 = vsel %vm450, %v1643, 0
  %v2039 = vsel %vm450, %v1644, 0
  %v2042 = vsel %vm450, %v1645, 0
  %v2045 = vsel %vm450, %v1646, 0
  %v2048 = vsel %vm450, %v1647, 0
  %v2051 = vsel %vm450, %v1648, 0
  %v2054 = vsel %vm450, %v1649, 0
  %v2057 = vsel %vm450, %v1650, 0
  %v2060 = vsel %vm450, %v1651, 0
  %v2063 = vsel %vm450, %v1652, 0
  %v2066 = vsel %vm450, %v1653, 0
  %2068 = vmatprep.subr.mxu0 0.0
  %2069 = vmatpush1.msra.mxu0 %v1571
  %2070 = vmatprep.subr.mxu0 0.0
  %2071 = vmatpush1.msra.mxu0 %v1576
  %2072 = vmatprep.subr.mxu0 0.0
  %2073 = vmatpush1.msra.mxu0 %v1581
  %2074 = vmatprep.subr.mxu0 0.0
  %2075 = vmatpush1.msra.mxu0 %v1586
  %2076 = vmatprep.subr.mxu0 0.0
  %2077 = vmatpush1.msra.mxu0 %v1591
  %2078 = vmatprep.subr.mxu0 0.0
  %2079 = vmatpush1.msra.mxu0 %v1596
  %2080 = vmatprep.subr.mxu0 0.0
  %2081 = vmatpush1.msra.mxu0 %v1601
  %2082 = vmatprep.subr.mxu0 0.0
  %2083 = vmatpush1.msra.mxu0 %v1606
  %2084 = vmatprep.subr.mxu0 0.0
  %2085 = vmatpush1.msra.mxu0 %v1611
  %2086 = vmatprep.subr.mxu0 0.0
  %2087 = vmatpush1.msra.mxu0 %v1616
  %2088 = vmatprep.subr.mxu0 0.0
  %2089 = vmatpush1.msra.mxu0 %v1621
  %2090 = vmatprep.subr.mxu0 0.0
  %2091 = vmatpush1.msra.mxu0 %v1626
  %2092 = vmatprep.subr.mxu0 0.0
  %2093 = vmatpush1.msra.mxu0 0.0
  %2094 = vmatprep.subr.mxu0 0.0
  %2095 = vmatpush1.msra.mxu0 0.0
  %2096 = vmatprep.subr.mxu0 0.0
  %2097 = vmatpush1.msra.mxu0 0.0
  %2098 = vmatprep.subr.mxu0 0.0
  %2099 = vmatpush1.msra.mxu0 0.0
  %2100 = vmatprep.subr.mxu0 0.0
  %2101 = vmatpush1.msra.mxu0 0.0
  %2102 = vmatprep.subr.mxu0 0.0
  %2103 = vmatpush1.msra.mxu0 0.0
  %2104 = vmatprep.subr.mxu0 0.0
  %2105 = vmatpush1.msra.mxu0 0.0
  %2106 = vmatprep.subr.mxu0 0.0
  %2107 = vmatpush1.msra.mxu0 0.0
  %2108 = vmatprep.subr.mxu0 0.0
  %2109 = vmatpush1.msra.mxu0 0.0
  %2110 = vmatprep.subr.mxu0 0.0
  %2111 = vmatpush1.msra.mxu0 0.0
  %2112 = vmatprep.subr.mxu0 0.0
  %2113 = vmatpush1.msra.mxu0 0.0
  %2114 = vmatprep.subr.mxu0 0.0
  %2115 = vmatpush1.msra.mxu0 0.0
  %2116 = vmatprep.subr.mxu0 0.0
  %2117 = vmatpush1.msra.mxu0 0.0
  %2118 = vmatprep.subr.mxu0 0.0
  %2119 = vmatpush1.msra.mxu0 0.0
  %2120 = vmatprep.subr.mxu0 0.0
  %2121 = vmatpush1.msra.mxu0 0.0
  %2122 = vmatprep.subr.mxu0 0.0
  %2123 = vmatpush1.msra.mxu0 0.0
  %2124 = vmatprep.subr.mxu0 0.0
  %2125 = vmatpush1.msra.mxu0 0.0
  %2126 = vmatprep.subr.mxu0 0.0
  %2127 = vmatpush1.msra.mxu0 0.0
  %2128 = vmatprep.subr.mxu0 0.0
  %2129 = vmatpush1.msra.mxu0 0.0
  %2130 = vmatprep.subr.mxu0 0.0
  %2131 = vmatpush1.msra.mxu0 0.0
  %2132 = vmatprep.mubr.f32.mxu0 0.0
  %2133 = vmatmul.mubr.f32.gmra.mrb[0].mxu0 %v1994
  %v2134 = vpop.f32.mrb[0].mxu0
  %v2135 = vadd.f32 %v1870, %v2134
  %v2136 = vpop.f32.mrb[0].mxu0
  %2137 = vmatprep.mubr.f32.mxu0 0.0
  %2138 = vmatmul.mubr.f32.gmra.mrb[0].mxu0 %v1997
  %v2139 = vpop.f32.mrb[0].mxu0
  %v2140 = vadd.f32 %v1875, %v2139
  %v2141 = vpop.f32.mrb[0].mxu0
  %2142 = vmatprep.mubr.f32.mxu0 0.0
  %2143 = vmatmul.mubr.f32.gmra.mrb[0].mxu0 %v2000
  %v2144 = vpop.f32.mrb[0].mxu0
  %v2145 = vadd.f32 %v1880, %v2144
  %v2146 = vpop.f32.mrb[0].mxu0
  %2147 = vmatprep.mubr.f32.mxu0 0.0
  %2148 = vmatmul.mubr.f32.gmra.mrb[0].mxu0 %v2003
  %v2149 = vpop.f32.mrb[0].mxu0
  %v2150 = vadd.f32 %v1885, %v2149
  %v2151 = vpop.f32.mrb[0].mxu0
  %2152 = vmatprep.mubr.f32.mxu0 0.0
  %2153 = vmatmul.mubr.f32.gmra.mrb[0].mxu0 %v2006
  %v2154 = vpop.f32.mrb[0].mxu0
  %v2155 = vadd.f32 %v1890, %v2154
  %v2156 = vpop.f32.mrb[0].mxu0
  %2157 = vmatprep.mubr.f32.mxu0 0.0
  %2158 = vmatmul.mubr.f32.gmra.mrb[0].mxu0 %v2009
  %v2159 = vpop.f32.mrb[0].mxu0
  %v2160 = vadd.f32 %v1895, %v2159
  %v2161 = vpop.f32.mrb[0].mxu0
  %2162 = vmatprep.mubr.f32.mxu0 0.0
  %2163 = vmatmul.mubr.f32.gmra.mrb[0].mxu0 %v2012
  %v2164 = vpop.f32.mrb[0].mxu0
  %v2165 = vadd.f32 %v1900, %v2164
  %v2166 = vpop.f32.mrb[0].mxu0
  %2167 = vmatprep.mubr.f32.mxu0 0.0
  %2168 = vmatmul.mubr.f32.gmra.mrb[0].mxu0 %v2015
  %v2169 = vpop.f32.mrb[0].mxu0
  %v2170 = vadd.f32 %v1905, %v2169
  %v2171 = vpop.f32.mrb[0].mxu0
  %2172 = vmatprep.mubr.f32.mxu0 0.0
  %2173 = vmatmul.mubr.f32.gmra.mrb[0].mxu0 %v2018
  %v2174 = vpop.f32.mrb[0].mxu0
  %v2175 = vadd.f32 %v1910, %v2174
  %v2176 = vpop.f32.mrb[0].mxu0
  %2177 = vmatprep.mubr.f32.mxu0 0.0
  %2178 = vmatmul.mubr.f32.gmra.mrb[0].mxu0 %v2021
  %v2179 = vpop.f32.mrb[0].mxu0
  %v2180 = vadd.f32 %v1915, %v2179
  %v2181 = vpop.f32.mrb[0].mxu0
  %2182 = vmatprep.mubr.f32.mxu0 0.0
  %2183 = vmatmul.mubr.f32.gmra.mrb[0].mxu0 %v2024
  %v2184 = vpop.f32.mrb[0].mxu0
  %v2185 = vadd.f32 %v1920, %v2184
  %v2186 = vpop.f32.mrb[0].mxu0
  %2187 = vmatprep.mubr.f32.mxu0 0.0
  %2188 = vmatmul.mubr.f32.gmra.mrb[0].mxu0 %v2027
  %v2189 = vpop.f32.mrb[0].mxu0
  %v2190 = vadd.f32 %v1925, %v2189
  %v2191 = vpop.f32.mrb[0].mxu0
  %2192 = vmatprep.mubr.f32.mxu0 0.0
  %2193 = vmatmul.mubr.f32.gmra.mrb[0].mxu0 %v2030
  %v2194 = vpop.f32.mrb[0].mxu0
  %v2195 = vadd.f32 %v1930, %v2194
  %v2196 = vpop.f32.mrb[0].mxu0
  %2197 = vmatprep.mubr.f32.mxu0 0.0
  %2198 = vmatmul.mubr.f32.gmra.mrb[0].mxu0 %v2033
  %v2199 = vpop.f32.mrb[0].mxu0
  %v2200 = vadd.f32 %v1935, %v2199
  %v2201 = vpop.f32.mrb[0].mxu0
  %2202 = vmatprep.mubr.f32.mxu0 0.0
  %2203 = vmatmul.mubr.f32.gmra.mrb[0].mxu0 %v2036
  %v2204 = vpop.f32.mrb[0].mxu0
  %v2205 = vadd.f32 %v1940, %v2204
  %v2206 = vpop.f32.mrb[0].mxu0
  %2207 = vmatprep.mubr.f32.mxu0 0.0
  %2208 = vmatmul.mubr.f32.gmra.mrb[0].mxu0 %v2039
  %v2209 = vpop.f32.mrb[0].mxu0
  %v2210 = vadd.f32 %v1945, %v2209
  %v2211 = vpop.f32.mrb[0].mxu0
  %2212 = vmatprep.mubr.f32.mxu0 0.0
  %2213 = vmatmul.mubr.f32.gmra.mrb[0].mxu0 %v2042
  %v2214 = vpop.f32.mrb[0].mxu0
  %v2215 = vadd.f32 %v1950, %v2214
  %v2216 = vpop.f32.mrb[0].mxu0
  %2217 = vmatprep.mubr.f32.mxu0 0.0
  %2218 = vmatmul.mubr.f32.gmra.mrb[0].mxu0 %v2045
  %v2219 = vpop.f32.mrb[0].mxu0
  %v2220 = vadd.f32 %v1955, %v2219
  %v2221 = vpop.f32.mrb[0].mxu0
  %2222 = vmatprep.mubr.f32.mxu0 0.0
  %2223 = vmatmul.mubr.f32.gmra.mrb[0].mxu0 %v2048
  %v2224 = vpop.f32.mrb[0].mxu0
  %v2225 = vadd.f32 %v1960, %v2224
  %v2226 = vpop.f32.mrb[0].mxu0
  %2227 = vmatprep.mubr.f32.mxu0 0.0
  %2228 = vmatmul.mubr.f32.gmra.mrb[0].mxu0 %v2051
  %v2229 = vpop.f32.mrb[0].mxu0
  %v2230 = vadd.f32 %v1965, %v2229
  %v2231 = vpop.f32.mrb[0].mxu0
  %2232 = vmatprep.mubr.f32.mxu0 0.0
  %2233 = vmatmul.mubr.f32.gmra.mrb[0].mxu0 %v2054
  %v2234 = vpop.f32.mrb[0].mxu0
  %v2235 = vadd.f32 %v1970, %v2234
  %v2236 = vpop.f32.mrb[0].mxu0
  %2237 = vmatprep.mubr.f32.mxu0 0.0
  %2238 = vmatmul.mubr.f32.gmra.mrb[0].mxu0 %v2057
  %v2239 = vpop.f32.mrb[0].mxu0
  %v2240 = vadd.f32 %v1975, %v2239
  %v2241 = vpop.f32.mrb[0].mxu0
  %2242 = vmatprep.mubr.f32.mxu0 0.0
  %2243 = vmatmul.mubr.f32.gmra.mrb[0].mxu0 %v2060
  %v2244 = vpop.f32.mrb[0].mxu0
  %v2245 = vadd.f32 %v1980, %v2244
  %v2246 = vpop.f32.mrb[0].mxu0
  %2247 = vmatprep.mubr.f32.mxu0 0.0
  %2248 = vmatmul.mubr.f32.gmra.mrb[0].mxu0 %v2063
  %v2249 = vpop.f32.mrb[0].mxu0
  %v2250 = vadd.f32 %v1985, %v2249
  %v2251 = vpop.f32.mrb[0].mxu0
  %2252 = vmatprep.mubr.f32.mxu0 0.0
  %2253 = vmatmul.mubr.f32.gmra.mrb[0].mxu0 %v2066
  %v2254 = vpop.f32.mrb[0].mxu0
  %v2255 = vadd.f32 %v1990, %v2254
  %v2256 = vpop.f32.mrb[0].mxu0
  %2257 = vdwg.mxu0
  %s2258 = scalar_lea.vmem %s9, 400
  %v2259 = vld [vmem:[%s2258] sm:$0xff]
  %v2260 = vld [vmem:[%s2258 + $0x8] sm:$0xff]
  %v2261 = vld [vmem:[%s2258 + $0x10] sm:$0xff]
  %v2262 = vld [vmem:[%s2258 + $0x18] sm:$0xff]
  %v2263 = vld [vmem:[%s2258 + $0x20] sm:$0xff]
  %v2264 = vld [vmem:[%s2258 + $0x28] sm:$0xff]
  %v2265 = vld [vmem:[%s2258 + $0x30] sm:$0xff]
  %v2266 = vld [vmem:[%s2258 + $0x38] sm:$0xff]
  %v2267 = vld [vmem:[%s2258 + $0x40] sm:$0xff]
  %v2268 = vld [vmem:[%s2258 + $0x48] sm:$0xff]
  %v2269 = vld [vmem:[%s2258 + $0x50] sm:$0xff]
  %v2270 = vld [vmem:[%s2258 + $0x58] sm:$0xff]
  %v2271 = vld [vmem:[%s2258 + $0x60] sm:$0xff]
  %v2272 = vld [vmem:[%s2258 + $0x68] sm:$0xff]
  %v2273 = vld [vmem:[%s2258 + $0x70] sm:$0xff]
  %v2274 = vld [vmem:[%s2258 + $0x78] sm:$0xff]
  %v2275 = vld [vmem:[%s2258 + $0x80] sm:$0xff]
  %v2276 = vld [vmem:[%s2258 + $0x88] sm:$0xff]
  %v2277 = vld [vmem:[%s2258 + $0x90] sm:$0xff]
  %v2278 = vld [vmem:[%s2258 + $0x98] sm:$0xff]
  %v2279 = vld [vmem:[%s2258 + $0xa0] sm:$0xff]
  %v2280 = vld [vmem:[%s2258 + $0xa8] sm:$0xff]
  %v2281 = vld [vmem:[%s2258 + $0xb0] sm:$0xff]
  %v2282 = vld [vmem:[%s2258 + $0xb8] sm:$0xff]
  %v2283 = vld [vmem:[%s2258 + $0xc0] sm:$0xff]
  %2284 = vrot.lane.b32.xlu0 %v1571, 124
  %v2285 = vpop.permute.xlu0 %2284
  %2286 = vrot.lane.b32.xlu0 %v1576, 124
  %v2287 = vpop.permute.xlu0 %2286
  %2288 = vrot.lane.b32.xlu0 %v1581, 124
  %v2289 = vpop.permute.xlu0 %2288
  %2290 = vrot.lane.b32.xlu0 %v1586, 124
  %v2291 = vpop.permute.xlu0 %2290
  %2292 = vrot.lane.b32.xlu0 %v1591, 124
  %v2293 = vpop.permute.xlu0 %2292
  %2294 = vrot.lane.b32.xlu0 %v1596, 124
  %v2295 = vpop.permute.xlu0 %2294
  %2296 = vrot.lane.b32.xlu0 %v1601, 124
  %v2297 = vpop.permute.xlu0 %2296
  %2298 = vrot.lane.b32.xlu0 %v1606, 124
  %v2299 = vpop.permute.xlu0 %2298
  %2300 = vrot.lane.b32.xlu0 %v1611, 124
  %v2301 = vpop.permute.xlu0 %2300
  %2302 = vrot.lane.b32.xlu0 %v1616, 124
  %v2303 = vpop.permute.xlu0 %2302
  %2304 = vrot.lane.b32.xlu0 %v1621, 124
  %v2305 = vpop.permute.xlu0 %2304
  %2306 = vrot.lane.b32.xlu0 %v1626, 124
  %v2307 = vpop.permute.xlu0 %2306
  %v2321 = vsel %vm450, %v2259, 0
  %v2324 = vsel %vm450, %v2260, 0
  %v2327 = vsel %vm450, %v2261, 0
  %v2330 = vsel %vm450, %v2262, 0
  %v2333 = vsel %vm450, %v2263, 0
  %v2336 = vsel %vm450, %v2264, 0
  %v2339 = vsel %vm450, %v2265, 0
  %v2342 = vsel %vm450, %v2266, 0
  %v2345 = vsel %vm450, %v2267, 0
  %v2348 = vsel %vm450, %v2268, 0
  %v2351 = vsel %vm450, %v2269, 0
  %v2354 = vsel %vm450, %v2270, 0
  %v2357 = vsel %vm450, %v2271, 0
  %v2360 = vsel %vm450, %v2272, 0
  %v2363 = vsel %vm450, %v2273, 0
  %v2366 = vsel %vm450, %v2274, 0
  %v2369 = vsel %vm450, %v2275, 0
  %v2372 = vsel %vm450, %v2276, 0
  %v2375 = vsel %vm450, %v2277, 0
  %v2378 = vsel %vm450, %v2278, 0
  %v2381 = vsel %vm450, %v2279, 0
  %v2384 = vsel %vm450, %v2280, 0
  %v2387 = vsel %vm450, %v2281, 0
  %v2390 = vsel %vm450, %v2282, 0
  %v2393 = vsel %vm450, %v2283, 0
  %2395 = vmatprep.subr.mxu0 0.0
  %2396 = vmatpush1.msra.mxu0 %v2285
  %2397 = vmatprep.subr.mxu0 0.0
  %2398 = vmatpush1.msra.mxu0 %v2287
  %2399 = vmatprep.subr.mxu0 0.0
  %2400 = vmatpush1.msra.mxu0 %v2289
  %2401 = vmatprep.subr.mxu0 0.0
  %2402 = vmatpush1.msra.mxu0 %v2291
  %2403 = vmatprep.subr.mxu0 0.0
  %2404 = vmatpush1.msra.mxu0 %v2293
  %2405 = vmatprep.subr.mxu0 0.0
  %2406 = vmatpush1.msra.mxu0 %v2295
  %2407 = vmatprep.subr.mxu0 0.0
  %2408 = vmatpush1.msra.mxu0 %v2297
  %2409 = vmatprep.subr.mxu0 0.0
  %2410 = vmatpush1.msra.mxu0 %v2299
  %2411 = vmatprep.subr.mxu0 0.0
  %2412 = vmatpush1.msra.mxu0 %v2301
  %2413 = vmatprep.subr.mxu0 0.0
  %2414 = vmatpush1.msra.mxu0 %v2303
  %2415 = vmatprep.subr.mxu0 0.0
  %2416 = vmatpush1.msra.mxu0 %v2305
  %2417 = vmatprep.subr.mxu0 0.0
  %2418 = vmatpush1.msra.mxu0 %v2307
  %2419 = vmatprep.subr.mxu0 0.0
  %2420 = vmatpush1.msra.mxu0 0.0
  %2421 = vmatprep.subr.mxu0 0.0
  %2422 = vmatpush1.msra.mxu0 0.0
  %2423 = vmatprep.subr.mxu0 0.0
  %2424 = vmatpush1.msra.mxu0 0.0
  %2425 = vmatprep.subr.mxu0 0.0
  %2426 = vmatpush1.msra.mxu0 0.0
  %2427 = vmatprep.subr.mxu0 0.0
  %2428 = vmatpush1.msra.mxu0 0.0
  %2429 = vmatprep.subr.mxu0 0.0
  %2430 = vmatpush1.msra.mxu0 0.0
  %2431 = vmatprep.subr.mxu0 0.0
  %2432 = vmatpush1.msra.mxu0 0.0
  %2433 = vmatprep.subr.mxu0 0.0
  %2434 = vmatpush1.msra.mxu0 0.0
  %2435 = vmatprep.subr.mxu0 0.0
  %2436 = vmatpush1.msra.mxu0 0.0
  %2437 = vmatprep.subr.mxu0 0.0
  %2438 = vmatpush1.msra.mxu0 0.0
  %2439 = vmatprep.subr.mxu0 0.0
  %2440 = vmatpush1.msra.mxu0 0.0
  %2441 = vmatprep.subr.mxu0 0.0
  %2442 = vmatpush1.msra.mxu0 0.0
  %2443 = vmatprep.subr.mxu0 0.0
  %2444 = vmatpush1.msra.mxu0 0.0
  %2445 = vmatprep.subr.mxu0 0.0
  %2446 = vmatpush1.msra.mxu0 0.0
  %2447 = vmatprep.subr.mxu0 0.0
  %2448 = vmatpush1.msra.mxu0 0.0
  %2449 = vmatprep.subr.mxu0 0.0
  %2450 = vmatpush1.msra.mxu0 0.0
  %2451 = vmatprep.subr.mxu0 0.0
  %2452 = vmatpush1.msra.mxu0 0.0
  %2453 = vmatprep.subr.mxu0 0.0
  %2454 = vmatpush1.msra.mxu0 0.0
  %2455 = vmatprep.subr.mxu0 0.0
  %2456 = vmatpush1.msra.mxu0 0.0
  %2457 = vmatprep.subr.mxu0 0.0
  %2458 = vmatpush1.msra.mxu0 0.0
  %2459 = vmatprep.mubr.f32.mxu0 0.0
  %2460 = vmatmul.mubr.f32.gmra.mrb[0].mxu0 %v2321
  %v2461 = vpop.f32.mrb[0].mxu0
  %v2462 = vadd.f32 0.0, %v2461
  %v2463 = vpop.f32.mrb[0].mxu0
  %2464 = vmatprep.mubr.f32.mxu0 0.0
  %2465 = vmatmul.mubr.f32.gmra.mrb[0].mxu0 %v2324
  %v2466 = vpop.f32.mrb[0].mxu0
  %v2467 = vadd.f32 0.0, %v2466
  %v2468 = vpop.f32.mrb[0].mxu0
  %2469 = vmatprep.mubr.f32.mxu0 0.0
  %2470 = vmatmul.mubr.f32.gmra.mrb[0].mxu0 %v2327
  %v2471 = vpop.f32.mrb[0].mxu0
  %v2472 = vadd.f32 0.0, %v2471
  %v2473 = vpop.f32.mrb[0].mxu0
  %2474 = vmatprep.mubr.f32.mxu0 0.0
  %2475 = vmatmul.mubr.f32.gmra.mrb[0].mxu0 %v2330
  %v2476 = vpop.f32.mrb[0].mxu0
  %v2477 = vadd.f32 0.0, %v2476
  %v2478 = vpop.f32.mrb[0].mxu0
  %2479 = vmatprep.mubr.f32.mxu0 0.0
  %2480 = vmatmul.mubr.f32.gmra.mrb[0].mxu0 %v2333
  %v2481 = vpop.f32.mrb[0].mxu0
  %v2482 = vadd.f32 0.0, %v2481
  %v2483 = vpop.f32.mrb[0].mxu0
  %2484 = vmatprep.mubr.f32.mxu0 0.0
  %2485 = vmatmul.mubr.f32.gmra.mrb[0].mxu0 %v2336
  %v2486 = vpop.f32.mrb[0].mxu0
  %v2487 = vadd.f32 0.0, %v2486
  %v2488 = vpop.f32.mrb[0].mxu0
  %2489 = vmatprep.mubr.f32.mxu0 0.0
  %2490 = vmatmul.mubr.f32.gmra.mrb[0].mxu0 %v2339
  %v2491 = vpop.f32.mrb[0].mxu0
  %v2492 = vadd.f32 0.0, %v2491
  %v2493 = vpop.f32.mrb[0].mxu0
  %2494 = vmatprep.mubr.f32.mxu0 0.0
  %2495 = vmatmul.mubr.f32.gmra.mrb[0].mxu0 %v2342
  %v2496 = vpop.f32.mrb[0].mxu0
  %v2497 = vadd.f32 0.0, %v2496
  %v2498 = vpop.f32.mrb[0].mxu0
  %2499 = vmatprep.mubr.f32.mxu0 0.0
  %2500 = vmatmul.mubr.f32.gmra.mrb[0].mxu0 %v2345
  %v2501 = vpop.f32.mrb[0].mxu0
  %v2502 = vadd.f32 0.0, %v2501
  %v2503 = vpop.f32.mrb[0].mxu0
  %2504 = vmatprep.mubr.f32.mxu0 0.0
  %2505 = vmatmul.mubr.f32.gmra.mrb[0].mxu0 %v2348
  %v2506 = vpop.f32.mrb[0].mxu0
  %v2507 = vadd.f32 0.0, %v2506
  %v2508 = vpop.f32.mrb[0].mxu0
  %2509 = vmatprep.mubr.f32.mxu0 0.0
  %2510 = vmatmul.mubr.f32.gmra.mrb[0].mxu0 %v2351
  %v2511 = vpop.f32.mrb[0].mxu0
  %v2512 = vadd.f32 0.0, %v2511
  %v2513 = vpop.f32.mrb[0].mxu0
  %2514 = vmatprep.mubr.f32.mxu0 0.0
  %2515 = vmatmul.mubr.f32.gmra.mrb[0].mxu0 %v2354
  %v2516 = vpop.f32.mrb[0].mxu0
  %v2517 = vadd.f32 0.0, %v2516
  %v2518 = vpop.f32.mrb[0].mxu0
  %2519 = vmatprep.mubr.f32.mxu0 0.0
  %2520 = vmatmul.mubr.f32.gmra.mrb[0].mxu0 %v2357
  %v2521 = vpop.f32.mrb[0].mxu0
  %v2522 = vadd.f32 0.0, %v2521
  %v2523 = vpop.f32.mrb[0].mxu0
  %2524 = vmatprep.mubr.f32.mxu0 0.0
  %2525 = vmatmul.mubr.f32.gmra.mrb[0].mxu0 %v2360
  %v2526 = vpop.f32.mrb[0].mxu0
  %v2527 = vadd.f32 0.0, %v2526
  %v2528 = vpop.f32.mrb[0].mxu0
  %2529 = vmatprep.mubr.f32.mxu0 0.0
  %2530 = vmatmul.mubr.f32.gmra.mrb[0].mxu0 %v2363
  %v2531 = vpop.f32.mrb[0].mxu0
  %v2532 = vadd.f32 0.0, %v2531
  %v2533 = vpop.f32.mrb[0].mxu0
  %2534 = vmatprep.mubr.f32.mxu0 0.0
  %2535 = vmatmul.mubr.f32.gmra.mrb[0].mxu0 %v2366
  %v2536 = vpop.f32.mrb[0].mxu0
  %v2537 = vadd.f32 0.0, %v2536
  %v2538 = vpop.f32.mrb[0].mxu0
  %2539 = vmatprep.mubr.f32.mxu0 0.0
  %2540 = vmatmul.mubr.f32.gmra.mrb[0].mxu0 %v2369
  %v2541 = vpop.f32.mrb[0].mxu0
  %v2542 = vadd.f32 0.0, %v2541
  %v2543 = vpop.f32.mrb[0].mxu0
  %2544 = vmatprep.mubr.f32.mxu0 0.0
  %2545 = vmatmul.mubr.f32.gmra.mrb[0].mxu0 %v2372
  %v2546 = vpop.f32.mrb[0].mxu0
  %v2547 = vadd.f32 0.0, %v2546
  %v2548 = vpop.f32.mrb[0].mxu0
  %2549 = vmatprep.mubr.f32.mxu0 0.0
  %2550 = vmatmul.mubr.f32.gmra.mrb[0].mxu0 %v2375
  %v2551 = vpop.f32.mrb[0].mxu0
  %v2552 = vadd.f32 0.0, %v2551
  %v2553 = vpop.f32.mrb[0].mxu0
  %2554 = vmatprep.mubr.f32.mxu0 0.0
  %2555 = vmatmul.mubr.f32.gmra.mrb[0].mxu0 %v2378
  %v2556 = vpop.f32.mrb[0].mxu0
  %v2557 = vadd.f32 0.0, %v2556
  %v2558 = vpop.f32.mrb[0].mxu0
  %2559 = vmatprep.mubr.f32.mxu0 0.0
  %2560 = vmatmul.mubr.f32.gmra.mrb[0].mxu0 %v2381
  %v2561 = vpop.f32.mrb[0].mxu0
  %v2562 = vadd.f32 0.0, %v2561
  %v2563 = vpop.f32.mrb[0].mxu0
  %2564 = vmatprep.mubr.f32.mxu0 0.0
  %2565 = vmatmul.mubr.f32.gmra.mrb[0].mxu0 %v2384
  %v2566 = vpop.f32.mrb[0].mxu0
  %v2567 = vadd.f32 0.0, %v2566
  %v2568 = vpop.f32.mrb[0].mxu0
  %2569 = vmatprep.mubr.f32.mxu0 0.0
  %2570 = vmatmul.mubr.f32.gmra.mrb[0].mxu0 %v2387
  %v2571 = vpop.f32.mrb[0].mxu0
  %v2572 = vadd.f32 0.0, %v2571
  %v2573 = vpop.f32.mrb[0].mxu0
  %2574 = vmatprep.mubr.f32.mxu0 0.0
  %2575 = vmatmul.mubr.f32.gmra.mrb[0].mxu0 %v2390
  %v2576 = vpop.f32.mrb[0].mxu0
  %v2577 = vadd.f32 0.0, %v2576
  %v2578 = vpop.f32.mrb[0].mxu0
  %2579 = vmatprep.mubr.f32.mxu0 0.0
  %2580 = vmatmul.mubr.f32.gmra.mrb[0].mxu0 %v2393
  %v2581 = vpop.f32.mrb[0].mxu0
  %v2582 = vadd.f32 0.0, %v2581
  %v2583 = vpop.f32.mrb[0].mxu0
  %2584 = vdwg.mxu0
  %v2585 = vadd.f32 %v2135, %v2462
  %v2586 = vadd.f32 %v2140, %v2467
  %v2587 = vadd.f32 %v2145, %v2472
  %v2588 = vadd.f32 %v2150, %v2477
  %v2589 = vadd.f32 %v2155, %v2482
  %v2590 = vadd.f32 %v2160, %v2487
  %v2591 = vadd.f32 %v2165, %v2492
  %v2592 = vadd.f32 %v2170, %v2497
  %v2593 = vadd.f32 %v2175, %v2502
  %v2594 = vadd.f32 %v2180, %v2507
  %v2595 = vadd.f32 %v2185, %v2512
  %v2596 = vadd.f32 %v2190, %v2517
  %v2597 = vadd.f32 %v2195, %v2522
  %v2598 = vadd.f32 %v2200, %v2527
  %v2599 = vadd.f32 %v2205, %v2532
  %v2600 = vadd.f32 %v2210, %v2537
  %v2601 = vadd.f32 %v2215, %v2542
  %v2602 = vadd.f32 %v2220, %v2547
  %v2603 = vadd.f32 %v2225, %v2552
  %v2604 = vadd.f32 %v2230, %v2557
  %v2605 = vadd.f32 %v2235, %v2562
  %v2606 = vadd.f32 %v2240, %v2567
  %v2607 = vadd.f32 %v2245, %v2572
  %v2608 = vadd.f32 %v2250, %v2577
  %v2609 = vadd.f32 %v2255, %v2582
  %s2610 = scalar_lea.vmem %s9, 600
  %v2611 = vld [vmem:[%s2610] sm:$0xff]
  %v2612 = vld [vmem:[%s2610 + $0x8] sm:$0xff]
  %v2613 = vld [vmem:[%s2610 + $0x10] sm:$0xff]
  %v2614 = vld [vmem:[%s2610 + $0x18] sm:$0xff]
  %v2615 = vld [vmem:[%s2610 + $0x20] sm:$0xff]
  %v2616 = vld [vmem:[%s2610 + $0x28] sm:$0xff]
  %v2617 = vld [vmem:[%s2610 + $0x30] sm:$0xff]
  %v2618 = vld [vmem:[%s2610 + $0x38] sm:$0xff]
  %v2619 = vld [vmem:[%s2610 + $0x40] sm:$0xff]
  %v2620 = vld [vmem:[%s2610 + $0x48] sm:$0xff]
  %v2621 = vld [vmem:[%s2610 + $0x50] sm:$0xff]
  %v2622 = vld [vmem:[%s2610 + $0x58] sm:$0xff]
  %v2623 = vld [vmem:[%s2610 + $0x60] sm:$0xff]
  %v2624 = vld [vmem:[%s2610 + $0x68] sm:$0xff]
  %v2625 = vld [vmem:[%s2610 + $0x70] sm:$0xff]
  %v2626 = vld [vmem:[%s2610 + $0x78] sm:$0xff]
  %v2627 = vld [vmem:[%s2610 + $0x80] sm:$0xff]
  %v2628 = vld [vmem:[%s2610 + $0x88] sm:$0xff]
  %v2629 = vld [vmem:[%s2610 + $0x90] sm:$0xff]
  %v2630 = vld [vmem:[%s2610 + $0x98] sm:$0xff]
  %v2631 = vld [vmem:[%s2610 + $0xa0] sm:$0xff]
  %v2632 = vld [vmem:[%s2610 + $0xa8] sm:$0xff]
  %v2633 = vld [vmem:[%s2610 + $0xb0] sm:$0xff]
  %v2634 = vld [vmem:[%s2610 + $0xb8] sm:$0xff]
  %v2635 = vld [vmem:[%s2610 + $0xc0] sm:$0xff]
  %2636 = vrot.lane.b32.xlu0 %v1571, 122
  %v2637 = vpop.permute.xlu0 %2636
  %2638 = vrot.lane.b32.xlu0 %v1576, 122
  %v2639 = vpop.permute.xlu0 %2638
  %2640 = vrot.lane.b32.xlu0 %v1581, 122
  %v2641 = vpop.permute.xlu0 %2640
  %2642 = vrot.lane.b32.xlu0 %v1586, 122
  %v2643 = vpop.permute.xlu0 %2642
  %2644 = vrot.lane.b32.xlu0 %v1591, 122
  %v2645 = vpop.permute.xlu0 %2644
  %2646 = vrot.lane.b32.xlu0 %v1596, 122
  %v2647 = vpop.permute.xlu0 %2646
  %2648 = vrot.lane.b32.xlu0 %v1601, 122
  %v2649 = vpop.permute.xlu0 %2648
  %2650 = vrot.lane.b32.xlu0 %v1606, 122
  %v2651 = vpop.permute.xlu0 %2650
  %2652 = vrot.lane.b32.xlu0 %v1611, 122
  %v2653 = vpop.permute.xlu0 %2652
  %2654 = vrot.lane.b32.xlu0 %v1616, 122
  %v2655 = vpop.permute.xlu0 %2654
  %2656 = vrot.lane.b32.xlu0 %v1621, 122
  %v2657 = vpop.permute.xlu0 %2656
  %2658 = vrot.lane.b32.xlu0 %v1626, 122
  %v2659 = vpop.permute.xlu0 %2658
  %v2673 = vsel %vm450, %v2611, 0
  %v2676 = vsel %vm450, %v2612, 0
  %v2679 = vsel %vm450, %v2613, 0
  %v2682 = vsel %vm450, %v2614, 0
  %v2685 = vsel %vm450, %v2615, 0
  %v2688 = vsel %vm450, %v2616, 0
  %v2691 = vsel %vm450, %v2617, 0
  %v2694 = vsel %vm450, %v2618, 0
  %v2697 = vsel %vm450, %v2619, 0
  %v2700 = vsel %vm450, %v2620, 0
  %v2703 = vsel %vm450, %v2621, 0
  %v2706 = vsel %vm450, %v2622, 0
  %v2709 = vsel %vm450, %v2623, 0
  %v2712 = vsel %vm450, %v2624, 0
  %v2715 = vsel %vm450, %v2625, 0
  %v2718 = vsel %vm450, %v2626, 0
  %v2721 = vsel %vm450, %v2627, 0
  %v2724 = vsel %vm450, %v2628, 0
  %v2727 = vsel %vm450, %v2629, 0
  %v2730 = vsel %vm450, %v2630, 0
  %v2733 = vsel %vm450, %v2631, 0
  %v2736 = vsel %vm450, %v2632, 0
  %v2739 = vsel %vm450, %v2633, 0
  %v2742 = vsel %vm450, %v2634, 0
  %v2745 = vsel %vm450, %v2635, 0
  %2747 = vmatprep.subr.mxu0 0.0
  %2748 = vmatpush1.msra.mxu0 %v2637
  %2749 = vmatprep.subr.mxu0 0.0
  %2750 = vmatpush1.msra.mxu0 %v2639
  %2751 = vmatprep.subr.mxu0 0.0
  %2752 = vmatpush1.msra.mxu0 %v2641
  %2753 = vmatprep.subr.mxu0 0.0
  %2754 = vmatpush1.msra.mxu0 %v2643
  %2755 = vmatprep.subr.mxu0 0.0
  %2756 = vmatpush1.msra.mxu0 %v2645
  %2757 = vmatprep.subr.mxu0 0.0
  %2758 = vmatpush1.msra.mxu0 %v2647
  %2759 = vmatprep.subr.mxu0 0.0
  %2760 = vmatpush1.msra.mxu0 %v2649
  %2761 = vmatprep.subr.mxu0 0.0
  %2762 = vmatpush1.msra.mxu0 %v2651
  %2763 = vmatprep.subr.mxu0 0.0
  %2764 = vmatpush1.msra.mxu0 %v2653
  %2765 = vmatprep.subr.mxu0 0.0
  %2766 = vmatpush1.msra.mxu0 %v2655
  %2767 = vmatprep.subr.mxu0 0.0
  %2768 = vmatpush1.msra.mxu0 %v2657
  %2769 = vmatprep.subr.mxu0 0.0
  %2770 = vmatpush1.msra.mxu0 %v2659
  %2771 = vmatprep.subr.mxu0 0.0
  %2772 = vmatpush1.msra.mxu0 0.0
  %2773 = vmatprep.subr.mxu0 0.0
  %2774 = vmatpush1.msra.mxu0 0.0
  %2775 = vmatprep.subr.mxu0 0.0
  %2776 = vmatpush1.msra.mxu0 0.0
  %2777 = vmatprep.subr.mxu0 0.0
  %2778 = vmatpush1.msra.mxu0 0.0
  %2779 = vmatprep.subr.mxu0 0.0
  %2780 = vmatpush1.msra.mxu0 0.0
  %2781 = vmatprep.subr.mxu0 0.0
  %2782 = vmatpush1.msra.mxu0 0.0
  %2783 = vmatprep.subr.mxu0 0.0
  %2784 = vmatpush1.msra.mxu0 0.0
  %2785 = vmatprep.subr.mxu0 0.0
  %2786 = vmatpush1.msra.mxu0 0.0
  %2787 = vmatprep.subr.mxu0 0.0
  %2788 = vmatpush1.msra.mxu0 0.0
  %2789 = vmatprep.subr.mxu0 0.0
  %2790 = vmatpush1.msra.mxu0 0.0
  %2791 = vmatprep.subr.mxu0 0.0
  %2792 = vmatpush1.msra.mxu0 0.0
  %2793 = vmatprep.subr.mxu0 0.0
  %2794 = vmatpush1.msra.mxu0 0.0
  %2795 = vmatprep.subr.mxu0 0.0
  %2796 = vmatpush1.msra.mxu0 0.0
  %2797 = vmatprep.subr.mxu0 0.0
  %2798 = vmatpush1.msra.mxu0 0.0
  %2799 = vmatprep.subr.mxu0 0.0
  %2800 = vmatpush1.msra.mxu0 0.0
  %2801 = vmatprep.subr.mxu0 0.0
  %2802 = vmatpush1.msra.mxu0 0.0
  %2803 = vmatprep.subr.mxu0 0.0
  %2804 = vmatpush1.msra.mxu0 0.0
  %2805 = vmatprep.subr.mxu0 0.0
  %2806 = vmatpush1.msra.mxu0 0.0
  %2807 = vmatprep.subr.mxu0 0.0
  %2808 = vmatpush1.msra.mxu0 0.0
  %2809 = vmatprep.subr.mxu0 0.0
  %2810 = vmatpush1.msra.mxu0 0.0
  %2811 = vmatprep.mubr.f32.mxu0 0.0
  %2812 = vmatmul.mubr.f32.gmra.mrb[0].mxu0 %v2673
  %v2813 = vpop.f32.mrb[0].mxu0
  %v2814 = vadd.f32 0.0, %v2813
  %v2815 = vpop.f32.mrb[0].mxu0
  %2816 = vmatprep.mubr.f32.mxu0 0.0
  %2817 = vmatmul.mubr.f32.gmra.mrb[0].mxu0 %v2676
  %v2818 = vpop.f32.mrb[0].mxu0
  %v2819 = vadd.f32 0.0, %v2818
  %v2820 = vpop.f32.mrb[0].mxu0
  %2821 = vmatprep.mubr.f32.mxu0 0.0
  %2822 = vmatmul.mubr.f32.gmra.mrb[0].mxu0 %v2679
  %v2823 = vpop.f32.mrb[0].mxu0
  %v2824 = vadd.f32 0.0, %v2823
  %v2825 = vpop.f32.mrb[0].mxu0
  %2826 = vmatprep.mubr.f32.mxu0 0.0
  %2827 = vmatmul.mubr.f32.gmra.mrb[0].mxu0 %v2682
  %v2828 = vpop.f32.mrb[0].mxu0
  %v2829 = vadd.f32 0.0, %v2828
  %v2830 = vpop.f32.mrb[0].mxu0
  %2831 = vmatprep.mubr.f32.mxu0 0.0
  %2832 = vmatmul.mubr.f32.gmra.mrb[0].mxu0 %v2685
  %v2833 = vpop.f32.mrb[0].mxu0
  %v2834 = vadd.f32 0.0, %v2833
  %v2835 = vpop.f32.mrb[0].mxu0
  %2836 = vmatprep.mubr.f32.mxu0 0.0
  %2837 = vmatmul.mubr.f32.gmra.mrb[0].mxu0 %v2688
  %v2838 = vpop.f32.mrb[0].mxu0
  %v2839 = vadd.f32 0.0, %v2838
  %v2840 = vpop.f32.mrb[0].mxu0
  %2841 = vmatprep.mubr.f32.mxu0 0.0
  %2842 = vmatmul.mubr.f32.gmra.mrb[0].mxu0 %v2691
  %v2843 = vpop.f32.mrb[0].mxu0
  %v2844 = vadd.f32 0.0, %v2843
  %v2845 = vpop.f32.mrb[0].mxu0
  %2846 = vmatprep.mubr.f32.mxu0 0.0
  %2847 = vmatmul.mubr.f32.gmra.mrb[0].mxu0 %v2694
  %v2848 = vpop.f32.mrb[0].mxu0
  %v2849 = vadd.f32 0.0, %v2848
  %v2850 = vpop.f32.mrb[0].mxu0
  %2851 = vmatprep.mubr.f32.mxu0 0.0
  %2852 = vmatmul.mubr.f32.gmra.mrb[0].mxu0 %v2697
  %v2853 = vpop.f32.mrb[0].mxu0
  %v2854 = vadd.f32 0.0, %v2853
  %v2855 = vpop.f32.mrb[0].mxu0
  %2856 = vmatprep.mubr.f32.mxu0 0.0
  %2857 = vmatmul.mubr.f32.gmra.mrb[0].mxu0 %v2700
  %v2858 = vpop.f32.mrb[0].mxu0
  %v2859 = vadd.f32 0.0, %v2858
  %v2860 = vpop.f32.mrb[0].mxu0
  %2861 = vmatprep.mubr.f32.mxu0 0.0
  %2862 = vmatmul.mubr.f32.gmra.mrb[0].mxu0 %v2703
  %v2863 = vpop.f32.mrb[0].mxu0
  %v2864 = vadd.f32 0.0, %v2863
  %v2865 = vpop.f32.mrb[0].mxu0
  %2866 = vmatprep.mubr.f32.mxu0 0.0
  %2867 = vmatmul.mubr.f32.gmra.mrb[0].mxu0 %v2706
  %v2868 = vpop.f32.mrb[0].mxu0
  %v2869 = vadd.f32 0.0, %v2868
  %v2870 = vpop.f32.mrb[0].mxu0
  %2871 = vmatprep.mubr.f32.mxu0 0.0
  %2872 = vmatmul.mubr.f32.gmra.mrb[0].mxu0 %v2709
  %v2873 = vpop.f32.mrb[0].mxu0
  %v2874 = vadd.f32 0.0, %v2873
  %v2875 = vpop.f32.mrb[0].mxu0
  %2876 = vmatprep.mubr.f32.mxu0 0.0
  %2877 = vmatmul.mubr.f32.gmra.mrb[0].mxu0 %v2712
  %v2878 = vpop.f32.mrb[0].mxu0
  %v2879 = vadd.f32 0.0, %v2878
  %v2880 = vpop.f32.mrb[0].mxu0
  %2881 = vmatprep.mubr.f32.mxu0 0.0
  %2882 = vmatmul.mubr.f32.gmra.mrb[0].mxu0 %v2715
  %v2883 = vpop.f32.mrb[0].mxu0
  %v2884 = vadd.f32 0.0, %v2883
  %v2885 = vpop.f32.mrb[0].mxu0
  %2886 = vmatprep.mubr.f32.mxu0 0.0
  %2887 = vmatmul.mubr.f32.gmra.mrb[0].mxu0 %v2718
  %v2888 = vpop.f32.mrb[0].mxu0
  %v2889 = vadd.f32 0.0, %v2888
  %v2890 = vpop.f32.mrb[0].mxu0
  %2891 = vmatprep.mubr.f32.mxu0 0.0
  %2892 = vmatmul.mubr.f32.gmra.mrb[0].mxu0 %v2721
  %v2893 = vpop.f32.mrb[0].mxu0
  %v2894 = vadd.f32 0.0, %v2893
  %v2895 = vpop.f32.mrb[0].mxu0
  %2896 = vmatprep.mubr.f32.mxu0 0.0
  %2897 = vmatmul.mubr.f32.gmra.mrb[0].mxu0 %v2724
  %v2898 = vpop.f32.mrb[0].mxu0
  %v2899 = vadd.f32 0.0, %v2898
  %v2900 = vpop.f32.mrb[0].mxu0
  %2901 = vmatprep.mubr.f32.mxu0 0.0
  %2902 = vmatmul.mubr.f32.gmra.mrb[0].mxu0 %v2727
  %v2903 = vpop.f32.mrb[0].mxu0
  %v2904 = vadd.f32 0.0, %v2903
  %v2905 = vpop.f32.mrb[0].mxu0
  %2906 = vmatprep.mubr.f32.mxu0 0.0
  %2907 = vmatmul.mubr.f32.gmra.mrb[0].mxu0 %v2730
  %v2908 = vpop.f32.mrb[0].mxu0
  %v2909 = vadd.f32 0.0, %v2908
  %v2910 = vpop.f32.mrb[0].mxu0
  %2911 = vmatprep.mubr.f32.mxu0 0.0
  %2912 = vmatmul.mubr.f32.gmra.mrb[0].mxu0 %v2733
  %v2913 = vpop.f32.mrb[0].mxu0
  %v2914 = vadd.f32 0.0, %v2913
  %v2915 = vpop.f32.mrb[0].mxu0
  %2916 = vmatprep.mubr.f32.mxu0 0.0
  %2917 = vmatmul.mubr.f32.gmra.mrb[0].mxu0 %v2736
  %v2918 = vpop.f32.mrb[0].mxu0
  %v2919 = vadd.f32 0.0, %v2918
  %v2920 = vpop.f32.mrb[0].mxu0
  %2921 = vmatprep.mubr.f32.mxu0 0.0
  %2922 = vmatmul.mubr.f32.gmra.mrb[0].mxu0 %v2739
  %v2923 = vpop.f32.mrb[0].mxu0
  %v2924 = vadd.f32 0.0, %v2923
  %v2925 = vpop.f32.mrb[0].mxu0
  %2926 = vmatprep.mubr.f32.mxu0 0.0
  %2927 = vmatmul.mubr.f32.gmra.mrb[0].mxu0 %v2742
  %v2928 = vpop.f32.mrb[0].mxu0
  %v2929 = vadd.f32 0.0, %v2928
  %v2930 = vpop.f32.mrb[0].mxu0
  %2931 = vmatprep.mubr.f32.mxu0 0.0
  %2932 = vmatmul.mubr.f32.gmra.mrb[0].mxu0 %v2745
  %v2933 = vpop.f32.mrb[0].mxu0
  %v2934 = vadd.f32 0.0, %v2933
  %v2935 = vpop.f32.mrb[0].mxu0
  %2936 = vdwg.mxu0
  %v2937 = vadd.f32 %v2585, %v2814
  %v2938 = vadd.f32 %v2586, %v2819
  %v2939 = vadd.f32 %v2587, %v2824
  %v2940 = vadd.f32 %v2588, %v2829
  %v2941 = vadd.f32 %v2589, %v2834
  %v2942 = vadd.f32 %v2590, %v2839
  %v2943 = vadd.f32 %v2591, %v2844
  %v2944 = vadd.f32 %v2592, %v2849
  %v2945 = vadd.f32 %v2593, %v2854
  %v2946 = vadd.f32 %v2594, %v2859
  %v2947 = vadd.f32 %v2595, %v2864
  %v2948 = vadd.f32 %v2596, %v2869
  %v2949 = vadd.f32 %v2597, %v2874
  %v2950 = vadd.f32 %v2598, %v2879
  %v2951 = vadd.f32 %v2599, %v2884
  %v2952 = vadd.f32 %v2600, %v2889
  %v2953 = vadd.f32 %v2601, %v2894
  %v2954 = vadd.f32 %v2602, %v2899
  %v2955 = vadd.f32 %v2603, %v2904
  %v2956 = vadd.f32 %v2604, %v2909
  %v2957 = vadd.f32 %v2605, %v2914
  %v2958 = vadd.f32 %v2606, %v2919
  %v2959 = vadd.f32 %v2607, %v2924
  %v2960 = vadd.f32 %v2608, %v2929
  %v2961 = vadd.f32 %v2609, %v2934
  %s2962 = scalar_lea.vmem %s9, 800
  %v2963 = vld [vmem:[%s2962] sm:$0xff]
  %v2964 = vld [vmem:[%s2962 + $0x8] sm:$0xff]
  %v2965 = vld [vmem:[%s2962 + $0x10] sm:$0xff]
  %v2966 = vld [vmem:[%s2962 + $0x18] sm:$0xff]
  %v2967 = vld [vmem:[%s2962 + $0x20] sm:$0xff]
  %v2968 = vld [vmem:[%s2962 + $0x28] sm:$0xff]
  %v2969 = vld [vmem:[%s2962 + $0x30] sm:$0xff]
  %v2970 = vld [vmem:[%s2962 + $0x38] sm:$0xff]
  %v2971 = vld [vmem:[%s2962 + $0x40] sm:$0xff]
  %v2972 = vld [vmem:[%s2962 + $0x48] sm:$0xff]
  %v2973 = vld [vmem:[%s2962 + $0x50] sm:$0xff]
  %v2974 = vld [vmem:[%s2962 + $0x58] sm:$0xff]
  %v2975 = vld [vmem:[%s2962 + $0x60] sm:$0xff]
  %v2976 = vld [vmem:[%s2962 + $0x68] sm:$0xff]
  %v2977 = vld [vmem:[%s2962 + $0x70] sm:$0xff]
  %v2978 = vld [vmem:[%s2962 + $0x78] sm:$0xff]
  %v2979 = vld [vmem:[%s2962 + $0x80] sm:$0xff]
  %v2980 = vld [vmem:[%s2962 + $0x88] sm:$0xff]
  %v2981 = vld [vmem:[%s2962 + $0x90] sm:$0xff]
  %v2982 = vld [vmem:[%s2962 + $0x98] sm:$0xff]
  %v2983 = vld [vmem:[%s2962 + $0xa0] sm:$0xff]
  %v2984 = vld [vmem:[%s2962 + $0xa8] sm:$0xff]
  %v2985 = vld [vmem:[%s2962 + $0xb0] sm:$0xff]
  %v2986 = vld [vmem:[%s2962 + $0xb8] sm:$0xff]
  %v2987 = vld [vmem:[%s2962 + $0xc0] sm:$0xff]
  %2988 = vrot.lane.b32.xlu0 %v1571, 120
  %v2989 = vpop.permute.xlu0 %2988
  %2990 = vrot.lane.b32.xlu0 %v1576, 120
  %v2991 = vpop.permute.xlu0 %2990
  %2992 = vrot.lane.b32.xlu0 %v1581, 120
  %v2993 = vpop.permute.xlu0 %2992
  %2994 = vrot.lane.b32.xlu0 %v1586, 120
  %v2995 = vpop.permute.xlu0 %2994
  %2996 = vrot.lane.b32.xlu0 %v1591, 120
  %v2997 = vpop.permute.xlu0 %2996
  %2998 = vrot.lane.b32.xlu0 %v1596, 120
  %v2999 = vpop.permute.xlu0 %2998
  %3000 = vrot.lane.b32.xlu0 %v1601, 120
  %v3001 = vpop.permute.xlu0 %3000
  %3002 = vrot.lane.b32.xlu0 %v1606, 120
  %v3003 = vpop.permute.xlu0 %3002
  %3004 = vrot.lane.b32.xlu0 %v1611, 120
  %v3005 = vpop.permute.xlu0 %3004
  %3006 = vrot.lane.b32.xlu0 %v1616, 120
  %v3007 = vpop.permute.xlu0 %3006
  %3008 = vrot.lane.b32.xlu0 %v1621, 120
  %v3009 = vpop.permute.xlu0 %3008
  %3010 = vrot.lane.b32.xlu0 %v1626, 120
  %v3011 = vpop.permute.xlu0 %3010
  %v3025 = vsel %vm450, %v2963, 0
  %v3028 = vsel %vm450, %v2964, 0
  %v3031 = vsel %vm450, %v2965, 0
  %v3034 = vsel %vm450, %v2966, 0
  %v3037 = vsel %vm450, %v2967, 0
  %v3040 = vsel %vm450, %v2968, 0
  %v3043 = vsel %vm450, %v2969, 0
  %v3046 = vsel %vm450, %v2970, 0
  %v3049 = vsel %vm450, %v2971, 0
  %v3052 = vsel %vm450, %v2972, 0
  %v3055 = vsel %vm450, %v2973, 0
  %v3058 = vsel %vm450, %v2974, 0
  %v3061 = vsel %vm450, %v2975, 0
  %v3064 = vsel %vm450, %v2976, 0
  %v3067 = vsel %vm450, %v2977, 0
  %v3070 = vsel %vm450, %v2978, 0
  %v3073 = vsel %vm450, %v2979, 0
  %v3076 = vsel %vm450, %v2980, 0
  %v3079 = vsel %vm450, %v2981, 0
  %v3082 = vsel %vm450, %v2982, 0
  %v3085 = vsel %vm450, %v2983, 0
  %v3088 = vsel %vm450, %v2984, 0
  %v3091 = vsel %vm450, %v2985, 0
  %v3094 = vsel %vm450, %v2986, 0
  %v3097 = vsel %vm450, %v2987, 0
  %3099 = vmatprep.subr.mxu0 0.0
  %3100 = vmatpush1.msra.mxu0 %v2989
  %3101 = vmatprep.subr.mxu0 0.0
  %3102 = vmatpush1.msra.mxu0 %v2991
  %3103 = vmatprep.subr.mxu0 0.0
  %3104 = vmatpush1.msra.mxu0 %v2993
  %3105 = vmatprep.subr.mxu0 0.0
  %3106 = vmatpush1.msra.mxu0 %v2995
  %3107 = vmatprep.subr.mxu0 0.0
  %3108 = vmatpush1.msra.mxu0 %v2997
  %3109 = vmatprep.subr.mxu0 0.0
  %3110 = vmatpush1.msra.mxu0 %v2999
  %3111 = vmatprep.subr.mxu0 0.0
  %3112 = vmatpush1.msra.mxu0 %v3001
  %3113 = vmatprep.subr.mxu0 0.0
  %3114 = vmatpush1.msra.mxu0 %v3003
  %3115 = vmatprep.subr.mxu0 0.0
  %3116 = vmatpush1.msra.mxu0 %v3005
  %3117 = vmatprep.subr.mxu0 0.0
  %3118 = vmatpush1.msra.mxu0 %v3007
  %3119 = vmatprep.subr.mxu0 0.0
  %3120 = vmatpush1.msra.mxu0 %v3009
  %3121 = vmatprep.subr.mxu0 0.0
  %3122 = vmatpush1.msra.mxu0 %v3011
  %3123 = vmatprep.subr.mxu0 0.0
  %3124 = vmatpush1.msra.mxu0 0.0
  %3125 = vmatprep.subr.mxu0 0.0
  %3126 = vmatpush1.msra.mxu0 0.0
  %3127 = vmatprep.subr.mxu0 0.0
  %3128 = vmatpush1.msra.mxu0 0.0
  %3129 = vmatprep.subr.mxu0 0.0
  %3130 = vmatpush1.msra.mxu0 0.0
  %3131 = vmatprep.subr.mxu0 0.0
  %3132 = vmatpush1.msra.mxu0 0.0
  %3133 = vmatprep.subr.mxu0 0.0
  %3134 = vmatpush1.msra.mxu0 0.0
  %3135 = vmatprep.subr.mxu0 0.0
  %3136 = vmatpush1.msra.mxu0 0.0
  %3137 = vmatprep.subr.mxu0 0.0
  %3138 = vmatpush1.msra.mxu0 0.0
  %3139 = vmatprep.subr.mxu0 0.0
  %3140 = vmatpush1.msra.mxu0 0.0
  %3141 = vmatprep.subr.mxu0 0.0
  %3142 = vmatpush1.msra.mxu0 0.0
  %3143 = vmatprep.subr.mxu0 0.0
  %3144 = vmatpush1.msra.mxu0 0.0
  %3145 = vmatprep.subr.mxu0 0.0
  %3146 = vmatpush1.msra.mxu0 0.0
  %3147 = vmatprep.subr.mxu0 0.0
  %3148 = vmatpush1.msra.mxu0 0.0
  %3149 = vmatprep.subr.mxu0 0.0
  %3150 = vmatpush1.msra.mxu0 0.0
  %3151 = vmatprep.subr.mxu0 0.0
  %3152 = vmatpush1.msra.mxu0 0.0
  %3153 = vmatprep.subr.mxu0 0.0
  %3154 = vmatpush1.msra.mxu0 0.0
  %3155 = vmatprep.subr.mxu0 0.0
  %3156 = vmatpush1.msra.mxu0 0.0
  %3157 = vmatprep.subr.mxu0 0.0
  %3158 = vmatpush1.msra.mxu0 0.0
  %3159 = vmatprep.subr.mxu0 0.0
  %3160 = vmatpush1.msra.mxu0 0.0
  %3161 = vmatprep.subr.mxu0 0.0
  %3162 = vmatpush1.msra.mxu0 0.0
  %3163 = vmatprep.mubr.f32.mxu0 0.0
  %3164 = vmatmul.mubr.f32.gmra.mrb[0].mxu0 %v3025
  %v3165 = vpop.f32.mrb[0].mxu0
  %v3166 = vadd.f32 0.0, %v3165
  %v3167 = vpop.f32.mrb[0].mxu0
  %3168 = vmatprep.mubr.f32.mxu0 0.0
  %3169 = vmatmul.mubr.f32.gmra.mrb[0].mxu0 %v3028
  %v3170 = vpop.f32.mrb[0].mxu0
  %v3171 = vadd.f32 0.0, %v3170
  %v3172 = vpop.f32.mrb[0].mxu0
  %3173 = vmatprep.mubr.f32.mxu0 0.0
  %3174 = vmatmul.mubr.f32.gmra.mrb[0].mxu0 %v3031
  %v3175 = vpop.f32.mrb[0].mxu0
  %v3176 = vadd.f32 0.0, %v3175
  %v3177 = vpop.f32.mrb[0].mxu0
  %3178 = vmatprep.mubr.f32.mxu0 0.0
  %3179 = vmatmul.mubr.f32.gmra.mrb[0].mxu0 %v3034
  %v3180 = vpop.f32.mrb[0].mxu0
  %v3181 = vadd.f32 0.0, %v3180
  %v3182 = vpop.f32.mrb[0].mxu0
  %3183 = vmatprep.mubr.f32.mxu0 0.0
  %3184 = vmatmul.mubr.f32.gmra.mrb[0].mxu0 %v3037
  %v3185 = vpop.f32.mrb[0].mxu0
  %v3186 = vadd.f32 0.0, %v3185
  %v3187 = vpop.f32.mrb[0].mxu0
  %3188 = vmatprep.mubr.f32.mxu0 0.0
  %3189 = vmatmul.mubr.f32.gmra.mrb[0].mxu0 %v3040
  %v3190 = vpop.f32.mrb[0].mxu0
  %v3191 = vadd.f32 0.0, %v3190
  %v3192 = vpop.f32.mrb[0].mxu0
  %3193 = vmatprep.mubr.f32.mxu0 0.0
  %3194 = vmatmul.mubr.f32.gmra.mrb[0].mxu0 %v3043
  %v3195 = vpop.f32.mrb[0].mxu0
  %v3196 = vadd.f32 0.0, %v3195
  %v3197 = vpop.f32.mrb[0].mxu0
  %3198 = vmatprep.mubr.f32.mxu0 0.0
  %3199 = vmatmul.mubr.f32.gmra.mrb[0].mxu0 %v3046
  %v3200 = vpop.f32.mrb[0].mxu0
  %v3201 = vadd.f32 0.0, %v3200
  %v3202 = vpop.f32.mrb[0].mxu0
  %3203 = vmatprep.mubr.f32.mxu0 0.0
  %3204 = vmatmul.mubr.f32.gmra.mrb[0].mxu0 %v3049
  %v3205 = vpop.f32.mrb[0].mxu0
  %v3206 = vadd.f32 0.0, %v3205
  %v3207 = vpop.f32.mrb[0].mxu0
  %3208 = vmatprep.mubr.f32.mxu0 0.0
  %3209 = vmatmul.mubr.f32.gmra.mrb[0].mxu0 %v3052
  %v3210 = vpop.f32.mrb[0].mxu0
  %v3211 = vadd.f32 0.0, %v3210
  %v3212 = vpop.f32.mrb[0].mxu0
  %3213 = vmatprep.mubr.f32.mxu0 0.0
  %3214 = vmatmul.mubr.f32.gmra.mrb[0].mxu0 %v3055
  %v3215 = vpop.f32.mrb[0].mxu0
  %v3216 = vadd.f32 0.0, %v3215
  %v3217 = vpop.f32.mrb[0].mxu0
  %3218 = vmatprep.mubr.f32.mxu0 0.0
  %3219 = vmatmul.mubr.f32.gmra.mrb[0].mxu0 %v3058
  %v3220 = vpop.f32.mrb[0].mxu0
  %v3221 = vadd.f32 0.0, %v3220
  %v3222 = vpop.f32.mrb[0].mxu0
  %3223 = vmatprep.mubr.f32.mxu0 0.0
  %3224 = vmatmul.mubr.f32.gmra.mrb[0].mxu0 %v3061
  %v3225 = vpop.f32.mrb[0].mxu0
  %v3226 = vadd.f32 0.0, %v3225
  %v3227 = vpop.f32.mrb[0].mxu0
  %3228 = vmatprep.mubr.f32.mxu0 0.0
  %3229 = vmatmul.mubr.f32.gmra.mrb[0].mxu0 %v3064
  %v3230 = vpop.f32.mrb[0].mxu0
  %v3231 = vadd.f32 0.0, %v3230
  %v3232 = vpop.f32.mrb[0].mxu0
  %3233 = vmatprep.mubr.f32.mxu0 0.0
  %3234 = vmatmul.mubr.f32.gmra.mrb[0].mxu0 %v3067
  %v3235 = vpop.f32.mrb[0].mxu0
  %v3236 = vadd.f32 0.0, %v3235
  %v3237 = vpop.f32.mrb[0].mxu0
  %3238 = vmatprep.mubr.f32.mxu0 0.0
  %3239 = vmatmul.mubr.f32.gmra.mrb[0].mxu0 %v3070
  %v3240 = vpop.f32.mrb[0].mxu0
  %v3241 = vadd.f32 0.0, %v3240
  %v3242 = vpop.f32.mrb[0].mxu0
  %3243 = vmatprep.mubr.f32.mxu0 0.0
  %3244 = vmatmul.mubr.f32.gmra.mrb[0].mxu0 %v3073
  %v3245 = vpop.f32.mrb[0].mxu0
  %v3246 = vadd.f32 0.0, %v3245
  %v3247 = vpop.f32.mrb[0].mxu0
  %3248 = vmatprep.mubr.f32.mxu0 0.0
  %3249 = vmatmul.mubr.f32.gmra.mrb[0].mxu0 %v3076
  %v3250 = vpop.f32.mrb[0].mxu0
  %v3251 = vadd.f32 0.0, %v3250
  %v3252 = vpop.f32.mrb[0].mxu0
  %3253 = vmatprep.mubr.f32.mxu0 0.0
  %3254 = vmatmul.mubr.f32.gmra.mrb[0].mxu0 %v3079
  %v3255 = vpop.f32.mrb[0].mxu0
  %v3256 = vadd.f32 0.0, %v3255
  %v3257 = vpop.f32.mrb[0].mxu0
  %3258 = vmatprep.mubr.f32.mxu0 0.0
  %3259 = vmatmul.mubr.f32.gmra.mrb[0].mxu0 %v3082
  %v3260 = vpop.f32.mrb[0].mxu0
  %v3261 = vadd.f32 0.0, %v3260
  %v3262 = vpop.f32.mrb[0].mxu0
  %3263 = vmatprep.mubr.f32.mxu0 0.0
  %3264 = vmatmul.mubr.f32.gmra.mrb[0].mxu0 %v3085
  %v3265 = vpop.f32.mrb[0].mxu0
  %v3266 = vadd.f32 0.0, %v3265
  %v3267 = vpop.f32.mrb[0].mxu0
  %3268 = vmatprep.mubr.f32.mxu0 0.0
  %3269 = vmatmul.mubr.f32.gmra.mrb[0].mxu0 %v3088
  %v3270 = vpop.f32.mrb[0].mxu0
  %v3271 = vadd.f32 0.0, %v3270
  %v3272 = vpop.f32.mrb[0].mxu0
  %3273 = vmatprep.mubr.f32.mxu0 0.0
  %3274 = vmatmul.mubr.f32.gmra.mrb[0].mxu0 %v3091
  %v3275 = vpop.f32.mrb[0].mxu0
  %v3276 = vadd.f32 0.0, %v3275
  %v3277 = vpop.f32.mrb[0].mxu0
  %3278 = vmatprep.mubr.f32.mxu0 0.0
  %3279 = vmatmul.mubr.f32.gmra.mrb[0].mxu0 %v3094
  %v3280 = vpop.f32.mrb[0].mxu0
  %v3281 = vadd.f32 0.0, %v3280
  %v3282 = vpop.f32.mrb[0].mxu0
  %3283 = vmatprep.mubr.f32.mxu0 0.0
  %3284 = vmatmul.mubr.f32.gmra.mrb[0].mxu0 %v3097
  %v3285 = vpop.f32.mrb[0].mxu0
  %v3286 = vadd.f32 0.0, %v3285
  %v3287 = vpop.f32.mrb[0].mxu0
  %3288 = vdwg.mxu0
  %v3289 = vadd.f32 %v2937, %v3166
  %v3290 = vadd.f32 %v2938, %v3171
  %v3291 = vadd.f32 %v2939, %v3176
  %v3292 = vadd.f32 %v2940, %v3181
  %v3293 = vadd.f32 %v2941, %v3186
  %v3294 = vadd.f32 %v2942, %v3191
  %v3295 = vadd.f32 %v2943, %v3196
  %v3296 = vadd.f32 %v2944, %v3201
  %v3297 = vadd.f32 %v2945, %v3206
  %v3298 = vadd.f32 %v2946, %v3211
  %v3299 = vadd.f32 %v2947, %v3216
  %v3300 = vadd.f32 %v2948, %v3221
  %v3301 = vadd.f32 %v2949, %v3226
  %v3302 = vadd.f32 %v2950, %v3231
  %v3303 = vadd.f32 %v2951, %v3236
  %v3304 = vadd.f32 %v2952, %v3241
  %v3305 = vadd.f32 %v2953, %v3246
  %v3306 = vadd.f32 %v2954, %v3251
  %v3307 = vadd.f32 %v2955, %v3256
  %v3308 = vadd.f32 %v2956, %v3261
  %v3309 = vadd.f32 %v2957, %v3266
  %v3310 = vadd.f32 %v2958, %v3271
  %v3311 = vadd.f32 %v2959, %v3276
  %v3312 = vadd.f32 %v2960, %v3281
  %v3313 = vadd.f32 %v2961, %v3286
  %v3314 = vld [vmem:[%s10] sm:$0xff]
  %v3315 = vld [vmem:[%s10 + $0x8] sm:$0xff]
  %v3316 = vld [vmem:[%s10 + $0x10] sm:$0xff]
  %v3317 = vld [vmem:[%s10 + $0x18] sm:$0xff]
  %v3318 = vld [vmem:[%s10 + $0x20] sm:$0xff]
  %v3319 = vld [vmem:[%s10 + $0x28] sm:$0xff]
  %v3320 = vld [vmem:[%s10 + $0x30] sm:$0xff]
  %v3321 = vld [vmem:[%s10 + $0x38] sm:$0xff]
  %v3322 = vld [vmem:[%s10 + $0x40] sm:$0xff]
  %v3323 = vld [vmem:[%s10 + $0x48] sm:$0xff]
  %v3324 = vld [vmem:[%s10 + $0x50] sm:$0xff]
  %v3325 = vld [vmem:[%s10 + $0x58] sm:$0xff]
  %v3326 = vld [vmem:[%s10 + $0x60] sm:$0xff]
  %v3327 = vld [vmem:[%s10 + $0x68] sm:$0xff]
  %v3328 = vld [vmem:[%s10 + $0x70] sm:$0xff]
  %v3329 = vld [vmem:[%s10 + $0x78] sm:$0xff]
  %v3330 = vld [vmem:[%s10 + $0x80] sm:$0xff]
  %v3331 = vld [vmem:[%s10 + $0x88] sm:$0xff]
  %v3332 = vld [vmem:[%s10 + $0x90] sm:$0xff]
  %v3333 = vld [vmem:[%s10 + $0x98] sm:$0xff]
  %v3334 = vld [vmem:[%s10 + $0xa0] sm:$0xff]
  %v3335 = vld [vmem:[%s10 + $0xa8] sm:$0xff]
  %v3336 = vld [vmem:[%s10 + $0xb0] sm:$0xff]
  %v3337 = vld [vmem:[%s10 + $0xb8] sm:$0xff]
  %v3338 = vld [vmem:[%s10 + $0xc0] sm:$0xff]
  %3340 = vset.pattern.permute.xlu0 0
  %3341 = vperm.xlu0 %3340, %v3314
  %v3342 = vpop.permute.xlu0 %3341
  %3345 = vset.pattern.permute.xlu0 0
  %3346 = vperm.xlu0 %3345, %v3315
  %v3347 = vpop.permute.xlu0 %3346
  %3350 = vset.pattern.permute.xlu0 0
  %3351 = vperm.xlu0 %3350, %v3316
  %v3352 = vpop.permute.xlu0 %3351
  %3355 = vset.pattern.permute.xlu0 0
  %3356 = vperm.xlu0 %3355, %v3317
  %v3357 = vpop.permute.xlu0 %3356
  %3360 = vset.pattern.permute.xlu0 0
  %3361 = vperm.xlu0 %3360, %v3318
  %v3362 = vpop.permute.xlu0 %3361
  %3365 = vset.pattern.permute.xlu0 0
  %3366 = vperm.xlu0 %3365, %v3319
  %v3367 = vpop.permute.xlu0 %3366
  %3370 = vset.pattern.permute.xlu0 0
  %3371 = vperm.xlu0 %3370, %v3320
  %v3372 = vpop.permute.xlu0 %3371
  %3375 = vset.pattern.permute.xlu0 0
  %3376 = vperm.xlu0 %3375, %v3321
  %v3377 = vpop.permute.xlu0 %3376
  %3380 = vset.pattern.permute.xlu0 0
  %3381 = vperm.xlu0 %3380, %v3322
  %v3382 = vpop.permute.xlu0 %3381
  %3385 = vset.pattern.permute.xlu0 0
  %3386 = vperm.xlu0 %3385, %v3323
  %v3387 = vpop.permute.xlu0 %3386
  %3390 = vset.pattern.permute.xlu0 0
  %3391 = vperm.xlu0 %3390, %v3324
  %v3392 = vpop.permute.xlu0 %3391
  %3395 = vset.pattern.permute.xlu0 0
  %3396 = vperm.xlu0 %3395, %v3325
  %v3397 = vpop.permute.xlu0 %3396
  %3400 = vset.pattern.permute.xlu0 0
  %3401 = vperm.xlu0 %3400, %v3326
  %v3402 = vpop.permute.xlu0 %3401
  %3405 = vset.pattern.permute.xlu0 0
  %3406 = vperm.xlu0 %3405, %v3327
  %v3407 = vpop.permute.xlu0 %3406
  %3410 = vset.pattern.permute.xlu0 0
  %3411 = vperm.xlu0 %3410, %v3328
  %v3412 = vpop.permute.xlu0 %3411
  %3415 = vset.pattern.permute.xlu0 0
  %3416 = vperm.xlu0 %3415, %v3329
  %v3417 = vpop.permute.xlu0 %3416
  %3420 = vset.pattern.permute.xlu0 0
  %3421 = vperm.xlu0 %3420, %v3330
  %v3422 = vpop.permute.xlu0 %3421
  %3425 = vset.pattern.permute.xlu0 0
  %3426 = vperm.xlu0 %3425, %v3331
  %v3427 = vpop.permute.xlu0 %3426
  %3430 = vset.pattern.permute.xlu0 0
  %3431 = vperm.xlu0 %3430, %v3332
  %v3432 = vpop.permute.xlu0 %3431
  %3435 = vset.pattern.permute.xlu0 0
  %3436 = vperm.xlu0 %3435, %v3333
  %v3437 = vpop.permute.xlu0 %3436
  %3440 = vset.pattern.permute.xlu0 0
  %3441 = vperm.xlu0 %3440, %v3334
  %v3442 = vpop.permute.xlu0 %3441
  %3445 = vset.pattern.permute.xlu0 0
  %3446 = vperm.xlu0 %3445, %v3335
  %v3447 = vpop.permute.xlu0 %3446
  %3450 = vset.pattern.permute.xlu0 0
  %3451 = vperm.xlu0 %3450, %v3336
  %v3452 = vpop.permute.xlu0 %3451
  %3455 = vset.pattern.permute.xlu0 0
  %3456 = vperm.xlu0 %3455, %v3337
  %v3457 = vpop.permute.xlu0 %3456
  %3460 = vset.pattern.permute.xlu0 0
  %3461 = vperm.xlu0 %3460, %v3338
  %v3462 = vpop.permute.xlu0 %3461
  %v3464 = vadd.f32 %v3289, %v3342
  %v3465 = vadd.f32 %v3290, %v3347
  %v3466 = vadd.f32 %v3291, %v3352
  %v3467 = vadd.f32 %v3292, %v3357
  %v3468 = vadd.f32 %v3293, %v3362
  %v3469 = vadd.f32 %v3294, %v3367
  %v3470 = vadd.f32 %v3295, %v3372
  %v3471 = vadd.f32 %v3296, %v3377
  %v3472 = vadd.f32 %v3297, %v3382
  %v3473 = vadd.f32 %v3298, %v3387
  %v3474 = vadd.f32 %v3299, %v3392
  %v3475 = vadd.f32 %v3300, %v3397
  %v3476 = vadd.f32 %v3301, %v3402
  %v3477 = vadd.f32 %v3302, %v3407
  %v3478 = vadd.f32 %v3303, %v3412
  %v3479 = vadd.f32 %v3304, %v3417
  %v3480 = vadd.f32 %v3305, %v3422
  %v3481 = vadd.f32 %v3306, %v3427
  %v3482 = vadd.f32 %v3307, %v3432
  %v3483 = vadd.f32 %v3308, %v3437
  %v3484 = vadd.f32 %v3309, %v3442
  %v3485 = vadd.f32 %v3310, %v3447
  %v3486 = vadd.f32 %v3311, %v3452
  %v3487 = vadd.f32 %v3312, %v3457
  %v3488 = vadd.f32 %v3313, %v3462
  %v3489 = vmax.f32 %v3464, 0.0
  %v3490 = vmax.f32 %v3465, 0.0
  %v3491 = vmax.f32 %v3466, 0.0
  %v3492 = vmax.f32 %v3467, 0.0
  %v3493 = vmax.f32 %v3468, 0.0
  %v3494 = vmax.f32 %v3469, 0.0
  %v3495 = vmax.f32 %v3470, 0.0
  %v3496 = vmax.f32 %v3471, 0.0
  %v3497 = vmax.f32 %v3472, 0.0
  %v3498 = vmax.f32 %v3473, 0.0
  %v3499 = vmax.f32 %v3474, 0.0
  %v3500 = vmax.f32 %v3475, 0.0
  %v3501 = vmax.f32 %v3476, 0.0
  %v3502 = vmax.f32 %v3477, 0.0
  %v3503 = vmax.f32 %v3478, 0.0
  %v3504 = vmax.f32 %v3479, 0.0
  %v3505 = vmax.f32 %v3480, 0.0
  %v3506 = vmax.f32 %v3481, 0.0
  %v3507 = vmax.f32 %v3482, 0.0
  %v3508 = vmax.f32 %v3483, 0.0
  %v3509 = vmax.f32 %v3484, 0.0
  %v3510 = vmax.f32 %v3485, 0.0
  %v3511 = vmax.f32 %v3486, 0.0
  %v3512 = vmax.f32 %v3487, 0.0
  %v3513 = vmax.f32 %v3488, 0.0
  %v3514 = vld [vmem:[%s11] sm:$0xff]
  %v3515 = vld [vmem:[%s11 + $0x8] sm:$0xff]
  %v3516 = vld [vmem:[%s11 + $0x10] sm:$0xff]
  %v3517 = vld [vmem:[%s11 + $0x18] sm:$0xff]
  %v3518 = vld [vmem:[%s11 + $0x20] sm:$0xff]
  %v3519 = vld [vmem:[%s11 + $0x28] sm:$0xff]
  %v3520 = vld [vmem:[%s11 + $0x30] sm:$0x3]
  %vm3521 = vcmask 408576
  %v3523 = vsel %vm3521, %v3489, 0
  %v3526 = vsel %vm3521, %v3490, 0
  %v3529 = vsel %vm3521, %v3491, 0
  %v3532 = vsel %vm3521, %v3492, 0
  %v3535 = vsel %vm3521, %v3493, 0
  %v3538 = vsel %vm3521, %v3494, 0
  %v3541 = vsel %vm3521, %v3495, 0
  %v3544 = vsel %vm3521, %v3496, 0
  %v3547 = vsel %vm3521, %v3497, 0
  %v3550 = vsel %vm3521, %v3498, 0
  %v3553 = vsel %vm3521, %v3499, 0
  %v3556 = vsel %vm3521, %v3500, 0
  %v3559 = vsel %vm3521, %v3501, 0
  %v3562 = vsel %vm3521, %v3502, 0
  %v3565 = vsel %vm3521, %v3503, 0
  %v3568 = vsel %vm3521, %v3504, 0
  %v3571 = vsel %vm3521, %v3505, 0
  %v3574 = vsel %vm3521, %v3506, 0
  %v3577 = vsel %vm3521, %v3507, 0
  %v3580 = vsel %vm3521, %v3508, 0
  %v3583 = vsel %vm3521, %v3509, 0
  %v3586 = vsel %vm3521, %v3510, 0
  %v3589 = vsel %vm3521, %v3511, 0
  %v3592 = vsel %vm3521, %v3512, 0
  %v3595 = vsel %vm3521, %v3513, 0
  %v3598 = vsel %vm197, %v3520, 0
  %3600 = vmatprep.subr.mxu0 0.0
  %3601 = vmatpush1.msra.mxu0 %v3514
  %3602 = vmatprep.subr.mxu0 0.0
  %3603 = vmatpush1.msra.mxu0 %v3515
  %3604 = vmatprep.subr.mxu0 0.0
  %3605 = vmatpush1.msra.mxu0 %v3516
  %3606 = vmatprep.subr.mxu0 0.0
  %3607 = vmatpush1.msra.mxu0 %v3517
  %3608 = vmatprep.subr.mxu0 0.0
  %3609 = vmatpush1.msra.mxu0 %v3518
  %3610 = vmatprep.subr.mxu0 0.0
  %3611 = vmatpush1.msra.mxu0 %v3519
  %3612 = vmatprep.subr.mxu0 0.0
  %3613 = vmatpush1.msra.mxu0 %v3598
  %3614 = vmatprep.subr.mxu0 0.0
  %3615 = vmatpush1.msra.mxu0 0.0
  %3616 = vmatprep.subr.mxu0 0.0
  %3617 = vmatpush1.msra.mxu0 0.0
  %3618 = vmatprep.subr.mxu0 0.0
  %3619 = vmatpush1.msra.mxu0 0.0
  %3620 = vmatprep.subr.mxu0 0.0
  %3621 = vmatpush1.msra.mxu0 0.0
  %3622 = vmatprep.subr.mxu0 0.0
  %3623 = vmatpush1.msra.mxu0 0.0
  %3624 = vmatprep.subr.mxu0 0.0
  %3625 = vmatpush1.msra.mxu0 0.0
  %3626 = vmatprep.subr.mxu0 0.0
  %3627 = vmatpush1.msra.mxu0 0.0
  %3628 = vmatprep.subr.mxu0 0.0
  %3629 = vmatpush1.msra.mxu0 0.0
  %3630 = vmatprep.subr.mxu0 0.0
  %3631 = vmatpush1.msra.mxu0 0.0
  %3632 = vmatprep.subr.mxu0 0.0
  %3633 = vmatpush1.msra.mxu0 0.0
  %3634 = vmatprep.subr.mxu0 0.0
  %3635 = vmatpush1.msra.mxu0 0.0
  %3636 = vmatprep.subr.mxu0 0.0
  %3637 = vmatpush1.msra.mxu0 0.0
  %3638 = vmatprep.subr.mxu0 0.0
  %3639 = vmatpush1.msra.mxu0 0.0
  %3640 = vmatprep.subr.mxu0 0.0
  %3641 = vmatpush1.msra.mxu0 0.0
  %3642 = vmatprep.subr.mxu0 0.0
  %3643 = vmatpush1.msra.mxu0 0.0
  %3644 = vmatprep.subr.mxu0 0.0
  %3645 = vmatpush1.msra.mxu0 0.0
  %3646 = vmatprep.subr.mxu0 0.0
  %3647 = vmatpush1.msra.mxu0 0.0
  %3648 = vmatprep.subr.mxu0 0.0
  %3649 = vmatpush1.msra.mxu0 0.0
  %3650 = vmatprep.subr.mxu0 0.0
  %3651 = vmatpush1.msra.mxu0 0.0
  %3652 = vmatprep.subr.mxu0 0.0
  %3653 = vmatpush1.msra.mxu0 0.0
  %3654 = vmatprep.subr.mxu0 0.0
  %3655 = vmatpush1.msra.mxu0 0.0
  %3656 = vmatprep.subr.mxu0 0.0
  %3657 = vmatpush1.msra.mxu0 0.0
  %3658 = vmatprep.subr.mxu0 0.0
  %3659 = vmatpush1.msra.mxu0 0.0
  %3660 = vmatprep.subr.mxu0 0.0
  %3661 = vmatpush1.msra.mxu0 0.0
  %3662 = vmatprep.subr.mxu0 0.0
  %3663 = vmatpush1.msra.mxu0 0.0
  %3664 = vmatprep.mubr.f32.mxu0 0.0
  %3665 = vmatmul.mubr.f32.gmra.mrb[0].mxu0 %v3523
  %v3666 = vpop.f32.mrb[0].mxu0
  %v3667 = vadd.f32 0.0, %v3666
  %v3668 = vpop.f32.mrb[0].mxu0
  %3669 = vmatprep.mubr.f32.mxu0 0.0
  %3670 = vmatmul.mubr.f32.gmra.mrb[0].mxu0 %v3526
  %v3671 = vpop.f32.mrb[0].mxu0
  %v3672 = vadd.f32 0.0, %v3671
  %v3673 = vpop.f32.mrb[0].mxu0
  %3674 = vmatprep.mubr.f32.mxu0 0.0
  %3675 = vmatmul.mubr.f32.gmra.mrb[0].mxu0 %v3529
  %v3676 = vpop.f32.mrb[0].mxu0
  %v3677 = vadd.f32 0.0, %v3676
  %v3678 = vpop.f32.mrb[0].mxu0
  %3679 = vmatprep.mubr.f32.mxu0 0.0
  %3680 = vmatmul.mubr.f32.gmra.mrb[0].mxu0 %v3532
  %v3681 = vpop.f32.mrb[0].mxu0
  %v3682 = vadd.f32 0.0, %v3681
  %v3683 = vpop.f32.mrb[0].mxu0
  %3684 = vmatprep.mubr.f32.mxu0 0.0
  %3685 = vmatmul.mubr.f32.gmra.mrb[0].mxu0 %v3535
  %v3686 = vpop.f32.mrb[0].mxu0
  %v3687 = vadd.f32 0.0, %v3686
  %v3688 = vpop.f32.mrb[0].mxu0
  %3689 = vmatprep.mubr.f32.mxu0 0.0
  %3690 = vmatmul.mubr.f32.gmra.mrb[0].mxu0 %v3538
  %v3691 = vpop.f32.mrb[0].mxu0
  %v3692 = vadd.f32 0.0, %v3691
  %v3693 = vpop.f32.mrb[0].mxu0
  %3694 = vmatprep.mubr.f32.mxu0 0.0
  %3695 = vmatmul.mubr.f32.gmra.mrb[0].mxu0 %v3541
  %v3696 = vpop.f32.mrb[0].mxu0
  %v3697 = vadd.f32 0.0, %v3696
  %v3698 = vpop.f32.mrb[0].mxu0
  %3699 = vmatprep.mubr.f32.mxu0 0.0
  %3700 = vmatmul.mubr.f32.gmra.mrb[0].mxu0 %v3544
  %v3701 = vpop.f32.mrb[0].mxu0
  %v3702 = vadd.f32 0.0, %v3701
  %v3703 = vpop.f32.mrb[0].mxu0
  %3704 = vmatprep.mubr.f32.mxu0 0.0
  %3705 = vmatmul.mubr.f32.gmra.mrb[0].mxu0 %v3547
  %v3706 = vpop.f32.mrb[0].mxu0
  %v3707 = vadd.f32 0.0, %v3706
  %v3708 = vpop.f32.mrb[0].mxu0
  %3709 = vmatprep.mubr.f32.mxu0 0.0
  %3710 = vmatmul.mubr.f32.gmra.mrb[0].mxu0 %v3550
  %v3711 = vpop.f32.mrb[0].mxu0
  %v3712 = vadd.f32 0.0, %v3711
  %v3713 = vpop.f32.mrb[0].mxu0
  %3714 = vmatprep.mubr.f32.mxu0 0.0
  %3715 = vmatmul.mubr.f32.gmra.mrb[0].mxu0 %v3553
  %v3716 = vpop.f32.mrb[0].mxu0
  %v3717 = vadd.f32 0.0, %v3716
  %v3718 = vpop.f32.mrb[0].mxu0
  %3719 = vmatprep.mubr.f32.mxu0 0.0
  %3720 = vmatmul.mubr.f32.gmra.mrb[0].mxu0 %v3556
  %v3721 = vpop.f32.mrb[0].mxu0
  %v3722 = vadd.f32 0.0, %v3721
  %v3723 = vpop.f32.mrb[0].mxu0
  %3724 = vmatprep.mubr.f32.mxu0 0.0
  %3725 = vmatmul.mubr.f32.gmra.mrb[0].mxu0 %v3559
  %v3726 = vpop.f32.mrb[0].mxu0
  %v3727 = vadd.f32 0.0, %v3726
  %v3728 = vpop.f32.mrb[0].mxu0
  %3729 = vmatprep.mubr.f32.mxu0 0.0
  %3730 = vmatmul.mubr.f32.gmra.mrb[0].mxu0 %v3562
  %v3731 = vpop.f32.mrb[0].mxu0
  %v3732 = vadd.f32 0.0, %v3731
  %v3733 = vpop.f32.mrb[0].mxu0
  %3734 = vmatprep.mubr.f32.mxu0 0.0
  %3735 = vmatmul.mubr.f32.gmra.mrb[0].mxu0 %v3565
  %v3736 = vpop.f32.mrb[0].mxu0
  %v3737 = vadd.f32 0.0, %v3736
  %v3738 = vpop.f32.mrb[0].mxu0
  %3739 = vmatprep.mubr.f32.mxu0 0.0
  %3740 = vmatmul.mubr.f32.gmra.mrb[0].mxu0 %v3568
  %v3741 = vpop.f32.mrb[0].mxu0
  %v3742 = vadd.f32 0.0, %v3741
  %v3743 = vpop.f32.mrb[0].mxu0
  %3744 = vmatprep.mubr.f32.mxu0 0.0
  %3745 = vmatmul.mubr.f32.gmra.mrb[0].mxu0 %v3571
  %v3746 = vpop.f32.mrb[0].mxu0
  %v3747 = vadd.f32 0.0, %v3746
  %v3748 = vpop.f32.mrb[0].mxu0
  %3749 = vmatprep.mubr.f32.mxu0 0.0
  %3750 = vmatmul.mubr.f32.gmra.mrb[0].mxu0 %v3574
  %v3751 = vpop.f32.mrb[0].mxu0
  %v3752 = vadd.f32 0.0, %v3751
  %v3753 = vpop.f32.mrb[0].mxu0
  %3754 = vmatprep.mubr.f32.mxu0 0.0
  %3755 = vmatmul.mubr.f32.gmra.mrb[0].mxu0 %v3577
  %v3756 = vpop.f32.mrb[0].mxu0
  %v3757 = vadd.f32 0.0, %v3756
  %v3758 = vpop.f32.mrb[0].mxu0
  %3759 = vmatprep.mubr.f32.mxu0 0.0
  %3760 = vmatmul.mubr.f32.gmra.mrb[0].mxu0 %v3580
  %v3761 = vpop.f32.mrb[0].mxu0
  %v3762 = vadd.f32 0.0, %v3761
  %v3763 = vpop.f32.mrb[0].mxu0
  %3764 = vmatprep.mubr.f32.mxu0 0.0
  %3765 = vmatmul.mubr.f32.gmra.mrb[0].mxu0 %v3583
  %v3766 = vpop.f32.mrb[0].mxu0
  %v3767 = vadd.f32 0.0, %v3766
  %v3768 = vpop.f32.mrb[0].mxu0
  %3769 = vmatprep.mubr.f32.mxu0 0.0
  %3770 = vmatmul.mubr.f32.gmra.mrb[0].mxu0 %v3586
  %v3771 = vpop.f32.mrb[0].mxu0
  %v3772 = vadd.f32 0.0, %v3771
  %v3773 = vpop.f32.mrb[0].mxu0
  %3774 = vmatprep.mubr.f32.mxu0 0.0
  %3775 = vmatmul.mubr.f32.gmra.mrb[0].mxu0 %v3589
  %v3776 = vpop.f32.mrb[0].mxu0
  %v3777 = vadd.f32 0.0, %v3776
  %v3778 = vpop.f32.mrb[0].mxu0
  %3779 = vmatprep.mubr.f32.mxu0 0.0
  %3780 = vmatmul.mubr.f32.gmra.mrb[0].mxu0 %v3592
  %v3781 = vpop.f32.mrb[0].mxu0
  %v3782 = vadd.f32 0.0, %v3781
  %v3783 = vpop.f32.mrb[0].mxu0
  %3784 = vmatprep.mubr.f32.mxu0 0.0
  %3785 = vmatmul.mubr.f32.gmra.mrb[0].mxu0 %v3595
  %v3786 = vpop.f32.mrb[0].mxu0
  %v3787 = vadd.f32 0.0, %v3786
  %v3788 = vpop.f32.mrb[0].mxu0
  %3789 = vdwg.mxu0
  %v3790 = vld [vmem:[%s12] sm:$0xff]
  %v3791 = vld [vmem:[%s12 + $0x8] sm:$0xff]
  %v3792 = vld [vmem:[%s12 + $0x10] sm:$0xff]
  %v3793 = vld [vmem:[%s12 + $0x18] sm:$0xff]
  %v3794 = vld [vmem:[%s12 + $0x20] sm:$0xff]
  %v3795 = vld [vmem:[%s12 + $0x28] sm:$0xff]
  %v3796 = vld [vmem:[%s12 + $0x30] sm:$0xff]
  %v3797 = vld [vmem:[%s12 + $0x38] sm:$0xff]
  %v3798 = vld [vmem:[%s12 + $0x40] sm:$0xff]
  %v3799 = vld [vmem:[%s12 + $0x48] sm:$0xff]
  %v3800 = vld [vmem:[%s12 + $0x50] sm:$0xff]
  %v3801 = vld [vmem:[%s12 + $0x58] sm:$0xff]
  %v3802 = vld [vmem:[%s12 + $0x60] sm:$0xff]
  %v3803 = vld [vmem:[%s12 + $0x68] sm:$0xff]
  %v3804 = vld [vmem:[%s12 + $0x70] sm:$0xff]
  %v3805 = vld [vmem:[%s12 + $0x78] sm:$0xff]
  %v3806 = vld [vmem:[%s12 + $0x80] sm:$0xff]
  %v3807 = vld [vmem:[%s12 + $0x88] sm:$0xff]
  %v3808 = vld [vmem:[%s12 + $0x90] sm:$0xff]
  %v3809 = vld [vmem:[%s12 + $0x98] sm:$0xff]
  %v3810 = vld [vmem:[%s12 + $0xa0] sm:$0xff]
  %v3811 = vld [vmem:[%s12 + $0xa8] sm:$0xff]
  %v3812 = vld [vmem:[%s12 + $0xb0] sm:$0xff]
  %v3813 = vld [vmem:[%s12 + $0xb8] sm:$0xff]
  %v3814 = vld [vmem:[%s12 + $0xc0] sm:$0xff]
  %v3815 = vld [vmem:[%s12 + $0xc8] sm:$0xff]
  %v3816 = vld [vmem:[%s12 + $0xd0] sm:$0xff]
  %v3817 = vld [vmem:[%s12 + $0xd8] sm:$0xff]
  %v3818 = vld [vmem:[%s12 + $0xe0] sm:$0xff]
  %v3819 = vld [vmem:[%s12 + $0xe8] sm:$0xff]
  %v3820 = vld [vmem:[%s12 + $0xf0] sm:$0xff]
  %v3821 = vld [vmem:[%s12 + $0xf8] sm:$0xff]
  %v3822 = vld [vmem:[%s12 + $0x100] sm:$0xff]
  %v3823 = vld [vmem:[%s12 + $0x108] sm:$0xff]
  %v3824 = vld [vmem:[%s12 + $0x110] sm:$0xff]
  %v3825 = vld [vmem:[%s12 + $0x118] sm:$0xff]
  %v3826 = vld [vmem:[%s12 + $0x120] sm:$0xff]
  %v3827 = vld [vmem:[%s12 + $0x128] sm:$0xff]
  %v3828 = vld [vmem:[%s12 + $0x130] sm:$0xff]
  %v3829 = vld [vmem:[%s12 + $0x138] sm:$0xff]
  %v3830 = vld [vmem:[%s12 + $0x140] sm:$0xff]
  %v3831 = vld [vmem:[%s12 + $0x148] sm:$0xff]
  %v3832 = vld [vmem:[%s12 + $0x150] sm:$0xff]
  %v3833 = vld [vmem:[%s12 + $0x158] sm:$0xff]
  %v3834 = vld [vmem:[%s12 + $0x160] sm:$0xff]
  %v3835 = vld [vmem:[%s12 + $0x168] sm:$0xff]
  %v3836 = vld [vmem:[%s12 + $0x170] sm:$0xff]
  %v3837 = vld [vmem:[%s12 + $0x178] sm:$0xff]
  %v3838 = vld [vmem:[%s12 + $0x180] sm:$0xff]
  %v3839 = vld [vmem:[%s12 + $0x188] sm:$0xff]
  %v3840 = vld [vmem:[%s12 + $0x190] sm:$0xff]
  %v3841 = vld [vmem:[%s12 + $0x198] sm:$0xff]
  %v3842 = vld [vmem:[%s12 + $0x1a0] sm:$0xff]
  %v3843 = vld [vmem:[%s12 + $0x1a8] sm:$0xff]
  %s3844 = scalar_lea.vmem %s12, 432
  %v3845 = vld [vmem:[%s3844] sm:$0xff]
  %v3846 = vld [vmem:[%s3844 + $0x8] sm:$0xff]
  %v3847 = vld [vmem:[%s3844 + $0x10] sm:$0xff]
  %v3848 = vld [vmem:[%s3844 + $0x18] sm:$0xff]
  %v3849 = vld [vmem:[%s3844 + $0x20] sm:$0xff]
  %v3850 = vld [vmem:[%s3844 + $0x28] sm:$0xff]
  %v3851 = vld [vmem:[%s3844 + $0x30] sm:$0xff]
  %v3852 = vld [vmem:[%s3844 + $0x38] sm:$0xff]
  %v3853 = vld [vmem:[%s3844 + $0x40] sm:$0xff]
  %v3854 = vld [vmem:[%s3844 + $0x48] sm:$0xff]
  %v3855 = vld [vmem:[%s3844 + $0x50] sm:$0xff]
  %v3856 = vld [vmem:[%s3844 + $0x58] sm:$0xff]
  %v3857 = vld [vmem:[%s3844 + $0x60] sm:$0xff]
  %v3858 = vld [vmem:[%s3844 + $0x68] sm:$0xff]
  %v3859 = vld [vmem:[%s3844 + $0x70] sm:$0xff]
  %v3860 = vld [vmem:[%s3844 + $0x78] sm:$0xff]
  %v3861 = vld [vmem:[%s3844 + $0x80] sm:$0xff]
  %v3862 = vld [vmem:[%s3844 + $0x88] sm:$0xff]
  %v3863 = vld [vmem:[%s3844 + $0x90] sm:$0xff]
  %v3864 = vld [vmem:[%s3844 + $0x98] sm:$0xff]
  %v3865 = vld [vmem:[%s3844 + $0xa0] sm:$0xff]
  %v3866 = vld [vmem:[%s3844 + $0xa8] sm:$0xff]
  %v3867 = vld [vmem:[%s3844 + $0xb0] sm:$0xff]
  %v3868 = vld [vmem:[%s3844 + $0xb8] sm:$0xff]
  %v3869 = vld [vmem:[%s3844 + $0xc0] sm:$0xff]
  %v3870 = vld [vmem:[%s3844 + $0xc8] sm:$0xff]
  %v3871 = vld [vmem:[%s3844 + $0xd0] sm:$0xff]
  %v3872 = vld [vmem:[%s3844 + $0xd8] sm:$0xff]
  %v3873 = vld [vmem:[%s3844 + $0xe0] sm:$0xff]
  %v3874 = vld [vmem:[%s3844 + $0xe8] sm:$0xff]
  %v3875 = vld [vmem:[%s3844 + $0xf0] sm:$0xff]
  %v3876 = vld [vmem:[%s3844 + $0xf8] sm:$0xff]
  %v3877 = vld [vmem:[%s3844 + $0x100] sm:$0xff]
  %v3878 = vld [vmem:[%s3844 + $0x108] sm:$0xff]
  %v3879 = vld [vmem:[%s3844 + $0x110] sm:$0xff]
  %v3880 = vld [vmem:[%s3844 + $0x118] sm:$0xff]
  %v3881 = vld [vmem:[%s3844 + $0x120] sm:$0xff]
  %v3882 = vld [vmem:[%s3844 + $0x128] sm:$0xff]
  %v3883 = vld [vmem:[%s3844 + $0x130] sm:$0xff]
  %v3884 = vld [vmem:[%s3844 + $0x138] sm:$0xff]
  %v3885 = vld [vmem:[%s3844 + $0x140] sm:$0xff]
  %v3886 = vld [vmem:[%s3844 + $0x148] sm:$0xff]
  %v3887 = vld [vmem:[%s3844 + $0x150] sm:$0xff]
  %v3888 = vld [vmem:[%s3844 + $0x158] sm:$0xff]
  %v3889 = vld [vmem:[%s3844 + $0x160] sm:$0xff]
  %v3890 = vld [vmem:[%s3844 + $0x168] sm:$0xff]
  %v3891 = vld [vmem:[%s3844 + $0x170] sm:$0xff]
  %v3892 = vld [vmem:[%s3844 + $0x178] sm:$0xff]
  %v3893 = vld [vmem:[%s3844 + $0x180] sm:$0xff]
  %v3894 = vld [vmem:[%s3844 + $0x188] sm:$0xff]
  %v3895 = vld [vmem:[%s3844 + $0x190] sm:$0xff]
  %v3896 = vld [vmem:[%s3844 + $0x198] sm:$0xff]
  %v3897 = vld [vmem:[%s3844 + $0x1a0] sm:$0xff]
  %v3898 = vld [vmem:[%s3844 + $0x1a8] sm:$0xff]
  %3924 = vrot.lane.b32.xlu0 %v3667, 126
  %v3925 = vpop.permute.xlu0 %3924
  %3926 = vrot.lane.b32.xlu0 %v3672, 126
  %v3927 = vpop.permute.xlu0 %3926
  %3928 = vrot.lane.b32.xlu0 %v3677, 126
  %v3929 = vpop.permute.xlu0 %3928
  %3930 = vrot.lane.b32.xlu0 %v3682, 126
  %v3931 = vpop.permute.xlu0 %3930
  %3932 = vrot.lane.b32.xlu0 %v3687, 126
  %v3933 = vpop.permute.xlu0 %3932
  %3934 = vrot.lane.b32.xlu0 %v3692, 126
  %v3935 = vpop.permute.xlu0 %3934
  %3936 = vrot.lane.b32.xlu0 %v3697, 126
  %v3937 = vpop.permute.xlu0 %3936
  %3938 = vrot.lane.b32.xlu0 %v3702, 126
  %v3939 = vpop.permute.xlu0 %3938
  %3940 = vrot.lane.b32.xlu0 %v3707, 126
  %v3941 = vpop.permute.xlu0 %3940
  %3942 = vrot.lane.b32.xlu0 %v3712, 126
  %v3943 = vpop.permute.xlu0 %3942
  %3944 = vrot.lane.b32.xlu0 %v3717, 126
  %v3945 = vpop.permute.xlu0 %3944
  %3946 = vrot.lane.b32.xlu0 %v3722, 126
  %v3947 = vpop.permute.xlu0 %3946
  %3948 = vrot.lane.b32.xlu0 %v3727, 126
  %v3949 = vpop.permute.xlu0 %3948
  %3950 = vrot.lane.b32.xlu0 %v3732, 126
  %v3951 = vpop.permute.xlu0 %3950
  %3952 = vrot.lane.b32.xlu0 %v3737, 126
  %v3953 = vpop.permute.xlu0 %3952
  %3954 = vrot.lane.b32.xlu0 %v3742, 126
  %v3955 = vpop.permute.xlu0 %3954
  %3956 = vrot.lane.b32.xlu0 %v3747, 126
  %v3957 = vpop.permute.xlu0 %3956
  %3958 = vrot.lane.b32.xlu0 %v3752, 126
  %v3959 = vpop.permute.xlu0 %3958
  %3960 = vrot.lane.b32.xlu0 %v3757, 126
  %v3961 = vpop.permute.xlu0 %3960
  %3962 = vrot.lane.b32.xlu0 %v3762, 126
  %v3963 = vpop.permute.xlu0 %3962
  %3964 = vrot.lane.b32.xlu0 %v3767, 126
  %v3965 = vpop.permute.xlu0 %3964
  %3966 = vrot.lane.b32.xlu0 %v3772, 126
  %v3967 = vpop.permute.xlu0 %3966
  %3968 = vrot.lane.b32.xlu0 %v3777, 126
  %v3969 = vpop.permute.xlu0 %3968
  %3970 = vrot.lane.b32.xlu0 %v3782, 126
  %v3971 = vpop.permute.xlu0 %3970
  %3972 = vrot.lane.b32.xlu0 %v3787, 126
  %v3973 = vpop.permute.xlu0 %3972
  %vm3999 = vcmask 588800
  %v4001 = vsel %vm3999, %v3846, 0
  %v4004 = vsel %vm3999, %v3848, 0
  %v4007 = vsel %vm3999, %v3850, 0
  %v4010 = vsel %vm3999, %v3852, 0
  %v4013 = vsel %vm3999, %v3854, 0
  %v4016 = vsel %vm3999, %v3856, 0
  %v4019 = vsel %vm3999, %v3858, 0
  %v4022 = vsel %vm3999, %v3860, 0
  %v4025 = vsel %vm3999, %v3862, 0
  %v4028 = vsel %vm3999, %v3864, 0
  %v4031 = vsel %vm3999, %v3866, 0
  %v4034 = vsel %vm3999, %v3868, 0
  %v4037 = vsel %vm3999, %v3870, 0
  %v4040 = vsel %vm3999, %v3872, 0
  %v4043 = vsel %vm3999, %v3874, 0
  %v4046 = vsel %vm3999, %v3876, 0
  %v4049 = vsel %vm3999, %v3878, 0
  %v4052 = vsel %vm3999, %v3880, 0
  %v4055 = vsel %vm3999, %v3882, 0
  %v4058 = vsel %vm3999, %v3884, 0
  %v4061 = vsel %vm3999, %v3886, 0
  %v4064 = vsel %vm3999, %v3888, 0
  %v4067 = vsel %vm3999, %v3890, 0
  %v4070 = vsel %vm3999, %v3892, 0
  %v4073 = vsel %vm3999, %v3894, 0
  %v4076 = vsel %vm3999, %v3896, 0
  %v4079 = vsel %vm3999, %v3898, 0
  %4081 = vmatprep.subr.mxu0 0.0
  %4082 = vmatpush1.msra.mxu0 %v3925
  %4083 = vmatprep.subr.mxu0 0.0
  %4084 = vmatpush1.msra.mxu0 %v3927
  %4085 = vmatprep.subr.mxu0 0.0
  %4086 = vmatpush1.msra.mxu0 %v3929
  %4087 = vmatprep.subr.mxu0 0.0
  %4088 = vmatpush1.msra.mxu0 %v3931
  %4089 = vmatprep.subr.mxu0 0.0
  %4090 = vmatpush1.msra.mxu0 %v3933
  %4091 = vmatprep.subr.mxu0 0.0
  %4092 = vmatpush1.msra.mxu0 %v3935
  %4093 = vmatprep.subr.mxu0 0.0
  %4094 = vmatpush1.msra.mxu0 %v3937
  %4095 = vmatprep.subr.mxu0 0.0
  %4096 = vmatpush1.msra.mxu0 %v3939
  %4097 = vmatprep.subr.mxu0 0.0
  %4098 = vmatpush1.msra.mxu0 %v3941
  %4099 = vmatprep.subr.mxu0 0.0
  %4100 = vmatpush1.msra.mxu0 %v3943
  %4101 = vmatprep.subr.mxu0 0.0
  %4102 = vmatpush1.msra.mxu0 %v3945
  %4103 = vmatprep.subr.mxu0 0.0
  %4104 = vmatpush1.msra.mxu0 %v3947
  %4105 = vmatprep.subr.mxu0 0.0
  %4106 = vmatpush1.msra.mxu0 %v3949
  %4107 = vmatprep.subr.mxu0 0.0
  %4108 = vmatpush1.msra.mxu0 %v3951
  %4109 = vmatprep.subr.mxu0 0.0
  %4110 = vmatpush1.msra.mxu0 %v3953
  %4111 = vmatprep.subr.mxu0 0.0
  %4112 = vmatpush1.msra.mxu0 %v3955
  %4113 = vmatprep.subr.mxu0 0.0
  %4114 = vmatpush1.msra.mxu0 %v3957
  %4115 = vmatprep.subr.mxu0 0.0
  %4116 = vmatpush1.msra.mxu0 %v3959
  %4117 = vmatprep.subr.mxu0 0.0
  %4118 = vmatpush1.msra.mxu0 %v3961
  %4119 = vmatprep.subr.mxu0 0.0
  %4120 = vmatpush1.msra.mxu0 %v3963
  %4121 = vmatprep.subr.mxu0 0.0
  %4122 = vmatpush1.msra.mxu0 %v3965
  %4123 = vmatprep.subr.mxu0 0.0
  %4124 = vmatpush1.msra.mxu0 %v3967
  %4125 = vmatprep.subr.mxu0 0.0
  %4126 = vmatpush1.msra.mxu0 %v3969
  %4127 = vmatprep.subr.mxu0 0.0
  %4128 = vmatpush1.msra.mxu0 %v3971
  %4129 = vmatprep.subr.mxu0 0.0
  %4130 = vmatpush1.msra.mxu0 %v3973
  %4131 = vmatprep.subr.mxu0 0.0
  %4132 = vmatpush1.msra.mxu0 0.0
  %4133 = vmatprep.subr.mxu0 0.0
  %4134 = vmatpush1.msra.mxu0 0.0
  %4135 = vmatprep.subr.mxu0 0.0
  %4136 = vmatpush1.msra.mxu0 0.0
  %4137 = vmatprep.subr.mxu0 0.0
  %4138 = vmatpush1.msra.mxu0 0.0
  %4139 = vmatprep.subr.mxu0 0.0
  %4140 = vmatpush1.msra.mxu0 0.0
  %4141 = vmatprep.subr.mxu0 0.0
  %4142 = vmatpush1.msra.mxu0 0.0
  %4143 = vmatprep.subr.mxu0 0.0
  %4144 = vmatpush1.msra.mxu0 0.0
  %4145 = vmatprep.mubr.f32.mxu0 %v4001
  %4146 = vmatmul.mubr.f32.gmra.mrb[0].mxu0 %v3845
  %v4147 = vpop.f32.mrb[0].mxu0
  %v4148 = vadd.f32 0.0, %v4147
  %v4149 = vpop.f32.mrb[0].mxu0
  %4150 = vmatprep.mubr.f32.mxu0 %v4004
  %4151 = vmatmul.mubr.f32.gmra.mrb[0].mxu0 %v3847
  %v4152 = vpop.f32.mrb[0].mxu0
  %v4153 = vadd.f32 0.0, %v4152
  %v4154 = vpop.f32.mrb[0].mxu0
  %4155 = vmatprep.mubr.f32.mxu0 %v4007
  %4156 = vmatmul.mubr.f32.gmra.mrb[0].mxu0 %v3849
  %v4157 = vpop.f32.mrb[0].mxu0
  %v4158 = vadd.f32 0.0, %v4157
  %v4159 = vpop.f32.mrb[0].mxu0
  %4160 = vmatprep.mubr.f32.mxu0 %v4010
  %4161 = vmatmul.mubr.f32.gmra.mrb[0].mxu0 %v3851
  %v4162 = vpop.f32.mrb[0].mxu0
  %v4163 = vadd.f32 0.0, %v4162
  %v4164 = vpop.f32.mrb[0].mxu0
  %4165 = vmatprep.mubr.f32.mxu0 %v4013
  %4166 = vmatmul.mubr.f32.gmra.mrb[0].mxu0 %v3853
  %v4167 = vpop.f32.mrb[0].mxu0
  %v4168 = vadd.f32 0.0, %v4167
  %v4169 = vpop.f32.mrb[0].mxu0
  %4170 = vmatprep.mubr.f32.mxu0 %v4016
  %4171 = vmatmul.mubr.f32.gmra.mrb[0].mxu0 %v3855
  %v4172 = vpop.f32.mrb[0].mxu0
  %v4173 = vadd.f32 0.0, %v4172
  %v4174 = vpop.f32.mrb[0].mxu0
  %4175 = vmatprep.mubr.f32.mxu0 %v4019
  %4176 = vmatmul.mubr.f32.gmra.mrb[0].mxu0 %v3857
  %v4177 = vpop.f32.mrb[0].mxu0
  %v4178 = vadd.f32 0.0, %v4177
  %v4179 = vpop.f32.mrb[0].mxu0
  %4180 = vmatprep.mubr.f32.mxu0 %v4022
  %4181 = vmatmul.mubr.f32.gmra.mrb[0].mxu0 %v3859
  %v4182 = vpop.f32.mrb[0].mxu0
  %v4183 = vadd.f32 0.0, %v4182
  %v4184 = vpop.f32.mrb[0].mxu0
  %4185 = vmatprep.mubr.f32.mxu0 %v4025
  %4186 = vmatmul.mubr.f32.gmra.mrb[0].mxu0 %v3861
  %v4187 = vpop.f32.mrb[0].mxu0
  %v4188 = vadd.f32 0.0, %v4187
  %v4189 = vpop.f32.mrb[0].mxu0
  %4190 = vmatprep.mubr.f32.mxu0 %v4028
  %4191 = vmatmul.mubr.f32.gmra.mrb[0].mxu0 %v3863
  %v4192 = vpop.f32.mrb[0].mxu0
  %v4193 = vadd.f32 0.0, %v4192
  %v4194 = vpop.f32.mrb[0].mxu0
  %4195 = vmatprep.mubr.f32.mxu0 %v4031
  %4196 = vmatmul.mubr.f32.gmra.mrb[0].mxu0 %v3865
  %v4197 = vpop.f32.mrb[0].mxu0
  %v4198 = vadd.f32 0.0, %v4197
  %v4199 = vpop.f32.mrb[0].mxu0
  %4200 = vmatprep.mubr.f32.mxu0 %v4034
  %4201 = vmatmul.mubr.f32.gmra.mrb[0].mxu0 %v3867
  %v4202 = vpop.f32.mrb[0].mxu0
  %v4203 = vadd.f32 0.0, %v4202
  %v4204 = vpop.f32.mrb[0].mxu0
  %4205 = vmatprep.mubr.f32.mxu0 %v4037
  %4206 = vmatmul.mubr.f32.gmra.mrb[0].mxu0 %v3869
  %v4207 = vpop.f32.mrb[0].mxu0
  %v4208 = vadd.f32 0.0, %v4207
  %v4209 = vpop.f32.mrb[0].mxu0
  %4210 = vmatprep.mubr.f32.mxu0 %v4040
  %4211 = vmatmul.mubr.f32.gmra.mrb[0].mxu0 %v3871
  %v4212 = vpop.f32.mrb[0].mxu0
  %v4213 = vadd.f32 0.0, %v4212
  %v4214 = vpop.f32.mrb[0].mxu0
  %4215 = vmatprep.mubr.f32.mxu0 %v4043
  %4216 = vmatmul.mubr.f32.gmra.mrb[0].mxu0 %v3873
  %v4217 = vpop.f32.mrb[0].mxu0
  %v4218 = vadd.f32 0.0, %v4217
  %v4219 = vpop.f32.mrb[0].mxu0
  %4220 = vmatprep.mubr.f32.mxu0 %v4046
  %4221 = vmatmul.mubr.f32.gmra.mrb[0].mxu0 %v3875
  %v4222 = vpop.f32.mrb[0].mxu0
  %v4223 = vadd.f32 0.0, %v4222
  %v4224 = vpop.f32.mrb[0].mxu0
  %4225 = vmatprep.mubr.f32.mxu0 %v4049
  %4226 = vmatmul.mubr.f32.gmra.mrb[0].mxu0 %v3877
  %v4227 = vpop.f32.mrb[0].mxu0
  %v4228 = vadd.f32 0.0, %v4227
  %v4229 = vpop.f32.mrb[0].mxu0
  %4230 = vmatprep.mubr.f32.mxu0 %v4052
  %4231 = vmatmul.mubr.f32.gmra.mrb[0].mxu0 %v3879
  %v4232 = vpop.f32.mrb[0].mxu0
  %v4233 = vadd.f32 0.0, %v4232
  %v4234 = vpop.f32.mrb[0].mxu0
  %4235 = vmatprep.mubr.f32.mxu0 %v4055
  %4236 = vmatmul.mubr.f32.gmra.mrb[0].mxu0 %v3881
  %v4237 = vpop.f32.mrb[0].mxu0
  %v4238 = vadd.f32 0.0, %v4237
  %v4239 = vpop.f32.mrb[0].mxu0
  %4240 = vmatprep.mubr.f32.mxu0 %v4058
  %4241 = vmatmul.mubr.f32.gmra.mrb[0].mxu0 %v3883
  %v4242 = vpop.f32.mrb[0].mxu0
  %v4243 = vadd.f32 0.0, %v4242
  %v4244 = vpop.f32.mrb[0].mxu0
  %4245 = vmatprep.mubr.f32.mxu0 %v4061
  %4246 = vmatmul.mubr.f32.gmra.mrb[0].mxu0 %v3885
  %v4247 = vpop.f32.mrb[0].mxu0
  %v4248 = vadd.f32 0.0, %v4247
  %v4249 = vpop.f32.mrb[0].mxu0
  %4250 = vmatprep.mubr.f32.mxu0 %v4064
  %4251 = vmatmul.mubr.f32.gmra.mrb[0].mxu0 %v3887
  %v4252 = vpop.f32.mrb[0].mxu0
  %v4253 = vadd.f32 0.0, %v4252
  %v4254 = vpop.f32.mrb[0].mxu0
  %4255 = vmatprep.mubr.f32.mxu0 %v4067
  %4256 = vmatmul.mubr.f32.gmra.mrb[0].mxu0 %v3889
  %v4257 = vpop.f32.mrb[0].mxu0
  %v4258 = vadd.f32 0.0, %v4257
  %v4259 = vpop.f32.mrb[0].mxu0
  %4260 = vmatprep.mubr.f32.mxu0 %v4070
  %4261 = vmatmul.mubr.f32.gmra.mrb[0].mxu0 %v3891
  %v4262 = vpop.f32.mrb[0].mxu0
  %v4263 = vadd.f32 0.0, %v4262
  %v4264 = vpop.f32.mrb[0].mxu0
  %4265 = vmatprep.mubr.f32.mxu0 %v4073
  %4266 = vmatmul.mubr.f32.gmra.mrb[0].mxu0 %v3893
  %v4267 = vpop.f32.mrb[0].mxu0
  %v4268 = vadd.f32 0.0, %v4267
  %v4269 = vpop.f32.mrb[0].mxu0
  %4270 = vmatprep.mubr.f32.mxu0 %v4076
  %4271 = vmatmul.mubr.f32.gmra.mrb[0].mxu0 %v3895
  %v4272 = vpop.f32.mrb[0].mxu0
  %v4273 = vadd.f32 0.0, %v4272
  %v4274 = vpop.f32.mrb[0].mxu0
  %4275 = vmatprep.mubr.f32.mxu0 %v4079
  %4276 = vmatmul.mubr.f32.gmra.mrb[0].mxu0 %v3897
  %v4277 = vpop.f32.mrb[0].mxu0
  %v4278 = vadd.f32 0.0, %v4277
  %v4279 = vpop.f32.mrb[0].mxu0
  %4280 = vdwg.mxu0
  %v4282 = vsel %vm3999, %v3791, 0
  %v4285 = vsel %vm3999, %v3793, 0
  %v4288 = vsel %vm3999, %v3795, 0
  %v4291 = vsel %vm3999, %v3797, 0
  %v4294 = vsel %vm3999, %v3799, 0
  %v4297 = vsel %vm3999, %v3801, 0
  %v4300 = vsel %vm3999, %v3803, 0
  %v4303 = vsel %vm3999, %v3805, 0
  %v4306 = vsel %vm3999, %v3807, 0
  %v4309 = vsel %vm3999, %v3809, 0
  %v4312 = vsel %vm3999, %v3811, 0
  %v4315 = vsel %vm3999, %v3813, 0
  %v4318 = vsel %vm3999, %v3815, 0
  %v4321 = vsel %vm3999, %v3817, 0
  %v4324 = vsel %vm3999, %v3819, 0
  %v4327 = vsel %vm3999, %v3821, 0
  %v4330 = vsel %vm3999, %v3823, 0
  %v4333 = vsel %vm3999, %v3825, 0
  %v4336 = vsel %vm3999, %v3827, 0
  %v4339 = vsel %vm3999, %v3829, 0
  %v4342 = vsel %vm3999, %v3831, 0
  %v4345 = vsel %vm3999, %v3833, 0
  %v4348 = vsel %vm3999, %v3835, 0
  %v4351 = vsel %vm3999, %v3837, 0
  %v4354 = vsel %vm3999, %v3839, 0
  %v4357 = vsel %vm3999, %v3841, 0
  %v4360 = vsel %vm3999, %v3843, 0
  %4362 = vmatprep.subr.mxu0 0.0
  %4363 = vmatpush1.msra.mxu0 %v3667
  %4364 = vmatprep.subr.mxu0 0.0
  %4365 = vmatpush1.msra.mxu0 %v3672
  %4366 = vmatprep.subr.mxu0 0.0
  %4367 = vmatpush1.msra.mxu0 %v3677
  %4368 = vmatprep.subr.mxu0 0.0
  %4369 = vmatpush1.msra.mxu0 %v3682
  %4370 = vmatprep.subr.mxu0 0.0
  %4371 = vmatpush1.msra.mxu0 %v3687
  %4372 = vmatprep.subr.mxu0 0.0
  %4373 = vmatpush1.msra.mxu0 %v3692
  %4374 = vmatprep.subr.mxu0 0.0
  %4375 = vmatpush1.msra.mxu0 %v3697
  %4376 = vmatprep.subr.mxu0 0.0
  %4377 = vmatpush1.msra.mxu0 %v3702
  %4378 = vmatprep.subr.mxu0 0.0
  %4379 = vmatpush1.msra.mxu0 %v3707
  %4380 = vmatprep.subr.mxu0 0.0
  %4381 = vmatpush1.msra.mxu0 %v3712
  %4382 = vmatprep.subr.mxu0 0.0
  %4383 = vmatpush1.msra.mxu0 %v3717
  %4384 = vmatprep.subr.mxu0 0.0
  %4385 = vmatpush1.msra.mxu0 %v3722
  %4386 = vmatprep.subr.mxu0 0.0
  %4387 = vmatpush1.msra.mxu0 %v3727
  %4388 = vmatprep.subr.mxu0 0.0
  %4389 = vmatpush1.msra.mxu0 %v3732
  %4390 = vmatprep.subr.mxu0 0.0
  %4391 = vmatpush1.msra.mxu0 %v3737
  %4392 = vmatprep.subr.mxu0 0.0
  %4393 = vmatpush1.msra.mxu0 %v3742
  %4394 = vmatprep.subr.mxu0 0.0
  %4395 = vmatpush1.msra.mxu0 %v3747
  %4396 = vmatprep.subr.mxu0 0.0
  %4397 = vmatpush1.msra.mxu0 %v3752
  %4398 = vmatprep.subr.mxu0 0.0
  %4399 = vmatpush1.msra.mxu0 %v3757
  %4400 = vmatprep.subr.mxu0 0.0
  %4401 = vmatpush1.msra.mxu0 %v3762
  %4402 = vmatprep.subr.mxu0 0.0
  %4403 = vmatpush1.msra.mxu0 %v3767
  %4404 = vmatprep.subr.mxu0 0.0
  %4405 = vmatpush1.msra.mxu0 %v3772
  %4406 = vmatprep.subr.mxu0 0.0
  %4407 = vmatpush1.msra.mxu0 %v3777
  %4408 = vmatprep.subr.mxu0 0.0
  %4409 = vmatpush1.msra.mxu0 %v3782
  %4410 = vmatprep.subr.mxu0 0.0
  %4411 = vmatpush1.msra.mxu0 %v3787
  %4412 = vmatprep.subr.mxu0 0.0
  %4413 = vmatpush1.msra.mxu0 0.0
  %4414 = vmatprep.subr.mxu0 0.0
  %4415 = vmatpush1.msra.mxu0 0.0
  %4416 = vmatprep.subr.mxu0 0.0
  %4417 = vmatpush1.msra.mxu0 0.0
  %4418 = vmatprep.subr.mxu0 0.0
  %4419 = vmatpush1.msra.mxu0 0.0
  %4420 = vmatprep.subr.mxu0 0.0
  %4421 = vmatpush1.msra.mxu0 0.0
  %4422 = vmatprep.subr.mxu0 0.0
  %4423 = vmatpush1.msra.mxu0 0.0
  %4424 = vmatprep.subr.mxu0 0.0
  %4425 = vmatpush1.msra.mxu0 0.0
  %4426 = vmatprep.mubr.f32.mxu0 %v4282
  %4427 = vmatmul.mubr.f32.gmra.mrb[0].mxu0 %v3790
  %v4428 = vpop.f32.mrb[0].mxu0
  %v4429 = vadd.f32 %v4148, %v4428
  %v4430 = vpop.f32.mrb[0].mxu0
  %4431 = vmatprep.mubr.f32.mxu0 %v4285
  %4432 = vmatmul.mubr.f32.gmra.mrb[0].mxu0 %v3792
  %v4433 = vpop.f32.mrb[0].mxu0
  %v4434 = vadd.f32 %v4153, %v4433
  %v4435 = vpop.f32.mrb[0].mxu0
  %4436 = vmatprep.mubr.f32.mxu0 %v4288
  %4437 = vmatmul.mubr.f32.gmra.mrb[0].mxu0 %v3794
  %v4438 = vpop.f32.mrb[0].mxu0
  %v4439 = vadd.f32 %v4158, %v4438
  %v4440 = vpop.f32.mrb[0].mxu0
  %4441 = vmatprep.mubr.f32.mxu0 %v4291
  %4442 = vmatmul.mubr.f32.gmra.mrb[0].mxu0 %v3796
  %v4443 = vpop.f32.mrb[0].mxu0
  %v4444 = vadd.f32 %v4163, %v4443
  %v4445 = vpop.f32.mrb[0].mxu0
  %4446 = vmatprep.mubr.f32.mxu0 %v4294
  %4447 = vmatmul.mubr.f32.gmra.mrb[0].mxu0 %v3798
  %v4448 = vpop.f32.mrb[0].mxu0
  %v4449 = vadd.f32 %v4168, %v4448
  %v4450 = vpop.f32.mrb[0].mxu0
  %4451 = vmatprep.mubr.f32.mxu0 %v4297
  %4452 = vmatmul.mubr.f32.gmra.mrb[0].mxu0 %v3800
  %v4453 = vpop.f32.mrb[0].mxu0
  %v4454 = vadd.f32 %v4173, %v4453
  %v4455 = vpop.f32.mrb[0].mxu0
  %4456 = vmatprep.mubr.f32.mxu0 %v4300
  %4457 = vmatmul.mubr.f32.gmra.mrb[0].mxu0 %v3802
  %v4458 = vpop.f32.mrb[0].mxu0
  %v4459 = vadd.f32 %v4178, %v4458
  %v4460 = vpop.f32.mrb[0].mxu0
  %4461 = vmatprep.mubr.f32.mxu0 %v4303
  %4462 = vmatmul.mubr.f32.gmra.mrb[0].mxu0 %v3804
  %v4463 = vpop.f32.mrb[0].mxu0
  %v4464 = vadd.f32 %v4183, %v4463
  %v4465 = vpop.f32.mrb[0].mxu0
  %4466 = vmatprep.mubr.f32.mxu0 %v4306
  %4467 = vmatmul.mubr.f32.gmra.mrb[0].mxu0 %v3806
  %v4468 = vpop.f32.mrb[0].mxu0
  %v4469 = vadd.f32 %v4188, %v4468
  %v4470 = vpop.f32.mrb[0].mxu0
  %4471 = vmatprep.mubr.f32.mxu0 %v4309
  %4472 = vmatmul.mubr.f32.gmra.mrb[0].mxu0 %v3808
  %v4473 = vpop.f32.mrb[0].mxu0
  %v4474 = vadd.f32 %v4193, %v4473
  %v4475 = vpop.f32.mrb[0].mxu0
  %4476 = vmatprep.mubr.f32.mxu0 %v4312
  %4477 = vmatmul.mubr.f32.gmra.mrb[0].mxu0 %v3810
  %v4478 = vpop.f32.mrb[0].mxu0
  %v4479 = vadd.f32 %v4198, %v4478
  %v4480 = vpop.f32.mrb[0].mxu0
  %4481 = vmatprep.mubr.f32.mxu0 %v4315
  %4482 = vmatmul.mubr.f32.gmra.mrb[0].mxu0 %v3812
  %v4483 = vpop.f32.mrb[0].mxu0
  %v4484 = vadd.f32 %v4203, %v4483
  %v4485 = vpop.f32.mrb[0].mxu0
  %4486 = vmatprep.mubr.f32.mxu0 %v4318
  %4487 = vmatmul.mubr.f32.gmra.mrb[0].mxu0 %v3814
  %v4488 = vpop.f32.mrb[0].mxu0
  %v4489 = vadd.f32 %v4208, %v4488
  %v4490 = vpop.f32.mrb[0].mxu0
  %4491 = vmatprep.mubr.f32.mxu0 %v4321
  %4492 = vmatmul.mubr.f32.gmra.mrb[0].mxu0 %v3816
  %v4493 = vpop.f32.mrb[0].mxu0
  %v4494 = vadd.f32 %v4213, %v4493
  %v4495 = vpop.f32.mrb[0].mxu0
  %4496 = vmatprep.mubr.f32.mxu0 %v4324
  %4497 = vmatmul.mubr.f32.gmra.mrb[0].mxu0 %v3818
  %v4498 = vpop.f32.mrb[0].mxu0
  %v4499 = vadd.f32 %v4218, %v4498
  %v4500 = vpop.f32.mrb[0].mxu0
  %4501 = vmatprep.mubr.f32.mxu0 %v4327
  %4502 = vmatmul.mubr.f32.gmra.mrb[0].mxu0 %v3820
  %v4503 = vpop.f32.mrb[0].mxu0
  %v4504 = vadd.f32 %v4223, %v4503
  %v4505 = vpop.f32.mrb[0].mxu0
  %4506 = vmatprep.mubr.f32.mxu0 %v4330
  %4507 = vmatmul.mubr.f32.gmra.mrb[0].mxu0 %v3822
  %v4508 = vpop.f32.mrb[0].mxu0
  %v4509 = vadd.f32 %v4228, %v4508
  %v4510 = vpop.f32.mrb[0].mxu0
  %4511 = vmatprep.mubr.f32.mxu0 %v4333
  %4512 = vmatmul.mubr.f32.gmra.mrb[0].mxu0 %v3824
  %v4513 = vpop.f32.mrb[0].mxu0
  %v4514 = vadd.f32 %v4233, %v4513
  %v4515 = vpop.f32.mrb[0].mxu0
  %4516 = vmatprep.mubr.f32.mxu0 %v4336
  %4517 = vmatmul.mubr.f32.gmra.mrb[0].mxu0 %v3826
  %v4518 = vpop.f32.mrb[0].mxu0
  %v4519 = vadd.f32 %v4238, %v4518
  %v4520 = vpop.f32.mrb[0].mxu0
  %4521 = vmatprep.mubr.f32.mxu0 %v4339
  %4522 = vmatmul.mubr.f32.gmra.mrb[0].mxu0 %v3828
  %v4523 = vpop.f32.mrb[0].mxu0
  %v4524 = vadd.f32 %v4243, %v4523
  %v4525 = vpop.f32.mrb[0].mxu0
  %4526 = vmatprep.mubr.f32.mxu0 %v4342
  %4527 = vmatmul.mubr.f32.gmra.mrb[0].mxu0 %v3830
  %v4528 = vpop.f32.mrb[0].mxu0
  %v4529 = vadd.f32 %v4248, %v4528
  %v4530 = vpop.f32.mrb[0].mxu0
  %4531 = vmatprep.mubr.f32.mxu0 %v4345
  %4532 = vmatmul.mubr.f32.gmra.mrb[0].mxu0 %v3832
  %v4533 = vpop.f32.mrb[0].mxu0
  %v4534 = vadd.f32 %v4253, %v4533
  %v4535 = vpop.f32.mrb[0].mxu0
  %4536 = vmatprep.mubr.f32.mxu0 %v4348
  %4537 = vmatmul.mubr.f32.gmra.mrb[0].mxu0 %v3834
  %v4538 = vpop.f32.mrb[0].mxu0
  %v4539 = vadd.f32 %v4258, %v4538
  %v4540 = vpop.f32.mrb[0].mxu0
  %4541 = vmatprep.mubr.f32.mxu0 %v4351
  %4542 = vmatmul.mubr.f32.gmra.mrb[0].mxu0 %v3836
  %v4543 = vpop.f32.mrb[0].mxu0
  %v4544 = vadd.f32 %v4263, %v4543
  %v4545 = vpop.f32.mrb[0].mxu0
  %4546 = vmatprep.mubr.f32.mxu0 %v4354
  %4547 = vmatmul.mubr.f32.gmra.mrb[0].mxu0 %v3838
  %v4548 = vpop.f32.mrb[0].mxu0
  %v4549 = vadd.f32 %v4268, %v4548
  %v4550 = vpop.f32.mrb[0].mxu0
  %4551 = vmatprep.mubr.f32.mxu0 %v4357
  %4552 = vmatmul.mubr.f32.gmra.mrb[0].mxu0 %v3840
  %v4553 = vpop.f32.mrb[0].mxu0
  %v4554 = vadd.f32 %v4273, %v4553
  %v4555 = vpop.f32.mrb[0].mxu0
  %4556 = vmatprep.mubr.f32.mxu0 %v4360
  %4557 = vmatmul.mubr.f32.gmra.mrb[0].mxu0 %v3842
  %v4558 = vpop.f32.mrb[0].mxu0
  %v4559 = vadd.f32 %v4278, %v4558
  %v4560 = vpop.f32.mrb[0].mxu0
  %4561 = vdwg.mxu0
  %s4562 = scalar_lea.vmem %s12, 864
  %v4563 = vld [vmem:[%s4562] sm:$0xff]
  %v4564 = vld [vmem:[%s4562 + $0x8] sm:$0xff]
  %v4565 = vld [vmem:[%s4562 + $0x10] sm:$0xff]
  %v4566 = vld [vmem:[%s4562 + $0x18] sm:$0xff]
  %v4567 = vld [vmem:[%s4562 + $0x20] sm:$0xff]
  %v4568 = vld [vmem:[%s4562 + $0x28] sm:$0xff]
  %v4569 = vld [vmem:[%s4562 + $0x30] sm:$0xff]
  %v4570 = vld [vmem:[%s4562 + $0x38] sm:$0xff]
  %v4571 = vld [vmem:[%s4562 + $0x40] sm:$0xff]
  %v4572 = vld [vmem:[%s4562 + $0x48] sm:$0xff]
  %v4573 = vld [vmem:[%s4562 + $0x50] sm:$0xff]
  %v4574 = vld [vmem:[%s4562 + $0x58] sm:$0xff]
  %v4575 = vld [vmem:[%s4562 + $0x60] sm:$0xff]
  %v4576 = vld [vmem:[%s4562 + $0x68] sm:$0xff]
  %v4577 = vld [vmem:[%s4562 + $0x70] sm:$0xff]
  %v4578 = vld [vmem:[%s4562 + $0x78] sm:$0xff]
  %v4579 = vld [vmem:[%s4562 + $0x80] sm:$0xff]
  %v4580 = vld [vmem:[%s4562 + $0x88] sm:$0xff]
  %v4581 = vld [vmem:[%s4562 + $0x90] sm:$0xff]
  %v4582 = vld [vmem:[%s4562 + $0x98] sm:$0xff]
  %v4583 = vld [vmem:[%s4562 + $0xa0] sm:$0xff]
  %v4584 = vld [vmem:[%s4562 + $0xa8] sm:$0xff]
  %v4585 = vld [vmem:[%s4562 + $0xb0] sm:$0xff]
  %v4586 = vld [vmem:[%s4562 + $0xb8] sm:$0xff]
  %v4587 = vld [vmem:[%s4562 + $0xc0] sm:$0xff]
  %v4588 = vld [vmem:[%s4562 + $0xc8] sm:$0xff]
  %v4589 = vld [vmem:[%s4562 + $0xd0] sm:$0xff]
  %v4590 = vld [vmem:[%s4562 + $0xd8] sm:$0xff]
  %v4591 = vld [vmem:[%s4562 + $0xe0] sm:$0xff]
  %v4592 = vld [vmem:[%s4562 + $0xe8] sm:$0xff]
  %v4593 = vld [vmem:[%s4562 + $0xf0] sm:$0xff]
  %v4594 = vld [vmem:[%s4562 + $0xf8] sm:$0xff]
  %v4595 = vld [vmem:[%s4562 + $0x100] sm:$0xff]
  %v4596 = vld [vmem:[%s4562 + $0x108] sm:$0xff]
  %v4597 = vld [vmem:[%s4562 + $0x110] sm:$0xff]
  %v4598 = vld [vmem:[%s4562 + $0x118] sm:$0xff]
  %v4599 = vld [vmem:[%s4562 + $0x120] sm:$0xff]
  %v4600 = vld [vmem:[%s4562 + $0x128] sm:$0xff]
  %v4601 = vld [vmem:[%s4562 + $0x130] sm:$0xff]
  %v4602 = vld [vmem:[%s4562 + $0x138] sm:$0xff]
  %v4603 = vld [vmem:[%s4562 + $0x140] sm:$0xff]
  %v4604 = vld [vmem:[%s4562 + $0x148] sm:$0xff]
  %v4605 = vld [vmem:[%s4562 + $0x150] sm:$0xff]
  %v4606 = vld [vmem:[%s4562 + $0x158] sm:$0xff]
  %v4607 = vld [vmem:[%s4562 + $0x160] sm:$0xff]
  %v4608 = vld [vmem:[%s4562 + $0x168] sm:$0xff]
  %v4609 = vld [vmem:[%s4562 + $0x170] sm:$0xff]
  %v4610 = vld [vmem:[%s4562 + $0x178] sm:$0xff]
  %v4611 = vld [vmem:[%s4562 + $0x180] sm:$0xff]
  %v4612 = vld [vmem:[%s4562 + $0x188] sm:$0xff]
  %v4613 = vld [vmem:[%s4562 + $0x190] sm:$0xff]
  %v4614 = vld [vmem:[%s4562 + $0x198] sm:$0xff]
  %v4615 = vld [vmem:[%s4562 + $0x1a0] sm:$0xff]
  %v4616 = vld [vmem:[%s4562 + $0x1a8] sm:$0xff]
  %4617 = vrot.lane.b32.xlu0 %v3667, 124
  %v4618 = vpop.permute.xlu0 %4617
  %4619 = vrot.lane.b32.xlu0 %v3672, 124
  %v4620 = vpop.permute.xlu0 %4619
  %4621 = vrot.lane.b32.xlu0 %v3677, 124
  %v4622 = vpop.permute.xlu0 %4621
  %4623 = vrot.lane.b32.xlu0 %v3682, 124
  %v4624 = vpop.permute.xlu0 %4623
  %4625 = vrot.lane.b32.xlu0 %v3687, 124
  %v4626 = vpop.permute.xlu0 %4625
  %4627 = vrot.lane.b32.xlu0 %v3692, 124
  %v4628 = vpop.permute.xlu0 %4627
  %4629 = vrot.lane.b32.xlu0 %v3697, 124
  %v4630 = vpop.permute.xlu0 %4629
  %4631 = vrot.lane.b32.xlu0 %v3702, 124
  %v4632 = vpop.permute.xlu0 %4631
  %4633 = vrot.lane.b32.xlu0 %v3707, 124
  %v4634 = vpop.permute.xlu0 %4633
  %4635 = vrot.lane.b32.xlu0 %v3712, 124
  %v4636 = vpop.permute.xlu0 %4635
  %4637 = vrot.lane.b32.xlu0 %v3717, 124
  %v4638 = vpop.permute.xlu0 %4637
  %4639 = vrot.lane.b32.xlu0 %v3722, 124
  %v4640 = vpop.permute.xlu0 %4639
  %4641 = vrot.lane.b32.xlu0 %v3727, 124
  %v4642 = vpop.permute.xlu0 %4641
  %4643 = vrot.lane.b32.xlu0 %v3732, 124
  %v4644 = vpop.permute.xlu0 %4643
  %4645 = vrot.lane.b32.xlu0 %v3737, 124
  %v4646 = vpop.permute.xlu0 %4645
  %4647 = vrot.lane.b32.xlu0 %v3742, 124
  %v4648 = vpop.permute.xlu0 %4647
  %4649 = vrot.lane.b32.xlu0 %v3747, 124
  %v4650 = vpop.permute.xlu0 %4649
  %4651 = vrot.lane.b32.xlu0 %v3752, 124
  %v4652 = vpop.permute.xlu0 %4651
  %4653 = vrot.lane.b32.xlu0 %v3757, 124
  %v4654 = vpop.permute.xlu0 %4653
  %4655 = vrot.lane.b32.xlu0 %v3762, 124
  %v4656 = vpop.permute.xlu0 %4655
  %4657 = vrot.lane.b32.xlu0 %v3767, 124
  %v4658 = vpop.permute.xlu0 %4657
  %4659 = vrot.lane.b32.xlu0 %v3772, 124
  %v4660 = vpop.permute.xlu0 %4659
  %4661 = vrot.lane.b32.xlu0 %v3777, 124
  %v4662 = vpop.permute.xlu0 %4661
  %4663 = vrot.lane.b32.xlu0 %v3782, 124
  %v4664 = vpop.permute.xlu0 %4663
  %4665 = vrot.lane.b32.xlu0 %v3787, 124
  %v4666 = vpop.permute.xlu0 %4665
  %v4693 = vsel %vm3999, %v4564, 0
  %v4696 = vsel %vm3999, %v4566, 0
  %v4699 = vsel %vm3999, %v4568, 0
  %v4702 = vsel %vm3999, %v4570, 0
  %v4705 = vsel %vm3999, %v4572, 0
  %v4708 = vsel %vm3999, %v4574, 0
  %v4711 = vsel %vm3999, %v4576, 0
  %v4714 = vsel %vm3999, %v4578, 0
  %v4717 = vsel %vm3999, %v4580, 0
  %v4720 = vsel %vm3999, %v4582, 0
  %v4723 = vsel %vm3999, %v4584, 0
  %v4726 = vsel %vm3999, %v4586, 0
  %v4729 = vsel %vm3999, %v4588, 0
  %v4732 = vsel %vm3999, %v4590, 0
  %v4735 = vsel %vm3999, %v4592, 0
  %v4738 = vsel %vm3999, %v4594, 0
  %v4741 = vsel %vm3999, %v4596, 0
  %v4744 = vsel %vm3999, %v4598, 0
  %v4747 = vsel %vm3999, %v4600, 0
  %v4750 = vsel %vm3999, %v4602, 0
  %v4753 = vsel %vm3999, %v4604, 0
  %v4756 = vsel %vm3999, %v4606, 0
  %v4759 = vsel %vm3999, %v4608, 0
  %v4762 = vsel %vm3999, %v4610, 0
  %v4765 = vsel %vm3999, %v4612, 0
  %v4768 = vsel %vm3999, %v4614, 0
  %v4771 = vsel %vm3999, %v4616, 0
  %4773 = vmatprep.subr.mxu0 0.0
  %4774 = vmatpush1.msra.mxu0 %v4618
  %4775 = vmatprep.subr.mxu0 0.0
  %4776 = vmatpush1.msra.mxu0 %v4620
  %4777 = vmatprep.subr.mxu0 0.0
  %4778 = vmatpush1.msra.mxu0 %v4622
  %4779 = vmatprep.subr.mxu0 0.0
  %4780 = vmatpush1.msra.mxu0 %v4624
  %4781 = vmatprep.subr.mxu0 0.0
  %4782 = vmatpush1.msra.mxu0 %v4626
  %4783 = vmatprep.subr.mxu0 0.0
  %4784 = vmatpush1.msra.mxu0 %v4628
  %4785 = vmatprep.subr.mxu0 0.0
  %4786 = vmatpush1.msra.mxu0 %v4630
  %4787 = vmatprep.subr.mxu0 0.0
  %4788 = vmatpush1.msra.mxu0 %v4632
  %4789 = vmatprep.subr.mxu0 0.0
  %4790 = vmatpush1.msra.mxu0 %v4634
  %4791 = vmatprep.subr.mxu0 0.0
  %4792 = vmatpush1.msra.mxu0 %v4636
  %4793 = vmatprep.subr.mxu0 0.0
  %4794 = vmatpush1.msra.mxu0 %v4638
  %4795 = vmatprep.subr.mxu0 0.0
  %4796 = vmatpush1.msra.mxu0 %v4640
  %4797 = vmatprep.subr.mxu0 0.0
  %4798 = vmatpush1.msra.mxu0 %v4642
  %4799 = vmatprep.subr.mxu0 0.0
  %4800 = vmatpush1.msra.mxu0 %v4644
  %4801 = vmatprep.subr.mxu0 0.0
  %4802 = vmatpush1.msra.mxu0 %v4646
  %4803 = vmatprep.subr.mxu0 0.0
  %4804 = vmatpush1.msra.mxu0 %v4648
  %4805 = vmatprep.subr.mxu0 0.0
  %4806 = vmatpush1.msra.mxu0 %v4650
  %4807 = vmatprep.subr.mxu0 0.0
  %4808 = vmatpush1.msra.mxu0 %v4652
  %4809 = vmatprep.subr.mxu0 0.0
  %4810 = vmatpush1.msra.mxu0 %v4654
  %4811 = vmatprep.subr.mxu0 0.0
  %4812 = vmatpush1.msra.mxu0 %v4656
  %4813 = vmatprep.subr.mxu0 0.0
  %4814 = vmatpush1.msra.mxu0 %v4658
  %4815 = vmatprep.subr.mxu0 0.0
  %4816 = vmatpush1.msra.mxu0 %v4660
  %4817 = vmatprep.subr.mxu0 0.0
  %4818 = vmatpush1.msra.mxu0 %v4662
  %4819 = vmatprep.subr.mxu0 0.0
  %4820 = vmatpush1.msra.mxu0 %v4664
  %4821 = vmatprep.subr.mxu0 0.0
  %4822 = vmatpush1.msra.mxu0 %v4666
  %4823 = vmatprep.subr.mxu0 0.0
  %4824 = vmatpush1.msra.mxu0 0.0
  %4825 = vmatprep.subr.mxu0 0.0
  %4826 = vmatpush1.msra.mxu0 0.0
  %4827 = vmatprep.subr.mxu0 0.0
  %4828 = vmatpush1.msra.mxu0 0.0
  %4829 = vmatprep.subr.mxu0 0.0
  %4830 = vmatpush1.msra.mxu0 0.0
  %4831 = vmatprep.subr.mxu0 0.0
  %4832 = vmatpush1.msra.mxu0 0.0
  %4833 = vmatprep.subr.mxu0 0.0
  %4834 = vmatpush1.msra.mxu0 0.0
  %4835 = vmatprep.subr.mxu0 0.0
  %4836 = vmatpush1.msra.mxu0 0.0
  %4837 = vmatprep.mubr.f32.mxu0 %v4693
  %4838 = vmatmul.mubr.f32.gmra.mrb[0].mxu0 %v4563
  %v4839 = vpop.f32.mrb[0].mxu0
  %v4840 = vadd.f32 0.0, %v4839
  %v4841 = vpop.f32.mrb[0].mxu0
  %4842 = vmatprep.mubr.f32.mxu0 %v4696
  %4843 = vmatmul.mubr.f32.gmra.mrb[0].mxu0 %v4565
  %v4844 = vpop.f32.mrb[0].mxu0
  %v4845 = vadd.f32 0.0, %v4844
  %v4846 = vpop.f32.mrb[0].mxu0
  %4847 = vmatprep.mubr.f32.mxu0 %v4699
  %4848 = vmatmul.mubr.f32.gmra.mrb[0].mxu0 %v4567
  %v4849 = vpop.f32.mrb[0].mxu0
  %v4850 = vadd.f32 0.0, %v4849
  %v4851 = vpop.f32.mrb[0].mxu0
  %4852 = vmatprep.mubr.f32.mxu0 %v4702
  %4853 = vmatmul.mubr.f32.gmra.mrb[0].mxu0 %v4569
  %v4854 = vpop.f32.mrb[0].mxu0
  %v4855 = vadd.f32 0.0, %v4854
  %v4856 = vpop.f32.mrb[0].mxu0
  %4857 = vmatprep.mubr.f32.mxu0 %v4705
  %4858 = vmatmul.mubr.f32.gmra.mrb[0].mxu0 %v4571
  %v4859 = vpop.f32.mrb[0].mxu0
  %v4860 = vadd.f32 0.0, %v4859
  %v4861 = vpop.f32.mrb[0].mxu0
  %4862 = vmatprep.mubr.f32.mxu0 %v4708
  %4863 = vmatmul.mubr.f32.gmra.mrb[0].mxu0 %v4573
  %v4864 = vpop.f32.mrb[0].mxu0
  %v4865 = vadd.f32 0.0, %v4864
  %v4866 = vpop.f32.mrb[0].mxu0
  %4867 = vmatprep.mubr.f32.mxu0 %v4711
  %4868 = vmatmul.mubr.f32.gmra.mrb[0].mxu0 %v4575
  %v4869 = vpop.f32.mrb[0].mxu0
  %v4870 = vadd.f32 0.0, %v4869
  %v4871 = vpop.f32.mrb[0].mxu0
  %4872 = vmatprep.mubr.f32.mxu0 %v4714
  %4873 = vmatmul.mubr.f32.gmra.mrb[0].mxu0 %v4577
  %v4874 = vpop.f32.mrb[0].mxu0
  %v4875 = vadd.f32 0.0, %v4874
  %v4876 = vpop.f32.mrb[0].mxu0
  %4877 = vmatprep.mubr.f32.mxu0 %v4717
  %4878 = vmatmul.mubr.f32.gmra.mrb[0].mxu0 %v4579
  %v4879 = vpop.f32.mrb[0].mxu0
  %v4880 = vadd.f32 0.0, %v4879
  %v4881 = vpop.f32.mrb[0].mxu0
  %4882 = vmatprep.mubr.f32.mxu0 %v4720
  %4883 = vmatmul.mubr.f32.gmra.mrb[0].mxu0 %v4581
  %v4884 = vpop.f32.mrb[0].mxu0
  %v4885 = vadd.f32 0.0, %v4884
  %v4886 = vpop.f32.mrb[0].mxu0
  %4887 = vmatprep.mubr.f32.mxu0 %v4723
  %4888 = vmatmul.mubr.f32.gmra.mrb[0].mxu0 %v4583
  %v4889 = vpop.f32.mrb[0].mxu0
  %v4890 = vadd.f32 0.0, %v4889
  %v4891 = vpop.f32.mrb[0].mxu0
  %4892 = vmatprep.mubr.f32.mxu0 %v4726
  %4893 = vmatmul.mubr.f32.gmra.mrb[0].mxu0 %v4585
  %v4894 = vpop.f32.mrb[0].mxu0
  %v4895 = vadd.f32 0.0, %v4894
  %v4896 = vpop.f32.mrb[0].mxu0
  %4897 = vmatprep.mubr.f32.mxu0 %v4729
  %4898 = vmatmul.mubr.f32.gmra.mrb[0].mxu0 %v4587
  %v4899 = vpop.f32.mrb[0].mxu0
  %v4900 = vadd.f32 0.0, %v4899
  %v4901 = vpop.f32.mrb[0].mxu0
  %4902 = vmatprep.mubr.f32.mxu0 %v4732
  %4903 = vmatmul.mubr.f32.gmra.mrb[0].mxu0 %v4589
  %v4904 = vpop.f32.mrb[0].mxu0
  %v4905 = vadd.f32 0.0, %v4904
  %v4906 = vpop.f32.mrb[0].mxu0
  %4907 = vmatprep.mubr.f32.mxu0 %v4735
  %4908 = vmatmul.mubr.f32.gmra.mrb[0].mxu0 %v4591
  %v4909 = vpop.f32.mrb[0].mxu0
  %v4910 = vadd.f32 0.0, %v4909
  %v4911 = vpop.f32.mrb[0].mxu0
  %4912 = vmatprep.mubr.f32.mxu0 %v4738
  %4913 = vmatmul.mubr.f32.gmra.mrb[0].mxu0 %v4593
  %v4914 = vpop.f32.mrb[0].mxu0
  %v4915 = vadd.f32 0.0, %v4914
  %v4916 = vpop.f32.mrb[0].mxu0
  %4917 = vmatprep.mubr.f32.mxu0 %v4741
  %4918 = vmatmul.mubr.f32.gmra.mrb[0].mxu0 %v4595
  %v4919 = vpop.f32.mrb[0].mxu0
  %v4920 = vadd.f32 0.0, %v4919
  %v4921 = vpop.f32.mrb[0].mxu0
  %4922 = vmatprep.mubr.f32.mxu0 %v4744
  %4923 = vmatmul.mubr.f32.gmra.mrb[0].mxu0 %v4597
  %v4924 = vpop.f32.mrb[0].mxu0
  %v4925 = vadd.f32 0.0, %v4924
  %v4926 = vpop.f32.mrb[0].mxu0
  %4927 = vmatprep.mubr.f32.mxu0 %v4747
  %4928 = vmatmul.mubr.f32.gmra.mrb[0].mxu0 %v4599
  %v4929 = vpop.f32.mrb[0].mxu0
  %v4930 = vadd.f32 0.0, %v4929
  %v4931 = vpop.f32.mrb[0].mxu0
  %4932 = vmatprep.mubr.f32.mxu0 %v4750
  %4933 = vmatmul.mubr.f32.gmra.mrb[0].mxu0 %v4601
  %v4934 = vpop.f32.mrb[0].mxu0
  %v4935 = vadd.f32 0.0, %v4934
  %v4936 = vpop.f32.mrb[0].mxu0
  %4937 = vmatprep.mubr.f32.mxu0 %v4753
  %4938 = vmatmul.mubr.f32.gmra.mrb[0].mxu0 %v4603
  %v4939 = vpop.f32.mrb[0].mxu0
  %v4940 = vadd.f32 0.0, %v4939
  %v4941 = vpop.f32.mrb[0].mxu0
  %4942 = vmatprep.mubr.f32.mxu0 %v4756
  %4943 = vmatmul.mubr.f32.gmra.mrb[0].mxu0 %v4605
  %v4944 = vpop.f32.mrb[0].mxu0
  %v4945 = vadd.f32 0.0, %v4944
  %v4946 = vpop.f32.mrb[0].mxu0
  %4947 = vmatprep.mubr.f32.mxu0 %v4759
  %4948 = vmatmul.mubr.f32.gmra.mrb[0].mxu0 %v4607
  %v4949 = vpop.f32.mrb[0].mxu0
  %v4950 = vadd.f32 0.0, %v4949
  %v4951 = vpop.f32.mrb[0].mxu0
  %4952 = vmatprep.mubr.f32.mxu0 %v4762
  %4953 = vmatmul.mubr.f32.gmra.mrb[0].mxu0 %v4609
  %v4954 = vpop.f32.mrb[0].mxu0
  %v4955 = vadd.f32 0.0, %v4954
  %v4956 = vpop.f32.mrb[0].mxu0
  %4957 = vmatprep.mubr.f32.mxu0 %v4765
  %4958 = vmatmul.mubr.f32.gmra.mrb[0].mxu0 %v4611
  %v4959 = vpop.f32.mrb[0].mxu0
  %v4960 = vadd.f32 0.0, %v4959
  %v4961 = vpop.f32.mrb[0].mxu0
  %4962 = vmatprep.mubr.f32.mxu0 %v4768
  %4963 = vmatmul.mubr.f32.gmra.mrb[0].mxu0 %v4613
  %v4964 = vpop.f32.mrb[0].mxu0
  %v4965 = vadd.f32 0.0, %v4964
  %v4966 = vpop.f32.mrb[0].mxu0
  %4967 = vmatprep.mubr.f32.mxu0 %v4771
  %4968 = vmatmul.mubr.f32.gmra.mrb[0].mxu0 %v4615
  %v4969 = vpop.f32.mrb[0].mxu0
  %v4970 = vadd.f32 0.0, %v4969
  %v4971 = vpop.f32.mrb[0].mxu0
  %4972 = vdwg.mxu0
  %v4973 = vadd.f32 %v4429, %v4840
  %v4974 = vadd.f32 %v4434, %v4845
  %v4975 = vadd.f32 %v4439, %v4850
  %v4976 = vadd.f32 %v4444, %v4855
  %v4977 = vadd.f32 %v4449, %v4860
  %v4978 = vadd.f32 %v4454, %v4865
  %v4979 = vadd.f32 %v4459, %v4870
  %v4980 = vadd.f32 %v4464, %v4875
  %v4981 = vadd.f32 %v4469, %v4880
  %v4982 = vadd.f32 %v4474, %v4885
  %v4983 = vadd.f32 %v4479, %v4890
  %v4984 = vadd.f32 %v4484, %v4895
  %v4985 = vadd.f32 %v4489, %v4900
  %v4986 = vadd.f32 %v4494, %v4905
  %v4987 = vadd.f32 %v4499, %v4910
  %v4988 = vadd.f32 %v4504, %v4915
  %v4989 = vadd.f32 %v4509, %v4920
  %v4990 = vadd.f32 %v4514, %v4925
  %v4991 = vadd.f32 %v4519, %v4930
  %v4992 = vadd.f32 %v4524, %v4935
  %v4993 = vadd.f32 %v4529, %v4940
  %v4994 = vadd.f32 %v4534, %v4945
  %v4995 = vadd.f32 %v4539, %v4950
  %v4996 = vadd.f32 %v4544, %v4955
  %v4997 = vadd.f32 %v4549, %v4960
  %v4998 = vadd.f32 %v4554, %v4965
  %v4999 = vadd.f32 %v4559, %v4970
  %s5000 = scalar_lea.vmem %s12, 1296
  %v5001 = vld [vmem:[%s5000] sm:$0xff]
  %v5002 = vld [vmem:[%s5000 + $0x8] sm:$0xff]
  %v5003 = vld [vmem:[%s5000 + $0x10] sm:$0xff]
  %v5004 = vld [vmem:[%s5000 + $0x18] sm:$0xff]
  %v5005 = vld [vmem:[%s5000 + $0x20] sm:$0xff]
  %v5006 = vld [vmem:[%s5000 + $0x28] sm:$0xff]
  %v5007 = vld [vmem:[%s5000 + $0x30] sm:$0xff]
  %v5008 = vld [vmem:[%s5000 + $0x38] sm:$0xff]
  %v5009 = vld [vmem:[%s5000 + $0x40] sm:$0xff]
  %v5010 = vld [vmem:[%s5000 + $0x48] sm:$0xff]
  %v5011 = vld [vmem:[%s5000 + $0x50] sm:$0xff]
  %v5012 = vld [vmem:[%s5000 + $0x58] sm:$0xff]
  %v5013 = vld [vmem:[%s5000 + $0x60] sm:$0xff]
  %v5014 = vld [vmem:[%s5000 + $0x68] sm:$0xff]
  %v5015 = vld [vmem:[%s5000 + $0x70] sm:$0xff]
  %v5016 = vld [vmem:[%s5000 + $0x78] sm:$0xff]
  %v5017 = vld [vmem:[%s5000 + $0x80] sm:$0xff]
  %v5018 = vld [vmem:[%s5000 + $0x88] sm:$0xff]
  %v5019 = vld [vmem:[%s5000 + $0x90] sm:$0xff]
  %v5020 = vld [vmem:[%s5000 + $0x98] sm:$0xff]
  %v5021 = vld [vmem:[%s5000 + $0xa0] sm:$0xff]
  %v5022 = vld [vmem:[%s5000 + $0xa8] sm:$0xff]
  %v5023 = vld [vmem:[%s5000 + $0xb0] sm:$0xff]
  %v5024 = vld [vmem:[%s5000 + $0xb8] sm:$0xff]
  %v5025 = vld [vmem:[%s5000 + $0xc0] sm:$0xff]
  %v5026 = vld [vmem:[%s5000 + $0xc8] sm:$0xff]
  %v5027 = vld [vmem:[%s5000 + $0xd0] sm:$0xff]
  %v5028 = vld [vmem:[%s5000 + $0xd8] sm:$0xff]
  %v5029 = vld [vmem:[%s5000 + $0xe0] sm:$0xff]
  %v5030 = vld [vmem:[%s5000 + $0xe8] sm:$0xff]
  %v5031 = vld [vmem:[%s5000 + $0xf0] sm:$0xff]
  %v5032 = vld [vmem:[%s5000 + $0xf8] sm:$0xff]
  %v5033 = vld [vmem:[%s5000 + $0x100] sm:$0xff]
  %v5034 = vld [vmem:[%s5000 + $0x108] sm:$0xff]
  %v5035 = vld [vmem:[%s5000 + $0x110] sm:$0xff]
  %v5036 = vld [vmem:[%s5000 + $0x118] sm:$0xff]
  %v5037 = vld [vmem:[%s5000 + $0x120] sm:$0xff]
  %v5038 = vld [vmem:[%s5000 + $0x128] sm:$0xff]
  %v5039 = vld [vmem:[%s5000 + $0x130] sm:$0xff]
  %v5040 = vld [vmem:[%s5000 + $0x138] sm:$0xff]
  %v5041 = vld [vmem:[%s5000 + $0x140] sm:$0xff]
  %v5042 = vld [vmem:[%s5000 + $0x148] sm:$0xff]
  %v5043 = vld [vmem:[%s5000 + $0x150] sm:$0xff]
  %v5044 = vld [vmem:[%s5000 + $0x158] sm:$0xff]
  %v5045 = vld [vmem:[%s5000 + $0x160] sm:$0xff]
  %v5046 = vld [vmem:[%s5000 + $0x168] sm:$0xff]
  %v5047 = vld [vmem:[%s5000 + $0x170] sm:$0xff]
  %v5048 = vld [vmem:[%s5000 + $0x178] sm:$0xff]
  %v5049 = vld [vmem:[%s5000 + $0x180] sm:$0xff]
  %v5050 = vld [vmem:[%s5000 + $0x188] sm:$0xff]
  %v5051 = vld [vmem:[%s5000 + $0x190] sm:$0xff]
  %v5052 = vld [vmem:[%s5000 + $0x198] sm:$0xff]
  %v5053 = vld [vmem:[%s5000 + $0x1a0] sm:$0xff]
  %v5054 = vld [vmem:[%s5000 + $0x1a8] sm:$0xff]
  %5055 = vrot.lane.b32.xlu0 %v3667, 122
  %v5056 = vpop.permute.xlu0 %5055
  %5057 = vrot.lane.b32.xlu0 %v3672, 122
  %v5058 = vpop.permute.xlu0 %5057
  %5059 = vrot.lane.b32.xlu0 %v3677, 122
  %v5060 = vpop.permute.xlu0 %5059
  %5061 = vrot.lane.b32.xlu0 %v3682, 122
  %v5062 = vpop.permute.xlu0 %5061
  %5063 = vrot.lane.b32.xlu0 %v3687, 122
  %v5064 = vpop.permute.xlu0 %5063
  %5065 = vrot.lane.b32.xlu0 %v3692, 122
  %v5066 = vpop.permute.xlu0 %5065
  %5067 = vrot.lane.b32.xlu0 %v3697, 122
  %v5068 = vpop.permute.xlu0 %5067
  %5069 = vrot.lane.b32.xlu0 %v3702, 122
  %v5070 = vpop.permute.xlu0 %5069
  %5071 = vrot.lane.b32.xlu0 %v3707, 122
  %v5072 = vpop.permute.xlu0 %5071
  %5073 = vrot.lane.b32.xlu0 %v3712, 122
  %v5074 = vpop.permute.xlu0 %5073
  %5075 = vrot.lane.b32.xlu0 %v3717, 122
  %v5076 = vpop.permute.xlu0 %5075
  %5077 = vrot.lane.b32.xlu0 %v3722, 122
  %v5078 = vpop.permute.xlu0 %5077
  %5079 = vrot.lane.b32.xlu0 %v3727, 122
  %v5080 = vpop.permute.xlu0 %5079
  %5081 = vrot.lane.b32.xlu0 %v3732, 122
  %v5082 = vpop.permute.xlu0 %5081
  %5083 = vrot.lane.b32.xlu0 %v3737, 122
  %v5084 = vpop.permute.xlu0 %5083
  %5085 = vrot.lane.b32.xlu0 %v3742, 122
  %v5086 = vpop.permute.xlu0 %5085
  %5087 = vrot.lane.b32.xlu0 %v3747, 122
  %v5088 = vpop.permute.xlu0 %5087
  %5089 = vrot.lane.b32.xlu0 %v3752, 122
  %v5090 = vpop.permute.xlu0 %5089
  %5091 = vrot.lane.b32.xlu0 %v3757, 122
  %v5092 = vpop.permute.xlu0 %5091
  %5093 = vrot.lane.b32.xlu0 %v3762, 122
  %v5094 = vpop.permute.xlu0 %5093
  %5095 = vrot.lane.b32.xlu0 %v3767, 122
  %v5096 = vpop.permute.xlu0 %5095
  %5097 = vrot.lane.b32.xlu0 %v3772, 122
  %v5098 = vpop.permute.xlu0 %5097
  %5099 = vrot.lane.b32.xlu0 %v3777, 122
  %v5100 = vpop.permute.xlu0 %5099
  %5101 = vrot.lane.b32.xlu0 %v3782, 122
  %v5102 = vpop.permute.xlu0 %5101
  %5103 = vrot.lane.b32.xlu0 %v3787, 122
  %v5104 = vpop.permute.xlu0 %5103
  %v5131 = vsel %vm3999, %v5002, 0
  %v5134 = vsel %vm3999, %v5004, 0
  %v5137 = vsel %vm3999, %v5006, 0
  %v5140 = vsel %vm3999, %v5008, 0
  %v5143 = vsel %vm3999, %v5010, 0
  %v5146 = vsel %vm3999, %v5012, 0
  %v5149 = vsel %vm3999, %v5014, 0
  %v5152 = vsel %vm3999, %v5016, 0
  %v5155 = vsel %vm3999, %v5018, 0
  %v5158 = vsel %vm3999, %v5020, 0
  %v5161 = vsel %vm3999, %v5022, 0
  %v5164 = vsel %vm3999, %v5024, 0
  %v5167 = vsel %vm3999, %v5026, 0
  %v5170 = vsel %vm3999, %v5028, 0
  %v5173 = vsel %vm3999, %v5030, 0
  %v5176 = vsel %vm3999, %v5032, 0
  %v5179 = vsel %vm3999, %v5034, 0
  %v5182 = vsel %vm3999, %v5036, 0
  %v5185 = vsel %vm3999, %v5038, 0
  %v5188 = vsel %vm3999, %v5040, 0
  %v5191 = vsel %vm3999, %v5042, 0
  %v5194 = vsel %vm3999, %v5044, 0
  %v5197 = vsel %vm3999, %v5046, 0
  %v5200 = vsel %vm3999, %v5048, 0
  %v5203 = vsel %vm3999, %v5050, 0
  %v5206 = vsel %vm3999, %v5052, 0
  %v5209 = vsel %vm3999, %v5054, 0
  %5211 = vmatprep.subr.mxu0 0.0
  %5212 = vmatpush1.msra.mxu0 %v5056
  %5213 = vmatprep.subr.mxu0 0.0
  %5214 = vmatpush1.msra.mxu0 %v5058
  %5215 = vmatprep.subr.mxu0 0.0
  %5216 = vmatpush1.msra.mxu0 %v5060
  %5217 = vmatprep.subr.mxu0 0.0
  %5218 = vmatpush1.msra.mxu0 %v5062
  %5219 = vmatprep.subr.mxu0 0.0
  %5220 = vmatpush1.msra.mxu0 %v5064
  %5221 = vmatprep.subr.mxu0 0.0
  %5222 = vmatpush1.msra.mxu0 %v5066
  %5223 = vmatprep.subr.mxu0 0.0
  %5224 = vmatpush1.msra.mxu0 %v5068
  %5225 = vmatprep.subr.mxu0 0.0
  %5226 = vmatpush1.msra.mxu0 %v5070
  %5227 = vmatprep.subr.mxu0 0.0
  %5228 = vmatpush1.msra.mxu0 %v5072
  %5229 = vmatprep.subr.mxu0 0.0
  %5230 = vmatpush1.msra.mxu0 %v5074
  %5231 = vmatprep.subr.mxu0 0.0
  %5232 = vmatpush1.msra.mxu0 %v5076
  %5233 = vmatprep.subr.mxu0 0.0
  %5234 = vmatpush1.msra.mxu0 %v5078
  %5235 = vmatprep.subr.mxu0 0.0
  %5236 = vmatpush1.msra.mxu0 %v5080
  %5237 = vmatprep.subr.mxu0 0.0
  %5238 = vmatpush1.msra.mxu0 %v5082
  %5239 = vmatprep.subr.mxu0 0.0
  %5240 = vmatpush1.msra.mxu0 %v5084
  %5241 = vmatprep.subr.mxu0 0.0
  %5242 = vmatpush1.msra.mxu0 %v5086
  %5243 = vmatprep.subr.mxu0 0.0
  %5244 = vmatpush1.msra.mxu0 %v5088
  %5245 = vmatprep.subr.mxu0 0.0
  %5246 = vmatpush1.msra.mxu0 %v5090
  %5247 = vmatprep.subr.mxu0 0.0
  %5248 = vmatpush1.msra.mxu0 %v5092
  %5249 = vmatprep.subr.mxu0 0.0
  %5250 = vmatpush1.msra.mxu0 %v5094
  %5251 = vmatprep.subr.mxu0 0.0
  %5252 = vmatpush1.msra.mxu0 %v5096
  %5253 = vmatprep.subr.mxu0 0.0
  %5254 = vmatpush1.msra.mxu0 %v5098
  %5255 = vmatprep.subr.mxu0 0.0
  %5256 = vmatpush1.msra.mxu0 %v5100
  %5257 = vmatprep.subr.mxu0 0.0
  %5258 = vmatpush1.msra.mxu0 %v5102
  %5259 = vmatprep.subr.mxu0 0.0
  %5260 = vmatpush1.msra.mxu0 %v5104
  %5261 = vmatprep.subr.mxu0 0.0
  %5262 = vmatpush1.msra.mxu0 0.0
  %5263 = vmatprep.subr.mxu0 0.0
  %5264 = vmatpush1.msra.mxu0 0.0
  %5265 = vmatprep.subr.mxu0 0.0
  %5266 = vmatpush1.msra.mxu0 0.0
  %5267 = vmatprep.subr.mxu0 0.0
  %5268 = vmatpush1.msra.mxu0 0.0
  %5269 = vmatprep.subr.mxu0 0.0
  %5270 = vmatpush1.msra.mxu0 0.0
  %5271 = vmatprep.subr.mxu0 0.0
  %5272 = vmatpush1.msra.mxu0 0.0
  %5273 = vmatprep.subr.mxu0 0.0
  %5274 = vmatpush1.msra.mxu0 0.0
  %5275 = vmatprep.mubr.f32.mxu0 %v5131
  %5276 = vmatmul.mubr.f32.gmra.mrb[0].mxu0 %v5001
  %v5277 = vpop.f32.mrb[0].mxu0
  %v5278 = vadd.f32 0.0, %v5277
  %v5279 = vpop.f32.mrb[0].mxu0
  %5280 = vmatprep.mubr.f32.mxu0 %v5134
  %5281 = vmatmul.mubr.f32.gmra.mrb[0].mxu0 %v5003
  %v5282 = vpop.f32.mrb[0].mxu0
  %v5283 = vadd.f32 0.0, %v5282
  %v5284 = vpop.f32.mrb[0].mxu0
  %5285 = vmatprep.mubr.f32.mxu0 %v5137
  %5286 = vmatmul.mubr.f32.gmra.mrb[0].mxu0 %v5005
  %v5287 = vpop.f32.mrb[0].mxu0
  %v5288 = vadd.f32 0.0, %v5287
  %v5289 = vpop.f32.mrb[0].mxu0
  %5290 = vmatprep.mubr.f32.mxu0 %v5140
  %5291 = vmatmul.mubr.f32.gmra.mrb[0].mxu0 %v5007
  %v5292 = vpop.f32.mrb[0].mxu0
  %v5293 = vadd.f32 0.0, %v5292
  %v5294 = vpop.f32.mrb[0].mxu0
  %5295 = vmatprep.mubr.f32.mxu0 %v5143
  %5296 = vmatmul.mubr.f32.gmra.mrb[0].mxu0 %v5009
  %v5297 = vpop.f32.mrb[0].mxu0
  %v5298 = vadd.f32 0.0, %v5297
  %v5299 = vpop.f32.mrb[0].mxu0
  %5300 = vmatprep.mubr.f32.mxu0 %v5146
  %5301 = vmatmul.mubr.f32.gmra.mrb[0].mxu0 %v5011
  %v5302 = vpop.f32.mrb[0].mxu0
  %v5303 = vadd.f32 0.0, %v5302
  %v5304 = vpop.f32.mrb[0].mxu0
  %5305 = vmatprep.mubr.f32.mxu0 %v5149
  %5306 = vmatmul.mubr.f32.gmra.mrb[0].mxu0 %v5013
  %v5307 = vpop.f32.mrb[0].mxu0
  %v5308 = vadd.f32 0.0, %v5307
  %v5309 = vpop.f32.mrb[0].mxu0
  %5310 = vmatprep.mubr.f32.mxu0 %v5152
  %5311 = vmatmul.mubr.f32.gmra.mrb[0].mxu0 %v5015
  %v5312 = vpop.f32.mrb[0].mxu0
  %v5313 = vadd.f32 0.0, %v5312
  %v5314 = vpop.f32.mrb[0].mxu0
  %5315 = vmatprep.mubr.f32.mxu0 %v5155
  %5316 = vmatmul.mubr.f32.gmra.mrb[0].mxu0 %v5017
  %v5317 = vpop.f32.mrb[0].mxu0
  %v5318 = vadd.f32 0.0, %v5317
  %v5319 = vpop.f32.mrb[0].mxu0
  %5320 = vmatprep.mubr.f32.mxu0 %v5158
  %5321 = vmatmul.mubr.f32.gmra.mrb[0].mxu0 %v5019
  %v5322 = vpop.f32.mrb[0].mxu0
  %v5323 = vadd.f32 0.0, %v5322
  %v5324 = vpop.f32.mrb[0].mxu0
  %5325 = vmatprep.mubr.f32.mxu0 %v5161
  %5326 = vmatmul.mubr.f32.gmra.mrb[0].mxu0 %v5021
  %v5327 = vpop.f32.mrb[0].mxu0
  %v5328 = vadd.f32 0.0, %v5327
  %v5329 = vpop.f32.mrb[0].mxu0
  %5330 = vmatprep.mubr.f32.mxu0 %v5164
  %5331 = vmatmul.mubr.f32.gmra.mrb[0].mxu0 %v5023
  %v5332 = vpop.f32.mrb[0].mxu0
  %v5333 = vadd.f32 0.0, %v5332
  %v5334 = vpop.f32.mrb[0].mxu0
  %5335 = vmatprep.mubr.f32.mxu0 %v5167
  %5336 = vmatmul.mubr.f32.gmra.mrb[0].mxu0 %v5025
  %v5337 = vpop.f32.mrb[0].mxu0
  %v5338 = vadd.f32 0.0, %v5337
  %v5339 = vpop.f32.mrb[0].mxu0
  %5340 = vmatprep.mubr.f32.mxu0 %v5170
  %5341 = vmatmul.mubr.f32.gmra.mrb[0].mxu0 %v5027
  %v5342 = vpop.f32.mrb[0].mxu0
  %v5343 = vadd.f32 0.0, %v5342
  %v5344 = vpop.f32.mrb[0].mxu0
  %5345 = vmatprep.mubr.f32.mxu0 %v5173
  %5346 = vmatmul.mubr.f32.gmra.mrb[0].mxu0 %v5029
  %v5347 = vpop.f32.mrb[0].mxu0
  %v5348 = vadd.f32 0.0, %v5347
  %v5349 = vpop.f32.mrb[0].mxu0
  %5350 = vmatprep.mubr.f32.mxu0 %v5176
  %5351 = vmatmul.mubr.f32.gmra.mrb[0].mxu0 %v5031
  %v5352 = vpop.f32.mrb[0].mxu0
  %v5353 = vadd.f32 0.0, %v5352
  %v5354 = vpop.f32.mrb[0].mxu0
  %5355 = vmatprep.mubr.f32.mxu0 %v5179
  %5356 = vmatmul.mubr.f32.gmra.mrb[0].mxu0 %v5033
  %v5357 = vpop.f32.mrb[0].mxu0
  %v5358 = vadd.f32 0.0, %v5357
  %v5359 = vpop.f32.mrb[0].mxu0
  %5360 = vmatprep.mubr.f32.mxu0 %v5182
  %5361 = vmatmul.mubr.f32.gmra.mrb[0].mxu0 %v5035
  %v5362 = vpop.f32.mrb[0].mxu0
  %v5363 = vadd.f32 0.0, %v5362
  %v5364 = vpop.f32.mrb[0].mxu0
  %5365 = vmatprep.mubr.f32.mxu0 %v5185
  %5366 = vmatmul.mubr.f32.gmra.mrb[0].mxu0 %v5037
  %v5367 = vpop.f32.mrb[0].mxu0
  %v5368 = vadd.f32 0.0, %v5367
  %v5369 = vpop.f32.mrb[0].mxu0
  %5370 = vmatprep.mubr.f32.mxu0 %v5188
  %5371 = vmatmul.mubr.f32.gmra.mrb[0].mxu0 %v5039
  %v5372 = vpop.f32.mrb[0].mxu0
  %v5373 = vadd.f32 0.0, %v5372
  %v5374 = vpop.f32.mrb[0].mxu0
  %5375 = vmatprep.mubr.f32.mxu0 %v5191
  %5376 = vmatmul.mubr.f32.gmra.mrb[0].mxu0 %v5041
  %v5377 = vpop.f32.mrb[0].mxu0
  %v5378 = vadd.f32 0.0, %v5377
  %v5379 = vpop.f32.mrb[0].mxu0
  %5380 = vmatprep.mubr.f32.mxu0 %v5194
  %5381 = vmatmul.mubr.f32.gmra.mrb[0].mxu0 %v5043
  %v5382 = vpop.f32.mrb[0].mxu0
  %v5383 = vadd.f32 0.0, %v5382
  %v5384 = vpop.f32.mrb[0].mxu0
  %5385 = vmatprep.mubr.f32.mxu0 %v5197
  %5386 = vmatmul.mubr.f32.gmra.mrb[0].mxu0 %v5045
  %v5387 = vpop.f32.mrb[0].mxu0
  %v5388 = vadd.f32 0.0, %v5387
  %v5389 = vpop.f32.mrb[0].mxu0
  %5390 = vmatprep.mubr.f32.mxu0 %v5200
  %5391 = vmatmul.mubr.f32.gmra.mrb[0].mxu0 %v5047
  %v5392 = vpop.f32.mrb[0].mxu0
  %v5393 = vadd.f32 0.0, %v5392
  %v5394 = vpop.f32.mrb[0].mxu0
  %5395 = vmatprep.mubr.f32.mxu0 %v5203
  %5396 = vmatmul.mubr.f32.gmra.mrb[0].mxu0 %v5049
  %v5397 = vpop.f32.mrb[0].mxu0
  %v5398 = vadd.f32 0.0, %v5397
  %v5399 = vpop.f32.mrb[0].mxu0
  %5400 = vmatprep.mubr.f32.mxu0 %v5206
  %5401 = vmatmul.mubr.f32.gmra.mrb[0].mxu0 %v5051
  %v5402 = vpop.f32.mrb[0].mxu0
  %v5403 = vadd.f32 0.0, %v5402
  %v5404 = vpop.f32.mrb[0].mxu0
  %5405 = vmatprep.mubr.f32.mxu0 %v5209
  %5406 = vmatmul.mubr.f32.gmra.mrb[0].mxu0 %v5053
  %v5407 = vpop.f32.mrb[0].mxu0
  %v5408 = vadd.f32 0.0, %v5407
  %v5409 = vpop.f32.mrb[0].mxu0
  %5410 = vdwg.mxu0
  %v5411 = vadd.f32 %v4973, %v5278
  %v5412 = vadd.f32 %v4974, %v5283
  %v5413 = vadd.f32 %v4975, %v5288
  %v5414 = vadd.f32 %v4976, %v5293
  %v5415 = vadd.f32 %v4977, %v5298
  %v5416 = vadd.f32 %v4978, %v5303
  %v5417 = vadd.f32 %v4979, %v5308
  %v5418 = vadd.f32 %v4980, %v5313
  %v5419 = vadd.f32 %v4981, %v5318
  %v5420 = vadd.f32 %v4982, %v5323
  %v5421 = vadd.f32 %v4983, %v5328
  %v5422 = vadd.f32 %v4984, %v5333
  %v5423 = vadd.f32 %v4985, %v5338
  %v5424 = vadd.f32 %v4986, %v5343
  %v5425 = vadd.f32 %v4987, %v5348
  %v5426 = vadd.f32 %v4988, %v5353
  %v5427 = vadd.f32 %v4989, %v5358
  %v5428 = vadd.f32 %v4990, %v5363
  %v5429 = vadd.f32 %v4991, %v5368
  %v5430 = vadd.f32 %v4992, %v5373
  %v5431 = vadd.f32 %v4993, %v5378
  %v5432 = vadd.f32 %v4994, %v5383
  %v5433 = vadd.f32 %v4995, %v5388
  %v5434 = vadd.f32 %v4996, %v5393
  %v5435 = vadd.f32 %v4997, %v5398
  %v5436 = vadd.f32 %v4998, %v5403
  %v5437 = vadd.f32 %v4999, %v5408
  %s5438 = scalar_lea.vmem %s12, 1728
  %v5439 = vld [vmem:[%s5438] sm:$0xff]
  %v5440 = vld [vmem:[%s5438 + $0x8] sm:$0xff]
  %v5441 = vld [vmem:[%s5438 + $0x10] sm:$0xff]
  %v5442 = vld [vmem:[%s5438 + $0x18] sm:$0xff]
  %v5443 = vld [vmem:[%s5438 + $0x20] sm:$0xff]
  %v5444 = vld [vmem:[%s5438 + $0x28] sm:$0xff]
  %v5445 = vld [vmem:[%s5438 + $0x30] sm:$0xff]
  %v5446 = vld [vmem:[%s5438 + $0x38] sm:$0xff]
  %v5447 = vld [vmem:[%s5438 + $0x40] sm:$0xff]
  %v5448 = vld [vmem:[%s5438 + $0x48] sm:$0xff]
  %v5449 = vld [vmem:[%s5438 + $0x50] sm:$0xff]
  %v5450 = vld [vmem:[%s5438 + $0x58] sm:$0xff]
  %v5451 = vld [vmem:[%s5438 + $0x60] sm:$0xff]
  %v5452 = vld [vmem:[%s5438 + $0x68] sm:$0xff]
  %v5453 = vld [vmem:[%s5438 + $0x70] sm:$0xff]
  %v5454 = vld [vmem:[%s5438 + $0x78] sm:$0xff]
  %v5455 = vld [vmem:[%s5438 + $0x80] sm:$0xff]
  %v5456 = vld [vmem:[%s5438 + $0x88] sm:$0xff]
  %v5457 = vld [vmem:[%s5438 + $0x90] sm:$0xff]
  %v5458 = vld [vmem:[%s5438 + $0x98] sm:$0xff]
  %v5459 = vld [vmem:[%s5438 + $0xa0] sm:$0xff]
  %v5460 = vld [vmem:[%s5438 + $0xa8] sm:$0xff]
  %v5461 = vld [vmem:[%s5438 + $0xb0] sm:$0xff]
  %v5462 = vld [vmem:[%s5438 + $0xb8] sm:$0xff]
  %v5463 = vld [vmem:[%s5438 + $0xc0] sm:$0xff]
  %v5464 = vld [vmem:[%s5438 + $0xc8] sm:$0xff]
  %v5465 = vld [vmem:[%s5438 + $0xd0] sm:$0xff]
  %v5466 = vld [vmem:[%s5438 + $0xd8] sm:$0xff]
  %v5467 = vld [vmem:[%s5438 + $0xe0] sm:$0xff]
  %v5468 = vld [vmem:[%s5438 + $0xe8] sm:$0xff]
  %v5469 = vld [vmem:[%s5438 + $0xf0] sm:$0xff]
  %v5470 = vld [vmem:[%s5438 + $0xf8] sm:$0xff]
  %v5471 = vld [vmem:[%s5438 + $0x100] sm:$0xff]
  %v5472 = vld [vmem:[%s5438 + $0x108] sm:$0xff]
  %v5473 = vld [vmem:[%s5438 + $0x110] sm:$0xff]
  %v5474 = vld [vmem:[%s5438 + $0x118] sm:$0xff]
  %v5475 = vld [vmem:[%s5438 + $0x120] sm:$0xff]
  %v5476 = vld [vmem:[%s5438 + $0x128] sm:$0xff]
  %v5477 = vld [vmem:[%s5438 + $0x130] sm:$0xff]
  %v5478 = vld [vmem:[%s5438 + $0x138] sm:$0xff]
  %v5479 = vld [vmem:[%s5438 + $0x140] sm:$0xff]
  %v5480 = vld [vmem:[%s5438 + $0x148] sm:$0xff]
  %v5481 = vld [vmem:[%s5438 + $0x150] sm:$0xff]
  %v5482 = vld [vmem:[%s5438 + $0x158] sm:$0xff]
  %v5483 = vld [vmem:[%s5438 + $0x160] sm:$0xff]
  %v5484 = vld [vmem:[%s5438 + $0x168] sm:$0xff]
  %v5485 = vld [vmem:[%s5438 + $0x170] sm:$0xff]
  %v5486 = vld [vmem:[%s5438 + $0x178] sm:$0xff]
  %v5487 = vld [vmem:[%s5438 + $0x180] sm:$0xff]
  %v5488 = vld [vmem:[%s5438 + $0x188] sm:$0xff]
  %v5489 = vld [vmem:[%s5438 + $0x190] sm:$0xff]
  %v5490 = vld [vmem:[%s5438 + $0x198] sm:$0xff]
  %v5491 = vld [vmem:[%s5438 + $0x1a0] sm:$0xff]
  %v5492 = vld [vmem:[%s5438 + $0x1a8] sm:$0xff]
  %5493 = vrot.lane.b32.xlu0 %v3667, 120
  %v5494 = vpop.permute.xlu0 %5493
  %5495 = vrot.lane.b32.xlu0 %v3672, 120
  %v5496 = vpop.permute.xlu0 %5495
  %5497 = vrot.lane.b32.xlu0 %v3677, 120
  %v5498 = vpop.permute.xlu0 %5497
  %5499 = vrot.lane.b32.xlu0 %v3682, 120
  %v5500 = vpop.permute.xlu0 %5499
  %5501 = vrot.lane.b32.xlu0 %v3687, 120
  %v5502 = vpop.permute.xlu0 %5501
  %5503 = vrot.lane.b32.xlu0 %v3692, 120
  %v5504 = vpop.permute.xlu0 %5503
  %5505 = vrot.lane.b32.xlu0 %v3697, 120
  %v5506 = vpop.permute.xlu0 %5505
  %5507 = vrot.lane.b32.xlu0 %v3702, 120
  %v5508 = vpop.permute.xlu0 %5507
  %5509 = vrot.lane.b32.xlu0 %v3707, 120
  %v5510 = vpop.permute.xlu0 %5509
  %5511 = vrot.lane.b32.xlu0 %v3712, 120
  %v5512 = vpop.permute.xlu0 %5511
  %5513 = vrot.lane.b32.xlu0 %v3717, 120
  %v5514 = vpop.permute.xlu0 %5513
  %5515 = vrot.lane.b32.xlu0 %v3722, 120
  %v5516 = vpop.permute.xlu0 %5515
  %5517 = vrot.lane.b32.xlu0 %v3727, 120
  %v5518 = vpop.permute.xlu0 %5517
  %5519 = vrot.lane.b32.xlu0 %v3732, 120
  %v5520 = vpop.permute.xlu0 %5519
  %5521 = vrot.lane.b32.xlu0 %v3737, 120
  %v5522 = vpop.permute.xlu0 %5521
  %5523 = vrot.lane.b32.xlu0 %v3742, 120
  %v5524 = vpop.permute.xlu0 %5523
  %5525 = vrot.lane.b32.xlu0 %v3747, 120
  %v5526 = vpop.permute.xlu0 %5525
  %5527 = vrot.lane.b32.xlu0 %v3752, 120
  %v5528 = vpop.permute.xlu0 %5527
  %5529 = vrot.lane.b32.xlu0 %v3757, 120
  %v5530 = vpop.permute.xlu0 %5529
  %5531 = vrot.lane.b32.xlu0 %v3762, 120
  %v5532 = vpop.permute.xlu0 %5531
  %5533 = vrot.lane.b32.xlu0 %v3767, 120
  %v5534 = vpop.permute.xlu0 %5533
  %5535 = vrot.lane.b32.xlu0 %v3772, 120
  %v5536 = vpop.permute.xlu0 %5535
  %5537 = vrot.lane.b32.xlu0 %v3777, 120
  %v5538 = vpop.permute.xlu0 %5537
  %5539 = vrot.lane.b32.xlu0 %v3782, 120
  %v5540 = vpop.permute.xlu0 %5539
  %5541 = vrot.lane.b32.xlu0 %v3787, 120
  %v5542 = vpop.permute.xlu0 %5541
  %v5569 = vsel %vm3999, %v5440, 0
  %v5572 = vsel %vm3999, %v5442, 0
  %v5575 = vsel %vm3999, %v5444, 0
  %v5578 = vsel %vm3999, %v5446, 0
  %v5581 = vsel %vm3999, %v5448, 0
  %v5584 = vsel %vm3999, %v5450, 0
  %v5587 = vsel %vm3999, %v5452, 0
  %v5590 = vsel %vm3999, %v5454, 0
  %v5593 = vsel %vm3999, %v5456, 0
  %v5596 = vsel %vm3999, %v5458, 0
  %v5599 = vsel %vm3999, %v5460, 0
  %v5602 = vsel %vm3999, %v5462, 0
  %v5605 = vsel %vm3999, %v5464, 0
  %v5608 = vsel %vm3999, %v5466, 0
  %v5611 = vsel %vm3999, %v5468, 0
  %v5614 = vsel %vm3999, %v5470, 0
  %v5617 = vsel %vm3999, %v5472, 0
  %v5620 = vsel %vm3999, %v5474, 0
  %v5623 = vsel %vm3999, %v5476, 0
  %v5626 = vsel %vm3999, %v5478, 0
  %v5629 = vsel %vm3999, %v5480, 0
  %v5632 = vsel %vm3999, %v5482, 0
  %v5635 = vsel %vm3999, %v5484, 0
  %v5638 = vsel %vm3999, %v5486, 0
  %v5641 = vsel %vm3999, %v5488, 0
  %v5644 = vsel %vm3999, %v5490, 0
  %v5647 = vsel %vm3999, %v5492, 0
  %5649 = vmatprep.subr.mxu0 0.0
  %5650 = vmatpush1.msra.mxu0 %v5494
  %5651 = vmatprep.subr.mxu0 0.0
  %5652 = vmatpush1.msra.mxu0 %v5496
  %5653 = vmatprep.subr.mxu0 0.0
  %5654 = vmatpush1.msra.mxu0 %v5498
  %5655 = vmatprep.subr.mxu0 0.0
  %5656 = vmatpush1.msra.mxu0 %v5500
  %5657 = vmatprep.subr.mxu0 0.0
  %5658 = vmatpush1.msra.mxu0 %v5502
  %5659 = vmatprep.subr.mxu0 0.0
  %5660 = vmatpush1.msra.mxu0 %v5504
  %5661 = vmatprep.subr.mxu0 0.0
  %5662 = vmatpush1.msra.mxu0 %v5506
  %5663 = vmatprep.subr.mxu0 0.0
  %5664 = vmatpush1.msra.mxu0 %v5508
  %5665 = vmatprep.subr.mxu0 0.0
  %5666 = vmatpush1.msra.mxu0 %v5510
  %5667 = vmatprep.subr.mxu0 0.0
  %5668 = vmatpush1.msra.mxu0 %v5512
  %5669 = vmatprep.subr.mxu0 0.0
  %5670 = vmatpush1.msra.mxu0 %v5514
  %5671 = vmatprep.subr.mxu0 0.0
  %5672 = vmatpush1.msra.mxu0 %v5516
  %5673 = vmatprep.subr.mxu0 0.0
  %5674 = vmatpush1.msra.mxu0 %v5518
  %5675 = vmatprep.subr.mxu0 0.0
  %5676 = vmatpush1.msra.mxu0 %v5520
  %5677 = vmatprep.subr.mxu0 0.0
  %5678 = vmatpush1.msra.mxu0 %v5522
  %5679 = vmatprep.subr.mxu0 0.0
  %5680 = vmatpush1.msra.mxu0 %v5524
  %5681 = vmatprep.subr.mxu0 0.0
  %5682 = vmatpush1.msra.mxu0 %v5526
  %5683 = vmatprep.subr.mxu0 0.0
  %5684 = vmatpush1.msra.mxu0 %v5528
  %5685 = vmatprep.subr.mxu0 0.0
  %5686 = vmatpush1.msra.mxu0 %v5530
  %5687 = vmatprep.subr.mxu0 0.0
  %5688 = vmatpush1.msra.mxu0 %v5532
  %5689 = vmatprep.subr.mxu0 0.0
  %5690 = vmatpush1.msra.mxu0 %v5534
  %5691 = vmatprep.subr.mxu0 0.0
  %5692 = vmatpush1.msra.mxu0 %v5536
  %5693 = vmatprep.subr.mxu0 0.0
  %5694 = vmatpush1.msra.mxu0 %v5538
  %5695 = vmatprep.subr.mxu0 0.0
  %5696 = vmatpush1.msra.mxu0 %v5540
  %5697 = vmatprep.subr.mxu0 0.0
  %5698 = vmatpush1.msra.mxu0 %v5542
  %5699 = vmatprep.subr.mxu0 0.0
  %5700 = vmatpush1.msra.mxu0 0.0
  %5701 = vmatprep.subr.mxu0 0.0
  %5702 = vmatpush1.msra.mxu0 0.0
  %5703 = vmatprep.subr.mxu0 0.0
  %5704 = vmatpush1.msra.mxu0 0.0
  %5705 = vmatprep.subr.mxu0 0.0
  %5706 = vmatpush1.msra.mxu0 0.0
  %5707 = vmatprep.subr.mxu0 0.0
  %5708 = vmatpush1.msra.mxu0 0.0
  %5709 = vmatprep.subr.mxu0 0.0
  %5710 = vmatpush1.msra.mxu0 0.0
  %5711 = vmatprep.subr.mxu0 0.0
  %5712 = vmatpush1.msra.mxu0 0.0
  %5713 = vmatprep.mubr.f32.mxu0 %v5569
  %5714 = vmatmul.mubr.f32.gmra.mrb[0].mxu0 %v5439
  %v5715 = vpop.f32.mrb[0].mxu0
  %v5716 = vadd.f32 0.0, %v5715
  %v5717 = vpop.f32.mrb[0].mxu0
  %5718 = vmatprep.mubr.f32.mxu0 %v5572
  %5719 = vmatmul.mubr.f32.gmra.mrb[0].mxu0 %v5441
  %v5720 = vpop.f32.mrb[0].mxu0
  %v5721 = vadd.f32 0.0, %v5720
  %v5722 = vpop.f32.mrb[0].mxu0
  %5723 = vmatprep.mubr.f32.mxu0 %v5575
  %5724 = vmatmul.mubr.f32.gmra.mrb[0].mxu0 %v5443
  %v5725 = vpop.f32.mrb[0].mxu0
  %v5726 = vadd.f32 0.0, %v5725
  %v5727 = vpop.f32.mrb[0].mxu0
  %5728 = vmatprep.mubr.f32.mxu0 %v5578
  %5729 = vmatmul.mubr.f32.gmra.mrb[0].mxu0 %v5445
  %v5730 = vpop.f32.mrb[0].mxu0
  %v5731 = vadd.f32 0.0, %v5730
  %v5732 = vpop.f32.mrb[0].mxu0
  %5733 = vmatprep.mubr.f32.mxu0 %v5581
  %5734 = vmatmul.mubr.f32.gmra.mrb[0].mxu0 %v5447
  %v5735 = vpop.f32.mrb[0].mxu0
  %v5736 = vadd.f32 0.0, %v5735
  %v5737 = vpop.f32.mrb[0].mxu0
  %5738 = vmatprep.mubr.f32.mxu0 %v5584
  %5739 = vmatmul.mubr.f32.gmra.mrb[0].mxu0 %v5449
  %v5740 = vpop.f32.mrb[0].mxu0
  %v5741 = vadd.f32 0.0, %v5740
  %v5742 = vpop.f32.mrb[0].mxu0
  %5743 = vmatprep.mubr.f32.mxu0 %v5587
  %5744 = vmatmul.mubr.f32.gmra.mrb[0].mxu0 %v5451
  %v5745 = vpop.f32.mrb[0].mxu0
  %v5746 = vadd.f32 0.0, %v5745
  %v5747 = vpop.f32.mrb[0].mxu0
  %5748 = vmatprep.mubr.f32.mxu0 %v5590
  %5749 = vmatmul.mubr.f32.gmra.mrb[0].mxu0 %v5453
  %v5750 = vpop.f32.mrb[0].mxu0
  %v5751 = vadd.f32 0.0, %v5750
  %v5752 = vpop.f32.mrb[0].mxu0
  %5753 = vmatprep.mubr.f32.mxu0 %v5593
  %5754 = vmatmul.mubr.f32.gmra.mrb[0].mxu0 %v5455
  %v5755 = vpop.f32.mrb[0].mxu0
  %v5756 = vadd.f32 0.0, %v5755
  %v5757 = vpop.f32.mrb[0].mxu0
  %5758 = vmatprep.mubr.f32.mxu0 %v5596
  %5759 = vmatmul.mubr.f32.gmra.mrb[0].mxu0 %v5457
  %v5760 = vpop.f32.mrb[0].mxu0
  %v5761 = vadd.f32 0.0, %v5760
  %v5762 = vpop.f32.mrb[0].mxu0
  %5763 = vmatprep.mubr.f32.mxu0 %v5599
  %5764 = vmatmul.mubr.f32.gmra.mrb[0].mxu0 %v5459
  %v5765 = vpop.f32.mrb[0].mxu0
  %v5766 = vadd.f32 0.0, %v5765
  %v5767 = vpop.f32.mrb[0].mxu0
  %5768 = vmatprep.mubr.f32.mxu0 %v5602
  %5769 = vmatmul.mubr.f32.gmra.mrb[0].mxu0 %v5461
  %v5770 = vpop.f32.mrb[0].mxu0
  %v5771 = vadd.f32 0.0, %v5770
  %v5772 = vpop.f32.mrb[0].mxu0
  %5773 = vmatprep.mubr.f32.mxu0 %v5605
  %5774 = vmatmul.mubr.f32.gmra.mrb[0].mxu0 %v5463
  %v5775 = vpop.f32.mrb[0].mxu0
  %v5776 = vadd.f32 0.0, %v5775
  %v5777 = vpop.f32.mrb[0].mxu0
  %5778 = vmatprep.mubr.f32.mxu0 %v5608
  %5779 = vmatmul.mubr.f32.gmra.mrb[0].mxu0 %v5465
  %v5780 = vpop.f32.mrb[0].mxu0
  %v5781 = vadd.f32 0.0, %v5780
  %v5782 = vpop.f32.mrb[0].mxu0
  %5783 = vmatprep.mubr.f32.mxu0 %v5611
  %5784 = vmatmul.mubr.f32.gmra.mrb[0].mxu0 %v5467
  %v5785 = vpop.f32.mrb[0].mxu0
  %v5786 = vadd.f32 0.0, %v5785
  %v5787 = vpop.f32.mrb[0].mxu0
  %5788 = vmatprep.mubr.f32.mxu0 %v5614
  %5789 = vmatmul.mubr.f32.gmra.mrb[0].mxu0 %v5469
  %v5790 = vpop.f32.mrb[0].mxu0
  %v5791 = vadd.f32 0.0, %v5790
  %v5792 = vpop.f32.mrb[0].mxu0
  %5793 = vmatprep.mubr.f32.mxu0 %v5617
  %5794 = vmatmul.mubr.f32.gmra.mrb[0].mxu0 %v5471
  %v5795 = vpop.f32.mrb[0].mxu0
  %v5796 = vadd.f32 0.0, %v5795
  %v5797 = vpop.f32.mrb[0].mxu0
  %5798 = vmatprep.mubr.f32.mxu0 %v5620
  %5799 = vmatmul.mubr.f32.gmra.mrb[0].mxu0 %v5473
  %v5800 = vpop.f32.mrb[0].mxu0
  %v5801 = vadd.f32 0.0, %v5800
  %v5802 = vpop.f32.mrb[0].mxu0
  %5803 = vmatprep.mubr.f32.mxu0 %v5623
  %5804 = vmatmul.mubr.f32.gmra.mrb[0].mxu0 %v5475
  %v5805 = vpop.f32.mrb[0].mxu0
  %v5806 = vadd.f32 0.0, %v5805
  %v5807 = vpop.f32.mrb[0].mxu0
  %5808 = vmatprep.mubr.f32.mxu0 %v5626
  %5809 = vmatmul.mubr.f32.gmra.mrb[0].mxu0 %v5477
  %v5810 = vpop.f32.mrb[0].mxu0
  %v5811 = vadd.f32 0.0, %v5810
  %v5812 = vpop.f32.mrb[0].mxu0
  %5813 = vmatprep.mubr.f32.mxu0 %v5629
  %5814 = vmatmul.mubr.f32.gmra.mrb[0].mxu0 %v5479
  %v5815 = vpop.f32.mrb[0].mxu0
  %v5816 = vadd.f32 0.0, %v5815
  %v5817 = vpop.f32.mrb[0].mxu0
  %5818 = vmatprep.mubr.f32.mxu0 %v5632
  %5819 = vmatmul.mubr.f32.gmra.mrb[0].mxu0 %v5481
  %v5820 = vpop.f32.mrb[0].mxu0
  %v5821 = vadd.f32 0.0, %v5820
  %v5822 = vpop.f32.mrb[0].mxu0
  %5823 = vmatprep.mubr.f32.mxu0 %v5635
  %5824 = vmatmul.mubr.f32.gmra.mrb[0].mxu0 %v5483
  %v5825 = vpop.f32.mrb[0].mxu0
  %v5826 = vadd.f32 0.0, %v5825
  %v5827 = vpop.f32.mrb[0].mxu0
  %5828 = vmatprep.mubr.f32.mxu0 %v5638
  %5829 = vmatmul.mubr.f32.gmra.mrb[0].mxu0 %v5485
  %v5830 = vpop.f32.mrb[0].mxu0
  %v5831 = vadd.f32 0.0, %v5830
  %v5832 = vpop.f32.mrb[0].mxu0
  %5833 = vmatprep.mubr.f32.mxu0 %v5641
  %5834 = vmatmul.mubr.f32.gmra.mrb[0].mxu0 %v5487
  %v5835 = vpop.f32.mrb[0].mxu0
  %v5836 = vadd.f32 0.0, %v5835
  %v5837 = vpop.f32.mrb[0].mxu0
  %5838 = vmatprep.mubr.f32.mxu0 %v5644
  %5839 = vmatmul.mubr.f32.gmra.mrb[0].mxu0 %v5489
  %v5840 = vpop.f32.mrb[0].mxu0
  %v5841 = vadd.f32 0.0, %v5840
  %v5842 = vpop.f32.mrb[0].mxu0
  %5843 = vmatprep.mubr.f32.mxu0 %v5647
  %5844 = vmatmul.mubr.f32.gmra.mrb[0].mxu0 %v5491
  %v5845 = vpop.f32.mrb[0].mxu0
  %v5846 = vadd.f32 0.0, %v5845
  %v5847 = vpop.f32.mrb[0].mxu0
  %5848 = vdwg.mxu0
  %v5849 = vadd.f32 %v5411, %v5716
  %v5850 = vadd.f32 %v5412, %v5721
  %v5851 = vadd.f32 %v5413, %v5726
  %v5852 = vadd.f32 %v5414, %v5731
  %v5853 = vadd.f32 %v5415, %v5736
  %v5854 = vadd.f32 %v5416, %v5741
  %v5855 = vadd.f32 %v5417, %v5746
  %v5856 = vadd.f32 %v5418, %v5751
  %v5857 = vadd.f32 %v5419, %v5756
  %v5858 = vadd.f32 %v5420, %v5761
  %v5859 = vadd.f32 %v5421, %v5766
  %v5860 = vadd.f32 %v5422, %v5771
  %v5861 = vadd.f32 %v5423, %v5776
  %v5862 = vadd.f32 %v5424, %v5781
  %v5863 = vadd.f32 %v5425, %v5786
  %v5864 = vadd.f32 %v5426, %v5791
  %v5865 = vadd.f32 %v5427, %v5796
  %v5866 = vadd.f32 %v5428, %v5801
  %v5867 = vadd.f32 %v5429, %v5806
  %v5868 = vadd.f32 %v5430, %v5811
  %v5869 = vadd.f32 %v5431, %v5816
  %v5870 = vadd.f32 %v5432, %v5821
  %v5871 = vadd.f32 %v5433, %v5826
  %v5872 = vadd.f32 %v5434, %v5831
  %v5873 = vadd.f32 %v5435, %v5836
  %v5874 = vadd.f32 %v5436, %v5841
  %v5875 = vadd.f32 %v5437, %v5846
  %v5876 = vld [vmem:[%s13] sm:$0xff]
  %v5877 = vld [vmem:[%s13 + $0x8] sm:$0xff]
  %v5878 = vld [vmem:[%s13 + $0x10] sm:$0xff]
  %v5879 = vld [vmem:[%s13 + $0x18] sm:$0xff]
  %v5880 = vld [vmem:[%s13 + $0x20] sm:$0xff]
  %v5881 = vld [vmem:[%s13 + $0x28] sm:$0xff]
  %v5882 = vld [vmem:[%s13 + $0x30] sm:$0xff]
  %v5883 = vld [vmem:[%s13 + $0x38] sm:$0xff]
  %v5884 = vld [vmem:[%s13 + $0x40] sm:$0xff]
  %v5885 = vld [vmem:[%s13 + $0x48] sm:$0xff]
  %v5886 = vld [vmem:[%s13 + $0x50] sm:$0xff]
  %v5887 = vld [vmem:[%s13 + $0x58] sm:$0xff]
  %v5888 = vld [vmem:[%s13 + $0x60] sm:$0xff]
  %v5889 = vld [vmem:[%s13 + $0x68] sm:$0xff]
  %v5890 = vld [vmem:[%s13 + $0x70] sm:$0xff]
  %v5891 = vld [vmem:[%s13 + $0x78] sm:$0xff]
  %v5892 = vld [vmem:[%s13 + $0x80] sm:$0xff]
  %v5893 = vld [vmem:[%s13 + $0x88] sm:$0xff]
  %v5894 = vld [vmem:[%s13 + $0x90] sm:$0xff]
  %v5895 = vld [vmem:[%s13 + $0x98] sm:$0xff]
  %v5896 = vld [vmem:[%s13 + $0xa0] sm:$0xff]
  %v5897 = vld [vmem:[%s13 + $0xa8] sm:$0xff]
  %v5898 = vld [vmem:[%s13 + $0xb0] sm:$0xff]
  %v5899 = vld [vmem:[%s13 + $0xb8] sm:$0xff]
  %v5900 = vld [vmem:[%s13 + $0xc0] sm:$0xff]
  %v5901 = vld [vmem:[%s13 + $0xc8] sm:$0xff]
  %v5902 = vld [vmem:[%s13 + $0xd0] sm:$0xff]
  %5904 = vset.pattern.permute.xlu0 0
  %5905 = vperm.xlu0 %5904, %v5876
  %v5906 = vpop.permute.xlu0 %5905
  %5909 = vset.pattern.permute.xlu0 0
  %5910 = vperm.xlu0 %5909, %v5877
  %v5911 = vpop.permute.xlu0 %5910
  %5914 = vset.pattern.permute.xlu0 0
  %5915 = vperm.xlu0 %5914, %v5878
  %v5916 = vpop.permute.xlu0 %5915
  %5919 = vset.pattern.permute.xlu0 0
  %5920 = vperm.xlu0 %5919, %v5879
  %v5921 = vpop.permute.xlu0 %5920
  %5924 = vset.pattern.permute.xlu0 0
  %5925 = vperm.xlu0 %5924, %v5880
  %v5926 = vpop.permute.xlu0 %5925
  %5929 = vset.pattern.permute.xlu0 0
  %5930 = vperm.xlu0 %5929, %v5881
  %v5931 = vpop.permute.xlu0 %5930
  %5934 = vset.pattern.permute.xlu0 0
  %5935 = vperm.xlu0 %5934, %v5882
  %v5936 = vpop.permute.xlu0 %5935
  %5939 = vset.pattern.permute.xlu0 0
  %5940 = vperm.xlu0 %5939, %v5883
  %v5941 = vpop.permute.xlu0 %5940
  %5944 = vset.pattern.permute.xlu0 0
  %5945 = vperm.xlu0 %5944, %v5884
  %v5946 = vpop.permute.xlu0 %5945
  %5949 = vset.pattern.permute.xlu0 0
  %5950 = vperm.xlu0 %5949, %v5885
  %v5951 = vpop.permute.xlu0 %5950
  %5954 = vset.pattern.permute.xlu0 0
  %5955 = vperm.xlu0 %5954, %v5886
  %v5956 = vpop.permute.xlu0 %5955
  %5959 = vset.pattern.permute.xlu0 0
  %5960 = vperm.xlu0 %5959, %v5887
  %v5961 = vpop.permute.xlu0 %5960
  %5964 = vset.pattern.permute.xlu0 0
  %5965 = vperm.xlu0 %5964, %v5888
  %v5966 = vpop.permute.xlu0 %5965
  %5969 = vset.pattern.permute.xlu0 0
  %5970 = vperm.xlu0 %5969, %v5889
  %v5971 = vpop.permute.xlu0 %5970
  %5974 = vset.pattern.permute.xlu0 0
  %5975 = vperm.xlu0 %5974, %v5890
  %v5976 = vpop.permute.xlu0 %5975
  %5979 = vset.pattern.permute.xlu0 0
  %5980 = vperm.xlu0 %5979, %v5891
  %v5981 = vpop.permute.xlu0 %5980
  %5984 = vset.pattern.permute.xlu0 0
  %5985 = vperm.xlu0 %5984, %v5892
  %v5986 = vpop.permute.xlu0 %5985
  %5989 = vset.pattern.permute.xlu0 0
  %5990 = vperm.xlu0 %5989, %v5893
  %v5991 = vpop.permute.xlu0 %5990
  %5994 = vset.pattern.permute.xlu0 0
  %5995 = vperm.xlu0 %5994, %v5894
  %v5996 = vpop.permute.xlu0 %5995
  %5999 = vset.pattern.permute.xlu0 0
  %6000 = vperm.xlu0 %5999, %v5895
  %v6001 = vpop.permute.xlu0 %6000
  %6004 = vset.pattern.permute.xlu0 0
  %6005 = vperm.xlu0 %6004, %v5896
  %v6006 = vpop.permute.xlu0 %6005
  %6009 = vset.pattern.permute.xlu0 0
  %6010 = vperm.xlu0 %6009, %v5897
  %v6011 = vpop.permute.xlu0 %6010
  %6014 = vset.pattern.permute.xlu0 0
  %6015 = vperm.xlu0 %6014, %v5898
  %v6016 = vpop.permute.xlu0 %6015
  %6019 = vset.pattern.permute.xlu0 0
  %6020 = vperm.xlu0 %6019, %v5899
  %v6021 = vpop.permute.xlu0 %6020
  %6024 = vset.pattern.permute.xlu0 0
  %6025 = vperm.xlu0 %6024, %v5900
  %v6026 = vpop.permute.xlu0 %6025
  %6029 = vset.pattern.permute.xlu0 0
  %6030 = vperm.xlu0 %6029, %v5901
  %v6031 = vpop.permute.xlu0 %6030
  %6034 = vset.pattern.permute.xlu0 0
  %6035 = vperm.xlu0 %6034, %v5902
  %v6036 = vpop.permute.xlu0 %6035
  %v6038 = vadd.f32 %v5849, %v5906
  %v6039 = vadd.f32 %v5850, %v5911
  %v6040 = vadd.f32 %v5851, %v5916
  %v6041 = vadd.f32 %v5852, %v5921
  %v6042 = vadd.f32 %v5853, %v5926
  %v6043 = vadd.f32 %v5854, %v5931
  %v6044 = vadd.f32 %v5855, %v5936
  %v6045 = vadd.f32 %v5856, %v5941
  %v6046 = vadd.f32 %v5857, %v5946
  %v6047 = vadd.f32 %v5858, %v5951
  %v6048 = vadd.f32 %v5859, %v5956
  %v6049 = vadd.f32 %v5860, %v5961
  %v6050 = vadd.f32 %v5861, %v5966
  %v6051 = vadd.f32 %v5862, %v5971
  %v6052 = vadd.f32 %v5863, %v5976
  %v6053 = vadd.f32 %v5864, %v5981
  %v6054 = vadd.f32 %v5865, %v5986
  %v6055 = vadd.f32 %v5866, %v5991
  %v6056 = vadd.f32 %v5867, %v5996
  %v6057 = vadd.f32 %v5868, %v6001
  %v6058 = vadd.f32 %v5869, %v6006
  %v6059 = vadd.f32 %v5870, %v6011
  %v6060 = vadd.f32 %v5871, %v6016
  %v6061 = vadd.f32 %v5872, %v6021
  %v6062 = vadd.f32 %v5873, %v6026
  %v6063 = vadd.f32 %v5874, %v6031
  %v6064 = vadd.f32 %v5875, %v6036
  %v6065 = vmax.f32 %v6038, 0.0
  %v6066 = vmax.f32 %v6039, 0.0
  %v6067 = vmax.f32 %v6040, 0.0
  %v6068 = vmax.f32 %v6041, 0.0
  %v6069 = vmax.f32 %v6042, 0.0
  %v6070 = vmax.f32 %v6043, 0.0
  %v6071 = vmax.f32 %v6044, 0.0
  %v6072 = vmax.f32 %v6045, 0.0
  %v6073 = vmax.f32 %v6046, 0.0
  %v6074 = vmax.f32 %v6047, 0.0
  %v6075 = vmax.f32 %v6048, 0.0
  %v6076 = vmax.f32 %v6049, 0.0
  %v6077 = vmax.f32 %v6050, 0.0
  %v6078 = vmax.f32 %v6051, 0.0
  %v6079 = vmax.f32 %v6052, 0.0
  %v6080 = vmax.f32 %v6053, 0.0
  %v6081 = vmax.f32 %v6054, 0.0
  %v6082 = vmax.f32 %v6055, 0.0
  %v6083 = vmax.f32 %v6056, 0.0
  %v6084 = vmax.f32 %v6057, 0.0
  %v6085 = vmax.f32 %v6058, 0.0
  %v6086 = vmax.f32 %v6059, 0.0
  %v6087 = vmax.f32 %v6060, 0.0
  %v6088 = vmax.f32 %v6061, 0.0
  %v6089 = vmax.f32 %v6062, 0.0
  %v6090 = vmax.f32 %v6063, 0.0
  %v6091 = vmax.f32 %v6064, 0.0
  %v6092 = vld [vmem:[%s14] sm:$0xff]
  %v6093 = vld [vmem:[%s14 + $0x8] sm:$0xff]
  %v6094 = vld [vmem:[%s14 + $0x10] sm:$0xff]
  %v6095 = vld [vmem:[%s14 + $0x18] sm:$0xff]
  %v6096 = vld [vmem:[%s14 + $0x20] sm:$0xff]
  %v6097 = vld [vmem:[%s14 + $0x28] sm:$0xff]
  %v6098 = vld [vmem:[%s14 + $0x30] sm:$0x3f]
  %vm6099 = vcmask 441344
  %v6101 = vsel %vm6099, %v6065, 0
  %v6104 = vsel %vm6099, %v6066, 0
  %v6107 = vsel %vm6099, %v6067, 0
  %v6110 = vsel %vm6099, %v6068, 0
  %v6113 = vsel %vm6099, %v6069, 0
  %v6116 = vsel %vm6099, %v6070, 0
  %v6119 = vsel %vm6099, %v6071, 0
  %v6122 = vsel %vm6099, %v6072, 0
  %v6125 = vsel %vm6099, %v6073, 0
  %v6128 = vsel %vm6099, %v6074, 0
  %v6131 = vsel %vm6099, %v6075, 0
  %v6134 = vsel %vm6099, %v6076, 0
  %v6137 = vsel %vm6099, %v6077, 0
  %v6140 = vsel %vm6099, %v6078, 0
  %v6143 = vsel %vm6099, %v6079, 0
  %v6146 = vsel %vm6099, %v6080, 0
  %v6149 = vsel %vm6099, %v6081, 0
  %v6152 = vsel %vm6099, %v6082, 0
  %v6155 = vsel %vm6099, %v6083, 0
  %v6158 = vsel %vm6099, %v6084, 0
  %v6161 = vsel %vm6099, %v6085, 0
  %v6164 = vsel %vm6099, %v6086, 0
  %v6167 = vsel %vm6099, %v6087, 0
  %v6170 = vsel %vm6099, %v6088, 0
  %v6173 = vsel %vm6099, %v6089, 0
  %v6176 = vsel %vm6099, %v6090, 0
  %v6179 = vsel %vm6099, %v6091, 0
  %vm6181 = vcmask 1045504
  %v6183 = vsel %vm6181, %v6098, 0
  %6185 = vmatprep.subr.mxu0 0.0
  %6186 = vmatpush1.msra.mxu0 %v6092
  %6187 = vmatprep.subr.mxu0 0.0
  %6188 = vmatpush1.msra.mxu0 %v6093
  %6189 = vmatprep.subr.mxu0 0.0
  %6190 = vmatpush1.msra.mxu0 %v6094
  %6191 = vmatprep.subr.mxu0 0.0
  %6192 = vmatpush1.msra.mxu0 %v6095
  %6193 = vmatprep.subr.mxu0 0.0
  %6194 = vmatpush1.msra.mxu0 %v6096
  %6195 = vmatprep.subr.mxu0 0.0
  %6196 = vmatpush1.msra.mxu0 %v6097
  %6197 = vmatprep.subr.mxu0 0.0
  %6198 = vmatpush1.msra.mxu0 %v6183
  %6199 = vmatprep.subr.mxu0 0.0
  %6200 = vmatpush1.msra.mxu0 0.0
  %6201 = vmatprep.subr.mxu0 0.0
  %6202 = vmatpush1.msra.mxu0 0.0
  %6203 = vmatprep.subr.mxu0 0.0
  %6204 = vmatpush1.msra.mxu0 0.0
  %6205 = vmatprep.subr.mxu0 0.0
  %6206 = vmatpush1.msra.mxu0 0.0
  %6207 = vmatprep.subr.mxu0 0.0
  %6208 = vmatpush1.msra.mxu0 0.0
  %6209 = vmatprep.subr.mxu0 0.0
  %6210 = vmatpush1.msra.mxu0 0.0
  %6211 = vmatprep.subr.mxu0 0.0
  %6212 = vmatpush1.msra.mxu0 0.0
  %6213 = vmatprep.subr.mxu0 0.0
  %6214 = vmatpush1.msra.mxu0 0.0
  %6215 = vmatprep.subr.mxu0 0.0
  %6216 = vmatpush1.msra.mxu0 0.0
  %6217 = vmatprep.subr.mxu0 0.0
  %6218 = vmatpush1.msra.mxu0 0.0
  %6219 = vmatprep.subr.mxu0 0.0
  %6220 = vmatpush1.msra.mxu0 0.0
  %6221 = vmatprep.subr.mxu0 0.0
  %6222 = vmatpush1.msra.mxu0 0.0
  %6223 = vmatprep.subr.mxu0 0.0
  %6224 = vmatpush1.msra.mxu0 0.0
  %6225 = vmatprep.subr.mxu0 0.0
  %6226 = vmatpush1.msra.mxu0 0.0
  %6227 = vmatprep.subr.mxu0 0.0
  %6228 = vmatpush1.msra.mxu0 0.0
  %6229 = vmatprep.subr.mxu0 0.0
  %6230 = vmatpush1.msra.mxu0 0.0
  %6231 = vmatprep.subr.mxu0 0.0
  %6232 = vmatpush1.msra.mxu0 0.0
  %6233 = vmatprep.subr.mxu0 0.0
  %6234 = vmatpush1.msra.mxu0 0.0
  %6235 = vmatprep.subr.mxu0 0.0
  %6236 = vmatpush1.msra.mxu0 0.0
  %6237 = vmatprep.subr.mxu0 0.0
  %6238 = vmatpush1.msra.mxu0 0.0
  %6239 = vmatprep.subr.mxu0 0.0
  %6240 = vmatpush1.msra.mxu0 0.0
  %6241 = vmatprep.subr.mxu0 0.0
  %6242 = vmatpush1.msra.mxu0 0.0
  %6243 = vmatprep.subr.mxu0 0.0
  %6244 = vmatpush1.msra.mxu0 0.0
  %6245 = vmatprep.subr.mxu0 0.0
  %6246 = vmatpush1.msra.mxu0 0.0
  %6247 = vmatprep.subr.mxu0 0.0
  %6248 = vmatpush1.msra.mxu0 0.0
  %6249 = vmatprep.mubr.f32.mxu0 0.0
  %6250 = vmatmul.mubr.f32.gmra.mrb[0].mxu0 %v6101
  %v6251 = vpop.f32.mrb[0].mxu0
  %v6252 = vadd.f32 0.0, %v6251
  %v6253 = vpop.f32.mrb[0].mxu0
  %6254 = vmatprep.mubr.f32.mxu0 0.0
  %6255 = vmatmul.mubr.f32.gmra.mrb[0].mxu0 %v6104
  %v6256 = vpop.f32.mrb[0].mxu0
  %v6257 = vadd.f32 0.0, %v6256
  %v6258 = vpop.f32.mrb[0].mxu0
  %6259 = vmatprep.mubr.f32.mxu0 0.0
  %6260 = vmatmul.mubr.f32.gmra.mrb[0].mxu0 %v6107
  %v6261 = vpop.f32.mrb[0].mxu0
  %v6262 = vadd.f32 0.0, %v6261
  %v6263 = vpop.f32.mrb[0].mxu0
  %6264 = vmatprep.mubr.f32.mxu0 0.0
  %6265 = vmatmul.mubr.f32.gmra.mrb[0].mxu0 %v6110
  %v6266 = vpop.f32.mrb[0].mxu0
  %v6267 = vadd.f32 0.0, %v6266
  %v6268 = vpop.f32.mrb[0].mxu0
  %6269 = vmatprep.mubr.f32.mxu0 0.0
  %6270 = vmatmul.mubr.f32.gmra.mrb[0].mxu0 %v6113
  %v6271 = vpop.f32.mrb[0].mxu0
  %v6272 = vadd.f32 0.0, %v6271
  %v6273 = vpop.f32.mrb[0].mxu0
  %6274 = vmatprep.mubr.f32.mxu0 0.0
  %6275 = vmatmul.mubr.f32.gmra.mrb[0].mxu0 %v6116
  %v6276 = vpop.f32.mrb[0].mxu0
  %v6277 = vadd.f32 0.0, %v6276
  %v6278 = vpop.f32.mrb[0].mxu0
  %6279 = vmatprep.mubr.f32.mxu0 0.0
  %6280 = vmatmul.mubr.f32.gmra.mrb[0].mxu0 %v6119
  %v6281 = vpop.f32.mrb[0].mxu0
  %v6282 = vadd.f32 0.0, %v6281
  %v6283 = vpop.f32.mrb[0].mxu0
  %6284 = vmatprep.mubr.f32.mxu0 0.0
  %6285 = vmatmul.mubr.f32.gmra.mrb[0].mxu0 %v6122
  %v6286 = vpop.f32.mrb[0].mxu0
  %v6287 = vadd.f32 0.0, %v6286
  %v6288 = vpop.f32.mrb[0].mxu0
  %6289 = vmatprep.mubr.f32.mxu0 0.0
  %6290 = vmatmul.mubr.f32.gmra.mrb[0].mxu0 %v6125
  %v6291 = vpop.f32.mrb[0].mxu0
  %v6292 = vadd.f32 0.0, %v6291
  %v6293 = vpop.f32.mrb[0].mxu0
  %6294 = vmatprep.mubr.f32.mxu0 0.0
  %6295 = vmatmul.mubr.f32.gmra.mrb[0].mxu0 %v6128
  %v6296 = vpop.f32.mrb[0].mxu0
  %v6297 = vadd.f32 0.0, %v6296
  %v6298 = vpop.f32.mrb[0].mxu0
  %6299 = vmatprep.mubr.f32.mxu0 0.0
  %6300 = vmatmul.mubr.f32.gmra.mrb[0].mxu0 %v6131
  %v6301 = vpop.f32.mrb[0].mxu0
  %v6302 = vadd.f32 0.0, %v6301
  %v6303 = vpop.f32.mrb[0].mxu0
  %6304 = vmatprep.mubr.f32.mxu0 0.0
  %6305 = vmatmul.mubr.f32.gmra.mrb[0].mxu0 %v6134
  %v6306 = vpop.f32.mrb[0].mxu0
  %v6307 = vadd.f32 0.0, %v6306
  %v6308 = vpop.f32.mrb[0].mxu0
  %6309 = vmatprep.mubr.f32.mxu0 0.0
  %6310 = vmatmul.mubr.f32.gmra.mrb[0].mxu0 %v6137
  %v6311 = vpop.f32.mrb[0].mxu0
  %v6312 = vadd.f32 0.0, %v6311
  %v6313 = vpop.f32.mrb[0].mxu0
  %6314 = vmatprep.mubr.f32.mxu0 0.0
  %6315 = vmatmul.mubr.f32.gmra.mrb[0].mxu0 %v6140
  %v6316 = vpop.f32.mrb[0].mxu0
  %v6317 = vadd.f32 0.0, %v6316
  %v6318 = vpop.f32.mrb[0].mxu0
  %6319 = vmatprep.mubr.f32.mxu0 0.0
  %6320 = vmatmul.mubr.f32.gmra.mrb[0].mxu0 %v6143
  %v6321 = vpop.f32.mrb[0].mxu0
  %v6322 = vadd.f32 0.0, %v6321
  %v6323 = vpop.f32.mrb[0].mxu0
  %6324 = vmatprep.mubr.f32.mxu0 0.0
  %6325 = vmatmul.mubr.f32.gmra.mrb[0].mxu0 %v6146
  %v6326 = vpop.f32.mrb[0].mxu0
  %v6327 = vadd.f32 0.0, %v6326
  %v6328 = vpop.f32.mrb[0].mxu0
  %6329 = vmatprep.mubr.f32.mxu0 0.0
  %6330 = vmatmul.mubr.f32.gmra.mrb[0].mxu0 %v6149
  %v6331 = vpop.f32.mrb[0].mxu0
  %v6332 = vadd.f32 0.0, %v6331
  %v6333 = vpop.f32.mrb[0].mxu0
  %6334 = vmatprep.mubr.f32.mxu0 0.0
  %6335 = vmatmul.mubr.f32.gmra.mrb[0].mxu0 %v6152
  %v6336 = vpop.f32.mrb[0].mxu0
  %v6337 = vadd.f32 0.0, %v6336
  %v6338 = vpop.f32.mrb[0].mxu0
  %6339 = vmatprep.mubr.f32.mxu0 0.0
  %6340 = vmatmul.mubr.f32.gmra.mrb[0].mxu0 %v6155
  %v6341 = vpop.f32.mrb[0].mxu0
  %v6342 = vadd.f32 0.0, %v6341
  %v6343 = vpop.f32.mrb[0].mxu0
  %6344 = vmatprep.mubr.f32.mxu0 0.0
  %6345 = vmatmul.mubr.f32.gmra.mrb[0].mxu0 %v6158
  %v6346 = vpop.f32.mrb[0].mxu0
  %v6347 = vadd.f32 0.0, %v6346
  %v6348 = vpop.f32.mrb[0].mxu0
  %6349 = vmatprep.mubr.f32.mxu0 0.0
  %6350 = vmatmul.mubr.f32.gmra.mrb[0].mxu0 %v6161
  %v6351 = vpop.f32.mrb[0].mxu0
  %v6352 = vadd.f32 0.0, %v6351
  %v6353 = vpop.f32.mrb[0].mxu0
  %6354 = vmatprep.mubr.f32.mxu0 0.0
  %6355 = vmatmul.mubr.f32.gmra.mrb[0].mxu0 %v6164
  %v6356 = vpop.f32.mrb[0].mxu0
  %v6357 = vadd.f32 0.0, %v6356
  %v6358 = vpop.f32.mrb[0].mxu0
  %6359 = vmatprep.mubr.f32.mxu0 0.0
  %6360 = vmatmul.mubr.f32.gmra.mrb[0].mxu0 %v6167
  %v6361 = vpop.f32.mrb[0].mxu0
  %v6362 = vadd.f32 0.0, %v6361
  %v6363 = vpop.f32.mrb[0].mxu0
  %6364 = vmatprep.mubr.f32.mxu0 0.0
  %6365 = vmatmul.mubr.f32.gmra.mrb[0].mxu0 %v6170
  %v6366 = vpop.f32.mrb[0].mxu0
  %v6367 = vadd.f32 0.0, %v6366
  %v6368 = vpop.f32.mrb[0].mxu0
  %6369 = vmatprep.mubr.f32.mxu0 0.0
  %6370 = vmatmul.mubr.f32.gmra.mrb[0].mxu0 %v6173
  %v6371 = vpop.f32.mrb[0].mxu0
  %v6372 = vadd.f32 0.0, %v6371
  %v6373 = vpop.f32.mrb[0].mxu0
  %6374 = vmatprep.mubr.f32.mxu0 0.0
  %6375 = vmatmul.mubr.f32.gmra.mrb[0].mxu0 %v6176
  %v6376 = vpop.f32.mrb[0].mxu0
  %v6377 = vadd.f32 0.0, %v6376
  %v6378 = vpop.f32.mrb[0].mxu0
  %6379 = vmatprep.mubr.f32.mxu0 0.0
  %6380 = vmatmul.mubr.f32.gmra.mrb[0].mxu0 %v6179
  %v6381 = vpop.f32.mrb[0].mxu0
  %v6382 = vadd.f32 0.0, %v6381
  %v6383 = vpop.f32.mrb[0].mxu0
  %6384 = vdwg.mxu0
  %v6385 = vld [vmem:[%s15] sm:$0xff]
  %v6386 = vld [vmem:[%s15 + $0x8] sm:$0xff]
  %v6387 = vld [vmem:[%s15 + $0x10] sm:$0xff]
  %v6388 = vld [vmem:[%s15 + $0x18] sm:$0xff]
  %v6389 = vld [vmem:[%s15 + $0x20] sm:$0xff]
  %v6390 = vld [vmem:[%s15 + $0x28] sm:$0xff]
  %v6391 = vld [vmem:[%s15 + $0x30] sm:$0xff]
  %v6392 = vld [vmem:[%s15 + $0x38] sm:$0xff]
  %v6393 = vld [vmem:[%s15 + $0x40] sm:$0xff]
  %v6394 = vld [vmem:[%s15 + $0x48] sm:$0xff]
  %v6395 = vld [vmem:[%s15 + $0x50] sm:$0xff]
  %v6396 = vld [vmem:[%s15 + $0x58] sm:$0xff]
  %v6397 = vld [vmem:[%s15 + $0x60] sm:$0xff]
  %v6398 = vld [vmem:[%s15 + $0x68] sm:$0xff]
  %v6399 = vld [vmem:[%s15 + $0x70] sm:$0xff]
  %v6400 = vld [vmem:[%s15 + $0x78] sm:$0xff]
  %v6401 = vld [vmem:[%s15 + $0x80] sm:$0xff]
  %v6402 = vld [vmem:[%s15 + $0x88] sm:$0xff]
  %v6403 = vld [vmem:[%s15 + $0x90] sm:$0xff]
  %v6404 = vld [vmem:[%s15 + $0x98] sm:$0xff]
  %v6405 = vld [vmem:[%s15 + $0xa0] sm:$0xff]
  %v6406 = vld [vmem:[%s15 + $0xa8] sm:$0xff]
  %v6407 = vld [vmem:[%s15 + $0xb0] sm:$0xff]
  %v6408 = vld [vmem:[%s15 + $0xb8] sm:$0xff]
  %v6409 = vld [vmem:[%s15 + $0xc0] sm:$0xff]
  %v6410 = vld [vmem:[%s15 + $0xc8] sm:$0xff]
  %v6411 = vld [vmem:[%s15 + $0xd0] sm:$0xff]
  %v6412 = vld [vmem:[%s15 + $0xd8] sm:$0xff]
  %v6413 = vld [vmem:[%s15 + $0xe0] sm:$0xff]
  %v6414 = vld [vmem:[%s15 + $0xe8] sm:$0xff]
  %v6415 = vld [vmem:[%s15 + $0xf0] sm:$0xff]
  %v6416 = vld [vmem:[%s15 + $0xf8] sm:$0xff]
  %v6417 = vld [vmem:[%s15 + $0x100] sm:$0xff]
  %v6418 = vld [vmem:[%s15 + $0x108] sm:$0xff]
  %v6419 = vld [vmem:[%s15 + $0x110] sm:$0xff]
  %v6420 = vld [vmem:[%s15 + $0x118] sm:$0xff]
  %v6421 = vld [vmem:[%s15 + $0x120] sm:$0xff]
  %v6422 = vld [vmem:[%s15 + $0x128] sm:$0xff]
  %v6423 = vld [vmem:[%s15 + $0x130] sm:$0xff]
  %v6424 = vld [vmem:[%s15 + $0x138] sm:$0xff]
  %v6425 = vld [vmem:[%s15 + $0x140] sm:$0xff]
  %v6426 = vld [vmem:[%s15 + $0x148] sm:$0xff]
  %v6427 = vld [vmem:[%s15 + $0x150] sm:$0xff]
  %v6428 = vld [vmem:[%s15 + $0x158] sm:$0xff]
  %v6429 = vld [vmem:[%s15 + $0x160] sm:$0xff]
  %v6430 = vld [vmem:[%s15 + $0x168] sm:$0xff]
  %v6431 = vld [vmem:[%s15 + $0x170] sm:$0xff]
  %v6432 = vld [vmem:[%s15 + $0x178] sm:$0xff]
  %v6433 = vld [vmem:[%s15 + $0x180] sm:$0xff]
  %v6434 = vld [vmem:[%s15 + $0x188] sm:$0xff]
  %v6435 = vld [vmem:[%s15 + $0x190] sm:$0xff]
  %v6436 = vld [vmem:[%s15 + $0x198] sm:$0xff]
  %v6437 = vld [vmem:[%s15 + $0x1a0] sm:$0xff]
  %v6438 = vld [vmem:[%s15 + $0x1a8] sm:$0xff]
  %v6439 = vld [vmem:[%s15 + $0x1b0] sm:$0xff]
  %v6440 = vld [vmem:[%s15 + $0x1b8] sm:$0xff]
  %s6441 = scalar_lea.vmem %s15, 448
  %v6442 = vld [vmem:[%s6441] sm:$0xff]
  %v6443 = vld [vmem:[%s6441 + $0x8] sm:$0xff]
  %v6444 = vld [vmem:[%s6441 + $0x10] sm:$0xff]
  %v6445 = vld [vmem:[%s6441 + $0x18] sm:$0xff]
  %v6446 = vld [vmem:[%s6441 + $0x20] sm:$0xff]
  %v6447 = vld [vmem:[%s6441 + $0x28] sm:$0xff]
  %v6448 = vld [vmem:[%s6441 + $0x30] sm:$0xff]
  %v6449 = vld [vmem:[%s6441 + $0x38] sm:$0xff]
  %v6450 = vld [vmem:[%s6441 + $0x40] sm:$0xff]
  %v6451 = vld [vmem:[%s6441 + $0x48] sm:$0xff]
  %v6452 = vld [vmem:[%s6441 + $0x50] sm:$0xff]
  %v6453 = vld [vmem:[%s6441 + $0x58] sm:$0xff]
  %v6454 = vld [vmem:[%s6441 + $0x60] sm:$0xff]
  %v6455 = vld [vmem:[%s6441 + $0x68] sm:$0xff]
  %v6456 = vld [vmem:[%s6441 + $0x70] sm:$0xff]
  %v6457 = vld [vmem:[%s6441 + $0x78] sm:$0xff]
  %v6458 = vld [vmem:[%s6441 + $0x80] sm:$0xff]
  %v6459 = vld [vmem:[%s6441 + $0x88] sm:$0xff]
  %v6460 = vld [vmem:[%s6441 + $0x90] sm:$0xff]
  %v6461 = vld [vmem:[%s6441 + $0x98] sm:$0xff]
  %v6462 = vld [vmem:[%s6441 + $0xa0] sm:$0xff]
  %v6463 = vld [vmem:[%s6441 + $0xa8] sm:$0xff]
  %v6464 = vld [vmem:[%s6441 + $0xb0] sm:$0xff]
  %v6465 = vld [vmem:[%s6441 + $0xb8] sm:$0xff]
  %v6466 = vld [vmem:[%s6441 + $0xc0] sm:$0xff]
  %v6467 = vld [vmem:[%s6441 + $0xc8] sm:$0xff]
  %v6468 = vld [vmem:[%s6441 + $0xd0] sm:$0xff]
  %v6469 = vld [vmem:[%s6441 + $0xd8] sm:$0xff]
  %v6470 = vld [vmem:[%s6441 + $0xe0] sm:$0xff]
  %v6471 = vld [vmem:[%s6441 + $0xe8] sm:$0xff]
  %v6472 = vld [vmem:[%s6441 + $0xf0] sm:$0xff]
  %v6473 = vld [vmem:[%s6441 + $0xf8] sm:$0xff]
  %v6474 = vld [vmem:[%s6441 + $0x100] sm:$0xff]
  %v6475 = vld [vmem:[%s6441 + $0x108] sm:$0xff]
  %v6476 = vld [vmem:[%s6441 + $0x110] sm:$0xff]
  %v6477 = vld [vmem:[%s6441 + $0x118] sm:$0xff]
  %v6478 = vld [vmem:[%s6441 + $0x120] sm:$0xff]
  %v6479 = vld [vmem:[%s6441 + $0x128] sm:$0xff]
  %v6480 = vld [vmem:[%s6441 + $0x130] sm:$0xff]
  %v6481 = vld [vmem:[%s6441 + $0x138] sm:$0xff]
  %v6482 = vld [vmem:[%s6441 + $0x140] sm:$0xff]
  %v6483 = vld [vmem:[%s6441 + $0x148] sm:$0xff]
  %v6484 = vld [vmem:[%s6441 + $0x150] sm:$0xff]
  %v6485 = vld [vmem:[%s6441 + $0x158] sm:$0xff]
  %v6486 = vld [vmem:[%s6441 + $0x160] sm:$0xff]
  %v6487 = vld [vmem:[%s6441 + $0x168] sm:$0xff]
  %v6488 = vld [vmem:[%s6441 + $0x170] sm:$0xff]
  %v6489 = vld [vmem:[%s6441 + $0x178] sm:$0xff]
  %v6490 = vld [vmem:[%s6441 + $0x180] sm:$0xff]
  %v6491 = vld [vmem:[%s6441 + $0x188] sm:$0xff]
  %v6492 = vld [vmem:[%s6441 + $0x190] sm:$0xff]
  %v6493 = vld [vmem:[%s6441 + $0x198] sm:$0xff]
  %v6494 = vld [vmem:[%s6441 + $0x1a0] sm:$0xff]
  %v6495 = vld [vmem:[%s6441 + $0x1a8] sm:$0xff]
  %v6496 = vld [vmem:[%s6441 + $0x1b0] sm:$0xff]
  %v6497 = vld [vmem:[%s6441 + $0x1b8] sm:$0xff]
  %6525 = vrot.lane.b32.xlu0 %v6252, 126
  %v6526 = vpop.permute.xlu0 %6525
  %6527 = vrot.lane.b32.xlu0 %v6257, 126
  %v6528 = vpop.permute.xlu0 %6527
  %6529 = vrot.lane.b32.xlu0 %v6262, 126
  %v6530 = vpop.permute.xlu0 %6529
  %6531 = vrot.lane.b32.xlu0 %v6267, 126
  %v6532 = vpop.permute.xlu0 %6531
  %6533 = vrot.lane.b32.xlu0 %v6272, 126
  %v6534 = vpop.permute.xlu0 %6533
  %6535 = vrot.lane.b32.xlu0 %v6277, 126
  %v6536 = vpop.permute.xlu0 %6535
  %6537 = vrot.lane.b32.xlu0 %v6282, 126
  %v6538 = vpop.permute.xlu0 %6537
  %6539 = vrot.lane.b32.xlu0 %v6287, 126
  %v6540 = vpop.permute.xlu0 %6539
  %6541 = vrot.lane.b32.xlu0 %v6292, 126
  %v6542 = vpop.permute.xlu0 %6541
  %6543 = vrot.lane.b32.xlu0 %v6297, 126
  %v6544 = vpop.permute.xlu0 %6543
  %6545 = vrot.lane.b32.xlu0 %v6302, 126
  %v6546 = vpop.permute.xlu0 %6545
  %6547 = vrot.lane.b32.xlu0 %v6307, 126
  %v6548 = vpop.permute.xlu0 %6547
  %6549 = vrot.lane.b32.xlu0 %v6312, 126
  %v6550 = vpop.permute.xlu0 %6549
  %6551 = vrot.lane.b32.xlu0 %v6317, 126
  %v6552 = vpop.permute.xlu0 %6551
  %6553 = vrot.lane.b32.xlu0 %v6322, 126
  %v6554 = vpop.permute.xlu0 %6553
  %6555 = vrot.lane.b32.xlu0 %v6327, 126
  %v6556 = vpop.permute.xlu0 %6555
  %6557 = vrot.lane.b32.xlu0 %v6332, 126
  %v6558 = vpop.permute.xlu0 %6557
  %6559 = vrot.lane.b32.xlu0 %v6337, 126
  %v6560 = vpop.permute.xlu0 %6559
  %6561 = vrot.lane.b32.xlu0 %v6342, 126
  %v6562 = vpop.permute.xlu0 %6561
  %6563 = vrot.lane.b32.xlu0 %v6347, 126
  %v6564 = vpop.permute.xlu0 %6563
  %6565 = vrot.lane.b32.xlu0 %v6352, 126
  %v6566 = vpop.permute.xlu0 %6565
  %6567 = vrot.lane.b32.xlu0 %v6357, 126
  %v6568 = vpop.permute.xlu0 %6567
  %6569 = vrot.lane.b32.xlu0 %v6362, 126
  %v6570 = vpop.permute.xlu0 %6569
  %6571 = vrot.lane.b32.xlu0 %v6367, 126
  %v6572 = vpop.permute.xlu0 %6571
  %6573 = vrot.lane.b32.xlu0 %v6372, 126
  %v6574 = vpop.permute.xlu0 %6573
  %6575 = vrot.lane.b32.xlu0 %v6377, 126
  %v6576 = vpop.permute.xlu0 %6575
  %6577 = vrot.lane.b32.xlu0 %v6382, 126
  %v6578 = vpop.permute.xlu0 %6577
  %vm6606 = vcmask 719872
  %v6608 = vsel %vm6606, %v6443, 0
  %v6611 = vsel %vm6606, %v6445, 0
  %v6614 = vsel %vm6606, %v6447, 0
  %v6617 = vsel %vm6606, %v6449, 0
  %v6620 = vsel %vm6606, %v6451, 0
  %v6623 = vsel %vm6606, %v6453, 0
  %v6626 = vsel %vm6606, %v6455, 0
  %v6629 = vsel %vm6606, %v6457, 0
  %v6632 = vsel %vm6606, %v6459, 0
  %v6635 = vsel %vm6606, %v6461, 0
  %v6638 = vsel %vm6606, %v6463, 0
  %v6641 = vsel %vm6606, %v6465, 0
  %v6644 = vsel %vm6606, %v6467, 0
  %v6647 = vsel %vm6606, %v6469, 0
  %v6650 = vsel %vm6606, %v6471, 0
  %v6653 = vsel %vm6606, %v6473, 0
  %v6656 = vsel %vm6606, %v6475, 0
  %v6659 = vsel %vm6606, %v6477, 0
  %v6662 = vsel %vm6606, %v6479, 0
  %v6665 = vsel %vm6606, %v6481, 0
  %v6668 = vsel %vm6606, %v6483, 0
  %v6671 = vsel %vm6606, %v6485, 0
  %v6674 = vsel %vm6606, %v6487, 0
  %v6677 = vsel %vm6606, %v6489, 0
  %v6680 = vsel %vm6606, %v6491, 0
  %v6683 = vsel %vm6606, %v6493, 0
  %v6686 = vsel %vm6606, %v6495, 0
  %v6689 = vsel %vm6606, %v6497, 0
  %6691 = vmatprep.subr.mxu0 0.0
  %6692 = vmatpush1.msra.mxu0 %v6526
  %6693 = vmatprep.subr.mxu0 0.0
  %6694 = vmatpush1.msra.mxu0 %v6528
  %6695 = vmatprep.subr.mxu0 0.0
  %6696 = vmatpush1.msra.mxu0 %v6530
  %6697 = vmatprep.subr.mxu0 0.0
  %6698 = vmatpush1.msra.mxu0 %v6532
  %6699 = vmatprep.subr.mxu0 0.0
  %6700 = vmatpush1.msra.mxu0 %v6534
  %6701 = vmatprep.subr.mxu0 0.0
  %6702 = vmatpush1.msra.mxu0 %v6536
  %6703 = vmatprep.subr.mxu0 0.0
  %6704 = vmatpush1.msra.mxu0 %v6538
  %6705 = vmatprep.subr.mxu0 0.0
  %6706 = vmatpush1.msra.mxu0 %v6540
  %6707 = vmatprep.subr.mxu0 0.0
  %6708 = vmatpush1.msra.mxu0 %v6542
  %6709 = vmatprep.subr.mxu0 0.0
  %6710 = vmatpush1.msra.mxu0 %v6544
  %6711 = vmatprep.subr.mxu0 0.0
  %6712 = vmatpush1.msra.mxu0 %v6546
  %6713 = vmatprep.subr.mxu0 0.0
  %6714 = vmatpush1.msra.mxu0 %v6548
  %6715 = vmatprep.subr.mxu0 0.0
  %6716 = vmatpush1.msra.mxu0 %v6550
  %6717 = vmatprep.subr.mxu0 0.0
  %6718 = vmatpush1.msra.mxu0 %v6552
  %6719 = vmatprep.subr.mxu0 0.0
  %6720 = vmatpush1.msra.mxu0 %v6554
  %6721 = vmatprep.subr.mxu0 0.0
  %6722 = vmatpush1.msra.mxu0 %v6556
  %6723 = vmatprep.subr.mxu0 0.0
  %6724 = vmatpush1.msra.mxu0 %v6558
  %6725 = vmatprep.subr.mxu0 0.0
  %6726 = vmatpush1.msra.mxu0 %v6560
  %6727 = vmatprep.subr.mxu0 0.0
  %6728 = vmatpush1.msra.mxu0 %v6562
  %6729 = vmatprep.subr.mxu0 0.0
  %6730 = vmatpush1.msra.mxu0 %v6564
  %6731 = vmatprep.subr.mxu0 0.0
  %6732 = vmatpush1.msra.mxu0 %v6566
  %6733 = vmatprep.subr.mxu0 0.0
  %6734 = vmatpush1.msra.mxu0 %v6568
  %6735 = vmatprep.subr.mxu0 0.0
  %6736 = vmatpush1.msra.mxu0 %v6570
  %6737 = vmatprep.subr.mxu0 0.0
  %6738 = vmatpush1.msra.mxu0 %v6572
  %6739 = vmatprep.subr.mxu0 0.0
  %6740 = vmatpush1.msra.mxu0 %v6574
  %6741 = vmatprep.subr.mxu0 0.0
  %6742 = vmatpush1.msra.mxu0 %v6576
  %6743 = vmatprep.subr.mxu0 0.0
  %6744 = vmatpush1.msra.mxu0 %v6578
  %6745 = vmatprep.subr.mxu0 0.0
  %6746 = vmatpush1.msra.mxu0 0.0
  %6747 = vmatprep.subr.mxu0 0.0
  %6748 = vmatpush1.msra.mxu0 0.0
  %6749 = vmatprep.subr.mxu0 0.0
  %6750 = vmatpush1.msra.mxu0 0.0
  %6751 = vmatprep.subr.mxu0 0.0
  %6752 = vmatpush1.msra.mxu0 0.0
  %6753 = vmatprep.subr.mxu0 0.0
  %6754 = vmatpush1.msra.mxu0 0.0
  %6755 = vmatprep.mubr.f32.mxu0 %v6608
  %6756 = vmatmul.mubr.f32.gmra.mrb[0].mxu0 %v6442
  %v6757 = vpop.f32.mrb[0].mxu0
  %v6758 = vadd.f32 0.0, %v6757
  %v6759 = vpop.f32.mrb[0].mxu0
  %6760 = vmatprep.mubr.f32.mxu0 %v6611
  %6761 = vmatmul.mubr.f32.gmra.mrb[0].mxu0 %v6444
  %v6762 = vpop.f32.mrb[0].mxu0
  %v6763 = vadd.f32 0.0, %v6762
  %v6764 = vpop.f32.mrb[0].mxu0
  %6765 = vmatprep.mubr.f32.mxu0 %v6614
  %6766 = vmatmul.mubr.f32.gmra.mrb[0].mxu0 %v6446
  %v6767 = vpop.f32.mrb[0].mxu0
  %v6768 = vadd.f32 0.0, %v6767
  %v6769 = vpop.f32.mrb[0].mxu0
  %6770 = vmatprep.mubr.f32.mxu0 %v6617
  %6771 = vmatmul.mubr.f32.gmra.mrb[0].mxu0 %v6448
  %v6772 = vpop.f32.mrb[0].mxu0
  %v6773 = vadd.f32 0.0, %v6772
  %v6774 = vpop.f32.mrb[0].mxu0
  %6775 = vmatprep.mubr.f32.mxu0 %v6620
  %6776 = vmatmul.mubr.f32.gmra.mrb[0].mxu0 %v6450
  %v6777 = vpop.f32.mrb[0].mxu0
  %v6778 = vadd.f32 0.0, %v6777
  %v6779 = vpop.f32.mrb[0].mxu0
  %6780 = vmatprep.mubr.f32.mxu0 %v6623
  %6781 = vmatmul.mubr.f32.gmra.mrb[0].mxu0 %v6452
  %v6782 = vpop.f32.mrb[0].mxu0
  %v6783 = vadd.f32 0.0, %v6782
  %v6784 = vpop.f32.mrb[0].mxu0
  %6785 = vmatprep.mubr.f32.mxu0 %v6626
  %6786 = vmatmul.mubr.f32.gmra.mrb[0].mxu0 %v6454
  %v6787 = vpop.f32.mrb[0].mxu0
  %v6788 = vadd.f32 0.0, %v6787
  %v6789 = vpop.f32.mrb[0].mxu0
  %6790 = vmatprep.mubr.f32.mxu0 %v6629
  %6791 = vmatmul.mubr.f32.gmra.mrb[0].mxu0 %v6456
  %v6792 = vpop.f32.mrb[0].mxu0
  %v6793 = vadd.f32 0.0, %v6792
  %v6794 = vpop.f32.mrb[0].mxu0
  %6795 = vmatprep.mubr.f32.mxu0 %v6632
  %6796 = vmatmul.mubr.f32.gmra.mrb[0].mxu0 %v6458
  %v6797 = vpop.f32.mrb[0].mxu0
  %v6798 = vadd.f32 0.0, %v6797
  %v6799 = vpop.f32.mrb[0].mxu0
  %6800 = vmatprep.mubr.f32.mxu0 %v6635
  %6801 = vmatmul.mubr.f32.gmra.mrb[0].mxu0 %v6460
  %v6802 = vpop.f32.mrb[0].mxu0
  %v6803 = vadd.f32 0.0, %v6802
  %v6804 = vpop.f32.mrb[0].mxu0
  %6805 = vmatprep.mubr.f32.mxu0 %v6638
  %6806 = vmatmul.mubr.f32.gmra.mrb[0].mxu0 %v6462
  %v6807 = vpop.f32.mrb[0].mxu0
  %v6808 = vadd.f32 0.0, %v6807
  %v6809 = vpop.f32.mrb[0].mxu0
  %6810 = vmatprep.mubr.f32.mxu0 %v6641
  %6811 = vmatmul.mubr.f32.gmra.mrb[0].mxu0 %v6464
  %v6812 = vpop.f32.mrb[0].mxu0
  %v6813 = vadd.f32 0.0, %v6812
  %v6814 = vpop.f32.mrb[0].mxu0
  %6815 = vmatprep.mubr.f32.mxu0 %v6644
  %6816 = vmatmul.mubr.f32.gmra.mrb[0].mxu0 %v6466
  %v6817 = vpop.f32.mrb[0].mxu0
  %v6818 = vadd.f32 0.0, %v6817
  %v6819 = vpop.f32.mrb[0].mxu0
  %6820 = vmatprep.mubr.f32.mxu0 %v6647
  %6821 = vmatmul.mubr.f32.gmra.mrb[0].mxu0 %v6468
  %v6822 = vpop.f32.mrb[0].mxu0
  %v6823 = vadd.f32 0.0, %v6822
  %v6824 = vpop.f32.mrb[0].mxu0
  %6825 = vmatprep.mubr.f32.mxu0 %v6650
  %6826 = vmatmul.mubr.f32.gmra.mrb[0].mxu0 %v6470
  %v6827 = vpop.f32.mrb[0].mxu0
  %v6828 = vadd.f32 0.0, %v6827
  %v6829 = vpop.f32.mrb[0].mxu0
  %6830 = vmatprep.mubr.f32.mxu0 %v6653
  %6831 = vmatmul.mubr.f32.gmra.mrb[0].mxu0 %v6472
  %v6832 = vpop.f32.mrb[0].mxu0
  %v6833 = vadd.f32 0.0, %v6832
  %v6834 = vpop.f32.mrb[0].mxu0
  %6835 = vmatprep.mubr.f32.mxu0 %v6656
  %6836 = vmatmul.mubr.f32.gmra.mrb[0].mxu0 %v6474
  %v6837 = vpop.f32.mrb[0].mxu0
  %v6838 = vadd.f32 0.0, %v6837
  %v6839 = vpop.f32.mrb[0].mxu0
  %6840 = vmatprep.mubr.f32.mxu0 %v6659
  %6841 = vmatmul.mubr.f32.gmra.mrb[0].mxu0 %v6476
  %v6842 = vpop.f32.mrb[0].mxu0
  %v6843 = vadd.f32 0.0, %v6842
  %v6844 = vpop.f32.mrb[0].mxu0
  %6845 = vmatprep.mubr.f32.mxu0 %v6662
  %6846 = vmatmul.mubr.f32.gmra.mrb[0].mxu0 %v6478
  %v6847 = vpop.f32.mrb[0].mxu0
  %v6848 = vadd.f32 0.0, %v6847
  %v6849 = vpop.f32.mrb[0].mxu0
  %6850 = vmatprep.mubr.f32.mxu0 %v6665
  %6851 = vmatmul.mubr.f32.gmra.mrb[0].mxu0 %v6480
  %v6852 = vpop.f32.mrb[0].mxu0
  %v6853 = vadd.f32 0.0, %v6852
  %v6854 = vpop.f32.mrb[0].mxu0
  %6855 = vmatprep.mubr.f32.mxu0 %v6668
  %6856 = vmatmul.mubr.f32.gmra.mrb[0].mxu0 %v6482
  %v6857 = vpop.f32.mrb[0].mxu0
  %v6858 = vadd.f32 0.0, %v6857
  %v6859 = vpop.f32.mrb[0].mxu0
  %6860 = vmatprep.mubr.f32.mxu0 %v6671
  %6861 = vmatmul.mubr.f32.gmra.mrb[0].mxu0 %v6484
  %v6862 = vpop.f32.mrb[0].mxu0
  %v6863 = vadd.f32 0.0, %v6862
  %v6864 = vpop.f32.mrb[0].mxu0
  %6865 = vmatprep.mubr.f32.mxu0 %v6674
  %6866 = vmatmul.mubr.f32.gmra.mrb[0].mxu0 %v6486
  %v6867 = vpop.f32.mrb[0].mxu0
  %v6868 = vadd.f32 0.0, %v6867
  %v6869 = vpop.f32.mrb[0].mxu0
  %6870 = vmatprep.mubr.f32.mxu0 %v6677
  %6871 = vmatmul.mubr.f32.gmra.mrb[0].mxu0 %v6488
  %v6872 = vpop.f32.mrb[0].mxu0
  %v6873 = vadd.f32 0.0, %v6872
  %v6874 = vpop.f32.mrb[0].mxu0
  %6875 = vmatprep.mubr.f32.mxu0 %v6680
  %6876 = vmatmul.mubr.f32.gmra.mrb[0].mxu0 %v6490
  %v6877 = vpop.f32.mrb[0].mxu0
  %v6878 = vadd.f32 0.0, %v6877
  %v6879 = vpop.f32.mrb[0].mxu0
  %6880 = vmatprep.mubr.f32.mxu0 %v6683
  %6881 = vmatmul.mubr.f32.gmra.mrb[0].mxu0 %v6492
  %v6882 = vpop.f32.mrb[0].mxu0
  %v6883 = vadd.f32 0.0, %v6882
  %v6884 = vpop.f32.mrb[0].mxu0
  %6885 = vmatprep.mubr.f32.mxu0 %v6686
  %6886 = vmatmul.mubr.f32.gmra.mrb[0].mxu0 %v6494
  %v6887 = vpop.f32.mrb[0].mxu0
  %v6888 = vadd.f32 0.0, %v6887
  %v6889 = vpop.f32.mrb[0].mxu0
  %6890 = vmatprep.mubr.f32.mxu0 %v6689
  %6891 = vmatmul.mubr.f32.gmra.mrb[0].mxu0 %v6496
  %v6892 = vpop.f32.mrb[0].mxu0
  %v6893 = vadd.f32 0.0, %v6892
  %v6894 = vpop.f32.mrb[0].mxu0
  %6895 = vdwg.mxu0
  %v6897 = vsel %vm6606, %v6386, 0
  %v6900 = vsel %vm6606, %v6388, 0
  %v6903 = vsel %vm6606, %v6390, 0
  %v6906 = vsel %vm6606, %v6392, 0
  %v6909 = vsel %vm6606, %v6394, 0
  %v6912 = vsel %vm6606, %v6396, 0
  %v6915 = vsel %vm6606, %v6398, 0
  %v6918 = vsel %vm6606, %v6400, 0
  %v6921 = vsel %vm6606, %v6402, 0
  %v6924 = vsel %vm6606, %v6404, 0
  %v6927 = vsel %vm6606, %v6406, 0
  %v6930 = vsel %vm6606, %v6408, 0
  %v6933 = vsel %vm6606, %v6410, 0
  %v6936 = vsel %vm6606, %v6412, 0
  %v6939 = vsel %vm6606, %v6414, 0
  %v6942 = vsel %vm6606, %v6416, 0
  %v6945 = vsel %vm6606, %v6418, 0
  %v6948 = vsel %vm6606, %v6420, 0
  %v6951 = vsel %vm6606, %v6422, 0
  %v6954 = vsel %vm6606, %v6424, 0
  %v6957 = vsel %vm6606, %v6426, 0
  %v6960 = vsel %vm6606, %v6428, 0
  %v6963 = vsel %vm6606, %v6430, 0
  %v6966 = vsel %vm6606, %v6432, 0
  %v6969 = vsel %vm6606, %v6434, 0
  %v6972 = vsel %vm6606, %v6436, 0
  %v6975 = vsel %vm6606, %v6438, 0
  %v6978 = vsel %vm6606, %v6440, 0
  %6980 = vmatprep.subr.mxu0 0.0
  %6981 = vmatpush1.msra.mxu0 %v6252
  %6982 = vmatprep.subr.mxu0 0.0
  %6983 = vmatpush1.msra.mxu0 %v6257
  %6984 = vmatprep.subr.mxu0 0.0
  %6985 = vmatpush1.msra.mxu0 %v6262
  %6986 = vmatprep.subr.mxu0 0.0
  %6987 = vmatpush1.msra.mxu0 %v6267
  %6988 = vmatprep.subr.mxu0 0.0
  %6989 = vmatpush1.msra.mxu0 %v6272
  %6990 = vmatprep.subr.mxu0 0.0
  %6991 = vmatpush1.msra.mxu0 %v6277
  %6992 = vmatprep.subr.mxu0 0.0
  %6993 = vmatpush1.msra.mxu0 %v6282
  %6994 = vmatprep.subr.mxu0 0.0
  %6995 = vmatpush1.msra.mxu0 %v6287
  %6996 = vmatprep.subr.mxu0 0.0
  %6997 = vmatpush1.msra.mxu0 %v6292
  %6998 = vmatprep.subr.mxu0 0.0
  %6999 = vmatpush1.msra.mxu0 %v6297
  %7000 = vmatprep.subr.mxu0 0.0
  %7001 = vmatpush1.msra.mxu0 %v6302
  %7002 = vmatprep.subr.mxu0 0.0
  %7003 = vmatpush1.msra.mxu0 %v6307
  %7004 = vmatprep.subr.mxu0 0.0
  %7005 = vmatpush1.msra.mxu0 %v6312
  %7006 = vmatprep.subr.mxu0 0.0
  %7007 = vmatpush1.msra.mxu0 %v6317
  %7008 = vmatprep.subr.mxu0 0.0
  %7009 = vmatpush1.msra.mxu0 %v6322
  %7010 = vmatprep.subr.mxu0 0.0
  %7011 = vmatpush1.msra.mxu0 %v6327
  %7012 = vmatprep.subr.mxu0 0.0
  %7013 = vmatpush1.msra.mxu0 %v6332
  %7014 = vmatprep.subr.mxu0 0.0
  %7015 = vmatpush1.msra.mxu0 %v6337
  %7016 = vmatprep.subr.mxu0 0.0
  %7017 = vmatpush1.msra.mxu0 %v6342
  %7018 = vmatprep.subr.mxu0 0.0
  %7019 = vmatpush1.msra.mxu0 %v6347
  %7020 = vmatprep.subr.mxu0 0.0
  %7021 = vmatpush1.msra.mxu0 %v6352
  %7022 = vmatprep.subr.mxu0 0.0
  %7023 = vmatpush1.msra.mxu0 %v6357
  %7024 = vmatprep.subr.mxu0 0.0
  %7025 = vmatpush1.msra.mxu0 %v6362
  %7026 = vmatprep.subr.mxu0 0.0
  %7027 = vmatpush1.msra.mxu0 %v6367
  %7028 = vmatprep.subr.mxu0 0.0
  %7029 = vmatpush1.msra.mxu0 %v6372
  %7030 = vmatprep.subr.mxu0 0.0
  %7031 = vmatpush1.msra.mxu0 %v6377
  %7032 = vmatprep.subr.mxu0 0.0
  %7033 = vmatpush1.msra.mxu0 %v6382
  %7034 = vmatprep.subr.mxu0 0.0
  %7035 = vmatpush1.msra.mxu0 0.0
  %7036 = vmatprep.subr.mxu0 0.0
  %7037 = vmatpush1.msra.mxu0 0.0
  %7038 = vmatprep.subr.mxu0 0.0
  %7039 = vmatpush1.msra.mxu0 0.0
  %7040 = vmatprep.subr.mxu0 0.0
  %7041 = vmatpush1.msra.mxu0 0.0
  %7042 = vmatprep.subr.mxu0 0.0
  %7043 = vmatpush1.msra.mxu0 0.0
  %7044 = vmatprep.mubr.f32.mxu0 %v6897
  %7045 = vmatmul.mubr.f32.gmra.mrb[0].mxu0 %v6385
  %v7046 = vpop.f32.mrb[0].mxu0
  %v7047 = vadd.f32 %v6758, %v7046
  %v7048 = vpop.f32.mrb[0].mxu0
  %7049 = vmatprep.mubr.f32.mxu0 %v6900
  %7050 = vmatmul.mubr.f32.gmra.mrb[0].mxu0 %v6387
  %v7051 = vpop.f32.mrb[0].mxu0
  %v7052 = vadd.f32 %v6763, %v7051
  %v7053 = vpop.f32.mrb[0].mxu0
  %7054 = vmatprep.mubr.f32.mxu0 %v6903
  %7055 = vmatmul.mubr.f32.gmra.mrb[0].mxu0 %v6389
  %v7056 = vpop.f32.mrb[0].mxu0
  %v7057 = vadd.f32 %v6768, %v7056
  %v7058 = vpop.f32.mrb[0].mxu0
  %7059 = vmatprep.mubr.f32.mxu0 %v6906
  %7060 = vmatmul.mubr.f32.gmra.mrb[0].mxu0 %v6391
  %v7061 = vpop.f32.mrb[0].mxu0
  %v7062 = vadd.f32 %v6773, %v7061
  %v7063 = vpop.f32.mrb[0].mxu0
  %7064 = vmatprep.mubr.f32.mxu0 %v6909
  %7065 = vmatmul.mubr.f32.gmra.mrb[0].mxu0 %v6393
  %v7066 = vpop.f32.mrb[0].mxu0
  %v7067 = vadd.f32 %v6778, %v7066
  %v7068 = vpop.f32.mrb[0].mxu0
  %7069 = vmatprep.mubr.f32.mxu0 %v6912
  %7070 = vmatmul.mubr.f32.gmra.mrb[0].mxu0 %v6395
  %v7071 = vpop.f32.mrb[0].mxu0
  %v7072 = vadd.f32 %v6783, %v7071
  %v7073 = vpop.f32.mrb[0].mxu0
  %7074 = vmatprep.mubr.f32.mxu0 %v6915
  %7075 = vmatmul.mubr.f32.gmra.mrb[0].mxu0 %v6397
  %v7076 = vpop.f32.mrb[0].mxu0
  %v7077 = vadd.f32 %v6788, %v7076
  %v7078 = vpop.f32.mrb[0].mxu0
  %7079 = vmatprep.mubr.f32.mxu0 %v6918
  %7080 = vmatmul.mubr.f32.gmra.mrb[0].mxu0 %v6399
  %v7081 = vpop.f32.mrb[0].mxu0
  %v7082 = vadd.f32 %v6793, %v7081
  %v7083 = vpop.f32.mrb[0].mxu0
  %7084 = vmatprep.mubr.f32.mxu0 %v6921
  %7085 = vmatmul.mubr.f32.gmra.mrb[0].mxu0 %v6401
  %v7086 = vpop.f32.mrb[0].mxu0
  %v7087 = vadd.f32 %v6798, %v7086
  %v7088 = vpop.f32.mrb[0].mxu0
  %7089 = vmatprep.mubr.f32.mxu0 %v6924
  %7090 = vmatmul.mubr.f32.gmra.mrb[0].mxu0 %v6403
  %v7091 = vpop.f32.mrb[0].mxu0
  %v7092 = vadd.f32 %v6803, %v7091
  %v7093 = vpop.f32.mrb[0].mxu0
  %7094 = vmatprep.mubr.f32.mxu0 %v6927
  %7095 = vmatmul.mubr.f32.gmra.mrb[0].mxu0 %v6405
  %v7096 = vpop.f32.mrb[0].mxu0
  %v7097 = vadd.f32 %v6808, %v7096
  %v7098 = vpop.f32.mrb[0].mxu0
  %7099 = vmatprep.mubr.f32.mxu0 %v6930
  %7100 = vmatmul.mubr.f32.gmra.mrb[0].mxu0 %v6407
  %v7101 = vpop.f32.mrb[0].mxu0
  %v7102 = vadd.f32 %v6813, %v7101
  %v7103 = vpop.f32.mrb[0].mxu0
  %7104 = vmatprep.mubr.f32.mxu0 %v6933
  %7105 = vmatmul.mubr.f32.gmra.mrb[0].mxu0 %v6409
  %v7106 = vpop.f32.mrb[0].mxu0
  %v7107 = vadd.f32 %v6818, %v7106
  %v7108 = vpop.f32.mrb[0].mxu0
  %7109 = vmatprep.mubr.f32.mxu0 %v6936
  %7110 = vmatmul.mubr.f32.gmra.mrb[0].mxu0 %v6411
  %v7111 = vpop.f32.mrb[0].mxu0
  %v7112 = vadd.f32 %v6823, %v7111
  %v7113 = vpop.f32.mrb[0].mxu0
  %7114 = vmatprep.mubr.f32.mxu0 %v6939
  %7115 = vmatmul.mubr.f32.gmra.mrb[0].mxu0 %v6413
  %v7116 = vpop.f32.mrb[0].mxu0
  %v7117 = vadd.f32 %v6828, %v7116
  %v7118 = vpop.f32.mrb[0].mxu0
  %7119 = vmatprep.mubr.f32.mxu0 %v6942
  %7120 = vmatmul.mubr.f32.gmra.mrb[0].mxu0 %v6415
  %v7121 = vpop.f32.mrb[0].mxu0
  %v7122 = vadd.f32 %v6833, %v7121
  %v7123 = vpop.f32.mrb[0].mxu0
  %7124 = vmatprep.mubr.f32.mxu0 %v6945
  %7125 = vmatmul.mubr.f32.gmra.mrb[0].mxu0 %v6417
  %v7126 = vpop.f32.mrb[0].mxu0
  %v7127 = vadd.f32 %v6838, %v7126
  %v7128 = vpop.f32.mrb[0].mxu0
  %7129 = vmatprep.mubr.f32.mxu0 %v6948
  %7130 = vmatmul.mubr.f32.gmra.mrb[0].mxu0 %v6419
  %v7131 = vpop.f32.mrb[0].mxu0
  %v7132 = vadd.f32 %v6843, %v7131
  %v7133 = vpop.f32.mrb[0].mxu0
  %7134 = vmatprep.mubr.f32.mxu0 %v6951
  %7135 = vmatmul.mubr.f32.gmra.mrb[0].mxu0 %v6421
  %v7136 = vpop.f32.mrb[0].mxu0
  %v7137 = vadd.f32 %v6848, %v7136
  %v7138 = vpop.f32.mrb[0].mxu0
  %7139 = vmatprep.mubr.f32.mxu0 %v6954
  %7140 = vmatmul.mubr.f32.gmra.mrb[0].mxu0 %v6423
  %v7141 = vpop.f32.mrb[0].mxu0
  %v7142 = vadd.f32 %v6853, %v7141
  %v7143 = vpop.f32.mrb[0].mxu0
  %7144 = vmatprep.mubr.f32.mxu0 %v6957
  %7145 = vmatmul.mubr.f32.gmra.mrb[0].mxu0 %v6425
  %v7146 = vpop.f32.mrb[0].mxu0
  %v7147 = vadd.f32 %v6858, %v7146
  %v7148 = vpop.f32.mrb[0].mxu0
  %7149 = vmatprep.mubr.f32.mxu0 %v6960
  %7150 = vmatmul.mubr.f32.gmra.mrb[0].mxu0 %v6427
  %v7151 = vpop.f32.mrb[0].mxu0
  %v7152 = vadd.f32 %v6863, %v7151
  %v7153 = vpop.f32.mrb[0].mxu0
  %7154 = vmatprep.mubr.f32.mxu0 %v6963
  %7155 = vmatmul.mubr.f32.gmra.mrb[0].mxu0 %v6429
  %v7156 = vpop.f32.mrb[0].mxu0
  %v7157 = vadd.f32 %v6868, %v7156
  %v7158 = vpop.f32.mrb[0].mxu0
  %7159 = vmatprep.mubr.f32.mxu0 %v6966
  %7160 = vmatmul.mubr.f32.gmra.mrb[0].mxu0 %v6431
  %v7161 = vpop.f32.mrb[0].mxu0
  %v7162 = vadd.f32 %v6873, %v7161
  %v7163 = vpop.f32.mrb[0].mxu0
  %7164 = vmatprep.mubr.f32.mxu0 %v6969
  %7165 = vmatmul.mubr.f32.gmra.mrb[0].mxu0 %v6433
  %v7166 = vpop.f32.mrb[0].mxu0
  %v7167 = vadd.f32 %v6878, %v7166
  %v7168 = vpop.f32.mrb[0].mxu0
  %7169 = vmatprep.mubr.f32.mxu0 %v6972
  %7170 = vmatmul.mubr.f32.gmra.mrb[0].mxu0 %v6435
  %v7171 = vpop.f32.mrb[0].mxu0
  %v7172 = vadd.f32 %v6883, %v7171
  %v7173 = vpop.f32.mrb[0].mxu0
  %7174 = vmatprep.mubr.f32.mxu0 %v6975
  %7175 = vmatmul.mubr.f32.gmra.mrb[0].mxu0 %v6437
  %v7176 = vpop.f32.mrb[0].mxu0
  %v7177 = vadd.f32 %v6888, %v7176
  %v7178 = vpop.f32.mrb[0].mxu0
  %7179 = vmatprep.mubr.f32.mxu0 %v6978
  %7180 = vmatmul.mubr.f32.gmra.mrb[0].mxu0 %v6439
  %v7181 = vpop.f32.mrb[0].mxu0
  %v7182 = vadd.f32 %v6893, %v7181
  %v7183 = vpop.f32.mrb[0].mxu0
  %7184 = vdwg.mxu0
  %s7185 = scalar_lea.vmem %s15, 896
  %v7186 = vld [vmem:[%s7185] sm:$0xff]
  %v7187 = vld [vmem:[%s7185 + $0x8] sm:$0xff]
  %v7188 = vld [vmem:[%s7185 + $0x10] sm:$0xff]
  %v7189 = vld [vmem:[%s7185 + $0x18] sm:$0xff]
  %v7190 = vld [vmem:[%s7185 + $0x20] sm:$0xff]
  %v7191 = vld [vmem:[%s7185 + $0x28] sm:$0xff]
  %v7192 = vld [vmem:[%s7185 + $0x30] sm:$0xff]
  %v7193 = vld [vmem:[%s7185 + $0x38] sm:$0xff]
  %v7194 = vld [vmem:[%s7185 + $0x40] sm:$0xff]
  %v7195 = vld [vmem:[%s7185 + $0x48] sm:$0xff]
  %v7196 = vld [vmem:[%s7185 + $0x50] sm:$0xff]
  %v7197 = vld [vmem:[%s7185 + $0x58] sm:$0xff]
  %v7198 = vld [vmem:[%s7185 + $0x60] sm:$0xff]
  %v7199 = vld [vmem:[%s7185 + $0x68] sm:$0xff]
  %v7200 = vld [vmem:[%s7185 + $0x70] sm:$0xff]
  %v7201 = vld [vmem:[%s7185 + $0x78] sm:$0xff]
  %v7202 = vld [vmem:[%s7185 + $0x80] sm:$0xff]
  %v7203 = vld [vmem:[%s7185 + $0x88] sm:$0xff]
  %v7204 = vld [vmem:[%s7185 + $0x90] sm:$0xff]
  %v7205 = vld [vmem:[%s7185 + $0x98] sm:$0xff]
  %v7206 = vld [vmem:[%s7185 + $0xa0] sm:$0xff]
  %v7207 = vld [vmem:[%s7185 + $0xa8] sm:$0xff]
  %v7208 = vld [vmem:[%s7185 + $0xb0] sm:$0xff]
  %v7209 = vld [vmem:[%s7185 + $0xb8] sm:$0xff]
  %v7210 = vld [vmem:[%s7185 + $0xc0] sm:$0xff]
  %v7211 = vld [vmem:[%s7185 + $0xc8] sm:$0xff]
  %v7212 = vld [vmem:[%s7185 + $0xd0] sm:$0xff]
  %v7213 = vld [vmem:[%s7185 + $0xd8] sm:$0xff]
  %v7214 = vld [vmem:[%s7185 + $0xe0] sm:$0xff]
  %v7215 = vld [vmem:[%s7185 + $0xe8] sm:$0xff]
  %v7216 = vld [vmem:[%s7185 + $0xf0] sm:$0xff]
  %v7217 = vld [vmem:[%s7185 + $0xf8] sm:$0xff]
  %v7218 = vld [vmem:[%s7185 + $0x100] sm:$0xff]
  %v7219 = vld [vmem:[%s7185 + $0x108] sm:$0xff]
  %v7220 = vld [vmem:[%s7185 + $0x110] sm:$0xff]
  %v7221 = vld [vmem:[%s7185 + $0x118] sm:$0xff]
  %v7222 = vld [vmem:[%s7185 + $0x120] sm:$0xff]
  %v7223 = vld [vmem:[%s7185 + $0x128] sm:$0xff]
  %v7224 = vld [vmem:[%s7185 + $0x130] sm:$0xff]
  %v7225 = vld [vmem:[%s7185 + $0x138] sm:$0xff]
  %v7226 = vld [vmem:[%s7185 + $0x140] sm:$0xff]
  %v7227 = vld [vmem:[%s7185 + $0x148] sm:$0xff]
  %v7228 = vld [vmem:[%s7185 + $0x150] sm:$0xff]
  %v7229 = vld [vmem:[%s7185 + $0x158] sm:$0xff]
  %v7230 = vld [vmem:[%s7185 + $0x160] sm:$0xff]
  %v7231 = vld [vmem:[%s7185 + $0x168] sm:$0xff]
  %v7232 = vld [vmem:[%s7185 + $0x170] sm:$0xff]
  %v7233 = vld [vmem:[%s7185 + $0x178] sm:$0xff]
  %v7234 = vld [vmem:[%s7185 + $0x180] sm:$0xff]
  %v7235 = vld [vmem:[%s7185 + $0x188] sm:$0xff]
  %v7236 = vld [vmem:[%s7185 + $0x190] sm:$0xff]
  %v7237 = vld [vmem:[%s7185 + $0x198] sm:$0xff]
  %v7238 = vld [vmem:[%s7185 + $0x1a0] sm:$0xff]
  %v7239 = vld [vmem:[%s7185 + $0x1a8] sm:$0xff]
  %v7240 = vld [vmem:[%s7185 + $0x1b0] sm:$0xff]
  %v7241 = vld [vmem:[%s7185 + $0x1b8] sm:$0xff]
  %7242 = vrot.lane.b32.xlu0 %v6252, 124
  %v7243 = vpop.permute.xlu0 %7242
  %7244 = vrot.lane.b32.xlu0 %v6257, 124
  %v7245 = vpop.permute.xlu0 %7244
  %7246 = vrot.lane.b32.xlu0 %v6262, 124
  %v7247 = vpop.permute.xlu0 %7246
  %7248 = vrot.lane.b32.xlu0 %v6267, 124
  %v7249 = vpop.permute.xlu0 %7248
  %7250 = vrot.lane.b32.xlu0 %v6272, 124
  %v7251 = vpop.permute.xlu0 %7250
  %7252 = vrot.lane.b32.xlu0 %v6277, 124
  %v7253 = vpop.permute.xlu0 %7252
  %7254 = vrot.lane.b32.xlu0 %v6282, 124
  %v7255 = vpop.permute.xlu0 %7254
  %7256 = vrot.lane.b32.xlu0 %v6287, 124
  %v7257 = vpop.permute.xlu0 %7256
  %7258 = vrot.lane.b32.xlu0 %v6292, 124
  %v7259 = vpop.permute.xlu0 %7258
  %7260 = vrot.lane.b32.xlu0 %v6297, 124
  %v7261 = vpop.permute.xlu0 %7260
  %7262 = vrot.lane.b32.xlu0 %v6302, 124
  %v7263 = vpop.permute.xlu0 %7262
  %7264 = vrot.lane.b32.xlu0 %v6307, 124
  %v7265 = vpop.permute.xlu0 %7264
  %7266 = vrot.lane.b32.xlu0 %v6312, 124
  %v7267 = vpop.permute.xlu0 %7266
  %7268 = vrot.lane.b32.xlu0 %v6317, 124
  %v7269 = vpop.permute.xlu0 %7268
  %7270 = vrot.lane.b32.xlu0 %v6322, 124
  %v7271 = vpop.permute.xlu0 %7270
  %7272 = vrot.lane.b32.xlu0 %v6327, 124
  %v7273 = vpop.permute.xlu0 %7272
  %7274 = vrot.lane.b32.xlu0 %v6332, 124
  %v7275 = vpop.permute.xlu0 %7274
  %7276 = vrot.lane.b32.xlu0 %v6337, 124
  %v7277 = vpop.permute.xlu0 %7276
  %7278 = vrot.lane.b32.xlu0 %v6342, 124
  %v7279 = vpop.permute.xlu0 %7278
  %7280 = vrot.lane.b32.xlu0 %v6347, 124
  %v7281 = vpop.permute.xlu0 %7280
  %7282 = vrot.lane.b32.xlu0 %v6352, 124
  %v7283 = vpop.permute.xlu0 %7282
  %7284 = vrot.lane.b32.xlu0 %v6357, 124
  %v7285 = vpop.permute.xlu0 %7284
  %7286 = vrot.lane.b32.xlu0 %v6362, 124
  %v7287 = vpop.permute.xlu0 %7286
  %7288 = vrot.lane.b32.xlu0 %v6367, 124
  %v7289 = vpop.permute.xlu0 %7288
  %7290 = vrot.lane.b32.xlu0 %v6372, 124
  %v7291 = vpop.permute.xlu0 %7290
  %7292 = vrot.lane.b32.xlu0 %v6377, 124
  %v7293 = vpop.permute.xlu0 %7292
  %7294 = vrot.lane.b32.xlu0 %v6382, 124
  %v7295 = vpop.permute.xlu0 %7294
  %v7324 = vsel %vm6606, %v7187, 0
  %v7327 = vsel %vm6606, %v7189, 0
  %v7330 = vsel %vm6606, %v7191, 0
  %v7333 = vsel %vm6606, %v7193, 0
  %v7336 = vsel %vm6606, %v7195, 0
  %v7339 = vsel %vm6606, %v7197, 0
  %v7342 = vsel %vm6606, %v7199, 0
  %v7345 = vsel %vm6606, %v7201, 0
  %v7348 = vsel %vm6606, %v7203, 0
  %v7351 = vsel %vm6606, %v7205, 0
  %v7354 = vsel %vm6606, %v7207, 0
  %v7357 = vsel %vm6606, %v7209, 0
  %v7360 = vsel %vm6606, %v7211, 0
  %v7363 = vsel %vm6606, %v7213, 0
  %v7366 = vsel %vm6606, %v7215, 0
  %v7369 = vsel %vm6606, %v7217, 0
  %v7372 = vsel %vm6606, %v7219, 0
  %v7375 = vsel %vm6606, %v7221, 0
  %v7378 = vsel %vm6606, %v7223, 0
  %v7381 = vsel %vm6606, %v7225, 0
  %v7384 = vsel %vm6606, %v7227, 0
  %v7387 = vsel %vm6606, %v7229, 0
  %v7390 = vsel %vm6606, %v7231, 0
  %v7393 = vsel %vm6606, %v7233, 0
  %v7396 = vsel %vm6606, %v7235, 0
  %v7399 = vsel %vm6606, %v7237, 0
  %v7402 = vsel %vm6606, %v7239, 0
  %v7405 = vsel %vm6606, %v7241, 0
  %7407 = vmatprep.subr.mxu0 0.0
  %7408 = vmatpush1.msra.mxu0 %v7243
  %7409 = vmatprep.subr.mxu0 0.0
  %7410 = vmatpush1.msra.mxu0 %v7245
  %7411 = vmatprep.subr.mxu0 0.0
  %7412 = vmatpush1.msra.mxu0 %v7247
  %7413 = vmatprep.subr.mxu0 0.0
  %7414 = vmatpush1.msra.mxu0 %v7249
  %7415 = vmatprep.subr.mxu0 0.0
  %7416 = vmatpush1.msra.mxu0 %v7251
  %7417 = vmatprep.subr.mxu0 0.0
  %7418 = vmatpush1.msra.mxu0 %v7253
  %7419 = vmatprep.subr.mxu0 0.0
  %7420 = vmatpush1.msra.mxu0 %v7255
  %7421 = vmatprep.subr.mxu0 0.0
  %7422 = vmatpush1.msra.mxu0 %v7257
  %7423 = vmatprep.subr.mxu0 0.0
  %7424 = vmatpush1.msra.mxu0 %v7259
  %7425 = vmatprep.subr.mxu0 0.0
  %7426 = vmatpush1.msra.mxu0 %v7261
  %7427 = vmatprep.subr.mxu0 0.0
  %7428 = vmatpush1.msra.mxu0 %v7263
  %7429 = vmatprep.subr.mxu0 0.0
  %7430 = vmatpush1.msra.mxu0 %v7265
  %7431 = vmatprep.subr.mxu0 0.0
  %7432 = vmatpush1.msra.mxu0 %v7267
  %7433 = vmatprep.subr.mxu0 0.0
  %7434 = vmatpush1.msra.mxu0 %v7269
  %7435 = vmatprep.subr.mxu0 0.0
  %7436 = vmatpush1.msra.mxu0 %v7271
  %7437 = vmatprep.subr.mxu0 0.0
  %7438 = vmatpush1.msra.mxu0 %v7273
  %7439 = vmatprep.subr.mxu0 0.0
  %7440 = vmatpush1.msra.mxu0 %v7275
  %7441 = vmatprep.subr.mxu0 0.0
  %7442 = vmatpush1.msra.mxu0 %v7277
  %7443 = vmatprep.subr.mxu0 0.0
  %7444 = vmatpush1.msra.mxu0 %v7279
  %7445 = vmatprep.subr.mxu0 0.0
  %7446 = vmatpush1.msra.mxu0 %v7281
  %7447 = vmatprep.subr.mxu0 0.0
  %7448 = vmatpush1.msra.mxu0 %v7283
  %7449 = vmatprep.subr.mxu0 0.0
  %7450 = vmatpush1.msra.mxu0 %v7285
  %7451 = vmatprep.subr.mxu0 0.0
  %7452 = vmatpush1.msra.mxu0 %v7287
  %7453 = vmatprep.subr.mxu0 0.0
  %7454 = vmatpush1.msra.mxu0 %v7289
  %7455 = vmatprep.subr.mxu0 0.0
  %7456 = vmatpush1.msra.mxu0 %v7291
  %7457 = vmatprep.subr.mxu0 0.0
  %7458 = vmatpush1.msra.mxu0 %v7293
  %7459 = vmatprep.subr.mxu0 0.0
  %7460 = vmatpush1.msra.mxu0 %v7295
  %7461 = vmatprep.subr.mxu0 0.0
  %7462 = vmatpush1.msra.mxu0 0.0
  %7463 = vmatprep.subr.mxu0 0.0
  %7464 = vmatpush1.msra.mxu0 0.0
  %7465 = vmatprep.subr.mxu0 0.0
  %7466 = vmatpush1.msra.mxu0 0.0
  %7467 = vmatprep.subr.mxu0 0.0
  %7468 = vmatpush1.msra.mxu0 0.0
  %7469 = vmatprep.subr.mxu0 0.0
  %7470 = vmatpush1.msra.mxu0 0.0
  %7471 = vmatprep.mubr.f32.mxu0 %v7324
  %7472 = vmatmul.mubr.f32.gmra.mrb[0].mxu0 %v7186
  %v7473 = vpop.f32.mrb[0].mxu0
  %v7474 = vadd.f32 0.0, %v7473
  %v7475 = vpop.f32.mrb[0].mxu0
  %7476 = vmatprep.mubr.f32.mxu0 %v7327
  %7477 = vmatmul.mubr.f32.gmra.mrb[0].mxu0 %v7188
  %v7478 = vpop.f32.mrb[0].mxu0
  %v7479 = vadd.f32 0.0, %v7478
  %v7480 = vpop.f32.mrb[0].mxu0
  %7481 = vmatprep.mubr.f32.mxu0 %v7330
  %7482 = vmatmul.mubr.f32.gmra.mrb[0].mxu0 %v7190
  %v7483 = vpop.f32.mrb[0].mxu0
  %v7484 = vadd.f32 0.0, %v7483
  %v7485 = vpop.f32.mrb[0].mxu0
  %7486 = vmatprep.mubr.f32.mxu0 %v7333
  %7487 = vmatmul.mubr.f32.gmra.mrb[0].mxu0 %v7192
  %v7488 = vpop.f32.mrb[0].mxu0
  %v7489 = vadd.f32 0.0, %v7488
  %v7490 = vpop.f32.mrb[0].mxu0
  %7491 = vmatprep.mubr.f32.mxu0 %v7336
  %7492 = vmatmul.mubr.f32.gmra.mrb[0].mxu0 %v7194
  %v7493 = vpop.f32.mrb[0].mxu0
  %v7494 = vadd.f32 0.0, %v7493
  %v7495 = vpop.f32.mrb[0].mxu0
  %7496 = vmatprep.mubr.f32.mxu0 %v7339
  %7497 = vmatmul.mubr.f32.gmra.mrb[0].mxu0 %v7196
  %v7498 = vpop.f32.mrb[0].mxu0
  %v7499 = vadd.f32 0.0, %v7498
  %v7500 = vpop.f32.mrb[0].mxu0
  %7501 = vmatprep.mubr.f32.mxu0 %v7342
  %7502 = vmatmul.mubr.f32.gmra.mrb[0].mxu0 %v7198
  %v7503 = vpop.f32.mrb[0].mxu0
  %v7504 = vadd.f32 0.0, %v7503
  %v7505 = vpop.f32.mrb[0].mxu0
  %7506 = vmatprep.mubr.f32.mxu0 %v7345
  %7507 = vmatmul.mubr.f32.gmra.mrb[0].mxu0 %v7200
  %v7508 = vpop.f32.mrb[0].mxu0
  %v7509 = vadd.f32 0.0, %v7508
  %v7510 = vpop.f32.mrb[0].mxu0
  %7511 = vmatprep.mubr.f32.mxu0 %v7348
  %7512 = vmatmul.mubr.f32.gmra.mrb[0].mxu0 %v7202
  %v7513 = vpop.f32.mrb[0].mxu0
  %v7514 = vadd.f32 0.0, %v7513
  %v7515 = vpop.f32.mrb[0].mxu0
  %7516 = vmatprep.mubr.f32.mxu0 %v7351
  %7517 = vmatmul.mubr.f32.gmra.mrb[0].mxu0 %v7204
  %v7518 = vpop.f32.mrb[0].mxu0
  %v7519 = vadd.f32 0.0, %v7518
  %v7520 = vpop.f32.mrb[0].mxu0
  %7521 = vmatprep.mubr.f32.mxu0 %v7354
  %7522 = vmatmul.mubr.f32.gmra.mrb[0].mxu0 %v7206
  %v7523 = vpop.f32.mrb[0].mxu0
  %v7524 = vadd.f32 0.0, %v7523
  %v7525 = vpop.f32.mrb[0].mxu0
  %7526 = vmatprep.mubr.f32.mxu0 %v7357
  %7527 = vmatmul.mubr.f32.gmra.mrb[0].mxu0 %v7208
  %v7528 = vpop.f32.mrb[0].mxu0
  %v7529 = vadd.f32 0.0, %v7528
  %v7530 = vpop.f32.mrb[0].mxu0
  %7531 = vmatprep.mubr.f32.mxu0 %v7360
  %7532 = vmatmul.mubr.f32.gmra.mrb[0].mxu0 %v7210
  %v7533 = vpop.f32.mrb[0].mxu0
  %v7534 = vadd.f32 0.0, %v7533
  %v7535 = vpop.f32.mrb[0].mxu0
  %7536 = vmatprep.mubr.f32.mxu0 %v7363
  %7537 = vmatmul.mubr.f32.gmra.mrb[0].mxu0 %v7212
  %v7538 = vpop.f32.mrb[0].mxu0
  %v7539 = vadd.f32 0.0, %v7538
  %v7540 = vpop.f32.mrb[0].mxu0
  %7541 = vmatprep.mubr.f32.mxu0 %v7366
  %7542 = vmatmul.mubr.f32.gmra.mrb[0].mxu0 %v7214
  %v7543 = vpop.f32.mrb[0].mxu0
  %v7544 = vadd.f32 0.0, %v7543
  %v7545 = vpop.f32.mrb[0].mxu0
  %7546 = vmatprep.mubr.f32.mxu0 %v7369
  %7547 = vmatmul.mubr.f32.gmra.mrb[0].mxu0 %v7216
  %v7548 = vpop.f32.mrb[0].mxu0
  %v7549 = vadd.f32 0.0, %v7548
  %v7550 = vpop.f32.mrb[0].mxu0
  %7551 = vmatprep.mubr.f32.mxu0 %v7372
  %7552 = vmatmul.mubr.f32.gmra.mrb[0].mxu0 %v7218
  %v7553 = vpop.f32.mrb[0].mxu0
  %v7554 = vadd.f32 0.0, %v7553
  %v7555 = vpop.f32.mrb[0].mxu0
  %7556 = vmatprep.mubr.f32.mxu0 %v7375
  %7557 = vmatmul.mubr.f32.gmra.mrb[0].mxu0 %v7220
  %v7558 = vpop.f32.mrb[0].mxu0
  %v7559 = vadd.f32 0.0, %v7558
  %v7560 = vpop.f32.mrb[0].mxu0
  %7561 = vmatprep.mubr.f32.mxu0 %v7378
  %7562 = vmatmul.mubr.f32.gmra.mrb[0].mxu0 %v7222
  %v7563 = vpop.f32.mrb[0].mxu0
  %v7564 = vadd.f32 0.0, %v7563
  %v7565 = vpop.f32.mrb[0].mxu0
  %7566 = vmatprep.mubr.f32.mxu0 %v7381
  %7567 = vmatmul.mubr.f32.gmra.mrb[0].mxu0 %v7224
  %v7568 = vpop.f32.mrb[0].mxu0
  %v7569 = vadd.f32 0.0, %v7568
  %v7570 = vpop.f32.mrb[0].mxu0
  %7571 = vmatprep.mubr.f32.mxu0 %v7384
  %7572 = vmatmul.mubr.f32.gmra.mrb[0].mxu0 %v7226
  %v7573 = vpop.f32.mrb[0].mxu0
  %v7574 = vadd.f32 0.0, %v7573
  %v7575 = vpop.f32.mrb[0].mxu0
  %7576 = vmatprep.mubr.f32.mxu0 %v7387
  %7577 = vmatmul.mubr.f32.gmra.mrb[0].mxu0 %v7228
  %v7578 = vpop.f32.mrb[0].mxu0
  %v7579 = vadd.f32 0.0, %v7578
  %v7580 = vpop.f32.mrb[0].mxu0
  %7581 = vmatprep.mubr.f32.mxu0 %v7390
  %7582 = vmatmul.mubr.f32.gmra.mrb[0].mxu0 %v7230
  %v7583 = vpop.f32.mrb[0].mxu0
  %v7584 = vadd.f32 0.0, %v7583
  %v7585 = vpop.f32.mrb[0].mxu0
  %7586 = vmatprep.mubr.f32.mxu0 %v7393
  %7587 = vmatmul.mubr.f32.gmra.mrb[0].mxu0 %v7232
  %v7588 = vpop.f32.mrb[0].mxu0
  %v7589 = vadd.f32 0.0, %v7588
  %v7590 = vpop.f32.mrb[0].mxu0
  %7591 = vmatprep.mubr.f32.mxu0 %v7396
  %7592 = vmatmul.mubr.f32.gmra.mrb[0].mxu0 %v7234
  %v7593 = vpop.f32.mrb[0].mxu0
  %v7594 = vadd.f32 0.0, %v7593
  %v7595 = vpop.f32.mrb[0].mxu0
  %7596 = vmatprep.mubr.f32.mxu0 %v7399
  %7597 = vmatmul.mubr.f32.gmra.mrb[0].mxu0 %v7236
  %v7598 = vpop.f32.mrb[0].mxu0
  %v7599 = vadd.f32 0.0, %v7598
  %v7600 = vpop.f32.mrb[0].mxu0
  %7601 = vmatprep.mubr.f32.mxu0 %v7402
  %7602 = vmatmul.mubr.f32.gmra.mrb[0].mxu0 %v7238
  %v7603 = vpop.f32.mrb[0].mxu0
  %v7604 = vadd.f32 0.0, %v7603
  %v7605 = vpop.f32.mrb[0].mxu0
  %7606 = vmatprep.mubr.f32.mxu0 %v7405
  %7607 = vmatmul.mubr.f32.gmra.mrb[0].mxu0 %v7240
  %v7608 = vpop.f32.mrb[0].mxu0
  %v7609 = vadd.f32 0.0, %v7608
  %v7610 = vpop.f32.mrb[0].mxu0
  %7611 = vdwg.mxu0
  %v7612 = vadd.f32 %v7047, %v7474
  %v7613 = vadd.f32 %v7052, %v7479
  %v7614 = vadd.f32 %v7057, %v7484
  %v7615 = vadd.f32 %v7062, %v7489
  %v7616 = vadd.f32 %v7067, %v7494
  %v7617 = vadd.f32 %v7072, %v7499
  %v7618 = vadd.f32 %v7077, %v7504
  %v7619 = vadd.f32 %v7082, %v7509
  %v7620 = vadd.f32 %v7087, %v7514
  %v7621 = vadd.f32 %v7092, %v7519
  %v7622 = vadd.f32 %v7097, %v7524
  %v7623 = vadd.f32 %v7102, %v7529
  %v7624 = vadd.f32 %v7107, %v7534
  %v7625 = vadd.f32 %v7112, %v7539
  %v7626 = vadd.f32 %v7117, %v7544
  %v7627 = vadd.f32 %v7122, %v7549
  %v7628 = vadd.f32 %v7127, %v7554
  %v7629 = vadd.f32 %v7132, %v7559
  %v7630 = vadd.f32 %v7137, %v7564
  %v7631 = vadd.f32 %v7142, %v7569
  %v7632 = vadd.f32 %v7147, %v7574
  %v7633 = vadd.f32 %v7152, %v7579
  %v7634 = vadd.f32 %v7157, %v7584
  %v7635 = vadd.f32 %v7162, %v7589
  %v7636 = vadd.f32 %v7167, %v7594
  %v7637 = vadd.f32 %v7172, %v7599
  %v7638 = vadd.f32 %v7177, %v7604
  %v7639 = vadd.f32 %v7182, %v7609
  %s7640 = scalar_lea.vmem %s15, 1344
  %v7641 = vld [vmem:[%s7640] sm:$0xff]
  %v7642 = vld [vmem:[%s7640 + $0x8] sm:$0xff]
  %v7643 = vld [vmem:[%s7640 + $0x10] sm:$0xff]
  %v7644 = vld [vmem:[%s7640 + $0x18] sm:$0xff]
  %v7645 = vld [vmem:[%s7640 + $0x20] sm:$0xff]
  %v7646 = vld [vmem:[%s7640 + $0x28] sm:$0xff]
  %v7647 = vld [vmem:[%s7640 + $0x30] sm:$0xff]
  %v7648 = vld [vmem:[%s7640 + $0x38] sm:$0xff]
  %v7649 = vld [vmem:[%s7640 + $0x40] sm:$0xff]
  %v7650 = vld [vmem:[%s7640 + $0x48] sm:$0xff]
  %v7651 = vld [vmem:[%s7640 + $0x50] sm:$0xff]
  %v7652 = vld [vmem:[%s7640 + $0x58] sm:$0xff]
  %v7653 = vld [vmem:[%s7640 + $0x60] sm:$0xff]
  %v7654 = vld [vmem:[%s7640 + $0x68] sm:$0xff]
  %v7655 = vld [vmem:[%s7640 + $0x70] sm:$0xff]
  %v7656 = vld [vmem:[%s7640 + $0x78] sm:$0xff]
  %v7657 = vld [vmem:[%s7640 + $0x80] sm:$0xff]
  %v7658 = vld [vmem:[%s7640 + $0x88] sm:$0xff]
  %v7659 = vld [vmem:[%s7640 + $0x90] sm:$0xff]
  %v7660 = vld [vmem:[%s7640 + $0x98] sm:$0xff]
  %v7661 = vld [vmem:[%s7640 + $0xa0] sm:$0xff]
  %v7662 = vld [vmem:[%s7640 + $0xa8] sm:$0xff]
  %v7663 = vld [vmem:[%s7640 + $0xb0] sm:$0xff]
  %v7664 = vld [vmem:[%s7640 + $0xb8] sm:$0xff]
  %v7665 = vld [vmem:[%s7640 + $0xc0] sm:$0xff]
  %v7666 = vld [vmem:[%s7640 + $0xc8] sm:$0xff]
  %v7667 = vld [vmem:[%s7640 + $0xd0] sm:$0xff]
  %v7668 = vld [vmem:[%s7640 + $0xd8] sm:$0xff]
  %v7669 = vld [vmem:[%s7640 + $0xe0] sm:$0xff]
  %v7670 = vld [vmem:[%s7640 + $0xe8] sm:$0xff]
  %v7671 = vld [vmem:[%s7640 + $0xf0] sm:$0xff]
  %v7672 = vld [vmem:[%s7640 + $0xf8] sm:$0xff]
  %v7673 = vld [vmem:[%s7640 + $0x100] sm:$0xff]
  %v7674 = vld [vmem:[%s7640 + $0x108] sm:$0xff]
  %v7675 = vld [vmem:[%s7640 + $0x110] sm:$0xff]
  %v7676 = vld [vmem:[%s7640 + $0x118] sm:$0xff]
  %v7677 = vld [vmem:[%s7640 + $0x120] sm:$0xff]
  %v7678 = vld [vmem:[%s7640 + $0x128] sm:$0xff]
  %v7679 = vld [vmem:[%s7640 + $0x130] sm:$0xff]
  %v7680 = vld [vmem:[%s7640 + $0x138] sm:$0xff]
  %v7681 = vld [vmem:[%s7640 + $0x140] sm:$0xff]
  %v7682 = vld [vmem:[%s7640 + $0x148] sm:$0xff]
  %v7683 = vld [vmem:[%s7640 + $0x150] sm:$0xff]
  %v7684 = vld [vmem:[%s7640 + $0x158] sm:$0xff]
  %v7685 = vld [vmem:[%s7640 + $0x160] sm:$0xff]
  %v7686 = vld [vmem:[%s7640 + $0x168] sm:$0xff]
  %v7687 = vld [vmem:[%s7640 + $0x170] sm:$0xff]
  %v7688 = vld [vmem:[%s7640 + $0x178] sm:$0xff]
  %v7689 = vld [vmem:[%s7640 + $0x180] sm:$0xff]
  %v7690 = vld [vmem:[%s7640 + $0x188] sm:$0xff]
  %v7691 = vld [vmem:[%s7640 + $0x190] sm:$0xff]
  %v7692 = vld [vmem:[%s7640 + $0x198] sm:$0xff]
  %v7693 = vld [vmem:[%s7640 + $0x1a0] sm:$0xff]
  %v7694 = vld [vmem:[%s7640 + $0x1a8] sm:$0xff]
  %v7695 = vld [vmem:[%s7640 + $0x1b0] sm:$0xff]
  %v7696 = vld [vmem:[%s7640 + $0x1b8] sm:$0xff]
  %7697 = vrot.lane.b32.xlu0 %v6252, 122
  %v7698 = vpop.permute.xlu0 %7697
  %7699 = vrot.lane.b32.xlu0 %v6257, 122
  %v7700 = vpop.permute.xlu0 %7699
  %7701 = vrot.lane.b32.xlu0 %v6262, 122
  %v7702 = vpop.permute.xlu0 %7701
  %7703 = vrot.lane.b32.xlu0 %v6267, 122
  %v7704 = vpop.permute.xlu0 %7703
  %7705 = vrot.lane.b32.xlu0 %v6272, 122
  %v7706 = vpop.permute.xlu0 %7705
  %7707 = vrot.lane.b32.xlu0 %v6277, 122
  %v7708 = vpop.permute.xlu0 %7707
  %7709 = vrot.lane.b32.xlu0 %v6282, 122
  %v7710 = vpop.permute.xlu0 %7709
  %7711 = vrot.lane.b32.xlu0 %v6287, 122
  %v7712 = vpop.permute.xlu0 %7711
  %7713 = vrot.lane.b32.xlu0 %v6292, 122
  %v7714 = vpop.permute.xlu0 %7713
  %7715 = vrot.lane.b32.xlu0 %v6297, 122
  %v7716 = vpop.permute.xlu0 %7715
  %7717 = vrot.lane.b32.xlu0 %v6302, 122
  %v7718 = vpop.permute.xlu0 %7717
  %7719 = vrot.lane.b32.xlu0 %v6307, 122
  %v7720 = vpop.permute.xlu0 %7719
  %7721 = vrot.lane.b32.xlu0 %v6312, 122
  %v7722 = vpop.permute.xlu0 %7721
  %7723 = vrot.lane.b32.xlu0 %v6317, 122
  %v7724 = vpop.permute.xlu0 %7723
  %7725 = vrot.lane.b32.xlu0 %v6322, 122
  %v7726 = vpop.permute.xlu0 %7725
  %7727 = vrot.lane.b32.xlu0 %v6327, 122
  %v7728 = vpop.permute.xlu0 %7727
  %7729 = vrot.lane.b32.xlu0 %v6332, 122
  %v7730 = vpop.permute.xlu0 %7729
  %7731 = vrot.lane.b32.xlu0 %v6337, 122
  %v7732 = vpop.permute.xlu0 %7731
  %7733 = vrot.lane.b32.xlu0 %v6342, 122
  %v7734 = vpop.permute.xlu0 %7733
  %7735 = vrot.lane.b32.xlu0 %v6347, 122
  %v7736 = vpop.permute.xlu0 %7735
  %7737 = vrot.lane.b32.xlu0 %v6352, 122
  %v7738 = vpop.permute.xlu0 %7737
  %7739 = vrot.lane.b32.xlu0 %v6357, 122
  %v7740 = vpop.permute.xlu0 %7739
  %7741 = vrot.lane.b32.xlu0 %v6362, 122
  %v7742 = vpop.permute.xlu0 %7741
  %7743 = vrot.lane.b32.xlu0 %v6367, 122
  %v7744 = vpop.permute.xlu0 %7743
  %7745 = vrot.lane.b32.xlu0 %v6372, 122
  %v7746 = vpop.permute.xlu0 %7745
  %7747 = vrot.lane.b32.xlu0 %v6377, 122
  %v7748 = vpop.permute.xlu0 %7747
  %7749 = vrot.lane.b32.xlu0 %v6382, 122
  %v7750 = vpop.permute.xlu0 %7749
  %v7779 = vsel %vm6606, %v7642, 0
  %v7782 = vsel %vm6606, %v7644, 0
  %v7785 = vsel %vm6606, %v7646, 0
  %v7788 = vsel %vm6606, %v7648, 0
  %v7791 = vsel %vm6606, %v7650, 0
  %v7794 = vsel %vm6606, %v7652, 0
  %v7797 = vsel %vm6606, %v7654, 0
  %v7800 = vsel %vm6606, %v7656, 0
  %v7803 = vsel %vm6606, %v7658, 0
  %v7806 = vsel %vm6606, %v7660, 0
  %v7809 = vsel %vm6606, %v7662, 0
  %v7812 = vsel %vm6606, %v7664, 0
  %v7815 = vsel %vm6606, %v7666, 0
  %v7818 = vsel %vm6606, %v7668, 0
  %v7821 = vsel %vm6606, %v7670, 0
  %v7824 = vsel %vm6606, %v7672, 0
  %v7827 = vsel %vm6606, %v7674, 0
  %v7830 = vsel %vm6606, %v7676, 0
  %v7833 = vsel %vm6606, %v7678, 0
  %v7836 = vsel %vm6606, %v7680, 0
  %v7839 = vsel %vm6606, %v7682, 0
  %v7842 = vsel %vm6606, %v7684, 0
  %v7845 = vsel %vm6606, %v7686, 0
  %v7848 = vsel %vm6606, %v7688, 0
  %v7851 = vsel %vm6606, %v7690, 0
  %v7854 = vsel %vm6606, %v7692, 0
  %v7857 = vsel %vm6606, %v7694, 0
  %v7860 = vsel %vm6606, %v7696, 0
  %7862 = vmatprep.subr.mxu0 0.0
  %7863 = vmatpush1.msra.mxu0 %v7698
  %7864 = vmatprep.subr.mxu0 0.0
  %7865 = vmatpush1.msra.mxu0 %v7700
  %7866 = vmatprep.subr.mxu0 0.0
  %7867 = vmatpush1.msra.mxu0 %v7702
  %7868 = vmatprep.subr.mxu0 0.0
  %7869 = vmatpush1.msra.mxu0 %v7704
  %7870 = vmatprep.subr.mxu0 0.0
  %7871 = vmatpush1.msra.mxu0 %v7706
  %7872 = vmatprep.subr.mxu0 0.0
  %7873 = vmatpush1.msra.mxu0 %v7708
  %7874 = vmatprep.subr.mxu0 0.0
  %7875 = vmatpush1.msra.mxu0 %v7710
  %7876 = vmatprep.subr.mxu0 0.0
  %7877 = vmatpush1.msra.mxu0 %v7712
  %7878 = vmatprep.subr.mxu0 0.0
  %7879 = vmatpush1.msra.mxu0 %v7714
  %7880 = vmatprep.subr.mxu0 0.0
  %7881 = vmatpush1.msra.mxu0 %v7716
  %7882 = vmatprep.subr.mxu0 0.0
  %7883 = vmatpush1.msra.mxu0 %v7718
  %7884 = vmatprep.subr.mxu0 0.0
  %7885 = vmatpush1.msra.mxu0 %v7720
  %7886 = vmatprep.subr.mxu0 0.0
  %7887 = vmatpush1.msra.mxu0 %v7722
  %7888 = vmatprep.subr.mxu0 0.0
  %7889 = vmatpush1.msra.mxu0 %v7724
  %7890 = vmatprep.subr.mxu0 0.0
  %7891 = vmatpush1.msra.mxu0 %v7726
  %7892 = vmatprep.subr.mxu0 0.0
  %7893 = vmatpush1.msra.mxu0 %v7728
  %7894 = vmatprep.subr.mxu0 0.0
  %7895 = vmatpush1.msra.mxu0 %v7730
  %7896 = vmatprep.subr.mxu0 0.0
  %7897 = vmatpush1.msra.mxu0 %v7732
  %7898 = vmatprep.subr.mxu0 0.0
  %7899 = vmatpush1.msra.mxu0 %v7734
  %7900 = vmatprep.subr.mxu0 0.0
  %7901 = vmatpush1.msra.mxu0 %v7736
  %7902 = vmatprep.subr.mxu0 0.0
  %7903 = vmatpush1.msra.mxu0 %v7738
  %7904 = vmatprep.subr.mxu0 0.0
  %7905 = vmatpush1.msra.mxu0 %v7740
  %7906 = vmatprep.subr.mxu0 0.0
  %7907 = vmatpush1.msra.mxu0 %v7742
  %7908 = vmatprep.subr.mxu0 0.0
  %7909 = vmatpush1.msra.mxu0 %v7744
  %7910 = vmatprep.subr.mxu0 0.0
  %7911 = vmatpush1.msra.mxu0 %v7746
  %7912 = vmatprep.subr.mxu0 0.0
  %7913 = vmatpush1.msra.mxu0 %v7748
  %7914 = vmatprep.subr.mxu0 0.0
  %7915 = vmatpush1.msra.mxu0 %v7750
  %7916 = vmatprep.subr.mxu0 0.0
  %7917 = vmatpush1.msra.mxu0 0.0
  %7918 = vmatprep.subr.mxu0 0.0
  %7919 = vmatpush1.msra.mxu0 0.0
  %7920 = vmatprep.subr.mxu0 0.0
  %7921 = vmatpush1.msra.mxu0 0.0
  %7922 = vmatprep.subr.mxu0 0.0
  %7923 = vmatpush1.msra.mxu0 0.0
  %7924 = vmatprep.subr.mxu0 0.0
  %7925 = vmatpush1.msra.mxu0 0.0
  %7926 = vmatprep.mubr.f32.mxu0 %v7779
  %7927 = vmatmul.mubr.f32.gmra.mrb[0].mxu0 %v7641
  %v7928 = vpop.f32.mrb[0].mxu0
  %v7929 = vadd.f32 0.0, %v7928
  %v7930 = vpop.f32.mrb[0].mxu0
  %7931 = vmatprep.mubr.f32.mxu0 %v7782
  %7932 = vmatmul.mubr.f32.gmra.mrb[0].mxu0 %v7643
  %v7933 = vpop.f32.mrb[0].mxu0
  %v7934 = vadd.f32 0.0, %v7933
  %v7935 = vpop.f32.mrb[0].mxu0
  %7936 = vmatprep.mubr.f32.mxu0 %v7785
  %7937 = vmatmul.mubr.f32.gmra.mrb[0].mxu0 %v7645
  %v7938 = vpop.f32.mrb[0].mxu0
  %v7939 = vadd.f32 0.0, %v7938
  %v7940 = vpop.f32.mrb[0].mxu0
  %7941 = vmatprep.mubr.f32.mxu0 %v7788
  %7942 = vmatmul.mubr.f32.gmra.mrb[0].mxu0 %v7647
  %v7943 = vpop.f32.mrb[0].mxu0
  %v7944 = vadd.f32 0.0, %v7943
  %v7945 = vpop.f32.mrb[0].mxu0
  %7946 = vmatprep.mubr.f32.mxu0 %v7791
  %7947 = vmatmul.mubr.f32.gmra.mrb[0].mxu0 %v7649
  %v7948 = vpop.f32.mrb[0].mxu0
  %v7949 = vadd.f32 0.0, %v7948
  %v7950 = vpop.f32.mrb[0].mxu0
  %7951 = vmatprep.mubr.f32.mxu0 %v7794
  %7952 = vmatmul.mubr.f32.gmra.mrb[0].mxu0 %v7651
  %v7953 = vpop.f32.mrb[0].mxu0
  %v7954 = vadd.f32 0.0, %v7953
  %v7955 = vpop.f32.mrb[0].mxu0
  %7956 = vmatprep.mubr.f32.mxu0 %v7797
  %7957 = vmatmul.mubr.f32.gmra.mrb[0].mxu0 %v7653
  %v7958 = vpop.f32.mrb[0].mxu0
  %v7959 = vadd.f32 0.0, %v7958
  %v7960 = vpop.f32.mrb[0].mxu0
  %7961 = vmatprep.mubr.f32.mxu0 %v7800
  %7962 = vmatmul.mubr.f32.gmra.mrb[0].mxu0 %v7655
  %v7963 = vpop.f32.mrb[0].mxu0
  %v7964 = vadd.f32 0.0, %v7963
  %v7965 = vpop.f32.mrb[0].mxu0
  %7966 = vmatprep.mubr.f32.mxu0 %v7803
  %7967 = vmatmul.mubr.f32.gmra.mrb[0].mxu0 %v7657
  %v7968 = vpop.f32.mrb[0].mxu0
  %v7969 = vadd.f32 0.0, %v7968
  %v7970 = vpop.f32.mrb[0].mxu0
  %7971 = vmatprep.mubr.f32.mxu0 %v7806
  %7972 = vmatmul.mubr.f32.gmra.mrb[0].mxu0 %v7659
  %v7973 = vpop.f32.mrb[0].mxu0
  %v7974 = vadd.f32 0.0, %v7973
  %v7975 = vpop.f32.mrb[0].mxu0
  %7976 = vmatprep.mubr.f32.mxu0 %v7809
  %7977 = vmatmul.mubr.f32.gmra.mrb[0].mxu0 %v7661
  %v7978 = vpop.f32.mrb[0].mxu0
  %v7979 = vadd.f32 0.0, %v7978
  %v7980 = vpop.f32.mrb[0].mxu0
  %7981 = vmatprep.mubr.f32.mxu0 %v7812
  %7982 = vmatmul.mubr.f32.gmra.mrb[0].mxu0 %v7663
  %v7983 = vpop.f32.mrb[0].mxu0
  %v7984 = vadd.f32 0.0, %v7983
  %v7985 = vpop.f32.mrb[0].mxu0
  %7986 = vmatprep.mubr.f32.mxu0 %v7815
  %7987 = vmatmul.mubr.f32.gmra.mrb[0].mxu0 %v7665
  %v7988 = vpop.f32.mrb[0].mxu0
  %v7989 = vadd.f32 0.0, %v7988
  %v7990 = vpop.f32.mrb[0].mxu0
  %7991 = vmatprep.mubr.f32.mxu0 %v7818
  %7992 = vmatmul.mubr.f32.gmra.mrb[0].mxu0 %v7667
  %v7993 = vpop.f32.mrb[0].mxu0
  %v7994 = vadd.f32 0.0, %v7993
  %v7995 = vpop.f32.mrb[0].mxu0
  %7996 = vmatprep.mubr.f32.mxu0 %v7821
  %7997 = vmatmul.mubr.f32.gmra.mrb[0].mxu0 %v7669
  %v7998 = vpop.f32.mrb[0].mxu0
  %v7999 = vadd.f32 0.0, %v7998
  %v8000 = vpop.f32.mrb[0].mxu0
  %8001 = vmatprep.mubr.f32.mxu0 %v7824
  %8002 = vmatmul.mubr.f32.gmra.mrb[0].mxu0 %v7671
  %v8003 = vpop.f32.mrb[0].mxu0
  %v8004 = vadd.f32 0.0, %v8003
  %v8005 = vpop.f32.mrb[0].mxu0
  %8006 = vmatprep.mubr.f32.mxu0 %v7827
  %8007 = vmatmul.mubr.f32.gmra.mrb[0].mxu0 %v7673
  %v8008 = vpop.f32.mrb[0].mxu0
  %v8009 = vadd.f32 0.0, %v8008
  %v8010 = vpop.f32.mrb[0].mxu0
  %8011 = vmatprep.mubr.f32.mxu0 %v7830
  %8012 = vmatmul.mubr.f32.gmra.mrb[0].mxu0 %v7675
  %v8013 = vpop.f32.mrb[0].mxu0
  %v8014 = vadd.f32 0.0, %v8013
  %v8015 = vpop.f32.mrb[0].mxu0
  %8016 = vmatprep.mubr.f32.mxu0 %v7833
  %8017 = vmatmul.mubr.f32.gmra.mrb[0].mxu0 %v7677
  %v8018 = vpop.f32.mrb[0].mxu0
  %v8019 = vadd.f32 0.0, %v8018
  %v8020 = vpop.f32.mrb[0].mxu0
  %8021 = vmatprep.mubr.f32.mxu0 %v7836
  %8022 = vmatmul.mubr.f32.gmra.mrb[0].mxu0 %v7679
  %v8023 = vpop.f32.mrb[0].mxu0
  %v8024 = vadd.f32 0.0, %v8023
  %v8025 = vpop.f32.mrb[0].mxu0
  %8026 = vmatprep.mubr.f32.mxu0 %v7839
  %8027 = vmatmul.mubr.f32.gmra.mrb[0].mxu0 %v7681
  %v8028 = vpop.f32.mrb[0].mxu0
  %v8029 = vadd.f32 0.0, %v8028
  %v8030 = vpop.f32.mrb[0].mxu0
  %8031 = vmatprep.mubr.f32.mxu0 %v7842
  %8032 = vmatmul.mubr.f32.gmra.mrb[0].mxu0 %v7683
  %v8033 = vpop.f32.mrb[0].mxu0
  %v8034 = vadd.f32 0.0, %v8033
  %v8035 = vpop.f32.mrb[0].mxu0
  %8036 = vmatprep.mubr.f32.mxu0 %v7845
  %8037 = vmatmul.mubr.f32.gmra.mrb[0].mxu0 %v7685
  %v8038 = vpop.f32.mrb[0].mxu0
  %v8039 = vadd.f32 0.0, %v8038
  %v8040 = vpop.f32.mrb[0].mxu0
  %8041 = vmatprep.mubr.f32.mxu0 %v7848
  %8042 = vmatmul.mubr.f32.gmra.mrb[0].mxu0 %v7687
  %v8043 = vpop.f32.mrb[0].mxu0
  %v8044 = vadd.f32 0.0, %v8043
  %v8045 = vpop.f32.mrb[0].mxu0
  %8046 = vmatprep.mubr.f32.mxu0 %v7851
  %8047 = vmatmul.mubr.f32.gmra.mrb[0].mxu0 %v7689
  %v8048 = vpop.f32.mrb[0].mxu0
  %v8049 = vadd.f32 0.0, %v8048
  %v8050 = vpop.f32.mrb[0].mxu0
  %8051 = vmatprep.mubr.f32.mxu0 %v7854
  %8052 = vmatmul.mubr.f32.gmra.mrb[0].mxu0 %v7691
  %v8053 = vpop.f32.mrb[0].mxu0
  %v8054 = vadd.f32 0.0, %v8053
  %v8055 = vpop.f32.mrb[0].mxu0
  %8056 = vmatprep.mubr.f32.mxu0 %v7857
  %8057 = vmatmul.mubr.f32.gmra.mrb[0].mxu0 %v7693
  %v8058 = vpop.f32.mrb[0].mxu0
  %v8059 = vadd.f32 0.0, %v8058
  %v8060 = vpop.f32.mrb[0].mxu0
  %8061 = vmatprep.mubr.f32.mxu0 %v7860
  %8062 = vmatmul.mubr.f32.gmra.mrb[0].mxu0 %v7695
  %v8063 = vpop.f32.mrb[0].mxu0
  %v8064 = vadd.f32 0.0, %v8063
  %v8065 = vpop.f32.mrb[0].mxu0
  %8066 = vdwg.mxu0
  %v8067 = vadd.f32 %v7612, %v7929
  %v8068 = vadd.f32 %v7613, %v7934
  %v8069 = vadd.f32 %v7614, %v7939
  %v8070 = vadd.f32 %v7615, %v7944
  %v8071 = vadd.f32 %v7616, %v7949
  %v8072 = vadd.f32 %v7617, %v7954
  %v8073 = vadd.f32 %v7618, %v7959
  %v8074 = vadd.f32 %v7619, %v7964
  %v8075 = vadd.f32 %v7620, %v7969
  %v8076 = vadd.f32 %v7621, %v7974
  %v8077 = vadd.f32 %v7622, %v7979
  %v8078 = vadd.f32 %v7623, %v7984
  %v8079 = vadd.f32 %v7624, %v7989
  %v8080 = vadd.f32 %v7625, %v7994
  %v8081 = vadd.f32 %v7626, %v7999
  %v8082 = vadd.f32 %v7627, %v8004
  %v8083 = vadd.f32 %v7628, %v8009
  %v8084 = vadd.f32 %v7629, %v8014
  %v8085 = vadd.f32 %v7630, %v8019
  %v8086 = vadd.f32 %v7631, %v8024
  %v8087 = vadd.f32 %v7632, %v8029
  %v8088 = vadd.f32 %v7633, %v8034
  %v8089 = vadd.f32 %v7634, %v8039
  %v8090 = vadd.f32 %v7635, %v8044
  %v8091 = vadd.f32 %v7636, %v8049
  %v8092 = vadd.f32 %v7637, %v8054
  %v8093 = vadd.f32 %v7638, %v8059
  %v8094 = vadd.f32 %v7639, %v8064
  %v8095 = vld [vmem:[%s16] sm:$0xff]
  %v8096 = vld [vmem:[%s16 + $0x8] sm:$0xff]
  %v8097 = vld [vmem:[%s16 + $0x10] sm:$0xff]
  %v8098 = vld [vmem:[%s16 + $0x18] sm:$0xff]
  %v8099 = vld [vmem:[%s16 + $0x20] sm:$0xff]
  %v8100 = vld [vmem:[%s16 + $0x28] sm:$0xff]
  %v8101 = vld [vmem:[%s16 + $0x30] sm:$0xff]
  %v8102 = vld [vmem:[%s16 + $0x38] sm:$0xff]
  %v8103 = vld [vmem:[%s16 + $0x40] sm:$0xff]
  %v8104 = vld [vmem:[%s16 + $0x48] sm:$0xff]
  %v8105 = vld [vmem:[%s16 + $0x50] sm:$0xff]
  %v8106 = vld [vmem:[%s16 + $0x58] sm:$0xff]
  %v8107 = vld [vmem:[%s16 + $0x60] sm:$0xff]
  %v8108 = vld [vmem:[%s16 + $0x68] sm:$0xff]
  %v8109 = vld [vmem:[%s16 + $0x70] sm:$0xff]
  %v8110 = vld [vmem:[%s16 + $0x78] sm:$0xff]
  %v8111 = vld [vmem:[%s16 + $0x80] sm:$0xff]
  %v8112 = vld [vmem:[%s16 + $0x88] sm:$0xff]
  %v8113 = vld [vmem:[%s16 + $0x90] sm:$0xff]
  %v8114 = vld [vmem:[%s16 + $0x98] sm:$0xff]
  %v8115 = vld [vmem:[%s16 + $0xa0] sm:$0xff]
  %v8116 = vld [vmem:[%s16 + $0xa8] sm:$0xff]
  %v8117 = vld [vmem:[%s16 + $0xb0] sm:$0xff]
  %v8118 = vld [vmem:[%s16 + $0xb8] sm:$0xff]
  %v8119 = vld [vmem:[%s16 + $0xc0] sm:$0xff]
  %v8120 = vld [vmem:[%s16 + $0xc8] sm:$0xff]
  %v8121 = vld [vmem:[%s16 + $0xd0] sm:$0xff]
  %v8122 = vld [vmem:[%s16 + $0xd8] sm:$0xff]
  %8124 = vset.pattern.permute.xlu0 0
  %8125 = vperm.xlu0 %8124, %v8095
  %v8126 = vpop.permute.xlu0 %8125
  %8129 = vset.pattern.permute.xlu0 0
  %8130 = vperm.xlu0 %8129, %v8096
  %v8131 = vpop.permute.xlu0 %8130
  %8134 = vset.pattern.permute.xlu0 0
  %8135 = vperm.xlu0 %8134, %v8097
  %v8136 = vpop.permute.xlu0 %8135
  %8139 = vset.pattern.permute.xlu0 0
  %8140 = vperm.xlu0 %8139, %v8098
  %v8141 = vpop.permute.xlu0 %8140
  %8144 = vset.pattern.permute.xlu0 0
  %8145 = vperm.xlu0 %8144, %v8099
  %v8146 = vpop.permute.xlu0 %8145
  %8149 = vset.pattern.permute.xlu0 0
  %8150 = vperm.xlu0 %8149, %v8100
  %v8151 = vpop.permute.xlu0 %8150
  %8154 = vset.pattern.permute.xlu0 0
  %8155 = vperm.xlu0 %8154, %v8101
  %v8156 = vpop.permute.xlu0 %8155
  %8159 = vset.pattern.permute.xlu0 0
  %8160 = vperm.xlu0 %8159, %v8102
  %v8161 = vpop.permute.xlu0 %8160
  %8164 = vset.pattern.permute.xlu0 0
  %8165 = vperm.xlu0 %8164, %v8103
  %v8166 = vpop.permute.xlu0 %8165
  %8169 = vset.pattern.permute.xlu0 0
  %8170 = vperm.xlu0 %8169, %v8104
  %v8171 = vpop.permute.xlu0 %8170
  %8174 = vset.pattern.permute.xlu0 0
  %8175 = vperm.xlu0 %8174, %v8105
  %v8176 = vpop.permute.xlu0 %8175
  %8179 = vset.pattern.permute.xlu0 0
  %8180 = vperm.xlu0 %8179, %v8106
  %v8181 = vpop.permute.xlu0 %8180
  %8184 = vset.pattern.permute.xlu0 0
  %8185 = vperm.xlu0 %8184, %v8107
  %v8186 = vpop.permute.xlu0 %8185
  %8189 = vset.pattern.permute.xlu0 0
  %8190 = vperm.xlu0 %8189, %v8108
  %v8191 = vpop.permute.xlu0 %8190
  %8194 = vset.pattern.permute.xlu0 0
  %8195 = vperm.xlu0 %8194, %v8109
  %v8196 = vpop.permute.xlu0 %8195
  %8199 = vset.pattern.permute.xlu0 0
  %8200 = vperm.xlu0 %8199, %v8110
  %v8201 = vpop.permute.xlu0 %8200
  %8204 = vset.pattern.permute.xlu0 0
  %8205 = vperm.xlu0 %8204, %v8111
  %v8206 = vpop.permute.xlu0 %8205
  %8209 = vset.pattern.permute.xlu0 0
  %8210 = vperm.xlu0 %8209, %v8112
  %v8211 = vpop.permute.xlu0 %8210
  %8214 = vset.pattern.permute.xlu0 0
  %8215 = vperm.xlu0 %8214, %v8113
  %v8216 = vpop.permute.xlu0 %8215
  %8219 = vset.pattern.permute.xlu0 0
  %8220 = vperm.xlu0 %8219, %v8114
  %v8221 = vpop.permute.xlu0 %8220
  %8224 = vset.pattern.permute.xlu0 0
  %8225 = vperm.xlu0 %8224, %v8115
  %v8226 = vpop.permute.xlu0 %8225
  %8229 = vset.pattern.permute.xlu0 0
  %8230 = vperm.xlu0 %8229, %v8116
  %v8231 = vpop.permute.xlu0 %8230
  %8234 = vset.pattern.permute.xlu0 0
  %8235 = vperm.xlu0 %8234, %v8117
  %v8236 = vpop.permute.xlu0 %8235
  %8239 = vset.pattern.permute.xlu0 0
  %8240 = vperm.xlu0 %8239, %v8118
  %v8241 = vpop.permute.xlu0 %8240
  %8244 = vset.pattern.permute.xlu0 0
  %8245 = vperm.xlu0 %8244, %v8119
  %v8246 = vpop.permute.xlu0 %8245
  %8249 = vset.pattern.permute.xlu0 0
  %8250 = vperm.xlu0 %8249, %v8120
  %v8251 = vpop.permute.xlu0 %8250
  %8254 = vset.pattern.permute.xlu0 0
  %8255 = vperm.xlu0 %8254, %v8121
  %v8256 = vpop.permute.xlu0 %8255
  %8259 = vset.pattern.permute.xlu0 0
  %8260 = vperm.xlu0 %8259, %v8122
  %v8261 = vpop.permute.xlu0 %8260
  %v8263 = vadd.f32 %v8067, %v8126
  %v8264 = vadd.f32 %v8068, %v8131
  %v8265 = vadd.f32 %v8069, %v8136
  %v8266 = vadd.f32 %v8070, %v8141
  %v8267 = vadd.f32 %v8071, %v8146
  %v8268 = vadd.f32 %v8072, %v8151
  %v8269 = vadd.f32 %v8073, %v8156
  %v8270 = vadd.f32 %v8074, %v8161
  %v8271 = vadd.f32 %v8075, %v8166
  %v8272 = vadd.f32 %v8076, %v8171
  %v8273 = vadd.f32 %v8077, %v8176
  %v8274 = vadd.f32 %v8078, %v8181
  %v8275 = vadd.f32 %v8079, %v8186
  %v8276 = vadd.f32 %v8080, %v8191
  %v8277 = vadd.f32 %v8081, %v8196
  %v8278 = vadd.f32 %v8082, %v8201
  %v8279 = vadd.f32 %v8083, %v8206
  %v8280 = vadd.f32 %v8084, %v8211
  %v8281 = vadd.f32 %v8085, %v8216
  %v8282 = vadd.f32 %v8086, %v8221
  %v8283 = vadd.f32 %v8087, %v8226
  %v8284 = vadd.f32 %v8088, %v8231
  %v8285 = vadd.f32 %v8089, %v8236
  %v8286 = vadd.f32 %v8090, %v8241
  %v8287 = vadd.f32 %v8091, %v8246
  %v8288 = vadd.f32 %v8092, %v8251
  %v8289 = vadd.f32 %v8093, %v8256
  %v8290 = vadd.f32 %v8094, %v8261
  %v8291 = vmax.f32 %v8263, 0.0
  %v8292 = vmax.f32 %v8264, 0.0
  %v8293 = vmax.f32 %v8265, 0.0
  %v8294 = vmax.f32 %v8266, 0.0
  %v8295 = vmax.f32 %v8267, 0.0
  %v8296 = vmax.f32 %v8268, 0.0
  %v8297 = vmax.f32 %v8269, 0.0
  %v8298 = vmax.f32 %v8270, 0.0
  %v8299 = vmax.f32 %v8271, 0.0
  %v8300 = vmax.f32 %v8272, 0.0
  %v8301 = vmax.f32 %v8273, 0.0
  %v8302 = vmax.f32 %v8274, 0.0
  %v8303 = vmax.f32 %v8275, 0.0
  %v8304 = vmax.f32 %v8276, 0.0
  %v8305 = vmax.f32 %v8277, 0.0
  %v8306 = vmax.f32 %v8278, 0.0
  %v8307 = vmax.f32 %v8279, 0.0
  %v8308 = vmax.f32 %v8280, 0.0
  %v8309 = vmax.f32 %v8281, 0.0
  %v8310 = vmax.f32 %v8282, 0.0
  %v8311 = vmax.f32 %v8283, 0.0
  %v8312 = vmax.f32 %v8284, 0.0
  %v8313 = vmax.f32 %v8285, 0.0
  %v8314 = vmax.f32 %v8286, 0.0
  %v8315 = vmax.f32 %v8287, 0.0
  %v8316 = vmax.f32 %v8288, 0.0
  %v8317 = vmax.f32 %v8289, 0.0
  %v8318 = vmax.f32 %v8290, 0.0
  %v8319 = vld [vmem:[%s17] sm:$0xff]
  %v8320 = vld [vmem:[%s17 + $0x8] sm:$0xff]
  %v8321 = vld [vmem:[%s17 + $0x10] sm:$0xff]
  %v8322 = vld [vmem:[%s17 + $0x18] sm:$0xff]
  %v8323 = vld [vmem:[%s17 + $0x20] sm:$0xff]
  %v8324 = vld [vmem:[%s17 + $0x28] sm:$0xff]
  %v8325 = vld [vmem:[%s17 + $0x30] sm:$0xff]
  %vm8326 = vcmask 457728
  %v8328 = vsel %vm8326, %v8291, 0
  %v8331 = vsel %vm8326, %v8292, 0
  %v8334 = vsel %vm8326, %v8293, 0
  %v8337 = vsel %vm8326, %v8294, 0
  %v8340 = vsel %vm8326, %v8295, 0
  %v8343 = vsel %vm8326, %v8296, 0
  %v8346 = vsel %vm8326, %v8297, 0
  %v8349 = vsel %vm8326, %v8298, 0
  %v8352 = vsel %vm8326, %v8299, 0
  %v8355 = vsel %vm8326, %v8300, 0
  %v8358 = vsel %vm8326, %v8301, 0
  %v8361 = vsel %vm8326, %v8302, 0
  %v8364 = vsel %vm8326, %v8303, 0
  %v8367 = vsel %vm8326, %v8304, 0
  %v8370 = vsel %vm8326, %v8305, 0
  %v8373 = vsel %vm8326, %v8306, 0
  %v8376 = vsel %vm8326, %v8307, 0
  %v8379 = vsel %vm8326, %v8308, 0
  %v8382 = vsel %vm8326, %v8309, 0
  %v8385 = vsel %vm8326, %v8310, 0
  %v8388 = vsel %vm8326, %v8311, 0
  %v8391 = vsel %vm8326, %v8312, 0
  %v8394 = vsel %vm8326, %v8313, 0
  %v8397 = vsel %vm8326, %v8314, 0
  %v8400 = vsel %vm8326, %v8315, 0
  %v8403 = vsel %vm8326, %v8316, 0
  %v8406 = vsel %vm8326, %v8317, 0
  %v8409 = vsel %vm8326, %v8318, 0
  %8411 = vmatprep.subr.mxu0 0.0
  %8412 = vmatpush1.msra.mxu0 %v8319
  %8413 = vmatprep.subr.mxu0 0.0
  %8414 = vmatpush1.msra.mxu0 %v8320
  %8415 = vmatprep.subr.mxu0 0.0
  %8416 = vmatpush1.msra.mxu0 %v8321
  %8417 = vmatprep.subr.mxu0 0.0
  %8418 = vmatpush1.msra.mxu0 %v8322
  %8419 = vmatprep.subr.mxu0 0.0
  %8420 = vmatpush1.msra.mxu0 %v8323
  %8421 = vmatprep.subr.mxu0 0.0
  %8422 = vmatpush1.msra.mxu0 %v8324
  %8423 = vmatprep.subr.mxu0 0.0
  %8424 = vmatpush1.msra.mxu0 %v8325
  %8425 = vmatprep.subr.mxu0 0.0
  %8426 = vmatpush1.msra.mxu0 0.0
  %8427 = vmatprep.subr.mxu0 0.0
  %8428 = vmatpush1.msra.mxu0 0.0
  %8429 = vmatprep.subr.mxu0 0.0
  %8430 = vmatpush1.msra.mxu0 0.0
  %8431 = vmatprep.subr.mxu0 0.0
  %8432 = vmatpush1.msra.mxu0 0.0
  %8433 = vmatprep.subr.mxu0 0.0
  %8434 = vmatpush1.msra.mxu0 0.0
  %8435 = vmatprep.subr.mxu0 0.0
  %8436 = vmatpush1.msra.mxu0 0.0
  %8437 = vmatprep.subr.mxu0 0.0
  %8438 = vmatpush1.msra.mxu0 0.0
  %8439 = vmatprep.subr.mxu0 0.0
  %8440 = vmatpush1.msra.mxu0 0.0
  %8441 = vmatprep.subr.mxu0 0.0
  %8442 = vmatpush1.msra.mxu0 0.0
  %8443 = vmatprep.subr.mxu0 0.0
  %8444 = vmatpush1.msra.mxu0 0.0
  %8445 = vmatprep.subr.mxu0 0.0
  %8446 = vmatpush1.msra.mxu0 0.0
  %8447 = vmatprep.subr.mxu0 0.0
  %8448 = vmatpush1.msra.mxu0 0.0
  %8449 = vmatprep.subr.mxu0 0.0
  %8450 = vmatpush1.msra.mxu0 0.0
  %8451 = vmatprep.subr.mxu0 0.0
  %8452 = vmatpush1.msra.mxu0 0.0
  %8453 = vmatprep.subr.mxu0 0.0
  %8454 = vmatpush1.msra.mxu0 0.0
  %8455 = vmatprep.subr.mxu0 0.0
  %8456 = vmatpush1.msra.mxu0 0.0
  %8457 = vmatprep.subr.mxu0 0.0
  %8458 = vmatpush1.msra.mxu0 0.0
  %8459 = vmatprep.subr.mxu0 0.0
  %8460 = vmatpush1.msra.mxu0 0.0
  %8461 = vmatprep.subr.mxu0 0.0
  %8462 = vmatpush1.msra.mxu0 0.0
  %8463 = vmatprep.subr.mxu0 0.0
  %8464 = vmatpush1.msra.mxu0 0.0
  %8465 = vmatprep.subr.mxu0 0.0
  %8466 = vmatpush1.msra.mxu0 0.0
  %8467 = vmatprep.subr.mxu0 0.0
  %8468 = vmatpush1.msra.mxu0 0.0
  %8469 = vmatprep.subr.mxu0 0.0
  %8470 = vmatpush1.msra.mxu0 0.0
  %8471 = vmatprep.subr.mxu0 0.0
  %8472 = vmatpush1.msra.mxu0 0.0
  %8473 = vmatprep.subr.mxu0 0.0
  %8474 = vmatpush1.msra.mxu0 0.0
  %8475 = vmatprep.mubr.f32.mxu0 0.0
  %8476 = vmatmul.mubr.f32.gmra.mrb[0].mxu0 %v8328
  %v8477 = vpop.f32.mrb[0].mxu0
  %v8478 = vadd.f32 0.0, %v8477
  %v8479 = vpop.f32.mrb[0].mxu0
  %8480 = vmatprep.mubr.f32.mxu0 0.0
  %8481 = vmatmul.mubr.f32.gmra.mrb[0].mxu0 %v8331
  %v8482 = vpop.f32.mrb[0].mxu0
  %v8483 = vadd.f32 0.0, %v8482
  %v8484 = vpop.f32.mrb[0].mxu0
  %8485 = vmatprep.mubr.f32.mxu0 0.0
  %8486 = vmatmul.mubr.f32.gmra.mrb[0].mxu0 %v8334
  %v8487 = vpop.f32.mrb[0].mxu0
  %v8488 = vadd.f32 0.0, %v8487
  %v8489 = vpop.f32.mrb[0].mxu0
  %8490 = vmatprep.mubr.f32.mxu0 0.0
  %8491 = vmatmul.mubr.f32.gmra.mrb[0].mxu0 %v8337
  %v8492 = vpop.f32.mrb[0].mxu0
  %v8493 = vadd.f32 0.0, %v8492
  %v8494 = vpop.f32.mrb[0].mxu0
  %8495 = vmatprep.mubr.f32.mxu0 0.0
  %8496 = vmatmul.mubr.f32.gmra.mrb[0].mxu0 %v8340
  %v8497 = vpop.f32.mrb[0].mxu0
  %v8498 = vadd.f32 0.0, %v8497
  %v8499 = vpop.f32.mrb[0].mxu0
  %8500 = vmatprep.mubr.f32.mxu0 0.0
  %8501 = vmatmul.mubr.f32.gmra.mrb[0].mxu0 %v8343
  %v8502 = vpop.f32.mrb[0].mxu0
  %v8503 = vadd.f32 0.0, %v8502
  %v8504 = vpop.f32.mrb[0].mxu0
  %8505 = vmatprep.mubr.f32.mxu0 0.0
  %8506 = vmatmul.mubr.f32.gmra.mrb[0].mxu0 %v8346
  %v8507 = vpop.f32.mrb[0].mxu0
  %v8508 = vadd.f32 0.0, %v8507
  %v8509 = vpop.f32.mrb[0].mxu0
  %8510 = vmatprep.mubr.f32.mxu0 0.0
  %8511 = vmatmul.mubr.f32.gmra.mrb[0].mxu0 %v8349
  %v8512 = vpop.f32.mrb[0].mxu0
  %v8513 = vadd.f32 0.0, %v8512
  %v8514 = vpop.f32.mrb[0].mxu0
  %8515 = vmatprep.mubr.f32.mxu0 0.0
  %8516 = vmatmul.mubr.f32.gmra.mrb[0].mxu0 %v8352
  %v8517 = vpop.f32.mrb[0].mxu0
  %v8518 = vadd.f32 0.0, %v8517
  %v8519 = vpop.f32.mrb[0].mxu0
  %8520 = vmatprep.mubr.f32.mxu0 0.0
  %8521 = vmatmul.mubr.f32.gmra.mrb[0].mxu0 %v8355
  %v8522 = vpop.f32.mrb[0].mxu0
  %v8523 = vadd.f32 0.0, %v8522
  %v8524 = vpop.f32.mrb[0].mxu0
  %8525 = vmatprep.mubr.f32.mxu0 0.0
  %8526 = vmatmul.mubr.f32.gmra.mrb[0].mxu0 %v8358
  %v8527 = vpop.f32.mrb[0].mxu0
  %v8528 = vadd.f32 0.0, %v8527
  %v8529 = vpop.f32.mrb[0].mxu0
  %8530 = vmatprep.mubr.f32.mxu0 0.0
  %8531 = vmatmul.mubr.f32.gmra.mrb[0].mxu0 %v8361
  %v8532 = vpop.f32.mrb[0].mxu0
  %v8533 = vadd.f32 0.0, %v8532
  %v8534 = vpop.f32.mrb[0].mxu0
  %8535 = vmatprep.mubr.f32.mxu0 0.0
  %8536 = vmatmul.mubr.f32.gmra.mrb[0].mxu0 %v8364
  %v8537 = vpop.f32.mrb[0].mxu0
  %v8538 = vadd.f32 0.0, %v8537
  %v8539 = vpop.f32.mrb[0].mxu0
  %8540 = vmatprep.mubr.f32.mxu0 0.0
  %8541 = vmatmul.mubr.f32.gmra.mrb[0].mxu0 %v8367
  %v8542 = vpop.f32.mrb[0].mxu0
  %v8543 = vadd.f32 0.0, %v8542
  %v8544 = vpop.f32.mrb[0].mxu0
  %8545 = vmatprep.mubr.f32.mxu0 0.0
  %8546 = vmatmul.mubr.f32.gmra.mrb[0].mxu0 %v8370
  %v8547 = vpop.f32.mrb[0].mxu0
  %v8548 = vadd.f32 0.0, %v8547
  %v8549 = vpop.f32.mrb[0].mxu0
  %8550 = vmatprep.mubr.f32.mxu0 0.0
  %8551 = vmatmul.mubr.f32.gmra.mrb[0].mxu0 %v8373
  %v8552 = vpop.f32.mrb[0].mxu0
  %v8553 = vadd.f32 0.0, %v8552
  %v8554 = vpop.f32.mrb[0].mxu0
  %8555 = vmatprep.mubr.f32.mxu0 0.0
  %8556 = vmatmul.mubr.f32.gmra.mrb[0].mxu0 %v8376
  %v8557 = vpop.f32.mrb[0].mxu0
  %v8558 = vadd.f32 0.0, %v8557
  %v8559 = vpop.f32.mrb[0].mxu0
  %8560 = vmatprep.mubr.f32.mxu0 0.0
  %8561 = vmatmul.mubr.f32.gmra.mrb[0].mxu0 %v8379
  %v8562 = vpop.f32.mrb[0].mxu0
  %v8563 = vadd.f32 0.0, %v8562
  %v8564 = vpop.f32.mrb[0].mxu0
  %8565 = vmatprep.mubr.f32.mxu0 0.0
  %8566 = vmatmul.mubr.f32.gmra.mrb[0].mxu0 %v8382
  %v8567 = vpop.f32.mrb[0].mxu0
  %v8568 = vadd.f32 0.0, %v8567
  %v8569 = vpop.f32.mrb[0].mxu0
  %8570 = vmatprep.mubr.f32.mxu0 0.0
  %8571 = vmatmul.mubr.f32.gmra.mrb[0].mxu0 %v8385
  %v8572 = vpop.f32.mrb[0].mxu0
  %v8573 = vadd.f32 0.0, %v8572
  %v8574 = vpop.f32.mrb[0].mxu0
  %8575 = vmatprep.mubr.f32.mxu0 0.0
  %8576 = vmatmul.mubr.f32.gmra.mrb[0].mxu0 %v8388
  %v8577 = vpop.f32.mrb[0].mxu0
  %v8578 = vadd.f32 0.0, %v8577
  %v8579 = vpop.f32.mrb[0].mxu0
  %8580 = vmatprep.mubr.f32.mxu0 0.0
  %8581 = vmatmul.mubr.f32.gmra.mrb[0].mxu0 %v8391
  %v8582 = vpop.f32.mrb[0].mxu0
  %v8583 = vadd.f32 0.0, %v8582
  %v8584 = vpop.f32.mrb[0].mxu0
  %8585 = vmatprep.mubr.f32.mxu0 0.0
  %8586 = vmatmul.mubr.f32.gmra.mrb[0].mxu0 %v8394
  %v8587 = vpop.f32.mrb[0].mxu0
  %v8588 = vadd.f32 0.0, %v8587
  %v8589 = vpop.f32.mrb[0].mxu0
  %8590 = vmatprep.mubr.f32.mxu0 0.0
  %8591 = vmatmul.mubr.f32.gmra.mrb[0].mxu0 %v8397
  %v8592 = vpop.f32.mrb[0].mxu0
  %v8593 = vadd.f32 0.0, %v8592
  %v8594 = vpop.f32.mrb[0].mxu0
  %8595 = vmatprep.mubr.f32.mxu0 0.0
  %8596 = vmatmul.mubr.f32.gmra.mrb[0].mxu0 %v8400
  %v8597 = vpop.f32.mrb[0].mxu0
  %v8598 = vadd.f32 0.0, %v8597
  %v8599 = vpop.f32.mrb[0].mxu0
  %8600 = vmatprep.mubr.f32.mxu0 0.0
  %8601 = vmatmul.mubr.f32.gmra.mrb[0].mxu0 %v8403
  %v8602 = vpop.f32.mrb[0].mxu0
  %v8603 = vadd.f32 0.0, %v8602
  %v8604 = vpop.f32.mrb[0].mxu0
  %8605 = vmatprep.mubr.f32.mxu0 0.0
  %8606 = vmatmul.mubr.f32.gmra.mrb[0].mxu0 %v8406
  %v8607 = vpop.f32.mrb[0].mxu0
  %v8608 = vadd.f32 0.0, %v8607
  %v8609 = vpop.f32.mrb[0].mxu0
  %8610 = vmatprep.mubr.f32.mxu0 0.0
  %8611 = vmatmul.mubr.f32.gmra.mrb[0].mxu0 %v8409
  %v8612 = vpop.f32.mrb[0].mxu0
  %v8613 = vadd.f32 0.0, %v8612
  %v8614 = vpop.f32.mrb[0].mxu0
  %8615 = vdwg.mxu0
  %v8616 = vld [vmem:[%s18] sm:$0xff]
  %v8617 = vld [vmem:[%s18 + $0x8] sm:$0xff]
  %v8618 = vld [vmem:[%s18 + $0x10] sm:$0xff]
  %v8619 = vld [vmem:[%s18 + $0x18] sm:$0xff]
  %v8620 = vld [vmem:[%s18 + $0x20] sm:$0xff]
  %v8621 = vld [vmem:[%s18 + $0x28] sm:$0xff]
  %v8622 = vld [vmem:[%s18 + $0x30] sm:$0xff]
  %v8623 = vld [vmem:[%s18 + $0x38] sm:$0xff]
  %v8624 = vld [vmem:[%s18 + $0x40] sm:$0xff]
  %v8625 = vld [vmem:[%s18 + $0x48] sm:$0xff]
  %v8626 = vld [vmem:[%s18 + $0x50] sm:$0xff]
  %v8627 = vld [vmem:[%s18 + $0x58] sm:$0xff]
  %v8628 = vld [vmem:[%s18 + $0x60] sm:$0xff]
  %v8629 = vld [vmem:[%s18 + $0x68] sm:$0xff]
  %v8630 = vld [vmem:[%s18 + $0x70] sm:$0xff]
  %v8631 = vld [vmem:[%s18 + $0x78] sm:$0xff]
  %v8632 = vld [vmem:[%s18 + $0x80] sm:$0xff]
  %v8633 = vld [vmem:[%s18 + $0x88] sm:$0xff]
  %v8634 = vld [vmem:[%s18 + $0x90] sm:$0xff]
  %v8635 = vld [vmem:[%s18 + $0x98] sm:$0xff]
  %v8636 = vld [vmem:[%s18 + $0xa0] sm:$0xff]
  %v8637 = vld [vmem:[%s18 + $0xa8] sm:$0xff]
  %v8638 = vld [vmem:[%s18 + $0xb0] sm:$0xff]
  %v8639 = vld [vmem:[%s18 + $0xb8] sm:$0xff]
  %v8640 = vld [vmem:[%s18 + $0xc0] sm:$0xff]
  %v8641 = vld [vmem:[%s18 + $0xc8] sm:$0xff]
  %v8642 = vld [vmem:[%s18 + $0xd0] sm:$0xff]
  %v8643 = vld [vmem:[%s18 + $0xd8] sm:$0xff]
  %v8644 = vld [vmem:[%s18 + $0xe0] sm:$0xff]
  %v8645 = vld [vmem:[%s18 + $0xe8] sm:$0xff]
  %v8646 = vld [vmem:[%s18 + $0xf0] sm:$0xff]
  %v8647 = vld [vmem:[%s18 + $0xf8] sm:$0xff]
  %v8648 = vld [vmem:[%s18 + $0x100] sm:$0xff]
  %v8649 = vld [vmem:[%s18 + $0x108] sm:$0xff]
  %v8650 = vld [vmem:[%s18 + $0x110] sm:$0xff]
  %v8651 = vld [vmem:[%s18 + $0x118] sm:$0xff]
  %v8652 = vld [vmem:[%s18 + $0x120] sm:$0xff]
  %v8653 = vld [vmem:[%s18 + $0x128] sm:$0xff]
  %v8654 = vld [vmem:[%s18 + $0x130] sm:$0xff]
  %v8655 = vld [vmem:[%s18 + $0x138] sm:$0xff]
  %v8656 = vld [vmem:[%s18 + $0x140] sm:$0xff]
  %v8657 = vld [vmem:[%s18 + $0x148] sm:$0xff]
  %v8658 = vld [vmem:[%s18 + $0x150] sm:$0xff]
  %v8659 = vld [vmem:[%s18 + $0x158] sm:$0xff]
  %v8660 = vld [vmem:[%s18 + $0x160] sm:$0xff]
  %v8661 = vld [vmem:[%s18 + $0x168] sm:$0xff]
  %v8662 = vld [vmem:[%s18 + $0x170] sm:$0xff]
  %v8663 = vld [vmem:[%s18 + $0x178] sm:$0xff]
  %v8664 = vld [vmem:[%s18 + $0x180] sm:$0xff]
  %v8665 = vld [vmem:[%s18 + $0x188] sm:$0xff]
  %v8666 = vld [vmem:[%s18 + $0x190] sm:$0xff]
  %v8667 = vld [vmem:[%s18 + $0x198] sm:$0xff]
  %v8668 = vld [vmem:[%s18 + $0x1a0] sm:$0xff]
  %v8669 = vld [vmem:[%s18 + $0x1a8] sm:$0xff]
  %v8670 = vld [vmem:[%s18 + $0x1b0] sm:$0xff]
  %v8671 = vld [vmem:[%s18 + $0x1b8] sm:$0xff]
  %s8672 = scalar_lea.vmem %s18, 448
  %v8673 = vld [vmem:[%s8672] sm:$0xff]
  %v8674 = vld [vmem:[%s8672 + $0x8] sm:$0xff]
  %v8675 = vld [vmem:[%s8672 + $0x10] sm:$0xff]
  %v8676 = vld [vmem:[%s8672 + $0x18] sm:$0xff]
  %v8677 = vld [vmem:[%s8672 + $0x20] sm:$0xff]
  %v8678 = vld [vmem:[%s8672 + $0x28] sm:$0xff]
  %v8679 = vld [vmem:[%s8672 + $0x30] sm:$0xff]
  %v8680 = vld [vmem:[%s8672 + $0x38] sm:$0xff]
  %v8681 = vld [vmem:[%s8672 + $0x40] sm:$0xff]
  %v8682 = vld [vmem:[%s8672 + $0x48] sm:$0xff]
  %v8683 = vld [vmem:[%s8672 + $0x50] sm:$0xff]
  %v8684 = vld [vmem:[%s8672 + $0x58] sm:$0xff]
  %v8685 = vld [vmem:[%s8672 + $0x60] sm:$0xff]
  %v8686 = vld [vmem:[%s8672 + $0x68] sm:$0xff]
  %v8687 = vld [vmem:[%s8672 + $0x70] sm:$0xff]
  %v8688 = vld [vmem:[%s8672 + $0x78] sm:$0xff]
  %v8689 = vld [vmem:[%s8672 + $0x80] sm:$0xff]
  %v8690 = vld [vmem:[%s8672 + $0x88] sm:$0xff]
  %v8691 = vld [vmem:[%s8672 + $0x90] sm:$0xff]
  %v8692 = vld [vmem:[%s8672 + $0x98] sm:$0xff]
  %v8693 = vld [vmem:[%s8672 + $0xa0] sm:$0xff]
  %v8694 = vld [vmem:[%s8672 + $0xa8] sm:$0xff]
  %v8695 = vld [vmem:[%s8672 + $0xb0] sm:$0xff]
  %v8696 = vld [vmem:[%s8672 + $0xb8] sm:$0xff]
  %v8697 = vld [vmem:[%s8672 + $0xc0] sm:$0xff]
  %v8698 = vld [vmem:[%s8672 + $0xc8] sm:$0xff]
  %v8699 = vld [vmem:[%s8672 + $0xd0] sm:$0xff]
  %v8700 = vld [vmem:[%s8672 + $0xd8] sm:$0xff]
  %v8701 = vld [vmem:[%s8672 + $0xe0] sm:$0xff]
  %v8702 = vld [vmem:[%s8672 + $0xe8] sm:$0xff]
  %v8703 = vld [vmem:[%s8672 + $0xf0] sm:$0xff]
  %v8704 = vld [vmem:[%s8672 + $0xf8] sm:$0xff]
  %v8705 = vld [vmem:[%s8672 + $0x100] sm:$0xff]
  %v8706 = vld [vmem:[%s8672 + $0x108] sm:$0xff]
  %v8707 = vld [vmem:[%s8672 + $0x110] sm:$0xff]
  %v8708 = vld [vmem:[%s8672 + $0x118] sm:$0xff]
  %v8709 = vld [vmem:[%s8672 + $0x120] sm:$0xff]
  %v8710 = vld [vmem:[%s8672 + $0x128] sm:$0xff]
  %v8711 = vld [vmem:[%s8672 + $0x130] sm:$0xff]
  %v8712 = vld [vmem:[%s8672 + $0x138] sm:$0xff]
  %v8713 = vld [vmem:[%s8672 + $0x140] sm:$0xff]
  %v8714 = vld [vmem:[%s8672 + $0x148] sm:$0xff]
  %v8715 = vld [vmem:[%s8672 + $0x150] sm:$0xff]
  %v8716 = vld [vmem:[%s8672 + $0x158] sm:$0xff]
  %v8717 = vld [vmem:[%s8672 + $0x160] sm:$0xff]
  %v8718 = vld [vmem:[%s8672 + $0x168] sm:$0xff]
  %v8719 = vld [vmem:[%s8672 + $0x170] sm:$0xff]
  %v8720 = vld [vmem:[%s8672 + $0x178] sm:$0xff]
  %v8721 = vld [vmem:[%s8672 + $0x180] sm:$0xff]
  %v8722 = vld [vmem:[%s8672 + $0x188] sm:$0xff]
  %v8723 = vld [vmem:[%s8672 + $0x190] sm:$0xff]
  %v8724 = vld [vmem:[%s8672 + $0x198] sm:$0xff]
  %v8725 = vld [vmem:[%s8672 + $0x1a0] sm:$0xff]
  %v8726 = vld [vmem:[%s8672 + $0x1a8] sm:$0xff]
  %v8727 = vld [vmem:[%s8672 + $0x1b0] sm:$0xff]
  %v8728 = vld [vmem:[%s8672 + $0x1b8] sm:$0xff]
  %8757 = vrot.lane.b32.xlu0 %v8478, 126
  %v8758 = vpop.permute.xlu0 %8757
  %8759 = vrot.lane.b32.xlu0 %v8483, 126
  %v8760 = vpop.permute.xlu0 %8759
  %8761 = vrot.lane.b32.xlu0 %v8488, 126
  %v8762 = vpop.permute.xlu0 %8761
  %8763 = vrot.lane.b32.xlu0 %v8493, 126
  %v8764 = vpop.permute.xlu0 %8763
  %8765 = vrot.lane.b32.xlu0 %v8498, 126
  %v8766 = vpop.permute.xlu0 %8765
  %8767 = vrot.lane.b32.xlu0 %v8503, 126
  %v8768 = vpop.permute.xlu0 %8767
  %8769 = vrot.lane.b32.xlu0 %v8508, 126
  %v8770 = vpop.permute.xlu0 %8769
  %8771 = vrot.lane.b32.xlu0 %v8513, 126
  %v8772 = vpop.permute.xlu0 %8771
  %8773 = vrot.lane.b32.xlu0 %v8518, 126
  %v8774 = vpop.permute.xlu0 %8773
  %8775 = vrot.lane.b32.xlu0 %v8523, 126
  %v8776 = vpop.permute.xlu0 %8775
  %8777 = vrot.lane.b32.xlu0 %v8528, 126
  %v8778 = vpop.permute.xlu0 %8777
  %8779 = vrot.lane.b32.xlu0 %v8533, 126
  %v8780 = vpop.permute.xlu0 %8779
  %8781 = vrot.lane.b32.xlu0 %v8538, 126
  %v8782 = vpop.permute.xlu0 %8781
  %8783 = vrot.lane.b32.xlu0 %v8543, 126
  %v8784 = vpop.permute.xlu0 %8783
  %8785 = vrot.lane.b32.xlu0 %v8548, 126
  %v8786 = vpop.permute.xlu0 %8785
  %8787 = vrot.lane.b32.xlu0 %v8553, 126
  %v8788 = vpop.permute.xlu0 %8787
  %8789 = vrot.lane.b32.xlu0 %v8558, 126
  %v8790 = vpop.permute.xlu0 %8789
  %8791 = vrot.lane.b32.xlu0 %v8563, 126
  %v8792 = vpop.permute.xlu0 %8791
  %8793 = vrot.lane.b32.xlu0 %v8568, 126
  %v8794 = vpop.permute.xlu0 %8793
  %8795 = vrot.lane.b32.xlu0 %v8573, 126
  %v8796 = vpop.permute.xlu0 %8795
  %8797 = vrot.lane.b32.xlu0 %v8578, 126
  %v8798 = vpop.permute.xlu0 %8797
  %8799 = vrot.lane.b32.xlu0 %v8583, 126
  %v8800 = vpop.permute.xlu0 %8799
  %8801 = vrot.lane.b32.xlu0 %v8588, 126
  %v8802 = vpop.permute.xlu0 %8801
  %8803 = vrot.lane.b32.xlu0 %v8593, 126
  %v8804 = vpop.permute.xlu0 %8803
  %8805 = vrot.lane.b32.xlu0 %v8598, 126
  %v8806 = vpop.permute.xlu0 %8805
  %8807 = vrot.lane.b32.xlu0 %v8603, 126
  %v8808 = vpop.permute.xlu0 %8807
  %8809 = vrot.lane.b32.xlu0 %v8608, 126
  %v8810 = vpop.permute.xlu0 %8809
  %8811 = vrot.lane.b32.xlu0 %v8613, 126
  %v8812 = vpop.permute.xlu0 %8811
  %v8842 = vsel %vm450, %v8674, 0
  %v8845 = vsel %vm450, %v8676, 0
  %v8848 = vsel %vm450, %v8678, 0
  %v8851 = vsel %vm450, %v8680, 0
  %v8854 = vsel %vm450, %v8682, 0
  %v8857 = vsel %vm450, %v8684, 0
  %v8860 = vsel %vm450, %v8686, 0
  %v8863 = vsel %vm450, %v8688, 0
  %v8866 = vsel %vm450, %v8690, 0
  %v8869 = vsel %vm450, %v8692, 0
  %v8872 = vsel %vm450, %v8694, 0
  %v8875 = vsel %vm450, %v8696, 0
  %v8878 = vsel %vm450, %v8698, 0
  %v8881 = vsel %vm450, %v8700, 0
  %v8884 = vsel %vm450, %v8702, 0
  %v8887 = vsel %vm450, %v8704, 0
  %v8890 = vsel %vm450, %v8706, 0
  %v8893 = vsel %vm450, %v8708, 0
  %v8896 = vsel %vm450, %v8710, 0
  %v8899 = vsel %vm450, %v8712, 0
  %v8902 = vsel %vm450, %v8714, 0
  %v8905 = vsel %vm450, %v8716, 0
  %v8908 = vsel %vm450, %v8718, 0
  %v8911 = vsel %vm450, %v8720, 0
  %v8914 = vsel %vm450, %v8722, 0
  %v8917 = vsel %vm450, %v8724, 0
  %v8920 = vsel %vm450, %v8726, 0
  %v8923 = vsel %vm450, %v8728, 0
  %8925 = vmatprep.subr.mxu0 0.0
  %8926 = vmatpush1.msra.mxu0 %v8758
  %8927 = vmatprep.subr.mxu0 0.0
  %8928 = vmatpush1.msra.mxu0 %v8760
  %8929 = vmatprep.subr.mxu0 0.0
  %8930 = vmatpush1.msra.mxu0 %v8762
  %8931 = vmatprep.subr.mxu0 0.0
  %8932 = vmatpush1.msra.mxu0 %v8764
  %8933 = vmatprep.subr.mxu0 0.0
  %8934 = vmatpush1.msra.mxu0 %v8766
  %8935 = vmatprep.subr.mxu0 0.0
  %8936 = vmatpush1.msra.mxu0 %v8768
  %8937 = vmatprep.subr.mxu0 0.0
  %8938 = vmatpush1.msra.mxu0 %v8770
  %8939 = vmatprep.subr.mxu0 0.0
  %8940 = vmatpush1.msra.mxu0 %v8772
  %8941 = vmatprep.subr.mxu0 0.0
  %8942 = vmatpush1.msra.mxu0 %v8774
  %8943 = vmatprep.subr.mxu0 0.0
  %8944 = vmatpush1.msra.mxu0 %v8776
  %8945 = vmatprep.subr.mxu0 0.0
  %8946 = vmatpush1.msra.mxu0 %v8778
  %8947 = vmatprep.subr.mxu0 0.0
  %8948 = vmatpush1.msra.mxu0 %v8780
  %8949 = vmatprep.subr.mxu0 0.0
  %8950 = vmatpush1.msra.mxu0 %v8782
  %8951 = vmatprep.subr.mxu0 0.0
  %8952 = vmatpush1.msra.mxu0 %v8784
  %8953 = vmatprep.subr.mxu0 0.0
  %8954 = vmatpush1.msra.mxu0 %v8786
  %8955 = vmatprep.subr.mxu0 0.0
  %8956 = vmatpush1.msra.mxu0 %v8788
  %8957 = vmatprep.subr.mxu0 0.0
  %8958 = vmatpush1.msra.mxu0 %v8790
  %8959 = vmatprep.subr.mxu0 0.0
  %8960 = vmatpush1.msra.mxu0 %v8792
  %8961 = vmatprep.subr.mxu0 0.0
  %8962 = vmatpush1.msra.mxu0 %v8794
  %8963 = vmatprep.subr.mxu0 0.0
  %8964 = vmatpush1.msra.mxu0 %v8796
  %8965 = vmatprep.subr.mxu0 0.0
  %8966 = vmatpush1.msra.mxu0 %v8798
  %8967 = vmatprep.subr.mxu0 0.0
  %8968 = vmatpush1.msra.mxu0 %v8800
  %8969 = vmatprep.subr.mxu0 0.0
  %8970 = vmatpush1.msra.mxu0 %v8802
  %8971 = vmatprep.subr.mxu0 0.0
  %8972 = vmatpush1.msra.mxu0 %v8804
  %8973 = vmatprep.subr.mxu0 0.0
  %8974 = vmatpush1.msra.mxu0 %v8806
  %8975 = vmatprep.subr.mxu0 0.0
  %8976 = vmatpush1.msra.mxu0 %v8808
  %8977 = vmatprep.subr.mxu0 0.0
  %8978 = vmatpush1.msra.mxu0 %v8810
  %8979 = vmatprep.subr.mxu0 0.0
  %8980 = vmatpush1.msra.mxu0 %v8812
  %8981 = vmatprep.subr.mxu0 0.0
  %8982 = vmatpush1.msra.mxu0 0.0
  %8983 = vmatprep.subr.mxu0 0.0
  %8984 = vmatpush1.msra.mxu0 0.0
  %8985 = vmatprep.subr.mxu0 0.0
  %8986 = vmatpush1.msra.mxu0 0.0
  %8987 = vmatprep.subr.mxu0 0.0
  %8988 = vmatpush1.msra.mxu0 0.0
  %8989 = vmatprep.mubr.f32.mxu0 %v8842
  %8990 = vmatmul.mubr.f32.gmra.mrb[0].mxu0 %v8673
  %v8991 = vpop.f32.mrb[0].mxu0
  %v8992 = vadd.f32 0.0, %v8991
  %v8993 = vpop.f32.mrb[0].mxu0
  %8994 = vmatprep.mubr.f32.mxu0 %v8845
  %8995 = vmatmul.mubr.f32.gmra.mrb[0].mxu0 %v8675
  %v8996 = vpop.f32.mrb[0].mxu0
  %v8997 = vadd.f32 0.0, %v8996
  %v8998 = vpop.f32.mrb[0].mxu0
  %8999 = vmatprep.mubr.f32.mxu0 %v8848
  %9000 = vmatmul.mubr.f32.gmra.mrb[0].mxu0 %v8677
  %v9001 = vpop.f32.mrb[0].mxu0
  %v9002 = vadd.f32 0.0, %v9001
  %v9003 = vpop.f32.mrb[0].mxu0
  %9004 = vmatprep.mubr.f32.mxu0 %v8851
  %9005 = vmatmul.mubr.f32.gmra.mrb[0].mxu0 %v8679
  %v9006 = vpop.f32.mrb[0].mxu0
  %v9007 = vadd.f32 0.0, %v9006
  %v9008 = vpop.f32.mrb[0].mxu0
  %9009 = vmatprep.mubr.f32.mxu0 %v8854
  %9010 = vmatmul.mubr.f32.gmra.mrb[0].mxu0 %v8681
  %v9011 = vpop.f32.mrb[0].mxu0
  %v9012 = vadd.f32 0.0, %v9011
  %v9013 = vpop.f32.mrb[0].mxu0
  %9014 = vmatprep.mubr.f32.mxu0 %v8857
  %9015 = vmatmul.mubr.f32.gmra.mrb[0].mxu0 %v8683
  %v9016 = vpop.f32.mrb[0].mxu0
  %v9017 = vadd.f32 0.0, %v9016
  %v9018 = vpop.f32.mrb[0].mxu0
  %9019 = vmatprep.mubr.f32.mxu0 %v8860
  %9020 = vmatmul.mubr.f32.gmra.mrb[0].mxu0 %v8685
  %v9021 = vpop.f32.mrb[0].mxu0
  %v9022 = vadd.f32 0.0, %v9021
  %v9023 = vpop.f32.mrb[0].mxu0
  %9024 = vmatprep.mubr.f32.mxu0 %v8863
  %9025 = vmatmul.mubr.f32.gmra.mrb[0].mxu0 %v8687
  %v9026 = vpop.f32.mrb[0].mxu0
  %v9027 = vadd.f32 0.0, %v9026
  %v9028 = vpop.f32.mrb[0].mxu0
  %9029 = vmatprep.mubr.f32.mxu0 %v8866
  %9030 = vmatmul.mubr.f32.gmra.mrb[0].mxu0 %v8689
  %v9031 = vpop.f32.mrb[0].mxu0
  %v9032 = vadd.f32 0.0, %v9031
  %v9033 = vpop.f32.mrb[0].mxu0
  %9034 = vmatprep.mubr.f32.mxu0 %v8869
  %9035 = vmatmul.mubr.f32.gmra.mrb[0].mxu0 %v8691
  %v9036 = vpop.f32.mrb[0].mxu0
  %v9037 = vadd.f32 0.0, %v9036
  %v9038 = vpop.f32.mrb[0].mxu0
  %9039 = vmatprep.mubr.f32.mxu0 %v8872
  %9040 = vmatmul.mubr.f32.gmra.mrb[0].mxu0 %v8693
  %v9041 = vpop.f32.mrb[0].mxu0
  %v9042 = vadd.f32 0.0, %v9041
  %v9043 = vpop.f32.mrb[0].mxu0
  %9044 = vmatprep.mubr.f32.mxu0 %v8875
  %9045 = vmatmul.mubr.f32.gmra.mrb[0].mxu0 %v8695
  %v9046 = vpop.f32.mrb[0].mxu0
  %v9047 = vadd.f32 0.0, %v9046
  %v9048 = vpop.f32.mrb[0].mxu0
  %9049 = vmatprep.mubr.f32.mxu0 %v8878
  %9050 = vmatmul.mubr.f32.gmra.mrb[0].mxu0 %v8697
  %v9051 = vpop.f32.mrb[0].mxu0
  %v9052 = vadd.f32 0.0, %v9051
  %v9053 = vpop.f32.mrb[0].mxu0
  %9054 = vmatprep.mubr.f32.mxu0 %v8881
  %9055 = vmatmul.mubr.f32.gmra.mrb[0].mxu0 %v8699
  %v9056 = vpop.f32.mrb[0].mxu0
  %v9057 = vadd.f32 0.0, %v9056
  %v9058 = vpop.f32.mrb[0].mxu0
  %9059 = vmatprep.mubr.f32.mxu0 %v8884
  %9060 = vmatmul.mubr.f32.gmra.mrb[0].mxu0 %v8701
  %v9061 = vpop.f32.mrb[0].mxu0
  %v9062 = vadd.f32 0.0, %v9061
  %v9063 = vpop.f32.mrb[0].mxu0
  %9064 = vmatprep.mubr.f32.mxu0 %v8887
  %9065 = vmatmul.mubr.f32.gmra.mrb[0].mxu0 %v8703
  %v9066 = vpop.f32.mrb[0].mxu0
  %v9067 = vadd.f32 0.0, %v9066
  %v9068 = vpop.f32.mrb[0].mxu0
  %9069 = vmatprep.mubr.f32.mxu0 %v8890
  %9070 = vmatmul.mubr.f32.gmra.mrb[0].mxu0 %v8705
  %v9071 = vpop.f32.mrb[0].mxu0
  %v9072 = vadd.f32 0.0, %v9071
  %v9073 = vpop.f32.mrb[0].mxu0
  %9074 = vmatprep.mubr.f32.mxu0 %v8893
  %9075 = vmatmul.mubr.f32.gmra.mrb[0].mxu0 %v8707
  %v9076 = vpop.f32.mrb[0].mxu0
  %v9077 = vadd.f32 0.0, %v9076
  %v9078 = vpop.f32.mrb[0].mxu0
  %9079 = vmatprep.mubr.f32.mxu0 %v8896
  %9080 = vmatmul.mubr.f32.gmra.mrb[0].mxu0 %v8709
  %v9081 = vpop.f32.mrb[0].mxu0
  %v9082 = vadd.f32 0.0, %v9081
  %v9083 = vpop.f32.mrb[0].mxu0
  %9084 = vmatprep.mubr.f32.mxu0 %v8899
  %9085 = vmatmul.mubr.f32.gmra.mrb[0].mxu0 %v8711
  %v9086 = vpop.f32.mrb[0].mxu0
  %v9087 = vadd.f32 0.0, %v9086
  %v9088 = vpop.f32.mrb[0].mxu0
  %9089 = vmatprep.mubr.f32.mxu0 %v8902
  %9090 = vmatmul.mubr.f32.gmra.mrb[0].mxu0 %v8713
  %v9091 = vpop.f32.mrb[0].mxu0
  %v9092 = vadd.f32 0.0, %v9091
  %v9093 = vpop.f32.mrb[0].mxu0
  %9094 = vmatprep.mubr.f32.mxu0 %v8905
  %9095 = vmatmul.mubr.f32.gmra.mrb[0].mxu0 %v8715
  %v9096 = vpop.f32.mrb[0].mxu0
  %v9097 = vadd.f32 0.0, %v9096
  %v9098 = vpop.f32.mrb[0].mxu0
  %9099 = vmatprep.mubr.f32.mxu0 %v8908
  %9100 = vmatmul.mubr.f32.gmra.mrb[0].mxu0 %v8717
  %v9101 = vpop.f32.mrb[0].mxu0
  %v9102 = vadd.f32 0.0, %v9101
  %v9103 = vpop.f32.mrb[0].mxu0
  %9104 = vmatprep.mubr.f32.mxu0 %v8911
  %9105 = vmatmul.mubr.f32.gmra.mrb[0].mxu0 %v8719
  %v9106 = vpop.f32.mrb[0].mxu0
  %v9107 = vadd.f32 0.0, %v9106
  %v9108 = vpop.f32.mrb[0].mxu0
  %9109 = vmatprep.mubr.f32.mxu0 %v8914
  %9110 = vmatmul.mubr.f32.gmra.mrb[0].mxu0 %v8721
  %v9111 = vpop.f32.mrb[0].mxu0
  %v9112 = vadd.f32 0.0, %v9111
  %v9113 = vpop.f32.mrb[0].mxu0
  %9114 = vmatprep.mubr.f32.mxu0 %v8917
  %9115 = vmatmul.mubr.f32.gmra.mrb[0].mxu0 %v8723
  %v9116 = vpop.f32.mrb[0].mxu0
  %v9117 = vadd.f32 0.0, %v9116
  %v9118 = vpop.f32.mrb[0].mxu0
  %9119 = vmatprep.mubr.f32.mxu0 %v8920
  %9120 = vmatmul.mubr.f32.gmra.mrb[0].mxu0 %v8725
  %v9121 = vpop.f32.mrb[0].mxu0
  %v9122 = vadd.f32 0.0, %v9121
  %v9123 = vpop.f32.mrb[0].mxu0
  %9124 = vmatprep.mubr.f32.mxu0 %v8923
  %9125 = vmatmul.mubr.f32.gmra.mrb[0].mxu0 %v8727
  %v9126 = vpop.f32.mrb[0].mxu0
  %v9127 = vadd.f32 0.0, %v9126
  %v9128 = vpop.f32.mrb[0].mxu0
  %9129 = vdwg.mxu0
  %v9131 = vsel %vm450, %v8617, 0
  %v9134 = vsel %vm450, %v8619, 0
  %v9137 = vsel %vm450, %v8621, 0
  %v9140 = vsel %vm450, %v8623, 0
  %v9143 = vsel %vm450, %v8625, 0
  %v9146 = vsel %vm450, %v8627, 0
  %v9149 = vsel %vm450, %v8629, 0
  %v9152 = vsel %vm450, %v8631, 0
  %v9155 = vsel %vm450, %v8633, 0
  %v9158 = vsel %vm450, %v8635, 0
  %v9161 = vsel %vm450, %v8637, 0
  %v9164 = vsel %vm450, %v8639, 0
  %v9167 = vsel %vm450, %v8641, 0
  %v9170 = vsel %vm450, %v8643, 0
  %v9173 = vsel %vm450, %v8645, 0
  %v9176 = vsel %vm450, %v8647, 0
  %v9179 = vsel %vm450, %v8649, 0
  %v9182 = vsel %vm450, %v8651, 0
  %v9185 = vsel %vm450, %v8653, 0
  %v9188 = vsel %vm450, %v8655, 0
  %v9191 = vsel %vm450, %v8657, 0
  %v9194 = vsel %vm450, %v8659, 0
  %v9197 = vsel %vm450, %v8661, 0
  %v9200 = vsel %vm450, %v8663, 0
  %v9203 = vsel %vm450, %v8665, 0
  %v9206 = vsel %vm450, %v8667, 0
  %v9209 = vsel %vm450, %v8669, 0
  %v9212 = vsel %vm450, %v8671, 0
  %9214 = vmatprep.subr.mxu0 0.0
  %9215 = vmatpush1.msra.mxu0 %v8478
  %9216 = vmatprep.subr.mxu0 0.0
  %9217 = vmatpush1.msra.mxu0 %v8483
  %9218 = vmatprep.subr.mxu0 0.0
  %9219 = vmatpush1.msra.mxu0 %v8488
  %9220 = vmatprep.subr.mxu0 0.0
  %9221 = vmatpush1.msra.mxu0 %v8493
  %9222 = vmatprep.subr.mxu0 0.0
  %9223 = vmatpush1.msra.mxu0 %v8498
  %9224 = vmatprep.subr.mxu0 0.0
  %9225 = vmatpush1.msra.mxu0 %v8503
  %9226 = vmatprep.subr.mxu0 0.0
  %9227 = vmatpush1.msra.mxu0 %v8508
  %9228 = vmatprep.subr.mxu0 0.0
  %9229 = vmatpush1.msra.mxu0 %v8513
  %9230 = vmatprep.subr.mxu0 0.0
  %9231 = vmatpush1.msra.mxu0 %v8518
  %9232 = vmatprep.subr.mxu0 0.0
  %9233 = vmatpush1.msra.mxu0 %v8523
  %9234 = vmatprep.subr.mxu0 0.0
  %9235 = vmatpush1.msra.mxu0 %v8528
  %9236 = vmatprep.subr.mxu0 0.0
  %9237 = vmatpush1.msra.mxu0 %v8533
  %9238 = vmatprep.subr.mxu0 0.0
  %9239 = vmatpush1.msra.mxu0 %v8538
  %9240 = vmatprep.subr.mxu0 0.0
  %9241 = vmatpush1.msra.mxu0 %v8543
  %9242 = vmatprep.subr.mxu0 0.0
  %9243 = vmatpush1.msra.mxu0 %v8548
  %9244 = vmatprep.subr.mxu0 0.0
  %9245 = vmatpush1.msra.mxu0 %v8553
  %9246 = vmatprep.subr.mxu0 0.0
  %9247 = vmatpush1.msra.mxu0 %v8558
  %9248 = vmatprep.subr.mxu0 0.0
  %9249 = vmatpush1.msra.mxu0 %v8563
  %9250 = vmatprep.subr.mxu0 0.0
  %9251 = vmatpush1.msra.mxu0 %v8568
  %9252 = vmatprep.subr.mxu0 0.0
  %9253 = vmatpush1.msra.mxu0 %v8573
  %9254 = vmatprep.subr.mxu0 0.0
  %9255 = vmatpush1.msra.mxu0 %v8578
  %9256 = vmatprep.subr.mxu0 0.0
  %9257 = vmatpush1.msra.mxu0 %v8583
  %9258 = vmatprep.subr.mxu0 0.0
  %9259 = vmatpush1.msra.mxu0 %v8588
  %9260 = vmatprep.subr.mxu0 0.0
  %9261 = vmatpush1.msra.mxu0 %v8593
  %9262 = vmatprep.subr.mxu0 0.0
  %9263 = vmatpush1.msra.mxu0 %v8598
  %9264 = vmatprep.subr.mxu0 0.0
  %9265 = vmatpush1.msra.mxu0 %v8603
  %9266 = vmatprep.subr.mxu0 0.0
  %9267 = vmatpush1.msra.mxu0 %v8608
  %9268 = vmatprep.subr.mxu0 0.0
  %9269 = vmatpush1.msra.mxu0 %v8613
  %9270 = vmatprep.subr.mxu0 0.0
  %9271 = vmatpush1.msra.mxu0 0.0
  %9272 = vmatprep.subr.mxu0 0.0
  %9273 = vmatpush1.msra.mxu0 0.0
  %9274 = vmatprep.subr.mxu0 0.0
  %9275 = vmatpush1.msra.mxu0 0.0
  %9276 = vmatprep.subr.mxu0 0.0
  %9277 = vmatpush1.msra.mxu0 0.0
  %9278 = vmatprep.mubr.f32.mxu0 %v9131
  %9279 = vmatmul.mubr.f32.gmra.mrb[0].mxu0 %v8616
  %v9280 = vpop.f32.mrb[0].mxu0
  %v9281 = vadd.f32 %v8992, %v9280
  %v9282 = vpop.f32.mrb[0].mxu0
  %9283 = vmatprep.mubr.f32.mxu0 %v9134
  %9284 = vmatmul.mubr.f32.gmra.mrb[0].mxu0 %v8618
  %v9285 = vpop.f32.mrb[0].mxu0
  %v9286 = vadd.f32 %v8997, %v9285
  %v9287 = vpop.f32.mrb[0].mxu0
  %9288 = vmatprep.mubr.f32.mxu0 %v9137
  %9289 = vmatmul.mubr.f32.gmra.mrb[0].mxu0 %v8620
  %v9290 = vpop.f32.mrb[0].mxu0
  %v9291 = vadd.f32 %v9002, %v9290
  %v9292 = vpop.f32.mrb[0].mxu0
  %9293 = vmatprep.mubr.f32.mxu0 %v9140
  %9294 = vmatmul.mubr.f32.gmra.mrb[0].mxu0 %v8622
  %v9295 = vpop.f32.mrb[0].mxu0
  %v9296 = vadd.f32 %v9007, %v9295
  %v9297 = vpop.f32.mrb[0].mxu0
  %9298 = vmatprep.mubr.f32.mxu0 %v9143
  %9299 = vmatmul.mubr.f32.gmra.mrb[0].mxu0 %v8624
  %v9300 = vpop.f32.mrb[0].mxu0
  %v9301 = vadd.f32 %v9012, %v9300
  %v9302 = vpop.f32.mrb[0].mxu0
  %9303 = vmatprep.mubr.f32.mxu0 %v9146
  %9304 = vmatmul.mubr.f32.gmra.mrb[0].mxu0 %v8626
  %v9305 = vpop.f32.mrb[0].mxu0
  %v9306 = vadd.f32 %v9017, %v9305
  %v9307 = vpop.f32.mrb[0].mxu0
  %9308 = vmatprep.mubr.f32.mxu0 %v9149
  %9309 = vmatmul.mubr.f32.gmra.mrb[0].mxu0 %v8628
  %v9310 = vpop.f32.mrb[0].mxu0
  %v9311 = vadd.f32 %v9022, %v9310
  %v9312 = vpop.f32.mrb[0].mxu0
  %9313 = vmatprep.mubr.f32.mxu0 %v9152
  %9314 = vmatmul.mubr.f32.gmra.mrb[0].mxu0 %v8630
  %v9315 = vpop.f32.mrb[0].mxu0
  %v9316 = vadd.f32 %v9027, %v9315
  %v9317 = vpop.f32.mrb[0].mxu0
  %9318 = vmatprep.mubr.f32.mxu0 %v9155
  %9319 = vmatmul.mubr.f32.gmra.mrb[0].mxu0 %v8632
  %v9320 = vpop.f32.mrb[0].mxu0
  %v9321 = vadd.f32 %v9032, %v9320
  %v9322 = vpop.f32.mrb[0].mxu0
  %9323 = vmatprep.mubr.f32.mxu0 %v9158
  %9324 = vmatmul.mubr.f32.gmra.mrb[0].mxu0 %v8634
  %v9325 = vpop.f32.mrb[0].mxu0
  %v9326 = vadd.f32 %v9037, %v9325
  %v9327 = vpop.f32.mrb[0].mxu0
  %9328 = vmatprep.mubr.f32.mxu0 %v9161
  %9329 = vmatmul.mubr.f32.gmra.mrb[0].mxu0 %v8636
  %v9330 = vpop.f32.mrb[0].mxu0
  %v9331 = vadd.f32 %v9042, %v9330
  %v9332 = vpop.f32.mrb[0].mxu0
  %9333 = vmatprep.mubr.f32.mxu0 %v9164
  %9334 = vmatmul.mubr.f32.gmra.mrb[0].mxu0 %v8638
  %v9335 = vpop.f32.mrb[0].mxu0
  %v9336 = vadd.f32 %v9047, %v9335
  %v9337 = vpop.f32.mrb[0].mxu0
  %9338 = vmatprep.mubr.f32.mxu0 %v9167
  %9339 = vmatmul.mubr.f32.gmra.mrb[0].mxu0 %v8640
  %v9340 = vpop.f32.mrb[0].mxu0
  %v9341 = vadd.f32 %v9052, %v9340
  %v9342 = vpop.f32.mrb[0].mxu0
  %9343 = vmatprep.mubr.f32.mxu0 %v9170
  %9344 = vmatmul.mubr.f32.gmra.mrb[0].mxu0 %v8642
  %v9345 = vpop.f32.mrb[0].mxu0
  %v9346 = vadd.f32 %v9057, %v9345
  %v9347 = vpop.f32.mrb[0].mxu0
  %9348 = vmatprep.mubr.f32.mxu0 %v9173
  %9349 = vmatmul.mubr.f32.gmra.mrb[0].mxu0 %v8644
  %v9350 = vpop.f32.mrb[0].mxu0
  %v9351 = vadd.f32 %v9062, %v9350
  %v9352 = vpop.f32.mrb[0].mxu0
  %9353 = vmatprep.mubr.f32.mxu0 %v9176
  %9354 = vmatmul.mubr.f32.gmra.mrb[0].mxu0 %v8646
  %v9355 = vpop.f32.mrb[0].mxu0
  %v9356 = vadd.f32 %v9067, %v9355
  %v9357 = vpop.f32.mrb[0].mxu0
  %9358 = vmatprep.mubr.f32.mxu0 %v9179
  %9359 = vmatmul.mubr.f32.gmra.mrb[0].mxu0 %v8648
  %v9360 = vpop.f32.mrb[0].mxu0
  %v9361 = vadd.f32 %v9072, %v9360
  %v9362 = vpop.f32.mrb[0].mxu0
  %9363 = vmatprep.mubr.f32.mxu0 %v9182
  %9364 = vmatmul.mubr.f32.gmra.mrb[0].mxu0 %v8650
  %v9365 = vpop.f32.mrb[0].mxu0
  %v9366 = vadd.f32 %v9077, %v9365
  %v9367 = vpop.f32.mrb[0].mxu0
  %9368 = vmatprep.mubr.f32.mxu0 %v9185
  %9369 = vmatmul.mubr.f32.gmra.mrb[0].mxu0 %v8652
  %v9370 = vpop.f32.mrb[0].mxu0
  %v9371 = vadd.f32 %v9082, %v9370
  %v9372 = vpop.f32.mrb[0].mxu0
  %9373 = vmatprep.mubr.f32.mxu0 %v9188
  %9374 = vmatmul.mubr.f32.gmra.mrb[0].mxu0 %v8654
  %v9375 = vpop.f32.mrb[0].mxu0
  %v9376 = vadd.f32 %v9087, %v9375
  %v9377 = vpop.f32.mrb[0].mxu0
  %9378 = vmatprep.mubr.f32.mxu0 %v9191
  %9379 = vmatmul.mubr.f32.gmra.mrb[0].mxu0 %v8656
  %v9380 = vpop.f32.mrb[0].mxu0
  %v9381 = vadd.f32 %v9092, %v9380
  %v9382 = vpop.f32.mrb[0].mxu0
  %9383 = vmatprep.mubr.f32.mxu0 %v9194
  %9384 = vmatmul.mubr.f32.gmra.mrb[0].mxu0 %v8658
  %v9385 = vpop.f32.mrb[0].mxu0
  %v9386 = vadd.f32 %v9097, %v9385
  %v9387 = vpop.f32.mrb[0].mxu0
  %9388 = vmatprep.mubr.f32.mxu0 %v9197
  %9389 = vmatmul.mubr.f32.gmra.mrb[0].mxu0 %v8660
  %v9390 = vpop.f32.mrb[0].mxu0
  %v9391 = vadd.f32 %v9102, %v9390
  %v9392 = vpop.f32.mrb[0].mxu0
  %9393 = vmatprep.mubr.f32.mxu0 %v9200
  %9394 = vmatmul.mubr.f32.gmra.mrb[0].mxu0 %v8662
  %v9395 = vpop.f32.mrb[0].mxu0
  %v9396 = vadd.f32 %v9107, %v9395
  %v9397 = vpop.f32.mrb[0].mxu0
  %9398 = vmatprep.mubr.f32.mxu0 %v9203
  %9399 = vmatmul.mubr.f32.gmra.mrb[0].mxu0 %v8664
  %v9400 = vpop.f32.mrb[0].mxu0
  %v9401 = vadd.f32 %v9112, %v9400
  %v9402 = vpop.f32.mrb[0].mxu0
  %9403 = vmatprep.mubr.f32.mxu0 %v9206
  %9404 = vmatmul.mubr.f32.gmra.mrb[0].mxu0 %v8666
  %v9405 = vpop.f32.mrb[0].mxu0
  %v9406 = vadd.f32 %v9117, %v9405
  %v9407 = vpop.f32.mrb[0].mxu0
  %9408 = vmatprep.mubr.f32.mxu0 %v9209
  %9409 = vmatmul.mubr.f32.gmra.mrb[0].mxu0 %v8668
  %v9410 = vpop.f32.mrb[0].mxu0
  %v9411 = vadd.f32 %v9122, %v9410
  %v9412 = vpop.f32.mrb[0].mxu0
  %9413 = vmatprep.mubr.f32.mxu0 %v9212
  %9414 = vmatmul.mubr.f32.gmra.mrb[0].mxu0 %v8670
  %v9415 = vpop.f32.mrb[0].mxu0
  %v9416 = vadd.f32 %v9127, %v9415
  %v9417 = vpop.f32.mrb[0].mxu0
  %9418 = vdwg.mxu0
  %s9419 = scalar_lea.vmem %s18, 896
  %v9420 = vld [vmem:[%s9419] sm:$0xff]
  %v9421 = vld [vmem:[%s9419 + $0x8] sm:$0xff]
  %v9422 = vld [vmem:[%s9419 + $0x10] sm:$0xff]
  %v9423 = vld [vmem:[%s9419 + $0x18] sm:$0xff]
  %v9424 = vld [vmem:[%s9419 + $0x20] sm:$0xff]
  %v9425 = vld [vmem:[%s9419 + $0x28] sm:$0xff]
  %v9426 = vld [vmem:[%s9419 + $0x30] sm:$0xff]
  %v9427 = vld [vmem:[%s9419 + $0x38] sm:$0xff]
  %v9428 = vld [vmem:[%s9419 + $0x40] sm:$0xff]
  %v9429 = vld [vmem:[%s9419 + $0x48] sm:$0xff]
  %v9430 = vld [vmem:[%s9419 + $0x50] sm:$0xff]
  %v9431 = vld [vmem:[%s9419 + $0x58] sm:$0xff]
  %v9432 = vld [vmem:[%s9419 + $0x60] sm:$0xff]
  %v9433 = vld [vmem:[%s9419 + $0x68] sm:$0xff]
  %v9434 = vld [vmem:[%s9419 + $0x70] sm:$0xff]
  %v9435 = vld [vmem:[%s9419 + $0x78] sm:$0xff]
  %v9436 = vld [vmem:[%s9419 + $0x80] sm:$0xff]
  %v9437 = vld [vmem:[%s9419 + $0x88] sm:$0xff]
  %v9438 = vld [vmem:[%s9419 + $0x90] sm:$0xff]
  %v9439 = vld [vmem:[%s9419 + $0x98] sm:$0xff]
  %v9440 = vld [vmem:[%s9419 + $0xa0] sm:$0xff]
  %v9441 = vld [vmem:[%s9419 + $0xa8] sm:$0xff]
  %v9442 = vld [vmem:[%s9419 + $0xb0] sm:$0xff]
  %v9443 = vld [vmem:[%s9419 + $0xb8] sm:$0xff]
  %v9444 = vld [vmem:[%s9419 + $0xc0] sm:$0xff]
  %v9445 = vld [vmem:[%s9419 + $0xc8] sm:$0xff]
  %v9446 = vld [vmem:[%s9419 + $0xd0] sm:$0xff]
  %v9447 = vld [vmem:[%s9419 + $0xd8] sm:$0xff]
  %v9448 = vld [vmem:[%s9419 + $0xe0] sm:$0xff]
  %v9449 = vld [vmem:[%s9419 + $0xe8] sm:$0xff]
  %v9450 = vld [vmem:[%s9419 + $0xf0] sm:$0xff]
  %v9451 = vld [vmem:[%s9419 + $0xf8] sm:$0xff]
  %v9452 = vld [vmem:[%s9419 + $0x100] sm:$0xff]
  %v9453 = vld [vmem:[%s9419 + $0x108] sm:$0xff]
  %v9454 = vld [vmem:[%s9419 + $0x110] sm:$0xff]
  %v9455 = vld [vmem:[%s9419 + $0x118] sm:$0xff]
  %v9456 = vld [vmem:[%s9419 + $0x120] sm:$0xff]
  %v9457 = vld [vmem:[%s9419 + $0x128] sm:$0xff]
  %v9458 = vld [vmem:[%s9419 + $0x130] sm:$0xff]
  %v9459 = vld [vmem:[%s9419 + $0x138] sm:$0xff]
  %v9460 = vld [vmem:[%s9419 + $0x140] sm:$0xff]
  %v9461 = vld [vmem:[%s9419 + $0x148] sm:$0xff]
  %v9462 = vld [vmem:[%s9419 + $0x150] sm:$0xff]
  %v9463 = vld [vmem:[%s9419 + $0x158] sm:$0xff]
  %v9464 = vld [vmem:[%s9419 + $0x160] sm:$0xff]
  %v9465 = vld [vmem:[%s9419 + $0x168] sm:$0xff]
  %v9466 = vld [vmem:[%s9419 + $0x170] sm:$0xff]
  %v9467 = vld [vmem:[%s9419 + $0x178] sm:$0xff]
  %v9468 = vld [vmem:[%s9419 + $0x180] sm:$0xff]
  %v9469 = vld [vmem:[%s9419 + $0x188] sm:$0xff]
  %v9470 = vld [vmem:[%s9419 + $0x190] sm:$0xff]
  %v9471 = vld [vmem:[%s9419 + $0x198] sm:$0xff]
  %v9472 = vld [vmem:[%s9419 + $0x1a0] sm:$0xff]
  %v9473 = vld [vmem:[%s9419 + $0x1a8] sm:$0xff]
  %v9474 = vld [vmem:[%s9419 + $0x1b0] sm:$0xff]
  %v9475 = vld [vmem:[%s9419 + $0x1b8] sm:$0xff]
  %9476 = vrot.lane.b32.xlu0 %v8478, 124
  %v9477 = vpop.permute.xlu0 %9476
  %9478 = vrot.lane.b32.xlu0 %v8483, 124
  %v9479 = vpop.permute.xlu0 %9478
  %9480 = vrot.lane.b32.xlu0 %v8488, 124
  %v9481 = vpop.permute.xlu0 %9480
  %9482 = vrot.lane.b32.xlu0 %v8493, 124
  %v9483 = vpop.permute.xlu0 %9482
  %9484 = vrot.lane.b32.xlu0 %v8498, 124
  %v9485 = vpop.permute.xlu0 %9484
  %9486 = vrot.lane.b32.xlu0 %v8503, 124
  %v9487 = vpop.permute.xlu0 %9486
  %9488 = vrot.lane.b32.xlu0 %v8508, 124
  %v9489 = vpop.permute.xlu0 %9488
  %9490 = vrot.lane.b32.xlu0 %v8513, 124
  %v9491 = vpop.permute.xlu0 %9490
  %9492 = vrot.lane.b32.xlu0 %v8518, 124
  %v9493 = vpop.permute.xlu0 %9492
  %9494 = vrot.lane.b32.xlu0 %v8523, 124
  %v9495 = vpop.permute.xlu0 %9494
  %9496 = vrot.lane.b32.xlu0 %v8528, 124
  %v9497 = vpop.permute.xlu0 %9496
  %9498 = vrot.lane.b32.xlu0 %v8533, 124
  %v9499 = vpop.permute.xlu0 %9498
  %9500 = vrot.lane.b32.xlu0 %v8538, 124
  %v9501 = vpop.permute.xlu0 %9500
  %9502 = vrot.lane.b32.xlu0 %v8543, 124
  %v9503 = vpop.permute.xlu0 %9502
  %9504 = vrot.lane.b32.xlu0 %v8548, 124
  %v9505 = vpop.permute.xlu0 %9504
  %9506 = vrot.lane.b32.xlu0 %v8553, 124
  %v9507 = vpop.permute.xlu0 %9506
  %9508 = vrot.lane.b32.xlu0 %v8558, 124
  %v9509 = vpop.permute.xlu0 %9508
  %9510 = vrot.lane.b32.xlu0 %v8563, 124
  %v9511 = vpop.permute.xlu0 %9510
  %9512 = vrot.lane.b32.xlu0 %v8568, 124
  %v9513 = vpop.permute.xlu0 %9512
  %9514 = vrot.lane.b32.xlu0 %v8573, 124
  %v9515 = vpop.permute.xlu0 %9514
  %9516 = vrot.lane.b32.xlu0 %v8578, 124
  %v9517 = vpop.permute.xlu0 %9516
  %9518 = vrot.lane.b32.xlu0 %v8583, 124
  %v9519 = vpop.permute.xlu0 %9518
  %9520 = vrot.lane.b32.xlu0 %v8588, 124
  %v9521 = vpop.permute.xlu0 %9520
  %9522 = vrot.lane.b32.xlu0 %v8593, 124
  %v9523 = vpop.permute.xlu0 %9522
  %9524 = vrot.lane.b32.xlu0 %v8598, 124
  %v9525 = vpop.permute.xlu0 %9524
  %9526 = vrot.lane.b32.xlu0 %v8603, 124
  %v9527 = vpop.permute.xlu0 %9526
  %9528 = vrot.lane.b32.xlu0 %v8608, 124
  %v9529 = vpop.permute.xlu0 %9528
  %9530 = vrot.lane.b32.xlu0 %v8613, 124
  %v9531 = vpop.permute.xlu0 %9530
  %v9561 = vsel %vm450, %v9421, 0
  %v9564 = vsel %vm450, %v9423, 0
  %v9567 = vsel %vm450, %v9425, 0
  %v9570 = vsel %vm450, %v9427, 0
  %v9573 = vsel %vm450, %v9429, 0
  %v9576 = vsel %vm450, %v9431, 0
  %v9579 = vsel %vm450, %v9433, 0
  %v9582 = vsel %vm450, %v9435, 0
  %v9585 = vsel %vm450, %v9437, 0
  %v9588 = vsel %vm450, %v9439, 0
  %v9591 = vsel %vm450, %v9441, 0
  %v9594 = vsel %vm450, %v9443, 0
  %v9597 = vsel %vm450, %v9445, 0
  %v9600 = vsel %vm450, %v9447, 0
  %v9603 = vsel %vm450, %v9449, 0
  %v9606 = vsel %vm450, %v9451, 0
  %v9609 = vsel %vm450, %v9453, 0
  %v9612 = vsel %vm450, %v9455, 0
  %v9615 = vsel %vm450, %v9457, 0
  %v9618 = vsel %vm450, %v9459, 0
  %v9621 = vsel %vm450, %v9461, 0
  %v9624 = vsel %vm450, %v9463, 0
  %v9627 = vsel %vm450, %v9465, 0
  %v9630 = vsel %vm450, %v9467, 0
  %v9633 = vsel %vm450, %v9469, 0
  %v9636 = vsel %vm450, %v9471, 0
  %v9639 = vsel %vm450, %v9473, 0
  %v9642 = vsel %vm450, %v9475, 0
  %9644 = vmatprep.subr.mxu0 0.0
  %9645 = vmatpush1.msra.mxu0 %v9477
  %9646 = vmatprep.subr.mxu0 0.0
  %9647 = vmatpush1.msra.mxu0 %v9479
  %9648 = vmatprep.subr.mxu0 0.0
  %9649 = vmatpush1.msra.mxu0 %v9481
  %9650 = vmatprep.subr.mxu0 0.0
  %9651 = vmatpush1.msra.mxu0 %v9483
  %9652 = vmatprep.subr.mxu0 0.0
  %9653 = vmatpush1.msra.mxu0 %v9485
  %9654 = vmatprep.subr.mxu0 0.0
  %9655 = vmatpush1.msra.mxu0 %v9487
  %9656 = vmatprep.subr.mxu0 0.0
  %9657 = vmatpush1.msra.mxu0 %v9489
  %9658 = vmatprep.subr.mxu0 0.0
  %9659 = vmatpush1.msra.mxu0 %v9491
  %9660 = vmatprep.subr.mxu0 0.0
  %9661 = vmatpush1.msra.mxu0 %v9493
  %9662 = vmatprep.subr.mxu0 0.0
  %9663 = vmatpush1.msra.mxu0 %v9495
  %9664 = vmatprep.subr.mxu0 0.0
  %9665 = vmatpush1.msra.mxu0 %v9497
  %9666 = vmatprep.subr.mxu0 0.0
  %9667 = vmatpush1.msra.mxu0 %v9499
  %9668 = vmatprep.subr.mxu0 0.0
  %9669 = vmatpush1.msra.mxu0 %v9501
  %9670 = vmatprep.subr.mxu0 0.0
  %9671 = vmatpush1.msra.mxu0 %v9503
  %9672 = vmatprep.subr.mxu0 0.0
  %9673 = vmatpush1.msra.mxu0 %v9505
  %9674 = vmatprep.subr.mxu0 0.0
  %9675 = vmatpush1.msra.mxu0 %v9507
  %9676 = vmatprep.subr.mxu0 0.0
  %9677 = vmatpush1.msra.mxu0 %v9509
  %9678 = vmatprep.subr.mxu0 0.0
  %9679 = vmatpush1.msra.mxu0 %v9511
  %9680 = vmatprep.subr.mxu0 0.0
  %9681 = vmatpush1.msra.mxu0 %v9513
  %9682 = vmatprep.subr.mxu0 0.0
  %9683 = vmatpush1.msra.mxu0 %v9515
  %9684 = vmatprep.subr.mxu0 0.0
  %9685 = vmatpush1.msra.mxu0 %v9517
  %9686 = vmatprep.subr.mxu0 0.0
  %9687 = vmatpush1.msra.mxu0 %v9519
  %9688 = vmatprep.subr.mxu0 0.0
  %9689 = vmatpush1.msra.mxu0 %v9521
  %9690 = vmatprep.subr.mxu0 0.0
  %9691 = vmatpush1.msra.mxu0 %v9523
  %9692 = vmatprep.subr.mxu0 0.0
  %9693 = vmatpush1.msra.mxu0 %v9525
  %9694 = vmatprep.subr.mxu0 0.0
  %9695 = vmatpush1.msra.mxu0 %v9527
  %9696 = vmatprep.subr.mxu0 0.0
  %9697 = vmatpush1.msra.mxu0 %v9529
  %9698 = vmatprep.subr.mxu0 0.0
  %9699 = vmatpush1.msra.mxu0 %v9531
  %9700 = vmatprep.subr.mxu0 0.0
  %9701 = vmatpush1.msra.mxu0 0.0
  %9702 = vmatprep.subr.mxu0 0.0
  %9703 = vmatpush1.msra.mxu0 0.0
  %9704 = vmatprep.subr.mxu0 0.0
  %9705 = vmatpush1.msra.mxu0 0.0
  %9706 = vmatprep.subr.mxu0 0.0
  %9707 = vmatpush1.msra.mxu0 0.0
  %9708 = vmatprep.mubr.f32.mxu0 %v9561
  %9709 = vmatmul.mubr.f32.gmra.mrb[0].mxu0 %v9420
  %v9710 = vpop.f32.mrb[0].mxu0
  %v9711 = vadd.f32 0.0, %v9710
  %v9712 = vpop.f32.mrb[0].mxu0
  %9713 = vmatprep.mubr.f32.mxu0 %v9564
  %9714 = vmatmul.mubr.f32.gmra.mrb[0].mxu0 %v9422
  %v9715 = vpop.f32.mrb[0].mxu0
  %v9716 = vadd.f32 0.0, %v9715
  %v9717 = vpop.f32.mrb[0].mxu0
  %9718 = vmatprep.mubr.f32.mxu0 %v9567
  %9719 = vmatmul.mubr.f32.gmra.mrb[0].mxu0 %v9424
  %v9720 = vpop.f32.mrb[0].mxu0
  %v9721 = vadd.f32 0.0, %v9720
  %v9722 = vpop.f32.mrb[0].mxu0
  %9723 = vmatprep.mubr.f32.mxu0 %v9570
  %9724 = vmatmul.mubr.f32.gmra.mrb[0].mxu0 %v9426
  %v9725 = vpop.f32.mrb[0].mxu0
  %v9726 = vadd.f32 0.0, %v9725
  %v9727 = vpop.f32.mrb[0].mxu0
  %9728 = vmatprep.mubr.f32.mxu0 %v9573
  %9729 = vmatmul.mubr.f32.gmra.mrb[0].mxu0 %v9428
  %v9730 = vpop.f32.mrb[0].mxu0
  %v9731 = vadd.f32 0.0, %v9730
  %v9732 = vpop.f32.mrb[0].mxu0
  %9733 = vmatprep.mubr.f32.mxu0 %v9576
  %9734 = vmatmul.mubr.f32.gmra.mrb[0].mxu0 %v9430
  %v9735 = vpop.f32.mrb[0].mxu0
  %v9736 = vadd.f32 0.0, %v9735
  %v9737 = vpop.f32.mrb[0].mxu0
  %9738 = vmatprep.mubr.f32.mxu0 %v9579
  %9739 = vmatmul.mubr.f32.gmra.mrb[0].mxu0 %v9432
  %v9740 = vpop.f32.mrb[0].mxu0
  %v9741 = vadd.f32 0.0, %v9740
  %v9742 = vpop.f32.mrb[0].mxu0
  %9743 = vmatprep.mubr.f32.mxu0 %v9582
  %9744 = vmatmul.mubr.f32.gmra.mrb[0].mxu0 %v9434
  %v9745 = vpop.f32.mrb[0].mxu0
  %v9746 = vadd.f32 0.0, %v9745
  %v9747 = vpop.f32.mrb[0].mxu0
  %9748 = vmatprep.mubr.f32.mxu0 %v9585
  %9749 = vmatmul.mubr.f32.gmra.mrb[0].mxu0 %v9436
  %v9750 = vpop.f32.mrb[0].mxu0
  %v9751 = vadd.f32 0.0, %v9750
  %v9752 = vpop.f32.mrb[0].mxu0
  %9753 = vmatprep.mubr.f32.mxu0 %v9588
  %9754 = vmatmul.mubr.f32.gmra.mrb[0].mxu0 %v9438
  %v9755 = vpop.f32.mrb[0].mxu0
  %v9756 = vadd.f32 0.0, %v9755
  %v9757 = vpop.f32.mrb[0].mxu0
  %9758 = vmatprep.mubr.f32.mxu0 %v9591
  %9759 = vmatmul.mubr.f32.gmra.mrb[0].mxu0 %v9440
  %v9760 = vpop.f32.mrb[0].mxu0
  %v9761 = vadd.f32 0.0, %v9760
  %v9762 = vpop.f32.mrb[0].mxu0
  %9763 = vmatprep.mubr.f32.mxu0 %v9594
  %9764 = vmatmul.mubr.f32.gmra.mrb[0].mxu0 %v9442
  %v9765 = vpop.f32.mrb[0].mxu0
  %v9766 = vadd.f32 0.0, %v9765
  %v9767 = vpop.f32.mrb[0].mxu0
  %9768 = vmatprep.mubr.f32.mxu0 %v9597
  %9769 = vmatmul.mubr.f32.gmra.mrb[0].mxu0 %v9444
  %v9770 = vpop.f32.mrb[0].mxu0
  %v9771 = vadd.f32 0.0, %v9770
  %v9772 = vpop.f32.mrb[0].mxu0
  %9773 = vmatprep.mubr.f32.mxu0 %v9600
  %9774 = vmatmul.mubr.f32.gmra.mrb[0].mxu0 %v9446
  %v9775 = vpop.f32.mrb[0].mxu0
  %v9776 = vadd.f32 0.0, %v9775
  %v9777 = vpop.f32.mrb[0].mxu0
  %9778 = vmatprep.mubr.f32.mxu0 %v9603
  %9779 = vmatmul.mubr.f32.gmra.mrb[0].mxu0 %v9448
  %v9780 = vpop.f32.mrb[0].mxu0
  %v9781 = vadd.f32 0.0, %v9780
  %v9782 = vpop.f32.mrb[0].mxu0
  %9783 = vmatprep.mubr.f32.mxu0 %v9606
  %9784 = vmatmul.mubr.f32.gmra.mrb[0].mxu0 %v9450
  %v9785 = vpop.f32.mrb[0].mxu0
  %v9786 = vadd.f32 0.0, %v9785
  %v9787 = vpop.f32.mrb[0].mxu0
  %9788 = vmatprep.mubr.f32.mxu0 %v9609
  %9789 = vmatmul.mubr.f32.gmra.mrb[0].mxu0 %v9452
  %v9790 = vpop.f32.mrb[0].mxu0
  %v9791 = vadd.f32 0.0, %v9790
  %v9792 = vpop.f32.mrb[0].mxu0
  %9793 = vmatprep.mubr.f32.mxu0 %v9612
  %9794 = vmatmul.mubr.f32.gmra.mrb[0].mxu0 %v9454
  %v9795 = vpop.f32.mrb[0].mxu0
  %v9796 = vadd.f32 0.0, %v9795
  %v9797 = vpop.f32.mrb[0].mxu0
  %9798 = vmatprep.mubr.f32.mxu0 %v9615
  %9799 = vmatmul.mubr.f32.gmra.mrb[0].mxu0 %v9456
  %v9800 = vpop.f32.mrb[0].mxu0
  %v9801 = vadd.f32 0.0, %v9800
  %v9802 = vpop.f32.mrb[0].mxu0
  %9803 = vmatprep.mubr.f32.mxu0 %v9618
  %9804 = vmatmul.mubr.f32.gmra.mrb[0].mxu0 %v9458
  %v9805 = vpop.f32.mrb[0].mxu0
  %v9806 = vadd.f32 0.0, %v9805
  %v9807 = vpop.f32.mrb[0].mxu0
  %9808 = vmatprep.mubr.f32.mxu0 %v9621
  %9809 = vmatmul.mubr.f32.gmra.mrb[0].mxu0 %v9460
  %v9810 = vpop.f32.mrb[0].mxu0
  %v9811 = vadd.f32 0.0, %v9810
  %v9812 = vpop.f32.mrb[0].mxu0
  %9813 = vmatprep.mubr.f32.mxu0 %v9624
  %9814 = vmatmul.mubr.f32.gmra.mrb[0].mxu0 %v9462
  %v9815 = vpop.f32.mrb[0].mxu0
  %v9816 = vadd.f32 0.0, %v9815
  %v9817 = vpop.f32.mrb[0].mxu0
  %9818 = vmatprep.mubr.f32.mxu0 %v9627
  %9819 = vmatmul.mubr.f32.gmra.mrb[0].mxu0 %v9464
  %v9820 = vpop.f32.mrb[0].mxu0
  %v9821 = vadd.f32 0.0, %v9820
  %v9822 = vpop.f32.mrb[0].mxu0
  %9823 = vmatprep.mubr.f32.mxu0 %v9630
  %9824 = vmatmul.mubr.f32.gmra.mrb[0].mxu0 %v9466
  %v9825 = vpop.f32.mrb[0].mxu0
  %v9826 = vadd.f32 0.0, %v9825
  %v9827 = vpop.f32.mrb[0].mxu0
  %9828 = vmatprep.mubr.f32.mxu0 %v9633
  %9829 = vmatmul.mubr.f32.gmra.mrb[0].mxu0 %v9468
  %v9830 = vpop.f32.mrb[0].mxu0
  %v9831 = vadd.f32 0.0, %v9830
  %v9832 = vpop.f32.mrb[0].mxu0
  %9833 = vmatprep.mubr.f32.mxu0 %v9636
  %9834 = vmatmul.mubr.f32.gmra.mrb[0].mxu0 %v9470
  %v9835 = vpop.f32.mrb[0].mxu0
  %v9836 = vadd.f32 0.0, %v9835
  %v9837 = vpop.f32.mrb[0].mxu0
  %9838 = vmatprep.mubr.f32.mxu0 %v9639
  %9839 = vmatmul.mubr.f32.gmra.mrb[0].mxu0 %v9472
  %v9840 = vpop.f32.mrb[0].mxu0
  %v9841 = vadd.f32 0.0, %v9840
  %v9842 = vpop.f32.mrb[0].mxu0
  %9843 = vmatprep.mubr.f32.mxu0 %v9642
  %9844 = vmatmul.mubr.f32.gmra.mrb[0].mxu0 %v9474
  %v9845 = vpop.f32.mrb[0].mxu0
  %v9846 = vadd.f32 0.0, %v9845
  %v9847 = vpop.f32.mrb[0].mxu0
  %9848 = vdwg.mxu0
  %v9849 = vadd.f32 %v9281, %v9711
  %v9850 = vadd.f32 %v9286, %v9716
  %v9851 = vadd.f32 %v9291, %v9721
  %v9852 = vadd.f32 %v9296, %v9726
  %v9853 = vadd.f32 %v9301, %v9731
  %v9854 = vadd.f32 %v9306, %v9736
  %v9855 = vadd.f32 %v9311, %v9741
  %v9856 = vadd.f32 %v9316, %v9746
  %v9857 = vadd.f32 %v9321, %v9751
  %v9858 = vadd.f32 %v9326, %v9756
  %v9859 = vadd.f32 %v9331, %v9761
  %v9860 = vadd.f32 %v9336, %v9766
  %v9861 = vadd.f32 %v9341, %v9771
  %v9862 = vadd.f32 %v9346, %v9776
  %v9863 = vadd.f32 %v9351, %v9781
  %v9864 = vadd.f32 %v9356, %v9786
  %v9865 = vadd.f32 %v9361, %v9791
  %v9866 = vadd.f32 %v9366, %v9796
  %v9867 = vadd.f32 %v9371, %v9801
  %v9868 = vadd.f32 %v9376, %v9806
  %v9869 = vadd.f32 %v9381, %v9811
  %v9870 = vadd.f32 %v9386, %v9816
  %v9871 = vadd.f32 %v9391, %v9821
  %v9872 = vadd.f32 %v9396, %v9826
  %v9873 = vadd.f32 %v9401, %v9831
  %v9874 = vadd.f32 %v9406, %v9836
  %v9875 = vadd.f32 %v9411, %v9841
  %v9876 = vadd.f32 %v9416, %v9846
  %v9877 = vld [vmem:[%s19] sm:$0xff]
  %v9878 = vld [vmem:[%s19 + $0x8] sm:$0xff]
  %v9879 = vld [vmem:[%s19 + $0x10] sm:$0xff]
  %v9880 = vld [vmem:[%s19 + $0x18] sm:$0xff]
  %v9881 = vld [vmem:[%s19 + $0x20] sm:$0xff]
  %v9882 = vld [vmem:[%s19 + $0x28] sm:$0xff]
  %v9883 = vld [vmem:[%s19 + $0x30] sm:$0xff]
  %v9884 = vld [vmem:[%s19 + $0x38] sm:$0xff]
  %v9885 = vld [vmem:[%s19 + $0x40] sm:$0xff]
  %v9886 = vld [vmem:[%s19 + $0x48] sm:$0xff]
  %v9887 = vld [vmem:[%s19 + $0x50] sm:$0xff]
  %v9888 = vld [vmem:[%s19 + $0x58] sm:$0xff]
  %v9889 = vld [vmem:[%s19 + $0x60] sm:$0xff]
  %v9890 = vld [vmem:[%s19 + $0x68] sm:$0xff]
  %v9891 = vld [vmem:[%s19 + $0x70] sm:$0xff]
  %v9892 = vld [vmem:[%s19 + $0x78] sm:$0xff]
  %v9893 = vld [vmem:[%s19 + $0x80] sm:$0xff]
  %v9894 = vld [vmem:[%s19 + $0x88] sm:$0xff]
  %v9895 = vld [vmem:[%s19 + $0x90] sm:$0xff]
  %v9896 = vld [vmem:[%s19 + $0x98] sm:$0xff]
  %v9897 = vld [vmem:[%s19 + $0xa0] sm:$0xff]
  %v9898 = vld [vmem:[%s19 + $0xa8] sm:$0xff]
  %v9899 = vld [vmem:[%s19 + $0xb0] sm:$0xff]
  %v9900 = vld [vmem:[%s19 + $0xb8] sm:$0xff]
  %v9901 = vld [vmem:[%s19 + $0xc0] sm:$0xff]
  %v9902 = vld [vmem:[%s19 + $0xc8] sm:$0xff]
  %v9903 = vld [vmem:[%s19 + $0xd0] sm:$0xff]
  %v9904 = vld [vmem:[%s19 + $0xd8] sm:$0xff]
  %9906 = vset.pattern.permute.xlu0 0
  %9907 = vperm.xlu0 %9906, %v9877
  %v9908 = vpop.permute.xlu0 %9907
  %9911 = vset.pattern.permute.xlu0 0
  %9912 = vperm.xlu0 %9911, %v9878
  %v9913 = vpop.permute.xlu0 %9912
  %9916 = vset.pattern.permute.xlu0 0
  %9917 = vperm.xlu0 %9916, %v9879
  %v9918 = vpop.permute.xlu0 %9917
  %9921 = vset.pattern.permute.xlu0 0
  %9922 = vperm.xlu0 %9921, %v9880
  %v9923 = vpop.permute.xlu0 %9922
  %9926 = vset.pattern.permute.xlu0 0
  %9927 = vperm.xlu0 %9926, %v9881
  %v9928 = vpop.permute.xlu0 %9927
  %9931 = vset.pattern.permute.xlu0 0
  %9932 = vperm.xlu0 %9931, %v9882
  %v9933 = vpop.permute.xlu0 %9932
  %9936 = vset.pattern.permute.xlu0 0
  %9937 = vperm.xlu0 %9936, %v9883
  %v9938 = vpop.permute.xlu0 %9937
  %9941 = vset.pattern.permute.xlu0 0
  %9942 = vperm.xlu0 %9941, %v9884
  %v9943 = vpop.permute.xlu0 %9942
  %9946 = vset.pattern.permute.xlu0 0
  %9947 = vperm.xlu0 %9946, %v9885
  %v9948 = vpop.permute.xlu0 %9947
  %9951 = vset.pattern.permute.xlu0 0
  %9952 = vperm.xlu0 %9951, %v9886
  %v9953 = vpop.permute.xlu0 %9952
  %9956 = vset.pattern.permute.xlu0 0
  %9957 = vperm.xlu0 %9956, %v9887
  %v9958 = vpop.permute.xlu0 %9957
  %9961 = vset.pattern.permute.xlu0 0
  %9962 = vperm.xlu0 %9961, %v9888
  %v9963 = vpop.permute.xlu0 %9962
  %9966 = vset.pattern.permute.xlu0 0
  %9967 = vperm.xlu0 %9966, %v9889
  %v9968 = vpop.permute.xlu0 %9967
  %9971 = vset.pattern.permute.xlu0 0
  %9972 = vperm.xlu0 %9971, %v9890
  %v9973 = vpop.permute.xlu0 %9972
  %9976 = vset.pattern.permute.xlu0 0
  %9977 = vperm.xlu0 %9976, %v9891
  %v9978 = vpop.permute.xlu0 %9977
  %9981 = vset.pattern.permute.xlu0 0
  %9982 = vperm.xlu0 %9981, %v9892
  %v9983 = vpop.permute.xlu0 %9982
  %9986 = vset.pattern.permute.xlu0 0
  %9987 = vperm.xlu0 %9986, %v9893
  %v9988 = vpop.permute.xlu0 %9987
  %9991 = vset.pattern.permute.xlu0 0
  %9992 = vperm.xlu0 %9991, %v9894
  %v9993 = vpop.permute.xlu0 %9992
  %9996 = vset.pattern.permute.xlu0 0
  %9997 = vperm.xlu0 %9996, %v9895
  %v9998 = vpop.permute.xlu0 %9997
  %10001 = vset.pattern.permute.xlu0 0
  %10002 = vperm.xlu0 %10001, %v9896
  %v10003 = vpop.permute.xlu0 %10002
  %10006 = vset.pattern.permute.xlu0 0
  %10007 = vperm.xlu0 %10006, %v9897
  %v10008 = vpop.permute.xlu0 %10007
  %10011 = vset.pattern.permute.xlu0 0
  %10012 = vperm.xlu0 %10011, %v9898
  %v10013 = vpop.permute.xlu0 %10012
  %10016 = vset.pattern.permute.xlu0 0
  %10017 = vperm.xlu0 %10016, %v9899
  %v10018 = vpop.permute.xlu0 %10017
  %10021 = vset.pattern.permute.xlu0 0
  %10022 = vperm.xlu0 %10021, %v9900
  %v10023 = vpop.permute.xlu0 %10022
  %10026 = vset.pattern.permute.xlu0 0
  %10027 = vperm.xlu0 %10026, %v9901
  %v10028 = vpop.permute.xlu0 %10027
  %10031 = vset.pattern.permute.xlu0 0
  %10032 = vperm.xlu0 %10031, %v9902
  %v10033 = vpop.permute.xlu0 %10032
  %10036 = vset.pattern.permute.xlu0 0
  %10037 = vperm.xlu0 %10036, %v9903
  %v10038 = vpop.permute.xlu0 %10037
  %10041 = vset.pattern.permute.xlu0 0
  %10042 = vperm.xlu0 %10041, %v9904
  %v10043 = vpop.permute.xlu0 %10042
  %v10045 = vadd.f32 %v9849, %v9908
  %v10046 = vadd.f32 %v9850, %v9913
  %v10047 = vadd.f32 %v9851, %v9918
  %v10048 = vadd.f32 %v9852, %v9923
  %v10049 = vadd.f32 %v9853, %v9928
  %v10050 = vadd.f32 %v9854, %v9933
  %v10051 = vadd.f32 %v9855, %v9938
  %v10052 = vadd.f32 %v9856, %v9943
  %v10053 = vadd.f32 %v9857, %v9948
  %v10054 = vadd.f32 %v9858, %v9953
  %v10055 = vadd.f32 %v9859, %v9958
  %v10056 = vadd.f32 %v9860, %v9963
  %v10057 = vadd.f32 %v9861, %v9968
  %v10058 = vadd.f32 %v9862, %v9973
  %v10059 = vadd.f32 %v9863, %v9978
  %v10060 = vadd.f32 %v9864, %v9983
  %v10061 = vadd.f32 %v9865, %v9988
  %v10062 = vadd.f32 %v9866, %v9993
  %v10063 = vadd.f32 %v9867, %v9998
  %v10064 = vadd.f32 %v9868, %v10003
  %v10065 = vadd.f32 %v9869, %v10008
  %v10066 = vadd.f32 %v9870, %v10013
  %v10067 = vadd.f32 %v9871, %v10018
  %v10068 = vadd.f32 %v9872, %v10023
  %v10069 = vadd.f32 %v9873, %v10028
  %v10070 = vadd.f32 %v9874, %v10033
  %v10071 = vadd.f32 %v9875, %v10038
  %v10072 = vadd.f32 %v9876, %v10043
  %v10073 = vmax.f32 %v10045, 0.0
  %v10074 = vmax.f32 %v10046, 0.0
  %v10075 = vmax.f32 %v10047, 0.0
  %v10076 = vmax.f32 %v10048, 0.0
  %v10077 = vmax.f32 %v10049, 0.0
  %v10078 = vmax.f32 %v10050, 0.0
  %v10079 = vmax.f32 %v10051, 0.0
  %v10080 = vmax.f32 %v10052, 0.0
  %v10081 = vmax.f32 %v10053, 0.0
  %v10082 = vmax.f32 %v10054, 0.0
  %v10083 = vmax.f32 %v10055, 0.0
  %v10084 = vmax.f32 %v10056, 0.0
  %v10085 = vmax.f32 %v10057, 0.0
  %v10086 = vmax.f32 %v10058, 0.0
  %v10087 = vmax.f32 %v10059, 0.0
  %v10088 = vmax.f32 %v10060, 0.0
  %v10089 = vmax.f32 %v10061, 0.0
  %v10090 = vmax.f32 %v10062, 0.0
  %v10091 = vmax.f32 %v10063, 0.0
  %v10092 = vmax.f32 %v10064, 0.0
  %v10093 = vmax.f32 %v10065, 0.0
  %v10094 = vmax.f32 %v10066, 0.0
  %v10095 = vmax.f32 %v10067, 0.0
  %v10096 = vmax.f32 %v10068, 0.0
  %v10097 = vmax.f32 %v10069, 0.0
  %v10098 = vmax.f32 %v10070, 0.0
  %v10099 = vmax.f32 %v10071, 0.0
  %v10100 = vmax.f32 %v10072, 0.0
  %v10101 = vld [vmem:[%s20] sm:$0xff]
  %v10102 = vld [vmem:[%s20 + $0x8] sm:$0xff]
  %v10103 = vld [vmem:[%s20 + $0x10] sm:$0xff]
  %v10104 = vld [vmem:[%s20 + $0x18] sm:$0xff]
  %v10105 = vld [vmem:[%s20 + $0x20] sm:$0xff]
  %v10106 = vld [vmem:[%s20 + $0x28] sm:$0xff]
  %v10107 = vld [vmem:[%s20 + $0x30] sm:$0xff]
  %v10109 = vsel %vm8326, %v10073, 0
  %v10112 = vsel %vm8326, %v10074, 0
  %v10115 = vsel %vm8326, %v10075, 0
  %v10118 = vsel %vm8326, %v10076, 0
  %v10121 = vsel %vm8326, %v10077, 0
  %v10124 = vsel %vm8326, %v10078, 0
  %v10127 = vsel %vm8326, %v10079, 0
  %v10130 = vsel %vm8326, %v10080, 0
  %v10133 = vsel %vm8326, %v10081, 0
  %v10136 = vsel %vm8326, %v10082, 0
  %v10139 = vsel %vm8326, %v10083, 0
  %v10142 = vsel %vm8326, %v10084, 0
  %v10145 = vsel %vm8326, %v10085, 0
  %v10148 = vsel %vm8326, %v10086, 0
  %v10151 = vsel %vm8326, %v10087, 0
  %v10154 = vsel %vm8326, %v10088, 0
  %v10157 = vsel %vm8326, %v10089, 0
  %v10160 = vsel %vm8326, %v10090, 0
  %v10163 = vsel %vm8326, %v10091, 0
  %v10166 = vsel %vm8326, %v10092, 0
  %v10169 = vsel %vm8326, %v10093, 0
  %v10172 = vsel %vm8326, %v10094, 0
  %v10175 = vsel %vm8326, %v10095, 0
  %v10178 = vsel %vm8326, %v10096, 0
  %v10181 = vsel %vm8326, %v10097, 0
  %v10184 = vsel %vm8326, %v10098, 0
  %v10187 = vsel %vm8326, %v10099, 0
  %v10190 = vsel %vm8326, %v10100, 0
  %10192 = vmatprep.subr.mxu0 0.0
  %10193 = vmatpush1.msra.mxu0 %v10101
  %10194 = vmatprep.subr.mxu0 0.0
  %10195 = vmatpush1.msra.mxu0 %v10102
  %10196 = vmatprep.subr.mxu0 0.0
  %10197 = vmatpush1.msra.mxu0 %v10103
  %10198 = vmatprep.subr.mxu0 0.0
  %10199 = vmatpush1.msra.mxu0 %v10104
  %10200 = vmatprep.subr.mxu0 0.0
  %10201 = vmatpush1.msra.mxu0 %v10105
  %10202 = vmatprep.subr.mxu0 0.0
  %10203 = vmatpush1.msra.mxu0 %v10106
  %10204 = vmatprep.subr.mxu0 0.0
  %10205 = vmatpush1.msra.mxu0 %v10107
  %10206 = vmatprep.subr.mxu0 0.0
  %10207 = vmatpush1.msra.mxu0 0.0
  %10208 = vmatprep.subr.mxu0 0.0
  %10209 = vmatpush1.msra.mxu0 0.0
  %10210 = vmatprep.subr.mxu0 0.0
  %10211 = vmatpush1.msra.mxu0 0.0
  %10212 = vmatprep.subr.mxu0 0.0
  %10213 = vmatpush1.msra.mxu0 0.0
  %10214 = vmatprep.subr.mxu0 0.0
  %10215 = vmatpush1.msra.mxu0 0.0
  %10216 = vmatprep.subr.mxu0 0.0
  %10217 = vmatpush1.msra.mxu0 0.0
  %10218 = vmatprep.subr.mxu0 0.0
  %10219 = vmatpush1.msra.mxu0 0.0
  %10220 = vmatprep.subr.mxu0 0.0
  %10221 = vmatpush1.msra.mxu0 0.0
  %10222 = vmatprep.subr.mxu0 0.0
  %10223 = vmatpush1.msra.mxu0 0.0
  %10224 = vmatprep.subr.mxu0 0.0
  %10225 = vmatpush1.msra.mxu0 0.0
  %10226 = vmatprep.subr.mxu0 0.0
  %10227 = vmatpush1.msra.mxu0 0.0
  %10228 = vmatprep.subr.mxu0 0.0
  %10229 = vmatpush1.msra.mxu0 0.0
  %10230 = vmatprep.subr.mxu0 0.0
  %10231 = vmatpush1.msra.mxu0 0.0
  %10232 = vmatprep.subr.mxu0 0.0
  %10233 = vmatpush1.msra.mxu0 0.0
  %10234 = vmatprep.subr.mxu0 0.0
  %10235 = vmatpush1.msra.mxu0 0.0
  %10236 = vmatprep.subr.mxu0 0.0
  %10237 = vmatpush1.msra.mxu0 0.0
  %10238 = vmatprep.subr.mxu0 0.0
  %10239 = vmatpush1.msra.mxu0 0.0
  %10240 = vmatprep.subr.mxu0 0.0
  %10241 = vmatpush1.msra.mxu0 0.0
  %10242 = vmatprep.subr.mxu0 0.0
  %10243 = vmatpush1.msra.mxu0 0.0
  %10244 = vmatprep.subr.mxu0 0.0
  %10245 = vmatpush1.msra.mxu0 0.0
  %10246 = vmatprep.subr.mxu0 0.0
  %10247 = vmatpush1.msra.mxu0 0.0
  %10248 = vmatprep.subr.mxu0 0.0
  %10249 = vmatpush1.msra.mxu0 0.0
  %10250 = vmatprep.subr.mxu0 0.0
  %10251 = vmatpush1.msra.mxu0 0.0
  %10252 = vmatprep.subr.mxu0 0.0
  %10253 = vmatpush1.msra.mxu0 0.0
  %10254 = vmatprep.subr.mxu0 0.0
  %10255 = vmatpush1.msra.mxu0 0.0
  %10256 = vmatprep.mubr.f32.mxu0 0.0
  %10257 = vmatmul.mubr.f32.gmra.mrb[0].mxu0 %v10109
  %v10258 = vpop.f32.mrb[0].mxu0
  %v10259 = vadd.f32 0.0, %v10258
  %v10260 = vpop.f32.mrb[0].mxu0
  %10261 = vmatprep.mubr.f32.mxu0 0.0
  %10262 = vmatmul.mubr.f32.gmra.mrb[0].mxu0 %v10112
  %v10263 = vpop.f32.mrb[0].mxu0
  %v10264 = vadd.f32 0.0, %v10263
  %v10265 = vpop.f32.mrb[0].mxu0
  %10266 = vmatprep.mubr.f32.mxu0 0.0
  %10267 = vmatmul.mubr.f32.gmra.mrb[0].mxu0 %v10115
  %v10268 = vpop.f32.mrb[0].mxu0
  %v10269 = vadd.f32 0.0, %v10268
  %v10270 = vpop.f32.mrb[0].mxu0
  %10271 = vmatprep.mubr.f32.mxu0 0.0
  %10272 = vmatmul.mubr.f32.gmra.mrb[0].mxu0 %v10118
  %v10273 = vpop.f32.mrb[0].mxu0
  %v10274 = vadd.f32 0.0, %v10273
  %v10275 = vpop.f32.mrb[0].mxu0
  %10276 = vmatprep.mubr.f32.mxu0 0.0
  %10277 = vmatmul.mubr.f32.gmra.mrb[0].mxu0 %v10121
  %v10278 = vpop.f32.mrb[0].mxu0
  %v10279 = vadd.f32 0.0, %v10278
  %v10280 = vpop.f32.mrb[0].mxu0
  %10281 = vmatprep.mubr.f32.mxu0 0.0
  %10282 = vmatmul.mubr.f32.gmra.mrb[0].mxu0 %v10124
  %v10283 = vpop.f32.mrb[0].mxu0
  %v10284 = vadd.f32 0.0, %v10283
  %v10285 = vpop.f32.mrb[0].mxu0
  %10286 = vmatprep.mubr.f32.mxu0 0.0
  %10287 = vmatmul.mubr.f32.gmra.mrb[0].mxu0 %v10127
  %v10288 = vpop.f32.mrb[0].mxu0
  %v10289 = vadd.f32 0.0, %v10288
  %v10290 = vpop.f32.mrb[0].mxu0
  %10291 = vmatprep.mubr.f32.mxu0 0.0
  %10292 = vmatmul.mubr.f32.gmra.mrb[0].mxu0 %v10130
  %v10293 = vpop.f32.mrb[0].mxu0
  %v10294 = vadd.f32 0.0, %v10293
  %v10295 = vpop.f32.mrb[0].mxu0
  %10296 = vmatprep.mubr.f32.mxu0 0.0
  %10297 = vmatmul.mubr.f32.gmra.mrb[0].mxu0 %v10133
  %v10298 = vpop.f32.mrb[0].mxu0
  %v10299 = vadd.f32 0.0, %v10298
  %v10300 = vpop.f32.mrb[0].mxu0
  %10301 = vmatprep.mubr.f32.mxu0 0.0
  %10302 = vmatmul.mubr.f32.gmra.mrb[0].mxu0 %v10136
  %v10303 = vpop.f32.mrb[0].mxu0
  %v10304 = vadd.f32 0.0, %v10303
  %v10305 = vpop.f32.mrb[0].mxu0
  %10306 = vmatprep.mubr.f32.mxu0 0.0
  %10307 = vmatmul.mubr.f32.gmra.mrb[0].mxu0 %v10139
  %v10308 = vpop.f32.mrb[0].mxu0
  %v10309 = vadd.f32 0.0, %v10308
  %v10310 = vpop.f32.mrb[0].mxu0
  %10311 = vmatprep.mubr.f32.mxu0 0.0
  %10312 = vmatmul.mubr.f32.gmra.mrb[0].mxu0 %v10142
  %v10313 = vpop.f32.mrb[0].mxu0
  %v10314 = vadd.f32 0.0, %v10313
  %v10315 = vpop.f32.mrb[0].mxu0
  %10316 = vmatprep.mubr.f32.mxu0 0.0
  %10317 = vmatmul.mubr.f32.gmra.mrb[0].mxu0 %v10145
  %v10318 = vpop.f32.mrb[0].mxu0
  %v10319 = vadd.f32 0.0, %v10318
  %v10320 = vpop.f32.mrb[0].mxu0
  %10321 = vmatprep.mubr.f32.mxu0 0.0
  %10322 = vmatmul.mubr.f32.gmra.mrb[0].mxu0 %v10148
  %v10323 = vpop.f32.mrb[0].mxu0
  %v10324 = vadd.f32 0.0, %v10323
  %v10325 = vpop.f32.mrb[0].mxu0
  %10326 = vmatprep.mubr.f32.mxu0 0.0
  %10327 = vmatmul.mubr.f32.gmra.mrb[0].mxu0 %v10151
  %v10328 = vpop.f32.mrb[0].mxu0
  %v10329 = vadd.f32 0.0, %v10328
  %v10330 = vpop.f32.mrb[0].mxu0
  %10331 = vmatprep.mubr.f32.mxu0 0.0
  %10332 = vmatmul.mubr.f32.gmra.mrb[0].mxu0 %v10154
  %v10333 = vpop.f32.mrb[0].mxu0
  %v10334 = vadd.f32 0.0, %v10333
  %v10335 = vpop.f32.mrb[0].mxu0
  %10336 = vmatprep.mubr.f32.mxu0 0.0
  %10337 = vmatmul.mubr.f32.gmra.mrb[0].mxu0 %v10157
  %v10338 = vpop.f32.mrb[0].mxu0
  %v10339 = vadd.f32 0.0, %v10338
  %v10340 = vpop.f32.mrb[0].mxu0
  %10341 = vmatprep.mubr.f32.mxu0 0.0
  %10342 = vmatmul.mubr.f32.gmra.mrb[0].mxu0 %v10160
  %v10343 = vpop.f32.mrb[0].mxu0
  %v10344 = vadd.f32 0.0, %v10343
  %v10345 = vpop.f32.mrb[0].mxu0
  %10346 = vmatprep.mubr.f32.mxu0 0.0
  %10347 = vmatmul.mubr.f32.gmra.mrb[0].mxu0 %v10163
  %v10348 = vpop.f32.mrb[0].mxu0
  %v10349 = vadd.f32 0.0, %v10348
  %v10350 = vpop.f32.mrb[0].mxu0
  %10351 = vmatprep.mubr.f32.mxu0 0.0
  %10352 = vmatmul.mubr.f32.gmra.mrb[0].mxu0 %v10166
  %v10353 = vpop.f32.mrb[0].mxu0
  %v10354 = vadd.f32 0.0, %v10353
  %v10355 = vpop.f32.mrb[0].mxu0
  %10356 = vmatprep.mubr.f32.mxu0 0.0
  %10357 = vmatmul.mubr.f32.gmra.mrb[0].mxu0 %v10169
  %v10358 = vpop.f32.mrb[0].mxu0
  %v10359 = vadd.f32 0.0, %v10358
  %v10360 = vpop.f32.mrb[0].mxu0
  %10361 = vmatprep.mubr.f32.mxu0 0.0
  %10362 = vmatmul.mubr.f32.gmra.mrb[0].mxu0 %v10172
  %v10363 = vpop.f32.mrb[0].mxu0
  %v10364 = vadd.f32 0.0, %v10363
  %v10365 = vpop.f32.mrb[0].mxu0
  %10366 = vmatprep.mubr.f32.mxu0 0.0
  %10367 = vmatmul.mubr.f32.gmra.mrb[0].mxu0 %v10175
  %v10368 = vpop.f32.mrb[0].mxu0
  %v10369 = vadd.f32 0.0, %v10368
  %v10370 = vpop.f32.mrb[0].mxu0
  %10371 = vmatprep.mubr.f32.mxu0 0.0
  %10372 = vmatmul.mubr.f32.gmra.mrb[0].mxu0 %v10178
  %v10373 = vpop.f32.mrb[0].mxu0
  %v10374 = vadd.f32 0.0, %v10373
  %v10375 = vpop.f32.mrb[0].mxu0
  %10376 = vmatprep.mubr.f32.mxu0 0.0
  %10377 = vmatmul.mubr.f32.gmra.mrb[0].mxu0 %v10181
  %v10378 = vpop.f32.mrb[0].mxu0
  %v10379 = vadd.f32 0.0, %v10378
  %v10380 = vpop.f32.mrb[0].mxu0
  %10381 = vmatprep.mubr.f32.mxu0 0.0
  %10382 = vmatmul.mubr.f32.gmra.mrb[0].mxu0 %v10184
  %v10383 = vpop.f32.mrb[0].mxu0
  %v10384 = vadd.f32 0.0, %v10383
  %v10385 = vpop.f32.mrb[0].mxu0
  %10386 = vmatprep.mubr.f32.mxu0 0.0
  %10387 = vmatmul.mubr.f32.gmra.mrb[0].mxu0 %v10187
  %v10388 = vpop.f32.mrb[0].mxu0
  %v10389 = vadd.f32 0.0, %v10388
  %v10390 = vpop.f32.mrb[0].mxu0
  %10391 = vmatprep.mubr.f32.mxu0 0.0
  %10392 = vmatmul.mubr.f32.gmra.mrb[0].mxu0 %v10190
  %v10393 = vpop.f32.mrb[0].mxu0
  %v10394 = vadd.f32 0.0, %v10393
  %v10395 = vpop.f32.mrb[0].mxu0
  %10396 = vdwg.mxu0
  %v10397 = vld [vmem:[%s21] sm:$0xff]
  %v10398 = vld [vmem:[%s21 + $0x8] sm:$0xff]
  %v10399 = vld [vmem:[%s21 + $0x10] sm:$0xff]
  %v10400 = vld [vmem:[%s21 + $0x18] sm:$0xff]
  %v10401 = vld [vmem:[%s21 + $0x20] sm:$0xff]
  %v10402 = vld [vmem:[%s21 + $0x28] sm:$0xff]
  %v10403 = vld [vmem:[%s21 + $0x30] sm:$0xff]
  %v10404 = vld [vmem:[%s21 + $0x38] sm:$0xff]
  %v10405 = vld [vmem:[%s21 + $0x40] sm:$0xff]
  %v10406 = vld [vmem:[%s21 + $0x48] sm:$0xff]
  %v10407 = vld [vmem:[%s21 + $0x50] sm:$0xff]
  %v10408 = vld [vmem:[%s21 + $0x58] sm:$0xff]
  %v10409 = vld [vmem:[%s21 + $0x60] sm:$0xff]
  %v10410 = vld [vmem:[%s21 + $0x68] sm:$0xff]
  %v10411 = vld [vmem:[%s21 + $0x70] sm:$0xff]
  %v10412 = vld [vmem:[%s21 + $0x78] sm:$0xff]
  %v10413 = vld [vmem:[%s21 + $0x80] sm:$0xff]
  %v10414 = vld [vmem:[%s21 + $0x88] sm:$0xff]
  %v10415 = vld [vmem:[%s21 + $0x90] sm:$0xff]
  %v10416 = vld [vmem:[%s21 + $0x98] sm:$0xff]
  %v10417 = vld [vmem:[%s21 + $0xa0] sm:$0xff]
  %v10418 = vld [vmem:[%s21 + $0xa8] sm:$0xff]
  %v10419 = vld [vmem:[%s21 + $0xb0] sm:$0xff]
  %v10420 = vld [vmem:[%s21 + $0xb8] sm:$0xff]
  %v10421 = vld [vmem:[%s21 + $0xc0] sm:$0xff]
  %v10422 = vld [vmem:[%s21 + $0xc8] sm:$0xff]
  %v10423 = vld [vmem:[%s21 + $0xd0] sm:$0xff]
  %v10424 = vld [vmem:[%s21 + $0xd8] sm:$0xff]
  %v10425 = vld [vmem:[%s21 + $0xe0] sm:$0xff]
  %v10426 = vld [vmem:[%s21 + $0xe8] sm:$0xff]
  %v10427 = vld [vmem:[%s21 + $0xf0] sm:$0xff]
  %v10428 = vld [vmem:[%s21 + $0xf8] sm:$0xff]
  %v10429 = vld [vmem:[%s21 + $0x100] sm:$0xff]
  %v10430 = vld [vmem:[%s21 + $0x108] sm:$0xff]
  %v10431 = vld [vmem:[%s21 + $0x110] sm:$0xff]
  %v10432 = vld [vmem:[%s21 + $0x118] sm:$0xff]
  %v10433 = vld [vmem:[%s21 + $0x120] sm:$0xff]
  %v10434 = vld [vmem:[%s21 + $0x128] sm:$0xff]
  %v10435 = vld [vmem:[%s21 + $0x130] sm:$0xff]
  %v10436 = vld [vmem:[%s21 + $0x138] sm:$0xff]
  %v10437 = vld [vmem:[%s21 + $0x140] sm:$0xff]
  %v10438 = vld [vmem:[%s21 + $0x148] sm:$0xff]
  %v10439 = vld [vmem:[%s21 + $0x150] sm:$0xff]
  %v10440 = vld [vmem:[%s21 + $0x158] sm:$0xff]
  %v10441 = vld [vmem:[%s21 + $0x160] sm:$0xff]
  %v10442 = vld [vmem:[%s21 + $0x168] sm:$0xff]
  %v10443 = vld [vmem:[%s21 + $0x170] sm:$0xff]
  %v10444 = vld [vmem:[%s21 + $0x178] sm:$0xff]
  %v10445 = vld [vmem:[%s21 + $0x180] sm:$0xff]
  %v10446 = vld [vmem:[%s21 + $0x188] sm:$0xff]
  %v10447 = vld [vmem:[%s21 + $0x190] sm:$0xff]
  %v10448 = vld [vmem:[%s21 + $0x198] sm:$0xff]
  %v10449 = vld [vmem:[%s21 + $0x1a0] sm:$0xff]
  %v10450 = vld [vmem:[%s21 + $0x1a8] sm:$0xff]
  %v10451 = vld [vmem:[%s21 + $0x1b0] sm:$0xff]
  %v10452 = vld [vmem:[%s21 + $0x1b8] sm:$0xff]
  %s10453 = scalar_lea.vmem %s21, 448
  %v10454 = vld [vmem:[%s10453] sm:$0xff]
  %v10455 = vld [vmem:[%s10453 + $0x8] sm:$0xff]
  %v10456 = vld [vmem:[%s10453 + $0x10] sm:$0xff]
  %v10457 = vld [vmem:[%s10453 + $0x18] sm:$0xff]
  %v10458 = vld [vmem:[%s10453 + $0x20] sm:$0xff]
  %v10459 = vld [vmem:[%s10453 + $0x28] sm:$0xff]
  %v10460 = vld [vmem:[%s10453 + $0x30] sm:$0xff]
  %v10461 = vld [vmem:[%s10453 + $0x38] sm:$0xff]
  %v10462 = vld [vmem:[%s10453 + $0x40] sm:$0xff]
  %v10463 = vld [vmem:[%s10453 + $0x48] sm:$0xff]
  %v10464 = vld [vmem:[%s10453 + $0x50] sm:$0xff]
  %v10465 = vld [vmem:[%s10453 + $0x58] sm:$0xff]
  %v10466 = vld [vmem:[%s10453 + $0x60] sm:$0xff]
  %v10467 = vld [vmem:[%s10453 + $0x68] sm:$0xff]
  %v10468 = vld [vmem:[%s10453 + $0x70] sm:$0xff]
  %v10469 = vld [vmem:[%s10453 + $0x78] sm:$0xff]
  %v10470 = vld [vmem:[%s10453 + $0x80] sm:$0xff]
  %v10471 = vld [vmem:[%s10453 + $0x88] sm:$0xff]
  %v10472 = vld [vmem:[%s10453 + $0x90] sm:$0xff]
  %v10473 = vld [vmem:[%s10453 + $0x98] sm:$0xff]
  %v10474 = vld [vmem:[%s10453 + $0xa0] sm:$0xff]
  %v10475 = vld [vmem:[%s10453 + $0xa8] sm:$0xff]
  %v10476 = vld [vmem:[%s10453 + $0xb0] sm:$0xff]
  %v10477 = vld [vmem:[%s10453 + $0xb8] sm:$0xff]
  %v10478 = vld [vmem:[%s10453 + $0xc0] sm:$0xff]
  %v10479 = vld [vmem:[%s10453 + $0xc8] sm:$0xff]
  %v10480 = vld [vmem:[%s10453 + $0xd0] sm:$0xff]
  %v10481 = vld [vmem:[%s10453 + $0xd8] sm:$0xff]
  %v10482 = vld [vmem:[%s10453 + $0xe0] sm:$0xff]
  %v10483 = vld [vmem:[%s10453 + $0xe8] sm:$0xff]
  %v10484 = vld [vmem:[%s10453 + $0xf0] sm:$0xff]
  %v10485 = vld [vmem:[%s10453 + $0xf8] sm:$0xff]
  %v10486 = vld [vmem:[%s10453 + $0x100] sm:$0xff]
  %v10487 = vld [vmem:[%s10453 + $0x108] sm:$0xff]
  %v10488 = vld [vmem:[%s10453 + $0x110] sm:$0xff]
  %v10489 = vld [vmem:[%s10453 + $0x118] sm:$0xff]
  %v10490 = vld [vmem:[%s10453 + $0x120] sm:$0xff]
  %v10491 = vld [vmem:[%s10453 + $0x128] sm:$0xff]
  %v10492 = vld [vmem:[%s10453 + $0x130] sm:$0xff]
  %v10493 = vld [vmem:[%s10453 + $0x138] sm:$0xff]
  %v10494 = vld [vmem:[%s10453 + $0x140] sm:$0xff]
  %v10495 = vld [vmem:[%s10453 + $0x148] sm:$0xff]
  %v10496 = vld [vmem:[%s10453 + $0x150] sm:$0xff]
  %v10497 = vld [vmem:[%s10453 + $0x158] sm:$0xff]
  %v10498 = vld [vmem:[%s10453 + $0x160] sm:$0xff]
  %v10499 = vld [vmem:[%s10453 + $0x168] sm:$0xff]
  %v10500 = vld [vmem:[%s10453 + $0x170] sm:$0xff]
  %v10501 = vld [vmem:[%s10453 + $0x178] sm:$0xff]
  %v10502 = vld [vmem:[%s10453 + $0x180] sm:$0xff]
  %v10503 = vld [vmem:[%s10453 + $0x188] sm:$0xff]
  %v10504 = vld [vmem:[%s10453 + $0x190] sm:$0xff]
  %v10505 = vld [vmem:[%s10453 + $0x198] sm:$0xff]
  %v10506 = vld [vmem:[%s10453 + $0x1a0] sm:$0xff]
  %v10507 = vld [vmem:[%s10453 + $0x1a8] sm:$0xff]
  %v10508 = vld [vmem:[%s10453 + $0x1b0] sm:$0xff]
  %v10509 = vld [vmem:[%s10453 + $0x1b8] sm:$0xff]
  %10538 = vrot.lane.b32.xlu0 %v10259, 126
  %v10539 = vpop.permute.xlu0 %10538
  %10540 = vrot.lane.b32.xlu0 %v10264, 126
  %v10541 = vpop.permute.xlu0 %10540
  %10542 = vrot.lane.b32.xlu0 %v10269, 126
  %v10543 = vpop.permute.xlu0 %10542
  %10544 = vrot.lane.b32.xlu0 %v10274, 126
  %v10545 = vpop.permute.xlu0 %10544
  %10546 = vrot.lane.b32.xlu0 %v10279, 126
  %v10547 = vpop.permute.xlu0 %10546
  %10548 = vrot.lane.b32.xlu0 %v10284, 126
  %v10549 = vpop.permute.xlu0 %10548
  %10550 = vrot.lane.b32.xlu0 %v10289, 126
  %v10551 = vpop.permute.xlu0 %10550
  %10552 = vrot.lane.b32.xlu0 %v10294, 126
  %v10553 = vpop.permute.xlu0 %10552
  %10554 = vrot.lane.b32.xlu0 %v10299, 126
  %v10555 = vpop.permute.xlu0 %10554
  %10556 = vrot.lane.b32.xlu0 %v10304, 126
  %v10557 = vpop.permute.xlu0 %10556
  %10558 = vrot.lane.b32.xlu0 %v10309, 126
  %v10559 = vpop.permute.xlu0 %10558
  %10560 = vrot.lane.b32.xlu0 %v10314, 126
  %v10561 = vpop.permute.xlu0 %10560
  %10562 = vrot.lane.b32.xlu0 %v10319, 126
  %v10563 = vpop.permute.xlu0 %10562
  %10564 = vrot.lane.b32.xlu0 %v10324, 126
  %v10565 = vpop.permute.xlu0 %10564
  %10566 = vrot.lane.b32.xlu0 %v10329, 126
  %v10567 = vpop.permute.xlu0 %10566
  %10568 = vrot.lane.b32.xlu0 %v10334, 126
  %v10569 = vpop.permute.xlu0 %10568
  %10570 = vrot.lane.b32.xlu0 %v10339, 126
  %v10571 = vpop.permute.xlu0 %10570
  %10572 = vrot.lane.b32.xlu0 %v10344, 126
  %v10573 = vpop.permute.xlu0 %10572
  %10574 = vrot.lane.b32.xlu0 %v10349, 126
  %v10575 = vpop.permute.xlu0 %10574
  %10576 = vrot.lane.b32.xlu0 %v10354, 126
  %v10577 = vpop.permute.xlu0 %10576
  %10578 = vrot.lane.b32.xlu0 %v10359, 126
  %v10579 = vpop.permute.xlu0 %10578
  %10580 = vrot.lane.b32.xlu0 %v10364, 126
  %v10581 = vpop.permute.xlu0 %10580
  %10582 = vrot.lane.b32.xlu0 %v10369, 126
  %v10583 = vpop.permute.xlu0 %10582
  %10584 = vrot.lane.b32.xlu0 %v10374, 126
  %v10585 = vpop.permute.xlu0 %10584
  %10586 = vrot.lane.b32.xlu0 %v10379, 126
  %v10587 = vpop.permute.xlu0 %10586
  %10588 = vrot.lane.b32.xlu0 %v10384, 126
  %v10589 = vpop.permute.xlu0 %10588
  %10590 = vrot.lane.b32.xlu0 %v10389, 126
  %v10591 = vpop.permute.xlu0 %10590
  %10592 = vrot.lane.b32.xlu0 %v10394, 126
  %v10593 = vpop.permute.xlu0 %10592
  %v10623 = vsel %vm450, %v10455, 0
  %v10626 = vsel %vm450, %v10457, 0
  %v10629 = vsel %vm450, %v10459, 0
  %v10632 = vsel %vm450, %v10461, 0
  %v10635 = vsel %vm450, %v10463, 0
  %v10638 = vsel %vm450, %v10465, 0
  %v10641 = vsel %vm450, %v10467, 0
  %v10644 = vsel %vm450, %v10469, 0
  %v10647 = vsel %vm450, %v10471, 0
  %v10650 = vsel %vm450, %v10473, 0
  %v10653 = vsel %vm450, %v10475, 0
  %v10656 = vsel %vm450, %v10477, 0
  %v10659 = vsel %vm450, %v10479, 0
  %v10662 = vsel %vm450, %v10481, 0
  %v10665 = vsel %vm450, %v10483, 0
  %v10668 = vsel %vm450, %v10485, 0
  %v10671 = vsel %vm450, %v10487, 0
  %v10674 = vsel %vm450, %v10489, 0
  %v10677 = vsel %vm450, %v10491, 0
  %v10680 = vsel %vm450, %v10493, 0
  %v10683 = vsel %vm450, %v10495, 0
  %v10686 = vsel %vm450, %v10497, 0
  %v10689 = vsel %vm450, %v10499, 0
  %v10692 = vsel %vm450, %v10501, 0
  %v10695 = vsel %vm450, %v10503, 0
  %v10698 = vsel %vm450, %v10505, 0
  %v10701 = vsel %vm450, %v10507, 0
  %v10704 = vsel %vm450, %v10509, 0
  %10706 = vmatprep.subr.mxu0 0.0
  %10707 = vmatpush1.msra.mxu0 %v10539
  %10708 = vmatprep.subr.mxu0 0.0
  %10709 = vmatpush1.msra.mxu0 %v10541
  %10710 = vmatprep.subr.mxu0 0.0
  %10711 = vmatpush1.msra.mxu0 %v10543
  %10712 = vmatprep.subr.mxu0 0.0
  %10713 = vmatpush1.msra.mxu0 %v10545
  %10714 = vmatprep.subr.mxu0 0.0
  %10715 = vmatpush1.msra.mxu0 %v10547
  %10716 = vmatprep.subr.mxu0 0.0
  %10717 = vmatpush1.msra.mxu0 %v10549
  %10718 = vmatprep.subr.mxu0 0.0
  %10719 = vmatpush1.msra.mxu0 %v10551
  %10720 = vmatprep.subr.mxu0 0.0
  %10721 = vmatpush1.msra.mxu0 %v10553
  %10722 = vmatprep.subr.mxu0 0.0
  %10723 = vmatpush1.msra.mxu0 %v10555
  %10724 = vmatprep.subr.mxu0 0.0
  %10725 = vmatpush1.msra.mxu0 %v10557
  %10726 = vmatprep.subr.mxu0 0.0
  %10727 = vmatpush1.msra.mxu0 %v10559
  %10728 = vmatprep.subr.mxu0 0.0
  %10729 = vmatpush1.msra.mxu0 %v10561
  %10730 = vmatprep.subr.mxu0 0.0
  %10731 = vmatpush1.msra.mxu0 %v10563
  %10732 = vmatprep.subr.mxu0 0.0
  %10733 = vmatpush1.msra.mxu0 %v10565
  %10734 = vmatprep.subr.mxu0 0.0
  %10735 = vmatpush1.msra.mxu0 %v10567
  %10736 = vmatprep.subr.mxu0 0.0
  %10737 = vmatpush1.msra.mxu0 %v10569
  %10738 = vmatprep.subr.mxu0 0.0
  %10739 = vmatpush1.msra.mxu0 %v10571
  %10740 = vmatprep.subr.mxu0 0.0
  %10741 = vmatpush1.msra.mxu0 %v10573
  %10742 = vmatprep.subr.mxu0 0.0
  %10743 = vmatpush1.msra.mxu0 %v10575
  %10744 = vmatprep.subr.mxu0 0.0
  %10745 = vmatpush1.msra.mxu0 %v10577
  %10746 = vmatprep.subr.mxu0 0.0
  %10747 = vmatpush1.msra.mxu0 %v10579
  %10748 = vmatprep.subr.mxu0 0.0
  %10749 = vmatpush1.msra.mxu0 %v10581
  %10750 = vmatprep.subr.mxu0 0.0
  %10751 = vmatpush1.msra.mxu0 %v10583
  %10752 = vmatprep.subr.mxu0 0.0
  %10753 = vmatpush1.msra.mxu0 %v10585
  %10754 = vmatprep.subr.mxu0 0.0
  %10755 = vmatpush1.msra.mxu0 %v10587
  %10756 = vmatprep.subr.mxu0 0.0
  %10757 = vmatpush1.msra.mxu0 %v10589
  %10758 = vmatprep.subr.mxu0 0.0
  %10759 = vmatpush1.msra.mxu0 %v10591
  %10760 = vmatprep.subr.mxu0 0.0
  %10761 = vmatpush1.msra.mxu0 %v10593
  %10762 = vmatprep.subr.mxu0 0.0
  %10763 = vmatpush1.msra.mxu0 0.0
  %10764 = vmatprep.subr.mxu0 0.0
  %10765 = vmatpush1.msra.mxu0 0.0
  %10766 = vmatprep.subr.mxu0 0.0
  %10767 = vmatpush1.msra.mxu0 0.0
  %10768 = vmatprep.subr.mxu0 0.0
  %10769 = vmatpush1.msra.mxu0 0.0
  %10770 = vmatprep.mubr.f32.mxu0 %v10623
  %10771 = vmatmul.mubr.f32.gmra.mrb[0].mxu0 %v10454
  %v10772 = vpop.f32.mrb[0].mxu0
  %v10773 = vadd.f32 0.0, %v10772
  %v10774 = vpop.f32.mrb[0].mxu0
  %10775 = vmatprep.mubr.f32.mxu0 %v10626
  %10776 = vmatmul.mubr.f32.gmra.mrb[0].mxu0 %v10456
  %v10777 = vpop.f32.mrb[0].mxu0
  %v10778 = vadd.f32 0.0, %v10777
  %v10779 = vpop.f32.mrb[0].mxu0
  %10780 = vmatprep.mubr.f32.mxu0 %v10629
  %10781 = vmatmul.mubr.f32.gmra.mrb[0].mxu0 %v10458
  %v10782 = vpop.f32.mrb[0].mxu0
  %v10783 = vadd.f32 0.0, %v10782
  %v10784 = vpop.f32.mrb[0].mxu0
  %10785 = vmatprep.mubr.f32.mxu0 %v10632
  %10786 = vmatmul.mubr.f32.gmra.mrb[0].mxu0 %v10460
  %v10787 = vpop.f32.mrb[0].mxu0
  %v10788 = vadd.f32 0.0, %v10787
  %v10789 = vpop.f32.mrb[0].mxu0
  %10790 = vmatprep.mubr.f32.mxu0 %v10635
  %10791 = vmatmul.mubr.f32.gmra.mrb[0].mxu0 %v10462
  %v10792 = vpop.f32.mrb[0].mxu0
  %v10793 = vadd.f32 0.0, %v10792
  %v10794 = vpop.f32.mrb[0].mxu0
  %10795 = vmatprep.mubr.f32.mxu0 %v10638
  %10796 = vmatmul.mubr.f32.gmra.mrb[0].mxu0 %v10464
  %v10797 = vpop.f32.mrb[0].mxu0
  %v10798 = vadd.f32 0.0, %v10797
  %v10799 = vpop.f32.mrb[0].mxu0
  %10800 = vmatprep.mubr.f32.mxu0 %v10641
  %10801 = vmatmul.mubr.f32.gmra.mrb[0].mxu0 %v10466
  %v10802 = vpop.f32.mrb[0].mxu0
  %v10803 = vadd.f32 0.0, %v10802
  %v10804 = vpop.f32.mrb[0].mxu0
  %10805 = vmatprep.mubr.f32.mxu0 %v10644
  %10806 = vmatmul.mubr.f32.gmra.mrb[0].mxu0 %v10468
  %v10807 = vpop.f32.mrb[0].mxu0
  %v10808 = vadd.f32 0.0, %v10807
  %v10809 = vpop.f32.mrb[0].mxu0
  %10810 = vmatprep.mubr.f32.mxu0 %v10647
  %10811 = vmatmul.mubr.f32.gmra.mrb[0].mxu0 %v10470
  %v10812 = vpop.f32.mrb[0].mxu0
  %v10813 = vadd.f32 0.0, %v10812
  %v10814 = vpop.f32.mrb[0].mxu0
  %10815 = vmatprep.mubr.f32.mxu0 %v10650
  %10816 = vmatmul.mubr.f32.gmra.mrb[0].mxu0 %v10472
  %v10817 = vpop.f32.mrb[0].mxu0
  %v10818 = vadd.f32 0.0, %v10817
  %v10819 = vpop.f32.mrb[0].mxu0
  %10820 = vmatprep.mubr.f32.mxu0 %v10653
  %10821 = vmatmul.mubr.f32.gmra.mrb[0].mxu0 %v10474
  %v10822 = vpop.f32.mrb[0].mxu0
  %v10823 = vadd.f32 0.0, %v10822
  %v10824 = vpop.f32.mrb[0].mxu0
  %10825 = vmatprep.mubr.f32.mxu0 %v10656
  %10826 = vmatmul.mubr.f32.gmra.mrb[0].mxu0 %v10476
  %v10827 = vpop.f32.mrb[0].mxu0
  %v10828 = vadd.f32 0.0, %v10827
  %v10829 = vpop.f32.mrb[0].mxu0
  %10830 = vmatprep.mubr.f32.mxu0 %v10659
  %10831 = vmatmul.mubr.f32.gmra.mrb[0].mxu0 %v10478
  %v10832 = vpop.f32.mrb[0].mxu0
  %v10833 = vadd.f32 0.0, %v10832
  %v10834 = vpop.f32.mrb[0].mxu0
  %10835 = vmatprep.mubr.f32.mxu0 %v10662
  %10836 = vmatmul.mubr.f32.gmra.mrb[0].mxu0 %v10480
  %v10837 = vpop.f32.mrb[0].mxu0
  %v10838 = vadd.f32 0.0, %v10837
  %v10839 = vpop.f32.mrb[0].mxu0
  %10840 = vmatprep.mubr.f32.mxu0 %v10665
  %10841 = vmatmul.mubr.f32.gmra.mrb[0].mxu0 %v10482
  %v10842 = vpop.f32.mrb[0].mxu0
  %v10843 = vadd.f32 0.0, %v10842
  %v10844 = vpop.f32.mrb[0].mxu0
  %10845 = vmatprep.mubr.f32.mxu0 %v10668
  %10846 = vmatmul.mubr.f32.gmra.mrb[0].mxu0 %v10484
  %v10847 = vpop.f32.mrb[0].mxu0
  %v10848 = vadd.f32 0.0, %v10847
  %v10849 = vpop.f32.mrb[0].mxu0
  %10850 = vmatprep.mubr.f32.mxu0 %v10671
  %10851 = vmatmul.mubr.f32.gmra.mrb[0].mxu0 %v10486
  %v10852 = vpop.f32.mrb[0].mxu0
  %v10853 = vadd.f32 0.0, %v10852
  %v10854 = vpop.f32.mrb[0].mxu0
  %10855 = vmatprep.mubr.f32.mxu0 %v10674
  %10856 = vmatmul.mubr.f32.gmra.mrb[0].mxu0 %v10488
  %v10857 = vpop.f32.mrb[0].mxu0
  %v10858 = vadd.f32 0.0, %v10857
  %v10859 = vpop.f32.mrb[0].mxu0
  %10860 = vmatprep.mubr.f32.mxu0 %v10677
  %10861 = vmatmul.mubr.f32.gmra.mrb[0].mxu0 %v10490
  %v10862 = vpop.f32.mrb[0].mxu0
  %v10863 = vadd.f32 0.0, %v10862
  %v10864 = vpop.f32.mrb[0].mxu0
  %10865 = vmatprep.mubr.f32.mxu0 %v10680
  %10866 = vmatmul.mubr.f32.gmra.mrb[0].mxu0 %v10492
  %v10867 = vpop.f32.mrb[0].mxu0
  %v10868 = vadd.f32 0.0, %v10867
  %v10869 = vpop.f32.mrb[0].mxu0
  %10870 = vmatprep.mubr.f32.mxu0 %v10683
  %10871 = vmatmul.mubr.f32.gmra.mrb[0].mxu0 %v10494
  %v10872 = vpop.f32.mrb[0].mxu0
  %v10873 = vadd.f32 0.0, %v10872
  %v10874 = vpop.f32.mrb[0].mxu0
  %10875 = vmatprep.mubr.f32.mxu0 %v10686
  %10876 = vmatmul.mubr.f32.gmra.mrb[0].mxu0 %v10496
  %v10877 = vpop.f32.mrb[0].mxu0
  %v10878 = vadd.f32 0.0, %v10877
  %v10879 = vpop.f32.mrb[0].mxu0
  %10880 = vmatprep.mubr.f32.mxu0 %v10689
  %10881 = vmatmul.mubr.f32.gmra.mrb[0].mxu0 %v10498
  %v10882 = vpop.f32.mrb[0].mxu0
  %v10883 = vadd.f32 0.0, %v10882
  %v10884 = vpop.f32.mrb[0].mxu0
  %10885 = vmatprep.mubr.f32.mxu0 %v10692
  %10886 = vmatmul.mubr.f32.gmra.mrb[0].mxu0 %v10500
  %v10887 = vpop.f32.mrb[0].mxu0
  %v10888 = vadd.f32 0.0, %v10887
  %v10889 = vpop.f32.mrb[0].mxu0
  %10890 = vmatprep.mubr.f32.mxu0 %v10695
  %10891 = vmatmul.mubr.f32.gmra.mrb[0].mxu0 %v10502
  %v10892 = vpop.f32.mrb[0].mxu0
  %v10893 = vadd.f32 0.0, %v10892
  %v10894 = vpop.f32.mrb[0].mxu0
  %10895 = vmatprep.mubr.f32.mxu0 %v10698
  %10896 = vmatmul.mubr.f32.gmra.mrb[0].mxu0 %v10504
  %v10897 = vpop.f32.mrb[0].mxu0
  %v10898 = vadd.f32 0.0, %v10897
  %v10899 = vpop.f32.mrb[0].mxu0
  %10900 = vmatprep.mubr.f32.mxu0 %v10701
  %10901 = vmatmul.mubr.f32.gmra.mrb[0].mxu0 %v10506
  %v10902 = vpop.f32.mrb[0].mxu0
  %v10903 = vadd.f32 0.0, %v10902
  %v10904 = vpop.f32.mrb[0].mxu0
  %10905 = vmatprep.mubr.f32.mxu0 %v10704
  %10906 = vmatmul.mubr.f32.gmra.mrb[0].mxu0 %v10508
  %v10907 = vpop.f32.mrb[0].mxu0
  %v10908 = vadd.f32 0.0, %v10907
  %v10909 = vpop.f32.mrb[0].mxu0
  %10910 = vdwg.mxu0
  %v10912 = vsel %vm450, %v10398, 0
  %v10915 = vsel %vm450, %v10400, 0
  %v10918 = vsel %vm450, %v10402, 0
  %v10921 = vsel %vm450, %v10404, 0
  %v10924 = vsel %vm450, %v10406, 0
  %v10927 = vsel %vm450, %v10408, 0
  %v10930 = vsel %vm450, %v10410, 0
  %v10933 = vsel %vm450, %v10412, 0
  %v10936 = vsel %vm450, %v10414, 0
  %v10939 = vsel %vm450, %v10416, 0
  %v10942 = vsel %vm450, %v10418, 0
  %v10945 = vsel %vm450, %v10420, 0
  %v10948 = vsel %vm450, %v10422, 0
  %v10951 = vsel %vm450, %v10424, 0
  %v10954 = vsel %vm450, %v10426, 0
  %v10957 = vsel %vm450, %v10428, 0
  %v10960 = vsel %vm450, %v10430, 0
  %v10963 = vsel %vm450, %v10432, 0
  %v10966 = vsel %vm450, %v10434, 0
  %v10969 = vsel %vm450, %v10436, 0
  %v10972 = vsel %vm450, %v10438, 0
  %v10975 = vsel %vm450, %v10440, 0
  %v10978 = vsel %vm450, %v10442, 0
  %v10981 = vsel %vm450, %v10444, 0
  %v10984 = vsel %vm450, %v10446, 0
  %v10987 = vsel %vm450, %v10448, 0
  %v10990 = vsel %vm450, %v10450, 0
  %v10993 = vsel %vm450, %v10452, 0
  %10995 = vmatprep.subr.mxu0 0.0
  %10996 = vmatpush1.msra.mxu0 %v10259
  %10997 = vmatprep.subr.mxu0 0.0
  %10998 = vmatpush1.msra.mxu0 %v10264
  %10999 = vmatprep.subr.mxu0 0.0
  %11000 = vmatpush1.msra.mxu0 %v10269
  %11001 = vmatprep.subr.mxu0 0.0
  %11002 = vmatpush1.msra.mxu0 %v10274
  %11003 = vmatprep.subr.mxu0 0.0
  %11004 = vmatpush1.msra.mxu0 %v10279
  %11005 = vmatprep.subr.mxu0 0.0
  %11006 = vmatpush1.msra.mxu0 %v10284
  %11007 = vmatprep.subr.mxu0 0.0
  %11008 = vmatpush1.msra.mxu0 %v10289
  %11009 = vmatprep.subr.mxu0 0.0
  %11010 = vmatpush1.msra.mxu0 %v10294
  %11011 = vmatprep.subr.mxu0 0.0
  %11012 = vmatpush1.msra.mxu0 %v10299
  %11013 = vmatprep.subr.mxu0 0.0
  %11014 = vmatpush1.msra.mxu0 %v10304
  %11015 = vmatprep.subr.mxu0 0.0
  %11016 = vmatpush1.msra.mxu0 %v10309
  %11017 = vmatprep.subr.mxu0 0.0
  %11018 = vmatpush1.msra.mxu0 %v10314
  %11019 = vmatprep.subr.mxu0 0.0
  %11020 = vmatpush1.msra.mxu0 %v10319
  %11021 = vmatprep.subr.mxu0 0.0
  %11022 = vmatpush1.msra.mxu0 %v10324
  %11023 = vmatprep.subr.mxu0 0.0
  %11024 = vmatpush1.msra.mxu0 %v10329
  %11025 = vmatprep.subr.mxu0 0.0
  %11026 = vmatpush1.msra.mxu0 %v10334
  %11027 = vmatprep.subr.mxu0 0.0
  %11028 = vmatpush1.msra.mxu0 %v10339
  %11029 = vmatprep.subr.mxu0 0.0
  %11030 = vmatpush1.msra.mxu0 %v10344
  %11031 = vmatprep.subr.mxu0 0.0
  %11032 = vmatpush1.msra.mxu0 %v10349
  %11033 = vmatprep.subr.mxu0 0.0
  %11034 = vmatpush1.msra.mxu0 %v10354
  %11035 = vmatprep.subr.mxu0 0.0
  %11036 = vmatpush1.msra.mxu0 %v10359
  %11037 = vmatprep.subr.mxu0 0.0
  %11038 = vmatpush1.msra.mxu0 %v10364
  %11039 = vmatprep.subr.mxu0 0.0
  %11040 = vmatpush1.msra.mxu0 %v10369
  %11041 = vmatprep.subr.mxu0 0.0
  %11042 = vmatpush1.msra.mxu0 %v10374
  %11043 = vmatprep.subr.mxu0 0.0
  %11044 = vmatpush1.msra.mxu0 %v10379
  %11045 = vmatprep.subr.mxu0 0.0
  %11046 = vmatpush1.msra.mxu0 %v10384
  %11047 = vmatprep.subr.mxu0 0.0
  %11048 = vmatpush1.msra.mxu0 %v10389
  %11049 = vmatprep.subr.mxu0 0.0
  %11050 = vmatpush1.msra.mxu0 %v10394
  %11051 = vmatprep.subr.mxu0 0.0
  %11052 = vmatpush1.msra.mxu0 0.0
  %11053 = vmatprep.subr.mxu0 0.0
  %11054 = vmatpush1.msra.mxu0 0.0
  %11055 = vmatprep.subr.mxu0 0.0
  %11056 = vmatpush1.msra.mxu0 0.0
  %11057 = vmatprep.subr.mxu0 0.0
  %11058 = vmatpush1.msra.mxu0 0.0
  %11059 = vmatprep.mubr.f32.mxu0 %v10912
  %11060 = vmatmul.mubr.f32.gmra.mrb[0].mxu0 %v10397
  %v11061 = vpop.f32.mrb[0].mxu0
  %v11062 = vadd.f32 %v10773, %v11061
  %v11063 = vpop.f32.mrb[0].mxu0
  %11064 = vmatprep.mubr.f32.mxu0 %v10915
  %11065 = vmatmul.mubr.f32.gmra.mrb[0].mxu0 %v10399
  %v11066 = vpop.f32.mrb[0].mxu0
  %v11067 = vadd.f32 %v10778, %v11066
  %v11068 = vpop.f32.mrb[0].mxu0
  %11069 = vmatprep.mubr.f32.mxu0 %v10918
  %11070 = vmatmul.mubr.f32.gmra.mrb[0].mxu0 %v10401
  %v11071 = vpop.f32.mrb[0].mxu0
  %v11072 = vadd.f32 %v10783, %v11071
  %v11073 = vpop.f32.mrb[0].mxu0
  %11074 = vmatprep.mubr.f32.mxu0 %v10921
  %11075 = vmatmul.mubr.f32.gmra.mrb[0].mxu0 %v10403
  %v11076 = vpop.f32.mrb[0].mxu0
  %v11077 = vadd.f32 %v10788, %v11076
  %v11078 = vpop.f32.mrb[0].mxu0
  %11079 = vmatprep.mubr.f32.mxu0 %v10924
  %11080 = vmatmul.mubr.f32.gmra.mrb[0].mxu0 %v10405
  %v11081 = vpop.f32.mrb[0].mxu0
  %v11082 = vadd.f32 %v10793, %v11081
  %v11083 = vpop.f32.mrb[0].mxu0
  %11084 = vmatprep.mubr.f32.mxu0 %v10927
  %11085 = vmatmul.mubr.f32.gmra.mrb[0].mxu0 %v10407
  %v11086 = vpop.f32.mrb[0].mxu0
  %v11087 = vadd.f32 %v10798, %v11086
  %v11088 = vpop.f32.mrb[0].mxu0
  %11089 = vmatprep.mubr.f32.mxu0 %v10930
  %11090 = vmatmul.mubr.f32.gmra.mrb[0].mxu0 %v10409
  %v11091 = vpop.f32.mrb[0].mxu0
  %v11092 = vadd.f32 %v10803, %v11091
  %v11093 = vpop.f32.mrb[0].mxu0
  %11094 = vmatprep.mubr.f32.mxu0 %v10933
  %11095 = vmatmul.mubr.f32.gmra.mrb[0].mxu0 %v10411
  %v11096 = vpop.f32.mrb[0].mxu0
  %v11097 = vadd.f32 %v10808, %v11096
  %v11098 = vpop.f32.mrb[0].mxu0
  %11099 = vmatprep.mubr.f32.mxu0 %v10936
  %11100 = vmatmul.mubr.f32.gmra.mrb[0].mxu0 %v10413
  %v11101 = vpop.f32.mrb[0].mxu0
  %v11102 = vadd.f32 %v10813, %v11101
  %v11103 = vpop.f32.mrb[0].mxu0
  %11104 = vmatprep.mubr.f32.mxu0 %v10939
  %11105 = vmatmul.mubr.f32.gmra.mrb[0].mxu0 %v10415
  %v11106 = vpop.f32.mrb[0].mxu0
  %v11107 = vadd.f32 %v10818, %v11106
  %v11108 = vpop.f32.mrb[0].mxu0
  %11109 = vmatprep.mubr.f32.mxu0 %v10942
  %11110 = vmatmul.mubr.f32.gmra.mrb[0].mxu0 %v10417
  %v11111 = vpop.f32.mrb[0].mxu0
  %v11112 = vadd.f32 %v10823, %v11111
  %v11113 = vpop.f32.mrb[0].mxu0
  %11114 = vmatprep.mubr.f32.mxu0 %v10945
  %11115 = vmatmul.mubr.f32.gmra.mrb[0].mxu0 %v10419
  %v11116 = vpop.f32.mrb[0].mxu0
  %v11117 = vadd.f32 %v10828, %v11116
  %v11118 = vpop.f32.mrb[0].mxu0
  %11119 = vmatprep.mubr.f32.mxu0 %v10948
  %11120 = vmatmul.mubr.f32.gmra.mrb[0].mxu0 %v10421
  %v11121 = vpop.f32.mrb[0].mxu0
  %v11122 = vadd.f32 %v10833, %v11121
  %v11123 = vpop.f32.mrb[0].mxu0
  %11124 = vmatprep.mubr.f32.mxu0 %v10951
  %11125 = vmatmul.mubr.f32.gmra.mrb[0].mxu0 %v10423
  %v11126 = vpop.f32.mrb[0].mxu0
  %v11127 = vadd.f32 %v10838, %v11126
  %v11128 = vpop.f32.mrb[0].mxu0
  %11129 = vmatprep.mubr.f32.mxu0 %v10954
  %11130 = vmatmul.mubr.f32.gmra.mrb[0].mxu0 %v10425
  %v11131 = vpop.f32.mrb[0].mxu0
  %v11132 = vadd.f32 %v10843, %v11131
  %v11133 = vpop.f32.mrb[0].mxu0
  %11134 = vmatprep.mubr.f32.mxu0 %v10957
  %11135 = vmatmul.mubr.f32.gmra.mrb[0].mxu0 %v10427
  %v11136 = vpop.f32.mrb[0].mxu0
  %v11137 = vadd.f32 %v10848, %v11136
  %v11138 = vpop.f32.mrb[0].mxu0
  %11139 = vmatprep.mubr.f32.mxu0 %v10960
  %11140 = vmatmul.mubr.f32.gmra.mrb[0].mxu0 %v10429
  %v11141 = vpop.f32.mrb[0].mxu0
  %v11142 = vadd.f32 %v10853, %v11141
  %v11143 = vpop.f32.mrb[0].mxu0
  %11144 = vmatprep.mubr.f32.mxu0 %v10963
  %11145 = vmatmul.mubr.f32.gmra.mrb[0].mxu0 %v10431
  %v11146 = vpop.f32.mrb[0].mxu0
  %v11147 = vadd.f32 %v10858, %v11146
  %v11148 = vpop.f32.mrb[0].mxu0
  %11149 = vmatprep.mubr.f32.mxu0 %v10966
  %11150 = vmatmul.mubr.f32.gmra.mrb[0].mxu0 %v10433
  %v11151 = vpop.f32.mrb[0].mxu0
  %v11152 = vadd.f32 %v10863, %v11151
  %v11153 = vpop.f32.mrb[0].mxu0
  %11154 = vmatprep.mubr.f32.mxu0 %v10969
  %11155 = vmatmul.mubr.f32.gmra.mrb[0].mxu0 %v10435
  %v11156 = vpop.f32.mrb[0].mxu0
  %v11157 = vadd.f32 %v10868, %v11156
  %v11158 = vpop.f32.mrb[0].mxu0
  %11159 = vmatprep.mubr.f32.mxu0 %v10972
  %11160 = vmatmul.mubr.f32.gmra.mrb[0].mxu0 %v10437
  %v11161 = vpop.f32.mrb[0].mxu0
  %v11162 = vadd.f32 %v10873, %v11161
  %v11163 = vpop.f32.mrb[0].mxu0
  %11164 = vmatprep.mubr.f32.mxu0 %v10975
  %11165 = vmatmul.mubr.f32.gmra.mrb[0].mxu0 %v10439
  %v11166 = vpop.f32.mrb[0].mxu0
  %v11167 = vadd.f32 %v10878, %v11166
  %v11168 = vpop.f32.mrb[0].mxu0
  %11169 = vmatprep.mubr.f32.mxu0 %v10978
  %11170 = vmatmul.mubr.f32.gmra.mrb[0].mxu0 %v10441
  %v11171 = vpop.f32.mrb[0].mxu0
  %v11172 = vadd.f32 %v10883, %v11171
  %v11173 = vpop.f32.mrb[0].mxu0
  %11174 = vmatprep.mubr.f32.mxu0 %v10981
  %11175 = vmatmul.mubr.f32.gmra.mrb[0].mxu0 %v10443
  %v11176 = vpop.f32.mrb[0].mxu0
  %v11177 = vadd.f32 %v10888, %v11176
  %v11178 = vpop.f32.mrb[0].mxu0
  %11179 = vmatprep.mubr.f32.mxu0 %v10984
  %11180 = vmatmul.mubr.f32.gmra.mrb[0].mxu0 %v10445
  %v11181 = vpop.f32.mrb[0].mxu0
  %v11182 = vadd.f32 %v10893, %v11181
  %v11183 = vpop.f32.mrb[0].mxu0
  %11184 = vmatprep.mubr.f32.mxu0 %v10987
  %11185 = vmatmul.mubr.f32.gmra.mrb[0].mxu0 %v10447
  %v11186 = vpop.f32.mrb[0].mxu0
  %v11187 = vadd.f32 %v10898, %v11186
  %v11188 = vpop.f32.mrb[0].mxu0
  %11189 = vmatprep.mubr.f32.mxu0 %v10990
  %11190 = vmatmul.mubr.f32.gmra.mrb[0].mxu0 %v10449
  %v11191 = vpop.f32.mrb[0].mxu0
  %v11192 = vadd.f32 %v10903, %v11191
  %v11193 = vpop.f32.mrb[0].mxu0
  %11194 = vmatprep.mubr.f32.mxu0 %v10993
  %11195 = vmatmul.mubr.f32.gmra.mrb[0].mxu0 %v10451
  %v11196 = vpop.f32.mrb[0].mxu0
  %v11197 = vadd.f32 %v10908, %v11196
  %v11198 = vpop.f32.mrb[0].mxu0
  %11199 = vdwg.mxu0
  %s11200 = scalar_lea.vmem %s21, 896
  %v11201 = vld [vmem:[%s11200] sm:$0xff]
  %v11202 = vld [vmem:[%s11200 + $0x8] sm:$0xff]
  %v11203 = vld [vmem:[%s11200 + $0x10] sm:$0xff]
  %v11204 = vld [vmem:[%s11200 + $0x18] sm:$0xff]
  %v11205 = vld [vmem:[%s11200 + $0x20] sm:$0xff]
  %v11206 = vld [vmem:[%s11200 + $0x28] sm:$0xff]
  %v11207 = vld [vmem:[%s11200 + $0x30] sm:$0xff]
  %v11208 = vld [vmem:[%s11200 + $0x38] sm:$0xff]
  %v11209 = vld [vmem:[%s11200 + $0x40] sm:$0xff]
  %v11210 = vld [vmem:[%s11200 + $0x48] sm:$0xff]
  %v11211 = vld [vmem:[%s11200 + $0x50] sm:$0xff]
  %v11212 = vld [vmem:[%s11200 + $0x58] sm:$0xff]
  %v11213 = vld [vmem:[%s11200 + $0x60] sm:$0xff]
  %v11214 = vld [vmem:[%s11200 + $0x68] sm:$0xff]
  %v11215 = vld [vmem:[%s11200 + $0x70] sm:$0xff]
  %v11216 = vld [vmem:[%s11200 + $0x78] sm:$0xff]
  %v11217 = vld [vmem:[%s11200 + $0x80] sm:$0xff]
  %v11218 = vld [vmem:[%s11200 + $0x88] sm:$0xff]
  %v11219 = vld [vmem:[%s11200 + $0x90] sm:$0xff]
  %v11220 = vld [vmem:[%s11200 + $0x98] sm:$0xff]
  %v11221 = vld [vmem:[%s11200 + $0xa0] sm:$0xff]
  %v11222 = vld [vmem:[%s11200 + $0xa8] sm:$0xff]
  %v11223 = vld [vmem:[%s11200 + $0xb0] sm:$0xff]
  %v11224 = vld [vmem:[%s11200 + $0xb8] sm:$0xff]
  %v11225 = vld [vmem:[%s11200 + $0xc0] sm:$0xff]
  %v11226 = vld [vmem:[%s11200 + $0xc8] sm:$0xff]
  %v11227 = vld [vmem:[%s11200 + $0xd0] sm:$0xff]
  %v11228 = vld [vmem:[%s11200 + $0xd8] sm:$0xff]
  %v11229 = vld [vmem:[%s11200 + $0xe0] sm:$0xff]
  %v11230 = vld [vmem:[%s11200 + $0xe8] sm:$0xff]
  %v11231 = vld [vmem:[%s11200 + $0xf0] sm:$0xff]
  %v11232 = vld [vmem:[%s11200 + $0xf8] sm:$0xff]
  %v11233 = vld [vmem:[%s11200 + $0x100] sm:$0xff]
  %v11234 = vld [vmem:[%s11200 + $0x108] sm:$0xff]
  %v11235 = vld [vmem:[%s11200 + $0x110] sm:$0xff]
  %v11236 = vld [vmem:[%s11200 + $0x118] sm:$0xff]
  %v11237 = vld [vmem:[%s11200 + $0x120] sm:$0xff]
  %v11238 = vld [vmem:[%s11200 + $0x128] sm:$0xff]
  %v11239 = vld [vmem:[%s11200 + $0x130] sm:$0xff]
  %v11240 = vld [vmem:[%s11200 + $0x138] sm:$0xff]
  %v11241 = vld [vmem:[%s11200 + $0x140] sm:$0xff]
  %v11242 = vld [vmem:[%s11200 + $0x148] sm:$0xff]
  %v11243 = vld [vmem:[%s11200 + $0x150] sm:$0xff]
  %v11244 = vld [vmem:[%s11200 + $0x158] sm:$0xff]
  %v11245 = vld [vmem:[%s11200 + $0x160] sm:$0xff]
  %v11246 = vld [vmem:[%s11200 + $0x168] sm:$0xff]
  %v11247 = vld [vmem:[%s11200 + $0x170] sm:$0xff]
  %v11248 = vld [vmem:[%s11200 + $0x178] sm:$0xff]
  %v11249 = vld [vmem:[%s11200 + $0x180] sm:$0xff]
  %v11250 = vld [vmem:[%s11200 + $0x188] sm:$0xff]
  %v11251 = vld [vmem:[%s11200 + $0x190] sm:$0xff]
  %v11252 = vld [vmem:[%s11200 + $0x198] sm:$0xff]
  %v11253 = vld [vmem:[%s11200 + $0x1a0] sm:$0xff]
  %v11254 = vld [vmem:[%s11200 + $0x1a8] sm:$0xff]
  %v11255 = vld [vmem:[%s11200 + $0x1b0] sm:$0xff]
  %v11256 = vld [vmem:[%s11200 + $0x1b8] sm:$0xff]
  %11257 = vrot.lane.b32.xlu0 %v10259, 124
  %v11258 = vpop.permute.xlu0 %11257
  %11259 = vrot.lane.b32.xlu0 %v10264, 124
  %v11260 = vpop.permute.xlu0 %11259
  %11261 = vrot.lane.b32.xlu0 %v10269, 124
  %v11262 = vpop.permute.xlu0 %11261
  %11263 = vrot.lane.b32.xlu0 %v10274, 124
  %v11264 = vpop.permute.xlu0 %11263
  %11265 = vrot.lane.b32.xlu0 %v10279, 124
  %v11266 = vpop.permute.xlu0 %11265
  %11267 = vrot.lane.b32.xlu0 %v10284, 124
  %v11268 = vpop.permute.xlu0 %11267
  %11269 = vrot.lane.b32.xlu0 %v10289, 124
  %v11270 = vpop.permute.xlu0 %11269
  %11271 = vrot.lane.b32.xlu0 %v10294, 124
  %v11272 = vpop.permute.xlu0 %11271
  %11273 = vrot.lane.b32.xlu0 %v10299, 124
  %v11274 = vpop.permute.xlu0 %11273
  %11275 = vrot.lane.b32.xlu0 %v10304, 124
  %v11276 = vpop.permute.xlu0 %11275
  %11277 = vrot.lane.b32.xlu0 %v10309, 124
  %v11278 = vpop.permute.xlu0 %11277
  %11279 = vrot.lane.b32.xlu0 %v10314, 124
  %v11280 = vpop.permute.xlu0 %11279
  %11281 = vrot.lane.b32.xlu0 %v10319, 124
  %v11282 = vpop.permute.xlu0 %11281
  %11283 = vrot.lane.b32.xlu0 %v10324, 124
  %v11284 = vpop.permute.xlu0 %11283
  %11285 = vrot.lane.b32.xlu0 %v10329, 124
  %v11286 = vpop.permute.xlu0 %11285
  %11287 = vrot.lane.b32.xlu0 %v10334, 124
  %v11288 = vpop.permute.xlu0 %11287
  %11289 = vrot.lane.b32.xlu0 %v10339, 124
  %v11290 = vpop.permute.xlu0 %11289
  %11291 = vrot.lane.b32.xlu0 %v10344, 124
  %v11292 = vpop.permute.xlu0 %11291
  %11293 = vrot.lane.b32.xlu0 %v10349, 124
  %v11294 = vpop.permute.xlu0 %11293
  %11295 = vrot.lane.b32.xlu0 %v10354, 124
  %v11296 = vpop.permute.xlu0 %11295
  %11297 = vrot.lane.b32.xlu0 %v10359, 124
  %v11298 = vpop.permute.xlu0 %11297
  %11299 = vrot.lane.b32.xlu0 %v10364, 124
  %v11300 = vpop.permute.xlu0 %11299
  %11301 = vrot.lane.b32.xlu0 %v10369, 124
  %v11302 = vpop.permute.xlu0 %11301
  %11303 = vrot.lane.b32.xlu0 %v10374, 124
  %v11304 = vpop.permute.xlu0 %11303
  %11305 = vrot.lane.b32.xlu0 %v10379, 124
  %v11306 = vpop.permute.xlu0 %11305
  %11307 = vrot.lane.b32.xlu0 %v10384, 124
  %v11308 = vpop.permute.xlu0 %11307
  %11309 = vrot.lane.b32.xlu0 %v10389, 124
  %v11310 = vpop.permute.xlu0 %11309
  %11311 = vrot.lane.b32.xlu0 %v10394, 124
  %v11312 = vpop.permute.xlu0 %11311
  %v11342 = vsel %vm450, %v11202, 0
  %v11345 = vsel %vm450, %v11204, 0
  %v11348 = vsel %vm450, %v11206, 0
  %v11351 = vsel %vm450, %v11208, 0
  %v11354 = vsel %vm450, %v11210, 0
  %v11357 = vsel %vm450, %v11212, 0
  %v11360 = vsel %vm450, %v11214, 0
  %v11363 = vsel %vm450, %v11216, 0
  %v11366 = vsel %vm450, %v11218, 0
  %v11369 = vsel %vm450, %v11220, 0
  %v11372 = vsel %vm450, %v11222, 0
  %v11375 = vsel %vm450, %v11224, 0
  %v11378 = vsel %vm450, %v11226, 0
  %v11381 = vsel %vm450, %v11228, 0
  %v11384 = vsel %vm450, %v11230, 0
  %v11387 = vsel %vm450, %v11232, 0
  %v11390 = vsel %vm450, %v11234, 0
  %v11393 = vsel %vm450, %v11236, 0
  %v11396 = vsel %vm450, %v11238, 0
  %v11399 = vsel %vm450, %v11240, 0
  %v11402 = vsel %vm450, %v11242, 0
  %v11405 = vsel %vm450, %v11244, 0
  %v11408 = vsel %vm450, %v11246, 0
  %v11411 = vsel %vm450, %v11248, 0
  %v11414 = vsel %vm450, %v11250, 0
  %v11417 = vsel %vm450, %v11252, 0
  %v11420 = vsel %vm450, %v11254, 0
  %v11423 = vsel %vm450, %v11256, 0
  %11425 = vmatprep.subr.mxu0 0.0
  %11426 = vmatpush1.msra.mxu0 %v11258
  %11427 = vmatprep.subr.mxu0 0.0
  %11428 = vmatpush1.msra.mxu0 %v11260
  %11429 = vmatprep.subr.mxu0 0.0
  %11430 = vmatpush1.msra.mxu0 %v11262
  %11431 = vmatprep.subr.mxu0 0.0
  %11432 = vmatpush1.msra.mxu0 %v11264
  %11433 = vmatprep.subr.mxu0 0.0
  %11434 = vmatpush1.msra.mxu0 %v11266
  %11435 = vmatprep.subr.mxu0 0.0
  %11436 = vmatpush1.msra.mxu0 %v11268
  %11437 = vmatprep.subr.mxu0 0.0
  %11438 = vmatpush1.msra.mxu0 %v11270
  %11439 = vmatprep.subr.mxu0 0.0
  %11440 = vmatpush1.msra.mxu0 %v11272
  %11441 = vmatprep.subr.mxu0 0.0
  %11442 = vmatpush1.msra.mxu0 %v11274
  %11443 = vmatprep.subr.mxu0 0.0
  %11444 = vmatpush1.msra.mxu0 %v11276
  %11445 = vmatprep.subr.mxu0 0.0
  %11446 = vmatpush1.msra.mxu0 %v11278
  %11447 = vmatprep.subr.mxu0 0.0
  %11448 = vmatpush1.msra.mxu0 %v11280
  %11449 = vmatprep.subr.mxu0 0.0
  %11450 = vmatpush1.msra.mxu0 %v11282
  %11451 = vmatprep.subr.mxu0 0.0
  %11452 = vmatpush1.msra.mxu0 %v11284
  %11453 = vmatprep.subr.mxu0 0.0
  %11454 = vmatpush1.msra.mxu0 %v11286
  %11455 = vmatprep.subr.mxu0 0.0
  %11456 = vmatpush1.msra.mxu0 %v11288
  %11457 = vmatprep.subr.mxu0 0.0
  %11458 = vmatpush1.msra.mxu0 %v11290
  %11459 = vmatprep.subr.mxu0 0.0
  %11460 = vmatpush1.msra.mxu0 %v11292
  %11461 = vmatprep.subr.mxu0 0.0
  %11462 = vmatpush1.msra.mxu0 %v11294
  %11463 = vmatprep.subr.mxu0 0.0
  %11464 = vmatpush1.msra.mxu0 %v11296
  %11465 = vmatprep.subr.mxu0 0.0
  %11466 = vmatpush1.msra.mxu0 %v11298
  %11467 = vmatprep.subr.mxu0 0.0
  %11468 = vmatpush1.msra.mxu0 %v11300
  %11469 = vmatprep.subr.mxu0 0.0
  %11470 = vmatpush1.msra.mxu0 %v11302
  %11471 = vmatprep.subr.mxu0 0.0
  %11472 = vmatpush1.msra.mxu0 %v11304
  %11473 = vmatprep.subr.mxu0 0.0
  %11474 = vmatpush1.msra.mxu0 %v11306
  %11475 = vmatprep.subr.mxu0 0.0
  %11476 = vmatpush1.msra.mxu0 %v11308
  %11477 = vmatprep.subr.mxu0 0.0
  %11478 = vmatpush1.msra.mxu0 %v11310
  %11479 = vmatprep.subr.mxu0 0.0
  %11480 = vmatpush1.msra.mxu0 %v11312
  %11481 = vmatprep.subr.mxu0 0.0
  %11482 = vmatpush1.msra.mxu0 0.0
  %11483 = vmatprep.subr.mxu0 0.0
  %11484 = vmatpush1.msra.mxu0 0.0
  %11485 = vmatprep.subr.mxu0 0.0
  %11486 = vmatpush1.msra.mxu0 0.0
  %11487 = vmatprep.subr.mxu0 0.0
  %11488 = vmatpush1.msra.mxu0 0.0
  %11489 = vmatprep.mubr.f32.mxu0 %v11342
  %11490 = vmatmul.mubr.f32.gmra.mrb[0].mxu0 %v11201
  %v11491 = vpop.f32.mrb[0].mxu0
  %v11492 = vadd.f32 0.0, %v11491
  %v11493 = vpop.f32.mrb[0].mxu0
  %11494 = vmatprep.mubr.f32.mxu0 %v11345
  %11495 = vmatmul.mubr.f32.gmra.mrb[0].mxu0 %v11203
  %v11496 = vpop.f32.mrb[0].mxu0
  %v11497 = vadd.f32 0.0, %v11496
  %v11498 = vpop.f32.mrb[0].mxu0
  %11499 = vmatprep.mubr.f32.mxu0 %v11348
  %11500 = vmatmul.mubr.f32.gmra.mrb[0].mxu0 %v11205
  %v11501 = vpop.f32.mrb[0].mxu0
  %v11502 = vadd.f32 0.0, %v11501
  %v11503 = vpop.f32.mrb[0].mxu0
  %11504 = vmatprep.mubr.f32.mxu0 %v11351
  %11505 = vmatmul.mubr.f32.gmra.mrb[0].mxu0 %v11207
  %v11506 = vpop.f32.mrb[0].mxu0
  %v11507 = vadd.f32 0.0, %v11506
  %v11508 = vpop.f32.mrb[0].mxu0
  %11509 = vmatprep.mubr.f32.mxu0 %v11354
  %11510 = vmatmul.mubr.f32.gmra.mrb[0].mxu0 %v11209
  %v11511 = vpop.f32.mrb[0].mxu0
  %v11512 = vadd.f32 0.0, %v11511
  %v11513 = vpop.f32.mrb[0].mxu0
  %11514 = vmatprep.mubr.f32.mxu0 %v11357
  %11515 = vmatmul.mubr.f32.gmra.mrb[0].mxu0 %v11211
  %v11516 = vpop.f32.mrb[0].mxu0
  %v11517 = vadd.f32 0.0, %v11516
  %v11518 = vpop.f32.mrb[0].mxu0
  %11519 = vmatprep.mubr.f32.mxu0 %v11360
  %11520 = vmatmul.mubr.f32.gmra.mrb[0].mxu0 %v11213
  %v11521 = vpop.f32.mrb[0].mxu0
  %v11522 = vadd.f32 0.0, %v11521
  %v11523 = vpop.f32.mrb[0].mxu0
  %11524 = vmatprep.mubr.f32.mxu0 %v11363
  %11525 = vmatmul.mubr.f32.gmra.mrb[0].mxu0 %v11215
  %v11526 = vpop.f32.mrb[0].mxu0
  %v11527 = vadd.f32 0.0, %v11526
  %v11528 = vpop.f32.mrb[0].mxu0
  %11529 = vmatprep.mubr.f32.mxu0 %v11366
  %11530 = vmatmul.mubr.f32.gmra.mrb[0].mxu0 %v11217
  %v11531 = vpop.f32.mrb[0].mxu0
  %v11532 = vadd.f32 0.0, %v11531
  %v11533 = vpop.f32.mrb[0].mxu0
  %11534 = vmatprep.mubr.f32.mxu0 %v11369
  %11535 = vmatmul.mubr.f32.gmra.mrb[0].mxu0 %v11219
  %v11536 = vpop.f32.mrb[0].mxu0
  %v11537 = vadd.f32 0.0, %v11536
  %v11538 = vpop.f32.mrb[0].mxu0
  %11539 = vmatprep.mubr.f32.mxu0 %v11372
  %11540 = vmatmul.mubr.f32.gmra.mrb[0].mxu0 %v11221
  %v11541 = vpop.f32.mrb[0].mxu0
  %v11542 = vadd.f32 0.0, %v11541
  %v11543 = vpop.f32.mrb[0].mxu0
  %11544 = vmatprep.mubr.f32.mxu0 %v11375
  %11545 = vmatmul.mubr.f32.gmra.mrb[0].mxu0 %v11223
  %v11546 = vpop.f32.mrb[0].mxu0
  %v11547 = vadd.f32 0.0, %v11546
  %v11548 = vpop.f32.mrb[0].mxu0
  %11549 = vmatprep.mubr.f32.mxu0 %v11378
  %11550 = vmatmul.mubr.f32.gmra.mrb[0].mxu0 %v11225
  %v11551 = vpop.f32.mrb[0].mxu0
  %v11552 = vadd.f32 0.0, %v11551
  %v11553 = vpop.f32.mrb[0].mxu0
  %11554 = vmatprep.mubr.f32.mxu0 %v11381
  %11555 = vmatmul.mubr.f32.gmra.mrb[0].mxu0 %v11227
  %v11556 = vpop.f32.mrb[0].mxu0
  %v11557 = vadd.f32 0.0, %v11556
  %v11558 = vpop.f32.mrb[0].mxu0
  %11559 = vmatprep.mubr.f32.mxu0 %v11384
  %11560 = vmatmul.mubr.f32.gmra.mrb[0].mxu0 %v11229
  %v11561 = vpop.f32.mrb[0].mxu0
  %v11562 = vadd.f32 0.0, %v11561
  %v11563 = vpop.f32.mrb[0].mxu0
  %11564 = vmatprep.mubr.f32.mxu0 %v11387
  %11565 = vmatmul.mubr.f32.gmra.mrb[0].mxu0 %v11231
  %v11566 = vpop.f32.mrb[0].mxu0
  %v11567 = vadd.f32 0.0, %v11566
  %v11568 = vpop.f32.mrb[0].mxu0
  %11569 = vmatprep.mubr.f32.mxu0 %v11390
  %11570 = vmatmul.mubr.f32.gmra.mrb[0].mxu0 %v11233
  %v11571 = vpop.f32.mrb[0].mxu0
  %v11572 = vadd.f32 0.0, %v11571
  %v11573 = vpop.f32.mrb[0].mxu0
  %11574 = vmatprep.mubr.f32.mxu0 %v11393
  %11575 = vmatmul.mubr.f32.gmra.mrb[0].mxu0 %v11235
  %v11576 = vpop.f32.mrb[0].mxu0
  %v11577 = vadd.f32 0.0, %v11576
  %v11578 = vpop.f32.mrb[0].mxu0
  %11579 = vmatprep.mubr.f32.mxu0 %v11396
  %11580 = vmatmul.mubr.f32.gmra.mrb[0].mxu0 %v11237
  %v11581 = vpop.f32.mrb[0].mxu0
  %v11582 = vadd.f32 0.0, %v11581
  %v11583 = vpop.f32.mrb[0].mxu0
  %11584 = vmatprep.mubr.f32.mxu0 %v11399
  %11585 = vmatmul.mubr.f32.gmra.mrb[0].mxu0 %v11239
  %v11586 = vpop.f32.mrb[0].mxu0
  %v11587 = vadd.f32 0.0, %v11586
  %v11588 = vpop.f32.mrb[0].mxu0
  %11589 = vmatprep.mubr.f32.mxu0 %v11402
  %11590 = vmatmul.mubr.f32.gmra.mrb[0].mxu0 %v11241
  %v11591 = vpop.f32.mrb[0].mxu0
  %v11592 = vadd.f32 0.0, %v11591
  %v11593 = vpop.f32.mrb[0].mxu0
  %11594 = vmatprep.mubr.f32.mxu0 %v11405
  %11595 = vmatmul.mubr.f32.gmra.mrb[0].mxu0 %v11243
  %v11596 = vpop.f32.mrb[0].mxu0
  %v11597 = vadd.f32 0.0, %v11596
  %v11598 = vpop.f32.mrb[0].mxu0
  %11599 = vmatprep.mubr.f32.mxu0 %v11408
  %11600 = vmatmul.mubr.f32.gmra.mrb[0].mxu0 %v11245
  %v11601 = vpop.f32.mrb[0].mxu0
  %v11602 = vadd.f32 0.0, %v11601
  %v11603 = vpop.f32.mrb[0].mxu0
  %11604 = vmatprep.mubr.f32.mxu0 %v11411
  %11605 = vmatmul.mubr.f32.gmra.mrb[0].mxu0 %v11247
  %v11606 = vpop.f32.mrb[0].mxu0
  %v11607 = vadd.f32 0.0, %v11606
  %v11608 = vpop.f32.mrb[0].mxu0
  %11609 = vmatprep.mubr.f32.mxu0 %v11414
  %11610 = vmatmul.mubr.f32.gmra.mrb[0].mxu0 %v11249
  %v11611 = vpop.f32.mrb[0].mxu0
  %v11612 = vadd.f32 0.0, %v11611
  %v11613 = vpop.f32.mrb[0].mxu0
  %11614 = vmatprep.mubr.f32.mxu0 %v11417
  %11615 = vmatmul.mubr.f32.gmra.mrb[0].mxu0 %v11251
  %v11616 = vpop.f32.mrb[0].mxu0
  %v11617 = vadd.f32 0.0, %v11616
  %v11618 = vpop.f32.mrb[0].mxu0
  %11619 = vmatprep.mubr.f32.mxu0 %v11420
  %11620 = vmatmul.mubr.f32.gmra.mrb[0].mxu0 %v11253
  %v11621 = vpop.f32.mrb[0].mxu0
  %v11622 = vadd.f32 0.0, %v11621
  %v11623 = vpop.f32.mrb[0].mxu0
  %11624 = vmatprep.mubr.f32.mxu0 %v11423
  %11625 = vmatmul.mubr.f32.gmra.mrb[0].mxu0 %v11255
  %v11626 = vpop.f32.mrb[0].mxu0
  %v11627 = vadd.f32 0.0, %v11626
  %v11628 = vpop.f32.mrb[0].mxu0
  %11629 = vdwg.mxu0
  %v11630 = vadd.f32 %v11062, %v11492
  %v11631 = vadd.f32 %v11067, %v11497
  %v11632 = vadd.f32 %v11072, %v11502
  %v11633 = vadd.f32 %v11077, %v11507
  %v11634 = vadd.f32 %v11082, %v11512
  %v11635 = vadd.f32 %v11087, %v11517
  %v11636 = vadd.f32 %v11092, %v11522
  %v11637 = vadd.f32 %v11097, %v11527
  %v11638 = vadd.f32 %v11102, %v11532
  %v11639 = vadd.f32 %v11107, %v11537
  %v11640 = vadd.f32 %v11112, %v11542
  %v11641 = vadd.f32 %v11117, %v11547
  %v11642 = vadd.f32 %v11122, %v11552
  %v11643 = vadd.f32 %v11127, %v11557
  %v11644 = vadd.f32 %v11132, %v11562
  %v11645 = vadd.f32 %v11137, %v11567
  %v11646 = vadd.f32 %v11142, %v11572
  %v11647 = vadd.f32 %v11147, %v11577
  %v11648 = vadd.f32 %v11152, %v11582
  %v11649 = vadd.f32 %v11157, %v11587
  %v11650 = vadd.f32 %v11162, %v11592
  %v11651 = vadd.f32 %v11167, %v11597
  %v11652 = vadd.f32 %v11172, %v11602
  %v11653 = vadd.f32 %v11177, %v11607
  %v11654 = vadd.f32 %v11182, %v11612
  %v11655 = vadd.f32 %v11187, %v11617
  %v11656 = vadd.f32 %v11192, %v11622
  %v11657 = vadd.f32 %v11197, %v11627
  %v11658 = vld [vmem:[%s22] sm:$0xff]
  %v11659 = vld [vmem:[%s22 + $0x8] sm:$0xff]
  %v11660 = vld [vmem:[%s22 + $0x10] sm:$0xff]
  %v11661 = vld [vmem:[%s22 + $0x18] sm:$0xff]
  %v11662 = vld [vmem:[%s22 + $0x20] sm:$0xff]
  %v11663 = vld [vmem:[%s22 + $0x28] sm:$0xff]
  %v11664 = vld [vmem:[%s22 + $0x30] sm:$0xff]
  %v11665 = vld [vmem:[%s22 + $0x38] sm:$0xff]
  %v11666 = vld [vmem:[%s22 + $0x40] sm:$0xff]
  %v11667 = vld [vmem:[%s22 + $0x48] sm:$0xff]
  %v11668 = vld [vmem:[%s22 + $0x50] sm:$0xff]
  %v11669 = vld [vmem:[%s22 + $0x58] sm:$0xff]
  %v11670 = vld [vmem:[%s22 + $0x60] sm:$0xff]
  %v11671 = vld [vmem:[%s22 + $0x68] sm:$0xff]
  %v11672 = vld [vmem:[%s22 + $0x70] sm:$0xff]
  %v11673 = vld [vmem:[%s22 + $0x78] sm:$0xff]
  %v11674 = vld [vmem:[%s22 + $0x80] sm:$0xff]
  %v11675 = vld [vmem:[%s22 + $0x88] sm:$0xff]
  %v11676 = vld [vmem:[%s22 + $0x90] sm:$0xff]
  %v11677 = vld [vmem:[%s22 + $0x98] sm:$0xff]
  %v11678 = vld [vmem:[%s22 + $0xa0] sm:$0xff]
  %v11679 = vld [vmem:[%s22 + $0xa8] sm:$0xff]
  %v11680 = vld [vmem:[%s22 + $0xb0] sm:$0xff]
  %v11681 = vld [vmem:[%s22 + $0xb8] sm:$0xff]
  %v11682 = vld [vmem:[%s22 + $0xc0] sm:$0xff]
  %v11683 = vld [vmem:[%s22 + $0xc8] sm:$0xff]
  %v11684 = vld [vmem:[%s22 + $0xd0] sm:$0xff]
  %v11685 = vld [vmem:[%s22 + $0xd8] sm:$0xff]
  %11687 = vset.pattern.permute.xlu0 0
  %11688 = vperm.xlu0 %11687, %v11658
  %v11689 = vpop.permute.xlu0 %11688
  %11692 = vset.pattern.permute.xlu0 0
  %11693 = vperm.xlu0 %11692, %v11659
  %v11694 = vpop.permute.xlu0 %11693
  %11697 = vset.pattern.permute.xlu0 0
  %11698 = vperm.xlu0 %11697, %v11660
  %v11699 = vpop.permute.xlu0 %11698
  %11702 = vset.pattern.permute.xlu0 0
  %11703 = vperm.xlu0 %11702, %v11661
  %v11704 = vpop.permute.xlu0 %11703
  %11707 = vset.pattern.permute.xlu0 0
  %11708 = vperm.xlu0 %11707, %v11662
  %v11709 = vpop.permute.xlu0 %11708
  %11712 = vset.pattern.permute.xlu0 0
  %11713 = vperm.xlu0 %11712, %v11663
  %v11714 = vpop.permute.xlu0 %11713
  %11717 = vset.pattern.permute.xlu0 0
  %11718 = vperm.xlu0 %11717, %v11664
  %v11719 = vpop.permute.xlu0 %11718
  %11722 = vset.pattern.permute.xlu0 0
  %11723 = vperm.xlu0 %11722, %v11665
  %v11724 = vpop.permute.xlu0 %11723
  %11727 = vset.pattern.permute.xlu0 0
  %11728 = vperm.xlu0 %11727, %v11666
  %v11729 = vpop.permute.xlu0 %11728
  %11732 = vset.pattern.permute.xlu0 0
  %11733 = vperm.xlu0 %11732, %v11667
  %v11734 = vpop.permute.xlu0 %11733
  %11737 = vset.pattern.permute.xlu0 0
  %11738 = vperm.xlu0 %11737, %v11668
  %v11739 = vpop.permute.xlu0 %11738
  %11742 = vset.pattern.permute.xlu0 0
  %11743 = vperm.xlu0 %11742, %v11669
  %v11744 = vpop.permute.xlu0 %11743
  %11747 = vset.pattern.permute.xlu0 0
  %11748 = vperm.xlu0 %11747, %v11670
  %v11749 = vpop.permute.xlu0 %11748
  %11752 = vset.pattern.permute.xlu0 0
  %11753 = vperm.xlu0 %11752, %v11671
  %v11754 = vpop.permute.xlu0 %11753
  %11757 = vset.pattern.permute.xlu0 0
  %11758 = vperm.xlu0 %11757, %v11672
  %v11759 = vpop.permute.xlu0 %11758
  %11762 = vset.pattern.permute.xlu0 0
  %11763 = vperm.xlu0 %11762, %v11673
  %v11764 = vpop.permute.xlu0 %11763
  %11767 = vset.pattern.permute.xlu0 0
  %11768 = vperm.xlu0 %11767, %v11674
  %v11769 = vpop.permute.xlu0 %11768
  %11772 = vset.pattern.permute.xlu0 0
  %11773 = vperm.xlu0 %11772, %v11675
  %v11774 = vpop.permute.xlu0 %11773
  %11777 = vset.pattern.permute.xlu0 0
  %11778 = vperm.xlu0 %11777, %v11676
  %v11779 = vpop.permute.xlu0 %11778
  %11782 = vset.pattern.permute.xlu0 0
  %11783 = vperm.xlu0 %11782, %v11677
  %v11784 = vpop.permute.xlu0 %11783
  %11787 = vset.pattern.permute.xlu0 0
  %11788 = vperm.xlu0 %11787, %v11678
  %v11789 = vpop.permute.xlu0 %11788
  %11792 = vset.pattern.permute.xlu0 0
  %11793 = vperm.xlu0 %11792, %v11679
  %v11794 = vpop.permute.xlu0 %11793
  %11797 = vset.pattern.permute.xlu0 0
  %11798 = vperm.xlu0 %11797, %v11680
  %v11799 = vpop.permute.xlu0 %11798
  %11802 = vset.pattern.permute.xlu0 0
  %11803 = vperm.xlu0 %11802, %v11681
  %v11804 = vpop.permute.xlu0 %11803
  %11807 = vset.pattern.permute.xlu0 0
  %11808 = vperm.xlu0 %11807, %v11682
  %v11809 = vpop.permute.xlu0 %11808
  %11812 = vset.pattern.permute.xlu0 0
  %11813 = vperm.xlu0 %11812, %v11683
  %v11814 = vpop.permute.xlu0 %11813
  %11817 = vset.pattern.permute.xlu0 0
  %11818 = vperm.xlu0 %11817, %v11684
  %v11819 = vpop.permute.xlu0 %11818
  %11822 = vset.pattern.permute.xlu0 0
  %11823 = vperm.xlu0 %11822, %v11685
  %v11824 = vpop.permute.xlu0 %11823
  %v11826 = vadd.f32 %v11630, %v11689
  %v11827 = vadd.f32 %v11631, %v11694
  %v11828 = vadd.f32 %v11632, %v11699
  %v11829 = vadd.f32 %v11633, %v11704
  %v11830 = vadd.f32 %v11634, %v11709
  %v11831 = vadd.f32 %v11635, %v11714
  %v11832 = vadd.f32 %v11636, %v11719
  %v11833 = vadd.f32 %v11637, %v11724
  %v11834 = vadd.f32 %v11638, %v11729
  %v11835 = vadd.f32 %v11639, %v11734
  %v11836 = vadd.f32 %v11640, %v11739
  %v11837 = vadd.f32 %v11641, %v11744
  %v11838 = vadd.f32 %v11642, %v11749
  %v11839 = vadd.f32 %v11643, %v11754
  %v11840 = vadd.f32 %v11644, %v11759
  %v11841 = vadd.f32 %v11645, %v11764
  %v11842 = vadd.f32 %v11646, %v11769
  %v11843 = vadd.f32 %v11647, %v11774
  %v11844 = vadd.f32 %v11648, %v11779
  %v11845 = vadd.f32 %v11649, %v11784
  %v11846 = vadd.f32 %v11650, %v11789
  %v11847 = vadd.f32 %v11651, %v11794
  %v11848 = vadd.f32 %v11652, %v11799
  %v11849 = vadd.f32 %v11653, %v11804
  %v11850 = vadd.f32 %v11654, %v11809
  %v11851 = vadd.f32 %v11655, %v11814
  %v11852 = vadd.f32 %v11656, %v11819
  %v11853 = vadd.f32 %v11657, %v11824
  %v11854 = vtanh.pop %v11826
  %v11855 = vtanh.pop %v11827
  %v11856 = vtanh.pop %v11828
  %v11857 = vtanh.pop %v11829
  %v11858 = vtanh.pop %v11830
  %v11859 = vtanh.pop %v11831
  %v11860 = vtanh.pop %v11832
  %v11861 = vtanh.pop %v11833
  %v11862 = vtanh.pop %v11834
  %v11863 = vtanh.pop %v11835
  %v11864 = vtanh.pop %v11836
  %v11865 = vtanh.pop %v11837
  %v11866 = vtanh.pop %v11838
  %v11867 = vtanh.pop %v11839
  %v11868 = vtanh.pop %v11840
  %v11869 = vtanh.pop %v11841
  %v11870 = vtanh.pop %v11842
  %v11871 = vtanh.pop %v11843
  %v11872 = vtanh.pop %v11844
  %v11873 = vtanh.pop %v11845
  %v11874 = vtanh.pop %v11846
  %v11875 = vtanh.pop %v11847
  %v11876 = vtanh.pop %v11848
  %v11877 = vtanh.pop %v11849
  %v11878 = vtanh.pop %v11850
  %v11879 = vtanh.pop %v11851
  %v11880 = vtanh.pop %v11852
  %v11881 = vtanh.pop %v11853
  %11882 = vst.msk [vmem:[%s23] sm:$0xff] %vm8326, %v11854
  %11883 = vst.msk [vmem:[%s23 + $0x8] sm:$0xff] %vm8326, %v11855
  %11884 = vst.msk [vmem:[%s23 + $0x10] sm:$0xff] %vm8326, %v11856
  %11885 = vst.msk [vmem:[%s23 + $0x18] sm:$0xff] %vm8326, %v11857
  %11886 = vst.msk [vmem:[%s23 + $0x20] sm:$0xff] %vm8326, %v11858
  %11887 = vst.msk [vmem:[%s23 + $0x28] sm:$0xff] %vm8326, %v11859
  %11888 = vst.msk [vmem:[%s23 + $0x30] sm:$0xff] %vm8326, %v11860
  %11889 = vst.msk [vmem:[%s23 + $0x38] sm:$0xff] %vm8326, %v11861
  %11890 = vst.msk [vmem:[%s23 + $0x40] sm:$0xff] %vm8326, %v11862
  %11891 = vst.msk [vmem:[%s23 + $0x48] sm:$0xff] %vm8326, %v11863
  %11892 = vst.msk [vmem:[%s23 + $0x50] sm:$0xff] %vm8326, %v11864
  %11893 = vst.msk [vmem:[%s23 + $0x58] sm:$0xff] %vm8326, %v11865
  %11894 = vst.msk [vmem:[%s23 + $0x60] sm:$0xff] %vm8326, %v11866
  %11895 = vst.msk [vmem:[%s23 + $0x68] sm:$0xff] %vm8326, %v11867
  %11896 = vst.msk [vmem:[%s23 + $0x70] sm:$0xff] %vm8326, %v11868
  %11897 = vst.msk [vmem:[%s23 + $0x78] sm:$0xff] %vm8326, %v11869
  %11898 = vst.msk [vmem:[%s23 + $0x80] sm:$0xff] %vm8326, %v11870
  %11899 = vst.msk [vmem:[%s23 + $0x88] sm:$0xff] %vm8326, %v11871
  %11900 = vst.msk [vmem:[%s23 + $0x90] sm:$0xff] %vm8326, %v11872
  %11901 = vst.msk [vmem:[%s23 + $0x98] sm:$0xff] %vm8326, %v11873
  %11902 = vst.msk [vmem:[%s23 + $0xa0] sm:$0xff] %vm8326, %v11874
  %11903 = vst.msk [vmem:[%s23 + $0xa8] sm:$0xff] %vm8326, %v11875
  %11904 = vst.msk [vmem:[%s23 + $0xb0] sm:$0xff] %vm8326, %v11876
  %11905 = vst.msk [vmem:[%s23 + $0xb8] sm:$0xff] %vm8326, %v11877
  %11906 = vst.msk [vmem:[%s23 + $0xc0] sm:$0xff] %vm8326, %v11878
  %11907 = vst.msk [vmem:[%s23 + $0xc8] sm:$0xff] %vm8326, %v11879
  %11908 = vst.msk [vmem:[%s23 + $0xd0] sm:$0xff] %vm8326, %v11880
  %11909 = vst.msk [vmem:[%s23 + $0xd8] sm:$0xff] %vm8326, %v11881
  // Predicated region
  $region94: #{decoder_forward.1} parent=0 // pred_check
    _
  $region95: #{decoder_forward.1} parent=0 // pred_check_branch
    %11911 = sbr.rel (0) target = $region97
  $region96: #{decoder_forward.1} parent=0 // pred_region
    _
  $region97: #{decoder_forward.1} parent=0 // pred_fallthru
    _
  // Predicated region
  $region98: #{decoder_forward.1} parent=0 // pred_check
    _
  $region99: #{decoder_forward.1} parent=0 // pred_check_branch
    %11913 = sbr.rel (0) target = $region101
  $region100: #{decoder_forward.1} parent=0 // pred_region
    _
  $region101: #{decoder_forward.1} parent=0 // pred_fallthru
    _

</llo_original>
